<compile_context>
chip_gen: v6e
topology: v6e:2x2x1
jax: 0.10.0
libtpu: 0.0.40
codegen_flags: <defaults>
</compile_context>

<pallas_src>
import functools
import math

import jax
import jax.numpy as jnp
from jax.experimental import pallas as pl
from jax.experimental.pallas import tpu as pltpu

_VMEM = pltpu.MemorySpace.VMEM
_BN_EPS = 1e-5
_LANE = 128          # tn: lane-dense output tile (MXU column granule)
_MAX_TM = 256        # row tile: double-buffered blocks stay far below the scoped-VMEM limit,
                     # and M_pad/tm >= 2 on the big layers so megacore can split the M axis
_MAX_TK = 512        # single K tile for every conv in this net; grid-K kicks in above this


def _round_up(x, m):
    return ((x + m - 1) // m) * m


def _k_padding(k):
    """Padded K and K-tile so blocks satisfy the tiling rules and divide evenly."""
    k8 = _round_up(k, 8)
    if k8 <= _MAX_TK:
        return k8, k8
    return _round_up(k, _MAX_TK), _MAX_TK


def _m_padding(m):
    # Round to 16 so bf16 outputs respect the (16,128) sublane/lane packing.
    m16 = _round_up(m, 16)
    tm = min(_MAX_TM, m16)
    return _round_up(m16, tm), tm


# ---------------------------------------------------------------------------
# Pallas kernels
# ---------------------------------------------------------------------------
def _matmul_affine_kernel(x_ref, w_ref, s_ref, b_ref, o_ref, acc_ref, *, relu):
    # acc += x @ w over the K grid axis; epilogue (scale/bias/ReLU) in f32 on the last K step.
    @pl.when(pl.program_id(2) == 0)
    def _():
        acc_ref[...] = jnp.zeros_like(acc_ref)

    acc_ref[...] += jnp.dot(x_ref[...], w_ref[...], preferred_element_type=jnp.float32)

    @pl.when(pl.program_id(2) == pl.num_programs(2) - 1)
    def _():
        y = acc_ref[...] * s_ref[...] + b_ref[...]
        if relu:
            y = jnp.maximum(y, 0.0)
        o_ref[...] = y.astype(o_ref.dtype)


def _matmul_affine_res_kernel(x_ref, w_ref, s_ref, b_ref, r_ref, o_ref, acc_ref, *, relu):
    # Same as above plus fused residual add (BasicBlock tail: conv2+BN+residual+ReLU).
    @pl.when(pl.program_id(2) == 0)
    def _():
        acc_ref[...] = jnp.zeros_like(acc_ref)

    acc_ref[...] += jnp.dot(x_ref[...], w_ref[...], preferred_element_type=jnp.float32)

    @pl.when(pl.program_id(2) == pl.num_programs(2) - 1)
    def _():
        y = acc_ref[...] * s_ref[...] + b_ref[...] + r_ref[...].astype(jnp.float32)
        if relu:
            y = jnp.maximum(y, 0.0)
        o_ref[...] = y.astype(o_ref.dtype)


def _avgpool_fc_kernel(x_ref, w_ref, b_ref, o_ref):
    # x_ref: (N, H*W, C_pad) bf16 -> mean over H*W in f32 (C stays in lanes), then the
    # fc matmul + bias in the same kernel so the pooled vector never leaves VMEM.
    pooled = jnp.mean(x_ref[...].astype(jnp.float32), axis=1)            # (N, C_pad)
    y = jnp.dot(pooled.astype(jnp.bfloat16), w_ref[...],
                preferred_element_type=jnp.float32)
    o_ref[...] = (y + b_ref[...]).astype(o_ref.dtype)


# ---------------------------------------------------------------------------
# Pallas wrappers
# ---------------------------------------------------------------------------
def matmul_affine(x2d, w2d, scale, bias, residual2d=None, relu=False,
                  out_cols=None, out_dtype=jnp.float32):
    """y = relu?((x @ w) * scale + bias [+ residual]); w/scale/bias pre-padded to lane-dense N."""
    M, K = x2d.shape
    K_pad, N_pad = w2d.shape
    M_pad, tm = _m_padding(M)
    tk = K_pad if K_pad <= _MAX_TK else _MAX_TK
    tn = _LANE

    # bf16 MXU inputs (accumulation + epilogue stay f32); zero-pad M/K so tiles divide evenly.
    xp = jnp.pad(x2d.astype(jnp.bfloat16), ((0, M_pad - M), (0, K_pad - K)))

    args = [xp, w2d, scale, bias]
    in_specs = [
        pl.BlockSpec((tm, tk), lambda i, j, k: (i, k)),
        pl.BlockSpec((tk, tn), lambda i, j, k: (k, j)),
        pl.BlockSpec((1, tn), lambda i, j, k: (0, j)),
        pl.BlockSpec((1, tn), lambda i, j, k: (0, j)),
    ]
    res_bytes = 0
    if residual2d is None:
        kern = functools.partial(_matmul_affine_kernel, relu=relu)
    else:
        rp = jnp.pad(
            residual2d.astype(jnp.bfloat16),
            ((0, M_pad - M), (0, N_pad - residual2d.shape[1])),
        )
        args.append(rp)
        in_specs.append(pl.BlockSpec((tm, tn), lambda i, j, k: (i, j)))
        kern = functools.partial(_matmul_affine_res_kernel, relu=relu)
        res_bytes = M_pad * N_pad * 2

    grid = (M_pad // tm, N_pad // tn, K_pad // tk)
    out_itemsize = jnp.dtype(out_dtype).itemsize
    bytes_accessed = (
        M_pad * K_pad * 2 + K_pad * N_pad * 2 + M_pad * N_pad * out_itemsize + res_bytes
    )

    out = pl.pallas_call(
        kern,
        out_shape=jax.ShapeDtypeStruct((M_pad, N_pad), out_dtype),
        grid_spec=pltpu.PrefetchScalarGridSpec(
            num_scalar_prefetch=0,
            grid=grid,
            in_specs=in_specs,
            out_specs=pl.BlockSpec((tm, tn), lambda i, j, k: (i, j)),
            scratch_shapes=[pltpu.VMEM((tm, tn), jnp.float32)],
        ),
        compiler_params=pltpu.CompilerParams(
            dimension_semantics=("parallel", "parallel", "arbitrary"),
            vmem_limit_bytes=32 * 1024 * 1024,
        ),
        cost_estimate=pl.CostEstimate(
            flops=2 * M_pad * K_pad * N_pad,
            transcendentals=0,
            bytes_accessed=bytes_accessed,
        ),
    )(*args)

    if out_cols is None:
        out_cols = N_pad
    return out[:M, :out_cols]


def avgpool_fc(x_nhwc, fcp):
    """AdaptiveAvgPool2d((1,1)) + flatten + nn.Linear fused into one tiny Pallas kernel."""
    N, H, W, C = x_nhwc.shape
    k_pad, n_pad = fcp["w2d"].shape
    x = x_nhwc.reshape(N, H * W, C).astype(jnp.bfloat16)   # contiguous reshape, no transpose
    if k_pad != C:
        x = jnp.pad(x, ((0, 0), (0, 0), (0, k_pad - C)))
    out = pl.pallas_call(
        _avgpool_fc_kernel,
        out_shape=jax.ShapeDtypeStruct((N, n_pad), jnp.float32),
        in_specs=[
            pl.BlockSpec(memory_space=_VMEM),
            pl.BlockSpec(memory_space=_VMEM),
            pl.BlockSpec(memory_space=_VMEM),
        ],
        out_specs=pl.BlockSpec(memory_space=_VMEM),
    )(x, fcp["w2d"], fcp["bias"])
    return out[:, : fcp["cout"]]


# ---------------------------------------------------------------------------
# Conv glue: im2col patch extraction (plain JAX, bf16), matmul happens in the kernel.
# TODO(synk): im2col still materializes ~KH*KW x activation traffic in HBM; production path
# should DMA shifted NHWC windows via the index_map (tap grid axis) or in-kernel gather.
# ---------------------------------------------------------------------------
def _im2col(x, kh, kw, stride, pad):
    # x: NHWC (bf16)
    if pad:
        x = jnp.pad(x, ((0, 0), (pad, pad), (pad, pad), (0, 0)))
    N, Hp, Wp, C = x.shape
    Ho = (Hp - kh) // stride + 1
    Wo = (Wp - kw) // stride + 1
    cols = []
    for i in range(kh):
        for j in range(kw):
            cols.append(
                x[:, i : i + stride * (Ho - 1) + 1 : stride,
                     j : j + stride * (Wo - 1) + 1 : stride, :]
            )
    patches = jnp.concatenate(cols, axis=-1)          # (N, Ho, Wo, kh*kw*C)
    return patches.reshape(N * Ho * Wo, kh * kw * C), (N, Ho, Wo)


def conv_bn(x, cp, stride, pad, relu, residual=None):
    patches, (N, Ho, Wo) = _im2col(x, cp["kh"], cp["kw"], stride, pad)
    res2d = None
    if residual is not None:
        res2d = residual.reshape(N * Ho * Wo, cp["cout"])
    y = matmul_affine(patches, cp["w2d"], cp["scale"], cp["bias"],
                      residual2d=res2d, relu=relu, out_cols=cp["cout"],
                      out_dtype=jnp.bfloat16)
    return y.reshape(N, Ho, Wo, cp["cout"])


# ---------------------------------------------------------------------------
# Parameter initialization (deterministic, mirrors the PyTorch __init__) with
# build-time weight packing: transpose -> pad (K to tile, Cout to 128) -> bf16.
# ---------------------------------------------------------------------------
def _conv_w(key, cout, cin, kh, kw):
    # kaiming_normal_, mode='fan_out', nonlinearity='relu'
    std = math.sqrt(2.0 / (cout * kh * kw))
    return jax.random.normal(key, (cout, cin, kh, kw), jnp.float32) * std


def _bn_fold(c):
    # eval-mode BN folded to scale/bias: gamma=1, beta=0, running_mean=0, running_var=1
    # TODO(synk): training-mode BatchNorm (batch statistics) not implemented; eval-mode fold used.
    gamma = jnp.ones((c,), jnp.float32)
    beta = jnp.zeros((c,), jnp.float32)
    rmean = jnp.zeros((c,), jnp.float32)
    rvar = jnp.ones((c,), jnp.float32)
    scale = gamma / jnp.sqrt(rvar + _BN_EPS)
    bias = beta - rmean * scale
    return scale, bias


def _pack_conv(w, scale, bias):
    """Pre-transpose / pre-pad / pre-cast a conv + folded BN once, at build time."""
    cout, cin, kh, kw = w.shape
    k = kh * kw * cin
    k_pad, _ = _k_padding(k)
    n_pad = _round_up(cout, _LANE)
    w2d = jnp.transpose(w, (2, 3, 1, 0)).reshape(k, cout)   # matches im2col tap ordering
    w2d = jnp.pad(w2d, ((0, k_pad - k), (0, n_pad - cout))).astype(jnp.bfloat16)
    s = jnp.pad(scale, (0, n_pad - cout), constant_values=1.0).reshape(1, n_pad)
    b = jnp.pad(bias, (0, n_pad - cout)).reshape(1, n_pad)
    return {"w2d": w2d, "scale": s.astype(jnp.float32), "bias": b.astype(jnp.float32),
            "kh": kh, "kw": kw, "cin": cin, "cout": cout}


def build_params(key, num_block, base_width, num_classes, max_width):
    INIT = int(max_width / 8)
    ki = iter(jax.random.split(key, 128))

    params = {}
    params["conv1"] = _pack_conv(_conv_w(next(ki), INIT, 3, 3, 3), *_bn_fold(INIT))

    in_ch = INIT
    expansion = 1  # BasicBlock
    layers = []
    for out_ch, nb, stride0 in zip(
        [INIT, 2 * INIT, 4 * INIT, 8 * INIT], num_block, [1, 2, 2, 2]
    ):
        strides = [stride0] + [1] * (nb - 1)
        blocks = []
        for s in strides:
            width = int(out_ch * (base_width / 64.0))
            bp = {"stride": s}
            bp["conv1"] = _pack_conv(_conv_w(next(ki), width, in_ch, 3, 3), *_bn_fold(width))
            bp["conv2"] = _pack_conv(_conv_w(next(ki), out_ch * expansion, width, 3, 3),
                                     *_bn_fold(out_ch * expansion))
            if s != 1 or in_ch != out_ch * expansion:
                bp["sc"] = _pack_conv(_conv_w(next(ki), out_ch * expansion, in_ch, 1, 1),
                                      *_bn_fold(out_ch * expansion))
            blocks.append(bp)
            in_ch = out_ch * expansion
        layers.append(blocks)
    params["layers"] = layers

    # nn.Linear default init: U(-1/sqrt(fan_in), 1/sqrt(fan_in)) for weight and bias
    fan_in = 8 * INIT * expansion
    bound = 1.0 / math.sqrt(fan_in)
    fc_w = jax.random.uniform(next(ki), (num_classes, fan_in), jnp.float32, -bound, bound)
    fc_b = jax.random.uniform(next(ki), (num_classes,), jnp.float32, -bound, bound)
    k_pad, _ = _k_padding(fan_in)
    n_pad = _round_up(num_classes, _LANE)
    fc_w2d = jnp.pad(jnp.transpose(fc_w),
                     ((0, k_pad - fan_in), (0, n_pad - num_classes))).astype(jnp.bfloat16)
    params["fc"] = {
        "w2d": fc_w2d,
        "bias": jnp.pad(fc_b, (0, n_pad - num_classes)).reshape(1, n_pad).astype(jnp.float32),
        "cout": num_classes,
    }
    return params


# ---------------------------------------------------------------------------
# Forward pass
# ---------------------------------------------------------------------------
def basic_block_fwd(x, bp):
    # TODO(synk): fuse the whole BasicBlock (conv1 -> conv2 + shortcut) into a single
    # pallas_call keeping the intermediate activation in VMEM scratch; currently 2-3 calls.
    s = bp["stride"]
    out = conv_bn(x, bp["conv1"], stride=s, pad=1, relu=True)

    if "sc" in bp:
        shortcut = conv_bn(x, bp["sc"], stride=s, pad=0, relu=False)
    else:
        shortcut = x

    # conv2 + bn2 + residual add + ReLU fused in one Pallas kernel call
    out = conv_bn(out, bp["conv2"], stride=1, pad=1, relu=True, residual=shortcut)
    return out


def resnet_forward(params, x_nchw):
    # NCHW -> NHWC and bf16 once at the top; all inter-layer activations stay bf16.
    x = jnp.transpose(x_nchw, (0, 2, 3, 1)).astype(jnp.bfloat16)

    x = conv_bn(x, params["conv1"], stride=1, pad=1, relu=True)

    for blocks in params["layers"]:
        for bp in blocks:
            x = basic_block_fwd(x, bp)

    # AdaptiveAvgPool2d((1,1)) + flatten + fc in one fused kernel
    out = avgpool_fc(x, params["fc"])
    return out                                                   # (N, num_classes)


# ---------------------------------------------------------------------------
if __name__ == "__main__":
    key = jax.random.PRNGKey(0)
    pkey, xkey = jax.random.split(key)

    # Small, shape-consistent configuration:
    #   block = BasicBlock (expansion 1), num_block = [1,1,1,1], base_width = 64,
    #   max_width = 32 -> INIT = 4 (channels 4 -> 4 -> 8 -> 16 -> 32), num_classes = 8
    params = build_params(
        pkey, num_block=[1, 1, 1, 1], base_width=64, num_classes=8, max_width=32
    )

    x = jax.random.normal(xkey, (2, 3, 16, 16), jnp.float32)  # NCHW like PyTorch

    forward = jax.jit(functools.partial(resnet_forward, params))
    out = jax.block_until_ready(forward(x))
    assert out.shape == (2, 8), out.shape
    print("KERNEL_OK")
</pallas_src>

<mosaic_0001>
module attributes {stable_mosaic.version = 11 : i64} {
  func.func @_matmul_affine_kernel(%arg0: i32, %arg1: i32, %arg2: i32, %arg3: memref<256x32xbf16, #tpu.memory_space<vmem>>, %arg4: memref<32x128xbf16, #tpu.memory_space<vmem>>, %arg5: memref<1x128xf32, #tpu.memory_space<vmem>>, %arg6: memref<1x128xf32, #tpu.memory_space<vmem>>, %arg7: memref<256x128xbf16, #tpu.memory_space<vmem>>, %arg8: memref<256x128xf32, #tpu.memory_space<vmem>>) attributes {dimension_semantics = [#tpu.dimension_semantics<parallel>, #tpu.dimension_semantics<parallel>, #tpu.dimension_semantics<arbitrary>], iteration_bounds = array<i64: 2, 1, 1>, scalar_prefetch = 0 : i64, scratch_operands = 1 : i64, tpu.core_type = #tpu.core_type<tc>, window_params = [{transform_indices = @transform_0, window_bounds = array<i64: 256, 32>}, {transform_indices = @transform_1, window_bounds = array<i64: 32, 128>}, {transform_indices = @transform_2, window_bounds = array<i64: 1, 128>}, {transform_indices = @transform_3, window_bounds = array<i64: 1, 128>}, {transform_indices = @transform_4, window_bounds = array<i64: 256, 128>}]} {
    %c0_i32 = arith.constant 0 : i32
    %0 = arith.cmpi eq, %arg2, %c0_i32 : i32
    %1 = arith.extui %0 : i1 to i32
    %c0_i32_0 = arith.constant 0 : i32
    %2 = arith.cmpi ne, %1, %c0_i32_0 : i32
    scf.if %2 {
      %cst_10 = arith.constant 0.000000e+00 : f32
      %12 = vector.broadcast %cst_10 : f32 to vector<256x128xf32>
      %c0_11 = arith.constant 0 : index
      %c0_12 = arith.constant 0 : index
      %13 = vector.load %arg8[%c0_11, %c0_12] : memref<256x128xf32, #tpu.memory_space<vmem>>, vector<256x128xf32>
      tpu.vector_store %arg8[%c0_11, %c0_12], %12 {strides = array<i32>} : memref<256x128xf32, #tpu.memory_space<vmem>>, vector<256x128xf32>,
    } else {
    }
    %c0 = arith.constant 0 : index
    %c0_1 = arith.constant 0 : index
    %3 = vector.load %arg8[%c0, %c0_1] : memref<256x128xf32, #tpu.memory_space<vmem>>, vector<256x128xf32>
    %c0_2 = arith.constant 0 : index
    %c0_3 = arith.constant 0 : index
    %4 = vector.load %arg3[%c0_2, %c0_3] : memref<256x32xbf16, #tpu.memory_space<vmem>>, vector<256x32xbf16>
    %c0_4 = arith.constant 0 : index
    %c0_5 = arith.constant 0 : index
    %5 = vector.load %arg4[%c0_4, %c0_5] : memref<32x128xbf16, #tpu.memory_space<vmem>>, vector<32x128xbf16>
    %cst = arith.constant dense<0.000000e+00> : vector<256x128xf32>
    %6 = tpu.matmul %4, %5, %cst {dimension_numbers = #tpu.dot_dimension_numbers<[1], [0], [0], [1], [0, 0, 1, 1], [], []>} : vector<256x32xbf16>, vector<32x128xbf16>, vector<256x128xf32> -> vector<256x128xf32>
    %7 = arith.addf %3, %6 : vector<256x128xf32>
    %c0_6 = arith.constant 0 : index
    %c0_7 = arith.constant 0 : index
    %8 = vector.load %arg8[%c0_6, %c0_7] : memref<256x128xf32, #tpu.memory_space<vmem>>, vector<256x128xf32>
    tpu.vector_store %arg8[%c0_6, %c0_7], %7 {strides = array<i32>} : memref<256x128xf32, #tpu.memory_space<vmem>>, vector<256x128xf32>,
    %c0_i32_8 = arith.constant 0 : i32
    %9 = arith.cmpi eq, %arg2, %c0_i32_8 : i32
    %10 = arith.extui %9 : i1 to i32
    %c0_i32_9 = arith.constant 0 : i32
    %11 = arith.cmpi ne, %10, %c0_i32_9 : i32
    scf.if %11 {
      %c0_10 = arith.constant 0 : index
      %c0_11 = arith.constant 0 : index
      %12 = vector.load %arg8[%c0_10, %c0_11] : memref<256x128xf32, #tpu.memory_space<vmem>>, vector<256x128xf32>
      %c0_12 = arith.constant 0 : index
      %c0_13 = arith.constant 0 : index
      %13 = vector.load %arg5[%c0_12, %c0_13] : memref<1x128xf32, #tpu.memory_space<vmem>>, vector<1x128xf32>
      %14 = vector.broadcast %13 : vector<1x128xf32> to vector<256x128xf32>
      %15 = arith.mulf %12, %14 : vector<256x128xf32>
      %c0_14 = arith.constant 0 : index
      %c0_15 = arith.constant 0 : index
      %16 = vector.load %arg6[%c0_14, %c0_15] : memref<1x128xf32, #tpu.memory_space<vmem>>, vector<1x128xf32>
      %17 = vector.broadcast %16 : vector<1x128xf32> to vector<256x128xf32>
      %18 = arith.addf %15, %17 : vector<256x128xf32>
      %cst_16 = arith.constant 0.000000e+00 : f32
      %19 = vector.broadcast %cst_16 : f32 to vector<256x128xf32>
      %20 = arith.maximumf %18, %19 : vector<256x128xf32>
      %21 = arith.truncf %20 : vector<256x128xf32> to vector<256x128xbf16>
      %c0_17 = arith.constant 0 : index
      %c0_18 = arith.constant 0 : index
      %22 = vector.load %arg7[%c0_17, %c0_18] : memref<256x128xbf16, #tpu.memory_space<vmem>>, vector<256x128xbf16>
      tpu.vector_store %arg7[%c0_17, %c0_18], %21 {strides = array<i32>} : memref<256x128xbf16, #tpu.memory_space<vmem>>, vector<256x128xbf16>,
    } else {
    }
    return
  }
  func.func @transform_0(%arg0: i32, %arg1: i32, %arg2: i32) -> (i32, i32) {
    %c0_i32 = arith.constant 0 : i32
    return %arg0, %arg2 : i32, i32
  }
  func.func @transform_1(%arg0: i32, %arg1: i32, %arg2: i32) -> (i32, i32) {
    %c0_i32 = arith.constant 0 : i32
    return %arg2, %arg1 : i32, i32
  }
  func.func @transform_2(%arg0: i32, %arg1: i32, %arg2: i32) -> (i32, i32) {
    %c0_i32 = arith.constant 0 : i32
    %c0_i32_0 = arith.constant 0 : i32
    return %c0_i32, %arg1 : i32, i32
  }
  func.func @transform_3(%arg0: i32, %arg1: i32, %arg2: i32) -> (i32, i32) {
    %c0_i32 = arith.constant 0 : i32
    %c0_i32_0 = arith.constant 0 : i32
    return %c0_i32, %arg1 : i32, i32
  }
  func.func @transform_4(%arg0: i32, %arg1: i32, %arg2: i32) -> (i32, i32) {
    %c0_i32 = arith.constant 0 : i32
    return %arg0, %arg1 : i32, i32
  }
}

module attributes {stable_mosaic.version = 11 : i64} {
  func.func @_matmul_affine_kernel(%arg0: i32, %arg1: i32, %arg2: i32, %arg3: memref<256x40xbf16, #tpu.memory_space<vmem>>, %arg4: memref<40x128xbf16, #tpu.memory_space<vmem>>, %arg5: memref<1x128xf32, #tpu.memory_space<vmem>>, %arg6: memref<1x128xf32, #tpu.memory_space<vmem>>, %arg7: memref<256x128xbf16, #tpu.memory_space<vmem>>, %arg8: memref<256x128xf32, #tpu.memory_space<vmem>>) attributes {dimension_semantics = [#tpu.dimension_semantics<parallel>, #tpu.dimension_semantics<parallel>, #tpu.dimension_semantics<arbitrary>], iteration_bounds = array<i64: 2, 1, 1>, scalar_prefetch = 0 : i64, scratch_operands = 1 : i64, tpu.core_type = #tpu.core_type<tc>, window_params = [{transform_indices = @transform_0, window_bounds = array<i64: 256, 40>}, {transform_indices = @transform_1, window_bounds = array<i64: 40, 128>}, {transform_indices = @transform_2, window_bounds = array<i64: 1, 128>}, {transform_indices = @transform_3, window_bounds = array<i64: 1, 128>}, {transform_indices = @transform_4, window_bounds = array<i64: 256, 128>}]} {
    %c0_i32 = arith.constant 0 : i32
    %0 = arith.cmpi eq, %arg2, %c0_i32 : i32
    %1 = arith.extui %0 : i1 to i32
    %c0_i32_0 = arith.constant 0 : i32
    %2 = arith.cmpi ne, %1, %c0_i32_0 : i32
    scf.if %2 {
      %cst_10 = arith.constant 0.000000e+00 : f32
      %12 = vector.broadcast %cst_10 : f32 to vector<256x128xf32>
      %c0_11 = arith.constant 0 : index
      %c0_12 = arith.constant 0 : index
      %13 = vector.load %arg8[%c0_11, %c0_12] : memref<256x128xf32, #tpu.memory_space<vmem>>, vector<256x128xf32>
      tpu.vector_store %arg8[%c0_11, %c0_12], %12 {strides = array<i32>} : memref<256x128xf32, #tpu.memory_space<vmem>>, vector<256x128xf32>,
    } else {
    }
    %c0 = arith.constant 0 : index
    %c0_1 = arith.constant 0 : index
    %3 = vector.load %arg8[%c0, %c0_1] : memref<256x128xf32, #tpu.memory_space<vmem>>, vector<256x128xf32>
    %c0_2 = arith.constant 0 : index
    %c0_3 = arith.constant 0 : index
    %4 = vector.load %arg3[%c0_2, %c0_3] : memref<256x40xbf16, #tpu.memory_space<vmem>>, vector<256x40xbf16>
    %c0_4 = arith.constant 0 : index
    %c0_5 = arith.constant 0 : index
    %5 = vector.load %arg4[%c0_4, %c0_5] : memref<40x128xbf16, #tpu.memory_space<vmem>>, vector<40x128xbf16>
    %cst = arith.constant dense<0.000000e+00> : vector<256x128xf32>
    %6 = tpu.matmul %4, %5, %cst {dimension_numbers = #tpu.dot_dimension_numbers<[1], [0], [0], [1], [0, 0, 1, 1], [], []>} : vector<256x40xbf16>, vector<40x128xbf16>, vector<256x128xf32> -> vector<256x128xf32>
    %7 = arith.addf %3, %6 : vector<256x128xf32>
    %c0_6 = arith.constant 0 : index
    %c0_7 = arith.constant 0 : index
    %8 = vector.load %arg8[%c0_6, %c0_7] : memref<256x128xf32, #tpu.memory_space<vmem>>, vector<256x128xf32>
    tpu.vector_store %arg8[%c0_6, %c0_7], %7 {strides = array<i32>} : memref<256x128xf32, #tpu.memory_space<vmem>>, vector<256x128xf32>,
    %c0_i32_8 = arith.constant 0 : i32
    %9 = arith.cmpi eq, %arg2, %c0_i32_8 : i32
    %10 = arith.extui %9 : i1 to i32
    %c0_i32_9 = arith.constant 0 : i32
    %11 = arith.cmpi ne, %10, %c0_i32_9 : i32
    scf.if %11 {
      %c0_10 = arith.constant 0 : index
      %c0_11 = arith.constant 0 : index
      %12 = vector.load %arg8[%c0_10, %c0_11] : memref<256x128xf32, #tpu.memory_space<vmem>>, vector<256x128xf32>
      %c0_12 = arith.constant 0 : index
      %c0_13 = arith.constant 0 : index
      %13 = vector.load %arg5[%c0_12, %c0_13] : memref<1x128xf32, #tpu.memory_space<vmem>>, vector<1x128xf32>
      %14 = vector.broadcast %13 : vector<1x128xf32> to vector<256x128xf32>
      %15 = arith.mulf %12, %14 : vector<256x128xf32>
      %c0_14 = arith.constant 0 : index
      %c0_15 = arith.constant 0 : index
      %16 = vector.load %arg6[%c0_14, %c0_15] : memref<1x128xf32, #tpu.memory_space<vmem>>, vector<1x128xf32>
      %17 = vector.broadcast %16 : vector<1x128xf32> to vector<256x128xf32>
      %18 = arith.addf %15, %17 : vector<256x128xf32>
      %cst_16 = arith.constant 0.000000e+00 : f32
      %19 = vector.broadcast %cst_16 : f32 to vector<256x128xf32>
      %20 = arith.maximumf %18, %19 : vector<256x128xf32>
      %21 = arith.truncf %20 : vector<256x128xf32> to vector<256x128xbf16>
      %c0_17 = arith.constant 0 : index
      %c0_18 = arith.constant 0 : index
      %22 = vector.load %arg7[%c0_17, %c0_18] : memref<256x128xbf16, #tpu.memory_space<vmem>>, vector<256x128xbf16>
      tpu.vector_store %arg7[%c0_17, %c0_18], %21 {strides = array<i32>} : memref<256x128xbf16, #tpu.memory_space<vmem>>, vector<256x128xbf16>,
    } else {
    }
    return
  }
  func.func @transform_0(%arg0: i32, %arg1: i32, %arg2: i32) -> (i32, i32) {
    %c0_i32 = arith.constant 0 : i32
    return %arg0, %arg2 : i32, i32
  }
  func.func @transform_1(%arg0: i32, %arg1: i32, %arg2: i32) -> (i32, i32) {
    %c0_i32 = arith.constant 0 : i32
    return %arg2, %arg1 : i32, i32
  }
  func.func @transform_2(%arg0: i32, %arg1: i32, %arg2: i32) -> (i32, i32) {
    %c0_i32 = arith.constant 0 : i32
    %c0_i32_0 = arith.constant 0 : i32
    return %c0_i32, %arg1 : i32, i32
  }
  func.func @transform_3(%arg0: i32, %arg1: i32, %arg2: i32) -> (i32, i32) {
    %c0_i32 = arith.constant 0 : i32
    %c0_i32_0 = arith.constant 0 : i32
    return %c0_i32, %arg1 : i32, i32
  }
  func.func @transform_4(%arg0: i32, %arg1: i32, %arg2: i32) -> (i32, i32) {
    %c0_i32 = arith.constant 0 : i32
    return %arg0, %arg1 : i32, i32
  }
}

module attributes {stable_mosaic.version = 11 : i64} {
  func.func @_matmul_affine_res_kernel(%arg0: i32, %arg1: i32, %arg2: i32, %arg3: memref<256x40xbf16, #tpu.memory_space<vmem>>, %arg4: memref<40x128xbf16, #tpu.memory_space<vmem>>, %arg5: memref<1x128xf32, #tpu.memory_space<vmem>>, %arg6: memref<1x128xf32, #tpu.memory_space<vmem>>, %arg7: memref<256x128xbf16, #tpu.memory_space<vmem>>, %arg8: memref<256x128xbf16, #tpu.memory_space<vmem>>, %arg9: memref<256x128xf32, #tpu.memory_space<vmem>>) attributes {dimension_semantics = [#tpu.dimension_semantics<parallel>, #tpu.dimension_semantics<parallel>, #tpu.dimension_semantics<arbitrary>], iteration_bounds = array<i64: 2, 1, 1>, scalar_prefetch = 0 : i64, scratch_operands = 1 : i64, tpu.core_type = #tpu.core_type<tc>, window_params = [{transform_indices = @transform_0, window_bounds = array<i64: 256, 40>}, {transform_indices = @transform_1, window_bounds = array<i64: 40, 128>}, {transform_indices = @transform_2, window_bounds = array<i64: 1, 128>}, {transform_indices = @transform_3, window_bounds = array<i64: 1, 128>}, {transform_indices = @transform_4, window_bounds = array<i64: 256, 128>}, {transform_indices = @transform_5, window_bounds = array<i64: 256, 128>}]} {
    %c0_i32 = arith.constant 0 : i32
    %0 = arith.cmpi eq, %arg2, %c0_i32 : i32
    %1 = arith.extui %0 : i1 to i32
    %c0_i32_0 = arith.constant 0 : i32
    %2 = arith.cmpi ne, %1, %c0_i32_0 : i32
    scf.if %2 {
      %cst_10 = arith.constant 0.000000e+00 : f32
      %12 = vector.broadcast %cst_10 : f32 to vector<256x128xf32>
      %c0_11 = arith.constant 0 : index
      %c0_12 = arith.constant 0 : index
      %13 = vector.load %arg9[%c0_11, %c0_12] : memref<256x128xf32, #tpu.memory_space<vmem>>, vector<256x128xf32>
      tpu.vector_store %arg9[%c0_11, %c0_12], %12 {strides = array<i32>} : memref<256x128xf32, #tpu.memory_space<vmem>>, vector<256x128xf32>,
    } else {
    }
    %c0 = arith.constant 0 : index
    %c0_1 = arith.constant 0 : index
    %3 = vector.load %arg9[%c0, %c0_1] : memref<256x128xf32, #tpu.memory_space<vmem>>, vector<256x128xf32>
    %c0_2 = arith.constant 0 : index
    %c0_3 = arith.constant 0 : index
    %4 = vector.load %arg3[%c0_2, %c0_3] : memref<256x40xbf16, #tpu.memory_space<vmem>>, vector<256x40xbf16>
    %c0_4 = arith.constant 0 : index
    %c0_5 = arith.constant 0 : index
    %5 = vector.load %arg4[%c0_4, %c0_5] : memref<40x128xbf16, #tpu.memory_space<vmem>>, vector<40x128xbf16>
    %cst = arith.constant dense<0.000000e+00> : vector<256x128xf32>
    %6 = tpu.matmul %4, %5, %cst {dimension_numbers = #tpu.dot_dimension_numbers<[1], [0], [0], [1], [0, 0, 1, 1], [], []>} : vector<256x40xbf16>, vector<40x128xbf16>, vector<256x128xf32> -> vector<256x128xf32>
    %7 = arith.addf %3, %6 : vector<256x128xf32>
    %c0_6 = arith.constant 0 : index
    %c0_7 = arith.constant 0 : index
    %8 = vector.load %arg9[%c0_6, %c0_7] : memref<256x128xf32, #tpu.memory_space<vmem>>, vector<256x128xf32>
    tpu.vector_store %arg9[%c0_6, %c0_7], %7 {strides = array<i32>} : memref<256x128xf32, #tpu.memory_space<vmem>>, vector<256x128xf32>,
    %c0_i32_8 = arith.constant 0 : i32
    %9 = arith.cmpi eq, %arg2, %c0_i32_8 : i32
    %10 = arith.extui %9 : i1 to i32
    %c0_i32_9 = arith.constant 0 : i32
    %11 = arith.cmpi ne, %10, %c0_i32_9 : i32
    scf.if %11 {
      %c0_10 = arith.constant 0 : index
      %c0_11 = arith.constant 0 : index
      %12 = vector.load %arg9[%c0_10, %c0_11] : memref<256x128xf32, #tpu.memory_space<vmem>>, vector<256x128xf32>
      %c0_12 = arith.constant 0 : index
      %c0_13 = arith.constant 0 : index
      %13 = vector.load %arg5[%c0_12, %c0_13] : memref<1x128xf32, #tpu.memory_space<vmem>>, vector<1x128xf32>
      %14 = vector.broadcast %13 : vector<1x128xf32> to vector<256x128xf32>
      %15 = arith.mulf %12, %14 : vector<256x128xf32>
      %c0_14 = arith.constant 0 : index
      %c0_15 = arith.constant 0 : index
      %16 = vector.load %arg6[%c0_14, %c0_15] : memref<1x128xf32, #tpu.memory_space<vmem>>, vector<1x128xf32>
      %17 = vector.broadcast %16 : vector<1x128xf32> to vector<256x128xf32>
      %18 = arith.addf %15, %17 : vector<256x128xf32>
      %c0_16 = arith.constant 0 : index
      %c0_17 = arith.constant 0 : index
      %19 = vector.load %arg7[%c0_16, %c0_17] : memref<256x128xbf16, #tpu.memory_space<vmem>>, vector<256x128xbf16>
      %20 = arith.extf %19 : vector<256x128xbf16> to vector<256x128xf32>
      %21 = arith.addf %18, %20 : vector<256x128xf32>
      %cst_18 = arith.constant 0.000000e+00 : f32
      %22 = vector.broadcast %cst_18 : f32 to vector<256x128xf32>
      %23 = arith.maximumf %21, %22 : vector<256x128xf32>
      %24 = arith.truncf %23 : vector<256x128xf32> to vector<256x128xbf16>
      %c0_19 = arith.constant 0 : index
      %c0_20 = arith.constant 0 : index
      %25 = vector.load %arg8[%c0_19, %c0_20] : memref<256x128xbf16, #tpu.memory_space<vmem>>, vector<256x128xbf16>
      tpu.vector_store %arg8[%c0_19, %c0_20], %24 {strides = array<i32>} : memref<256x128xbf16, #tpu.memory_space<vmem>>, vector<256x128xbf16>,
    } else {
    }
    return
  }
  func.func @transform_0(%arg0: i32, %arg1: i32, %arg2: i32) -> (i32, i32) {
    %c0_i32 = arith.constant 0 : i32
    return %arg0, %arg2 : i32, i32
  }
  func.func @transform_1(%arg0: i32, %arg1: i32, %arg2: i32) -> (i32, i32) {
    %c0_i32 = arith.constant 0 : i32
    return %arg2, %arg1 : i32, i32
  }
  func.func @transform_2(%arg0: i32, %arg1: i32, %arg2: i32) -> (i32, i32) {
    %c0_i32 = arith.constant 0 : i32
    %c0_i32_0 = arith.constant 0 : i32
    return %c0_i32, %arg1 : i32, i32
  }
  func.func @transform_3(%arg0: i32, %arg1: i32, %arg2: i32) -> (i32, i32) {
    %c0_i32 = arith.constant 0 : i32
    %c0_i32_0 = arith.constant 0 : i32
    return %c0_i32, %arg1 : i32, i32
  }
  func.func @transform_4(%arg0: i32, %arg1: i32, %arg2: i32) -> (i32, i32) {
    %c0_i32 = arith.constant 0 : i32
    return %arg0, %arg1 : i32, i32
  }
  func.func @transform_5(%arg0: i32, %arg1: i32, %arg2: i32) -> (i32, i32) {
    %c0_i32 = arith.constant 0 : i32
    return %arg0, %arg1 : i32, i32
  }
}

module attributes {stable_mosaic.version = 11 : i64} {
  func.func @_matmul_affine_kernel(%arg0: i32, %arg1: i32, %arg2: i32, %arg3: memref<128x8xbf16, #tpu.memory_space<vmem>>, %arg4: memref<8x128xbf16, #tpu.memory_space<vmem>>, %arg5: memref<1x128xf32, #tpu.memory_space<vmem>>, %arg6: memref<1x128xf32, #tpu.memory_space<vmem>>, %arg7: memref<128x128xbf16, #tpu.memory_space<vmem>>, %arg8: memref<128x128xf32, #tpu.memory_space<vmem>>) attributes {dimension_semantics = [#tpu.dimension_semantics<parallel>, #tpu.dimension_semantics<parallel>, #tpu.dimension_semantics<arbitrary>], iteration_bounds = array<i64: 1, 1, 1>, scalar_prefetch = 0 : i64, scratch_operands = 1 : i64, tpu.core_type = #tpu.core_type<tc>, window_params = [{transform_indices = @transform_0, window_bounds = array<i64: 128, 8>}, {transform_indices = @transform_1, window_bounds = array<i64: 8, 128>}, {transform_indices = @transform_2, window_bounds = array<i64: 1, 128>}, {transform_indices = @transform_3, window_bounds = array<i64: 1, 128>}, {transform_indices = @transform_4, window_bounds = array<i64: 128, 128>}]} {
    %c0_i32 = arith.constant 0 : i32
    %0 = arith.cmpi eq, %arg2, %c0_i32 : i32
    %1 = arith.extui %0 : i1 to i32
    %c0_i32_0 = arith.constant 0 : i32
    %2 = arith.cmpi ne, %1, %c0_i32_0 : i32
    scf.if %2 {
      %cst_10 = arith.constant 0.000000e+00 : f32
      %12 = vector.broadcast %cst_10 : f32 to vector<128x128xf32>
      %c0_11 = arith.constant 0 : index
      %c0_12 = arith.constant 0 : index
      %13 = vector.load %arg8[%c0_11, %c0_12] : memref<128x128xf32, #tpu.memory_space<vmem>>, vector<128x128xf32>
      tpu.vector_store %arg8[%c0_11, %c0_12], %12 {strides = array<i32>} : memref<128x128xf32, #tpu.memory_space<vmem>>, vector<128x128xf32>,
    } else {
    }
    %c0 = arith.constant 0 : index
    %c0_1 = arith.constant 0 : index
    %3 = vector.load %arg8[%c0, %c0_1] : memref<128x128xf32, #tpu.memory_space<vmem>>, vector<128x128xf32>
    %c0_2 = arith.constant 0 : index
    %c0_3 = arith.constant 0 : index
    %4 = vector.load %arg3[%c0_2, %c0_3] : memref<128x8xbf16, #tpu.memory_space<vmem>>, vector<128x8xbf16>
    %c0_4 = arith.constant 0 : index
    %c0_5 = arith.constant 0 : index
    %5 = vector.load %arg4[%c0_4, %c0_5] : memref<8x128xbf16, #tpu.memory_space<vmem>>, vector<8x128xbf16>
    %cst = arith.constant dense<0.000000e+00> : vector<128x128xf32>
    %6 = tpu.matmul %4, %5, %cst {dimension_numbers = #tpu.dot_dimension_numbers<[1], [0], [0], [1], [0, 0, 1, 1], [], []>} : vector<128x8xbf16>, vector<8x128xbf16>, vector<128x128xf32> -> vector<128x128xf32>
    %7 = arith.addf %3, %6 : vector<128x128xf32>
    %c0_6 = arith.constant 0 : index
    %c0_7 = arith.constant 0 : index
    %8 = vector.load %arg8[%c0_6, %c0_7] : memref<128x128xf32, #tpu.memory_space<vmem>>, vector<128x128xf32>
    tpu.vector_store %arg8[%c0_6, %c0_7], %7 {strides = array<i32>} : memref<128x128xf32, #tpu.memory_space<vmem>>, vector<128x128xf32>,
    %c0_i32_8 = arith.constant 0 : i32
    %9 = arith.cmpi eq, %arg2, %c0_i32_8 : i32
    %10 = arith.extui %9 : i1 to i32
    %c0_i32_9 = arith.constant 0 : i32
    %11 = arith.cmpi ne, %10, %c0_i32_9 : i32
    scf.if %11 {
      %c0_10 = arith.constant 0 : index
      %c0_11 = arith.constant 0 : index
      %12 = vector.load %arg8[%c0_10, %c0_11] : memref<128x128xf32, #tpu.memory_space<vmem>>, vector<128x128xf32>
      %c0_12 = arith.constant 0 : index
      %c0_13 = arith.constant 0 : index
      %13 = vector.load %arg5[%c0_12, %c0_13] : memref<1x128xf32, #tpu.memory_space<vmem>>, vector<1x128xf32>
      %14 = vector.broadcast %13 : vector<1x128xf32> to vector<128x128xf32>
      %15 = arith.mulf %12, %14 : vector<128x128xf32>
      %c0_14 = arith.constant 0 : index
      %c0_15 = arith.constant 0 : index
      %16 = vector.load %arg6[%c0_14, %c0_15] : memref<1x128xf32, #tpu.memory_space<vmem>>, vector<1x128xf32>
      %17 = vector.broadcast %16 : vector<1x128xf32> to vector<128x128xf32>
      %18 = arith.addf %15, %17 : vector<128x128xf32>
      %19 = arith.truncf %18 : vector<128x128xf32> to vector<128x128xbf16>
      %c0_16 = arith.constant 0 : index
      %c0_17 = arith.constant 0 : index
      %20 = vector.load %arg7[%c0_16, %c0_17] : memref<128x128xbf16, #tpu.memory_space<vmem>>, vector<128x128xbf16>
      tpu.vector_store %arg7[%c0_16, %c0_17], %19 {strides = array<i32>} : memref<128x128xbf16, #tpu.memory_space<vmem>>, vector<128x128xbf16>,
    } else {
    }
    return
  }
  func.func @transform_0(%arg0: i32, %arg1: i32, %arg2: i32) -> (i32, i32) {
    %c0_i32 = arith.constant 0 : i32
    return %arg0, %arg2 : i32, i32
  }
  func.func @transform_1(%arg0: i32, %arg1: i32, %arg2: i32) -> (i32, i32) {
    %c0_i32 = arith.constant 0 : i32
    return %arg2, %arg1 : i32, i32
  }
  func.func @transform_2(%arg0: i32, %arg1: i32, %arg2: i32) -> (i32, i32) {
    %c0_i32 = arith.constant 0 : i32
    %c0_i32_0 = arith.constant 0 : i32
    return %c0_i32, %arg1 : i32, i32
  }
  func.func @transform_3(%arg0: i32, %arg1: i32, %arg2: i32) -> (i32, i32) {
    %c0_i32 = arith.constant 0 : i32
    %c0_i32_0 = arith.constant 0 : i32
    return %c0_i32, %arg1 : i32, i32
  }
  func.func @transform_4(%arg0: i32, %arg1: i32, %arg2: i32) -> (i32, i32) {
    %c0_i32 = arith.constant 0 : i32
    return %arg0, %arg1 : i32, i32
  }
}

module attributes {stable_mosaic.version = 11 : i64} {
  func.func @_matmul_affine_kernel(%arg0: i32, %arg1: i32, %arg2: i32, %arg3: memref<128x40xbf16, #tpu.memory_space<vmem>>, %arg4: memref<40x128xbf16, #tpu.memory_space<vmem>>, %arg5: memref<1x128xf32, #tpu.memory_space<vmem>>, %arg6: memref<1x128xf32, #tpu.memory_space<vmem>>, %arg7: memref<128x128xbf16, #tpu.memory_space<vmem>>, %arg8: memref<128x128xf32, #tpu.memory_space<vmem>>) attributes {dimension_semantics = [#tpu.dimension_semantics<parallel>, #tpu.dimension_semantics<parallel>, #tpu.dimension_semantics<arbitrary>], iteration_bounds = array<i64: 1, 1, 1>, scalar_prefetch = 0 : i64, scratch_operands = 1 : i64, tpu.core_type = #tpu.core_type<tc>, window_params = [{transform_indices = @transform_0, window_bounds = array<i64: 128, 40>}, {transform_indices = @transform_1, window_bounds = array<i64: 40, 128>}, {transform_indices = @transform_2, window_bounds = array<i64: 1, 128>}, {transform_indices = @transform_3, window_bounds = array<i64: 1, 128>}, {transform_indices = @transform_4, window_bounds = array<i64: 128, 128>}]} {
    %c0_i32 = arith.constant 0 : i32
    %0 = arith.cmpi eq, %arg2, %c0_i32 : i32
    %1 = arith.extui %0 : i1 to i32
    %c0_i32_0 = arith.constant 0 : i32
    %2 = arith.cmpi ne, %1, %c0_i32_0 : i32
    scf.if %2 {
      %cst_10 = arith.constant 0.000000e+00 : f32
      %12 = vector.broadcast %cst_10 : f32 to vector<128x128xf32>
      %c0_11 = arith.constant 0 : index
      %c0_12 = arith.constant 0 : index
      %13 = vector.load %arg8[%c0_11, %c0_12] : memref<128x128xf32, #tpu.memory_space<vmem>>, vector<128x128xf32>
      tpu.vector_store %arg8[%c0_11, %c0_12], %12 {strides = array<i32>} : memref<128x128xf32, #tpu.memory_space<vmem>>, vector<128x128xf32>,
    } else {
    }
    %c0 = arith.constant 0 : index
    %c0_1 = arith.constant 0 : index
    %3 = vector.load %arg8[%c0, %c0_1] : memref<128x128xf32, #tpu.memory_space<vmem>>, vector<128x128xf32>
    %c0_2 = arith.constant 0 : index
    %c0_3 = arith.constant 0 : index
    %4 = vector.load %arg3[%c0_2, %c0_3] : memref<128x40xbf16, #tpu.memory_space<vmem>>, vector<128x40xbf16>
    %c0_4 = arith.constant 0 : index
    %c0_5 = arith.constant 0 : index
    %5 = vector.load %arg4[%c0_4, %c0_5] : memref<40x128xbf16, #tpu.memory_space<vmem>>, vector<40x128xbf16>
    %cst = arith.constant dense<0.000000e+00> : vector<128x128xf32>
    %6 = tpu.matmul %4, %5, %cst {dimension_numbers = #tpu.dot_dimension_numbers<[1], [0], [0], [1], [0, 0, 1, 1], [], []>} : vector<128x40xbf16>, vector<40x128xbf16>, vector<128x128xf32> -> vector<128x128xf32>
    %7 = arith.addf %3, %6 : vector<128x128xf32>
    %c0_6 = arith.constant 0 : index
    %c0_7 = arith.constant 0 : index
    %8 = vector.load %arg8[%c0_6, %c0_7] : memref<128x128xf32, #tpu.memory_space<vmem>>, vector<128x128xf32>
    tpu.vector_store %arg8[%c0_6, %c0_7], %7 {strides = array<i32>} : memref<128x128xf32, #tpu.memory_space<vmem>>, vector<128x128xf32>,
    %c0_i32_8 = arith.constant 0 : i32
    %9 = arith.cmpi eq, %arg2, %c0_i32_8 : i32
    %10 = arith.extui %9 : i1 to i32
    %c0_i32_9 = arith.constant 0 : i32
    %11 = arith.cmpi ne, %10, %c0_i32_9 : i32
    scf.if %11 {
      %c0_10 = arith.constant 0 : index
      %c0_11 = arith.constant 0 : index
      %12 = vector.load %arg8[%c0_10, %c0_11] : memref<128x128xf32, #tpu.memory_space<vmem>>, vector<128x128xf32>
      %c0_12 = arith.constant 0 : index
      %c0_13 = arith.constant 0 : index
      %13 = vector.load %arg5[%c0_12, %c0_13] : memref<1x128xf32, #tpu.memory_space<vmem>>, vector<1x128xf32>
      %14 = vector.broadcast %13 : vector<1x128xf32> to vector<128x128xf32>
      %15 = arith.mulf %12, %14 : vector<128x128xf32>
      %c0_14 = arith.constant 0 : index
      %c0_15 = arith.constant 0 : index
      %16 = vector.load %arg6[%c0_14, %c0_15] : memref<1x128xf32, #tpu.memory_space<vmem>>, vector<1x128xf32>
      %17 = vector.broadcast %16 : vector<1x128xf32> to vector<128x128xf32>
      %18 = arith.addf %15, %17 : vector<128x128xf32>
      %cst_16 = arith.constant 0.000000e+00 : f32
      %19 = vector.broadcast %cst_16 : f32 to vector<128x128xf32>
      %20 = arith.maximumf %18, %19 : vector<128x128xf32>
      %21 = arith.truncf %20 : vector<128x128xf32> to vector<128x128xbf16>
      %c0_17 = arith.constant 0 : index
      %c0_18 = arith.constant 0 : index
      %22 = vector.load %arg7[%c0_17, %c0_18] : memref<128x128xbf16, #tpu.memory_space<vmem>>, vector<128x128xbf16>
      tpu.vector_store %arg7[%c0_17, %c0_18], %21 {strides = array<i32>} : memref<128x128xbf16, #tpu.memory_space<vmem>>, vector<128x128xbf16>,
    } else {
    }
    return
  }
  func.func @transform_0(%arg0: i32, %arg1: i32, %arg2: i32) -> (i32, i32) {
    %c0_i32 = arith.constant 0 : i32
    return %arg0, %arg2 : i32, i32
  }
  func.func @transform_1(%arg0: i32, %arg1: i32, %arg2: i32) -> (i32, i32) {
    %c0_i32 = arith.constant 0 : i32
    return %arg2, %arg1 : i32, i32
  }
  func.func @transform_2(%arg0: i32, %arg1: i32, %arg2: i32) -> (i32, i32) {
    %c0_i32 = arith.constant 0 : i32
    %c0_i32_0 = arith.constant 0 : i32
    return %c0_i32, %arg1 : i32, i32
  }
  func.func @transform_3(%arg0: i32, %arg1: i32, %arg2: i32) -> (i32, i32) {
    %c0_i32 = arith.constant 0 : i32
    %c0_i32_0 = arith.constant 0 : i32
    return %c0_i32, %arg1 : i32, i32
  }
  func.func @transform_4(%arg0: i32, %arg1: i32, %arg2: i32) -> (i32, i32) {
    %c0_i32 = arith.constant 0 : i32
    return %arg0, %arg1 : i32, i32
  }
}

module attributes {stable_mosaic.version = 11 : i64} {
  func.func @_matmul_affine_res_kernel(%arg0: i32, %arg1: i32, %arg2: i32, %arg3: memref<128x72xbf16, #tpu.memory_space<vmem>>, %arg4: memref<72x128xbf16, #tpu.memory_space<vmem>>, %arg5: memref<1x128xf32, #tpu.memory_space<vmem>>, %arg6: memref<1x128xf32, #tpu.memory_space<vmem>>, %arg7: memref<128x128xbf16, #tpu.memory_space<vmem>>, %arg8: memref<128x128xbf16, #tpu.memory_space<vmem>>, %arg9: memref<128x128xf32, #tpu.memory_space<vmem>>) attributes {dimension_semantics = [#tpu.dimension_semantics<parallel>, #tpu.dimension_semantics<parallel>, #tpu.dimension_semantics<arbitrary>], iteration_bounds = array<i64: 1, 1, 1>, scalar_prefetch = 0 : i64, scratch_operands = 1 : i64, tpu.core_type = #tpu.core_type<tc>, window_params = [{transform_indices = @transform_0, window_bounds = array<i64: 128, 72>}, {transform_indices = @transform_1, window_bounds = array<i64: 72, 128>}, {transform_indices = @transform_2, window_bounds = array<i64: 1, 128>}, {transform_indices = @transform_3, window_bounds = array<i64: 1, 128>}, {transform_indices = @transform_4, window_bounds = array<i64: 128, 128>}, {transform_indices = @transform_5, window_bounds = array<i64: 128, 128>}]} {
    %c0_i32 = arith.constant 0 : i32
    %0 = arith.cmpi eq, %arg2, %c0_i32 : i32
    %1 = arith.extui %0 : i1 to i32
    %c0_i32_0 = arith.constant 0 : i32
    %2 = arith.cmpi ne, %1, %c0_i32_0 : i32
    scf.if %2 {
      %cst_10 = arith.constant 0.000000e+00 : f32
      %12 = vector.broadcast %cst_10 : f32 to vector<128x128xf32>
      %c0_11 = arith.constant 0 : index
      %c0_12 = arith.constant 0 : index
      %13 = vector.load %arg9[%c0_11, %c0_12] : memref<128x128xf32, #tpu.memory_space<vmem>>, vector<128x128xf32>
      tpu.vector_store %arg9[%c0_11, %c0_12], %12 {strides = array<i32>} : memref<128x128xf32, #tpu.memory_space<vmem>>, vector<128x128xf32>,
    } else {
    }
    %c0 = arith.constant 0 : index
    %c0_1 = arith.constant 0 : index
    %3 = vector.load %arg9[%c0, %c0_1] : memref<128x128xf32, #tpu.memory_space<vmem>>, vector<128x128xf32>
    %c0_2 = arith.constant 0 : index
    %c0_3 = arith.constant 0 : index
    %4 = vector.load %arg3[%c0_2, %c0_3] : memref<128x72xbf16, #tpu.memory_space<vmem>>, vector<128x72xbf16>
    %c0_4 = arith.constant 0 : index
    %c0_5 = arith.constant 0 : index
    %5 = vector.load %arg4[%c0_4, %c0_5] : memref<72x128xbf16, #tpu.memory_space<vmem>>, vector<72x128xbf16>
    %cst = arith.constant dense<0.000000e+00> : vector<128x128xf32>
    %6 = tpu.matmul %4, %5, %cst {dimension_numbers = #tpu.dot_dimension_numbers<[1], [0], [0], [1], [0, 0, 1, 1], [], []>} : vector<128x72xbf16>, vector<72x128xbf16>, vector<128x128xf32> -> vector<128x128xf32>
    %7 = arith.addf %3, %6 : vector<128x128xf32>
    %c0_6 = arith.constant 0 : index
    %c0_7 = arith.constant 0 : index
    %8 = vector.load %arg9[%c0_6, %c0_7] : memref<128x128xf32, #tpu.memory_space<vmem>>, vector<128x128xf32>
    tpu.vector_store %arg9[%c0_6, %c0_7], %7 {strides = array<i32>} : memref<128x128xf32, #tpu.memory_space<vmem>>, vector<128x128xf32>,
    %c0_i32_8 = arith.constant 0 : i32
    %9 = arith.cmpi eq, %arg2, %c0_i32_8 : i32
    %10 = arith.extui %9 : i1 to i32
    %c0_i32_9 = arith.constant 0 : i32
    %11 = arith.cmpi ne, %10, %c0_i32_9 : i32
    scf.if %11 {
      %c0_10 = arith.constant 0 : index
      %c0_11 = arith.constant 0 : index
      %12 = vector.load %arg9[%c0_10, %c0_11] : memref<128x128xf32, #tpu.memory_space<vmem>>, vector<128x128xf32>
      %c0_12 = arith.constant 0 : index
      %c0_13 = arith.constant 0 : index
      %13 = vector.load %arg5[%c0_12, %c0_13] : memref<1x128xf32, #tpu.memory_space<vmem>>, vector<1x128xf32>
      %14 = vector.broadcast %13 : vector<1x128xf32> to vector<128x128xf32>
      %15 = arith.mulf %12, %14 : vector<128x128xf32>
      %c0_14 = arith.constant 0 : index
      %c0_15 = arith.constant 0 : index
      %16 = vector.load %arg6[%c0_14, %c0_15] : memref<1x128xf32, #tpu.memory_space<vmem>>, vector<1x128xf32>
      %17 = vector.broadcast %16 : vector<1x128xf32> to vector<128x128xf32>
      %18 = arith.addf %15, %17 : vector<128x128xf32>
      %c0_16 = arith.constant 0 : index
      %c0_17 = arith.constant 0 : index
      %19 = vector.load %arg7[%c0_16, %c0_17] : memref<128x128xbf16, #tpu.memory_space<vmem>>, vector<128x128xbf16>
      %20 = arith.extf %19 : vector<128x128xbf16> to vector<128x128xf32>
      %21 = arith.addf %18, %20 : vector<128x128xf32>
      %cst_18 = arith.constant 0.000000e+00 : f32
      %22 = vector.broadcast %cst_18 : f32 to vector<128x128xf32>
      %23 = arith.maximumf %21, %22 : vector<128x128xf32>
      %24 = arith.truncf %23 : vector<128x128xf32> to vector<128x128xbf16>
      %c0_19 = arith.constant 0 : index
      %c0_20 = arith.constant 0 : index
      %25 = vector.load %arg8[%c0_19, %c0_20] : memref<128x128xbf16, #tpu.memory_space<vmem>>, vector<128x128xbf16>
      tpu.vector_store %arg8[%c0_19, %c0_20], %24 {strides = array<i32>} : memref<128x128xbf16, #tpu.memory_space<vmem>>, vector<128x128xbf16>,
    } else {
    }
    return
  }
  func.func @transform_0(%arg0: i32, %arg1: i32, %arg2: i32) -> (i32, i32) {
    %c0_i32 = arith.constant 0 : i32
    return %arg0, %arg2 : i32, i32
  }
  func.func @transform_1(%arg0: i32, %arg1: i32, %arg2: i32) -> (i32, i32) {
    %c0_i32 = arith.constant 0 : i32
    return %arg2, %arg1 : i32, i32
  }
  func.func @transform_2(%arg0: i32, %arg1: i32, %arg2: i32) -> (i32, i32) {
    %c0_i32 = arith.constant 0 : i32
    %c0_i32_0 = arith.constant 0 : i32
    return %c0_i32, %arg1 : i32, i32
  }
  func.func @transform_3(%arg0: i32, %arg1: i32, %arg2: i32) -> (i32, i32) {
    %c0_i32 = arith.constant 0 : i32
    %c0_i32_0 = arith.constant 0 : i32
    return %c0_i32, %arg1 : i32, i32
  }
  func.func @transform_4(%arg0: i32, %arg1: i32, %arg2: i32) -> (i32, i32) {
    %c0_i32 = arith.constant 0 : i32
    return %arg0, %arg1 : i32, i32
  }
  func.func @transform_5(%arg0: i32, %arg1: i32, %arg2: i32) -> (i32, i32) {
    %c0_i32 = arith.constant 0 : i32
    return %arg0, %arg1 : i32, i32
  }
}

module attributes {stable_mosaic.version = 11 : i64} {
  func.func @_matmul_affine_kernel(%arg0: i32, %arg1: i32, %arg2: i32, %arg3: memref<32x8xbf16, #tpu.memory_space<vmem>>, %arg4: memref<8x128xbf16, #tpu.memory_space<vmem>>, %arg5: memref<1x128xf32, #tpu.memory_space<vmem>>, %arg6: memref<1x128xf32, #tpu.memory_space<vmem>>, %arg7: memref<32x128xbf16, #tpu.memory_space<vmem>>, %arg8: memref<32x128xf32, #tpu.memory_space<vmem>>) attributes {dimension_semantics = [#tpu.dimension_semantics<parallel>, #tpu.dimension_semantics<parallel>, #tpu.dimension_semantics<arbitrary>], iteration_bounds = array<i64: 1, 1, 1>, scalar_prefetch = 0 : i64, scratch_operands = 1 : i64, tpu.core_type = #tpu.core_type<tc>, window_params = [{transform_indices = @transform_0, window_bounds = array<i64: 32, 8>}, {transform_indices = @transform_1, window_bounds = array<i64: 8, 128>}, {transform_indices = @transform_2, window_bounds = array<i64: 1, 128>}, {transform_indices = @transform_3, window_bounds = array<i64: 1, 128>}, {transform_indices = @transform_4, window_bounds = array<i64: 32, 128>}]} {
    %c0_i32 = arith.constant 0 : i32
    %0 = arith.cmpi eq, %arg2, %c0_i32 : i32
    %1 = arith.extui %0 : i1 to i32
    %c0_i32_0 = arith.constant 0 : i32
    %2 = arith.cmpi ne, %1, %c0_i32_0 : i32
    scf.if %2 {
      %cst_10 = arith.constant 0.000000e+00 : f32
      %12 = vector.broadcast %cst_10 : f32 to vector<32x128xf32>
      %c0_11 = arith.constant 0 : index
      %c0_12 = arith.constant 0 : index
      %13 = vector.load %arg8[%c0_11, %c0_12] : memref<32x128xf32, #tpu.memory_space<vmem>>, vector<32x128xf32>
      tpu.vector_store %arg8[%c0_11, %c0_12], %12 {strides = array<i32>} : memref<32x128xf32, #tpu.memory_space<vmem>>, vector<32x128xf32>,
    } else {
    }
    %c0 = arith.constant 0 : index
    %c0_1 = arith.constant 0 : index
    %3 = vector.load %arg8[%c0, %c0_1] : memref<32x128xf32, #tpu.memory_space<vmem>>, vector<32x128xf32>
    %c0_2 = arith.constant 0 : index
    %c0_3 = arith.constant 0 : index
    %4 = vector.load %arg3[%c0_2, %c0_3] : memref<32x8xbf16, #tpu.memory_space<vmem>>, vector<32x8xbf16>
    %c0_4 = arith.constant 0 : index
    %c0_5 = arith.constant 0 : index
    %5 = vector.load %arg4[%c0_4, %c0_5] : memref<8x128xbf16, #tpu.memory_space<vmem>>, vector<8x128xbf16>
    %cst = arith.constant dense<0.000000e+00> : vector<32x128xf32>
    %6 = tpu.matmul %4, %5, %cst {dimension_numbers = #tpu.dot_dimension_numbers<[1], [0], [0], [1], [0, 0, 1, 1], [], []>} : vector<32x8xbf16>, vector<8x128xbf16>, vector<32x128xf32> -> vector<32x128xf32>
    %7 = arith.addf %3, %6 : vector<32x128xf32>
    %c0_6 = arith.constant 0 : index
    %c0_7 = arith.constant 0 : index
    %8 = vector.load %arg8[%c0_6, %c0_7] : memref<32x128xf32, #tpu.memory_space<vmem>>, vector<32x128xf32>
    tpu.vector_store %arg8[%c0_6, %c0_7], %7 {strides = array<i32>} : memref<32x128xf32, #tpu.memory_space<vmem>>, vector<32x128xf32>,
    %c0_i32_8 = arith.constant 0 : i32
    %9 = arith.cmpi eq, %arg2, %c0_i32_8 : i32
    %10 = arith.extui %9 : i1 to i32
    %c0_i32_9 = arith.constant 0 : i32
    %11 = arith.cmpi ne, %10, %c0_i32_9 : i32
    scf.if %11 {
      %c0_10 = arith.constant 0 : index
      %c0_11 = arith.constant 0 : index
      %12 = vector.load %arg8[%c0_10, %c0_11] : memref<32x128xf32, #tpu.memory_space<vmem>>, vector<32x128xf32>
      %c0_12 = arith.constant 0 : index
      %c0_13 = arith.constant 0 : index
      %13 = vector.load %arg5[%c0_12, %c0_13] : memref<1x128xf32, #tpu.memory_space<vmem>>, vector<1x128xf32>
      %14 = vector.broadcast %13 : vector<1x128xf32> to vector<32x128xf32>
      %15 = arith.mulf %12, %14 : vector<32x128xf32>
      %c0_14 = arith.constant 0 : index
      %c0_15 = arith.constant 0 : index
      %16 = vector.load %arg6[%c0_14, %c0_15] : memref<1x128xf32, #tpu.memory_space<vmem>>, vector<1x128xf32>
      %17 = vector.broadcast %16 : vector<1x128xf32> to vector<32x128xf32>
      %18 = arith.addf %15, %17 : vector<32x128xf32>
      %19 = arith.truncf %18 : vector<32x128xf32> to vector<32x128xbf16>
      %c0_16 = arith.constant 0 : index
      %c0_17 = arith.constant 0 : index
      %20 = vector.load %arg7[%c0_16, %c0_17] : memref<32x128xbf16, #tpu.memory_space<vmem>>, vector<32x128xbf16>
      tpu.vector_store %arg7[%c0_16, %c0_17], %19 {strides = array<i32>} : memref<32x128xbf16, #tpu.memory_space<vmem>>, vector<32x128xbf16>,
    } else {
    }
    return
  }
  func.func @transform_0(%arg0: i32, %arg1: i32, %arg2: i32) -> (i32, i32) {
    %c0_i32 = arith.constant 0 : i32
    return %arg0, %arg2 : i32, i32
  }
  func.func @transform_1(%arg0: i32, %arg1: i32, %arg2: i32) -> (i32, i32) {
    %c0_i32 = arith.constant 0 : i32
    return %arg2, %arg1 : i32, i32
  }
  func.func @transform_2(%arg0: i32, %arg1: i32, %arg2: i32) -> (i32, i32) {
    %c0_i32 = arith.constant 0 : i32
    %c0_i32_0 = arith.constant 0 : i32
    return %c0_i32, %arg1 : i32, i32
  }
  func.func @transform_3(%arg0: i32, %arg1: i32, %arg2: i32) -> (i32, i32) {
    %c0_i32 = arith.constant 0 : i32
    %c0_i32_0 = arith.constant 0 : i32
    return %c0_i32, %arg1 : i32, i32
  }
  func.func @transform_4(%arg0: i32, %arg1: i32, %arg2: i32) -> (i32, i32) {
    %c0_i32 = arith.constant 0 : i32
    return %arg0, %arg1 : i32, i32
  }
}

module attributes {stable_mosaic.version = 11 : i64} {
  func.func @_matmul_affine_kernel(%arg0: i32, %arg1: i32, %arg2: i32, %arg3: memref<32x72xbf16, #tpu.memory_space<vmem>>, %arg4: memref<72x128xbf16, #tpu.memory_space<vmem>>, %arg5: memref<1x128xf32, #tpu.memory_space<vmem>>, %arg6: memref<1x128xf32, #tpu.memory_space<vmem>>, %arg7: memref<32x128xbf16, #tpu.memory_space<vmem>>, %arg8: memref<32x128xf32, #tpu.memory_space<vmem>>) attributes {dimension_semantics = [#tpu.dimension_semantics<parallel>, #tpu.dimension_semantics<parallel>, #tpu.dimension_semantics<arbitrary>], iteration_bounds = array<i64: 1, 1, 1>, scalar_prefetch = 0 : i64, scratch_operands = 1 : i64, tpu.core_type = #tpu.core_type<tc>, window_params = [{transform_indices = @transform_0, window_bounds = array<i64: 32, 72>}, {transform_indices = @transform_1, window_bounds = array<i64: 72, 128>}, {transform_indices = @transform_2, window_bounds = array<i64: 1, 128>}, {transform_indices = @transform_3, window_bounds = array<i64: 1, 128>}, {transform_indices = @transform_4, window_bounds = array<i64: 32, 128>}]} {
    %c0_i32 = arith.constant 0 : i32
    %0 = arith.cmpi eq, %arg2, %c0_i32 : i32
    %1 = arith.extui %0 : i1 to i32
    %c0_i32_0 = arith.constant 0 : i32
    %2 = arith.cmpi ne, %1, %c0_i32_0 : i32
    scf.if %2 {
      %cst_10 = arith.constant 0.000000e+00 : f32
      %12 = vector.broadcast %cst_10 : f32 to vector<32x128xf32>
      %c0_11 = arith.constant 0 : index
      %c0_12 = arith.constant 0 : index
      %13 = vector.load %arg8[%c0_11, %c0_12] : memref<32x128xf32, #tpu.memory_space<vmem>>, vector<32x128xf32>
      tpu.vector_store %arg8[%c0_11, %c0_12], %12 {strides = array<i32>} : memref<32x128xf32, #tpu.memory_space<vmem>>, vector<32x128xf32>,
    } else {
    }
    %c0 = arith.constant 0 : index
    %c0_1 = arith.constant 0 : index
    %3 = vector.load %arg8[%c0, %c0_1] : memref<32x128xf32, #tpu.memory_space<vmem>>, vector<32x128xf32>
    %c0_2 = arith.constant 0 : index
    %c0_3 = arith.constant 0 : index
    %4 = vector.load %arg3[%c0_2, %c0_3] : memref<32x72xbf16, #tpu.memory_space<vmem>>, vector<32x72xbf16>
    %c0_4 = arith.constant 0 : index
    %c0_5 = arith.constant 0 : index
    %5 = vector.load %arg4[%c0_4, %c0_5] : memref<72x128xbf16, #tpu.memory_space<vmem>>, vector<72x128xbf16>
    %cst = arith.constant dense<0.000000e+00> : vector<32x128xf32>
    %6 = tpu.matmul %4, %5, %cst {dimension_numbers = #tpu.dot_dimension_numbers<[1], [0], [0], [1], [0, 0, 1, 1], [], []>} : vector<32x72xbf16>, vector<72x128xbf16>, vector<32x128xf32> -> vector<32x128xf32>
    %7 = arith.addf %3, %6 : vector<32x128xf32>
    %c0_6 = arith.constant 0 : index
    %c0_7 = arith.constant 0 : index
    %8 = vector.load %arg8[%c0_6, %c0_7] : memref<32x128xf32, #tpu.memory_space<vmem>>, vector<32x128xf32>
    tpu.vector_store %arg8[%c0_6, %c0_7], %7 {strides = array<i32>} : memref<32x128xf32, #tpu.memory_space<vmem>>, vector<32x128xf32>,
    %c0_i32_8 = arith.constant 0 : i32
    %9 = arith.cmpi eq, %arg2, %c0_i32_8 : i32
    %10 = arith.extui %9 : i1 to i32
    %c0_i32_9 = arith.constant 0 : i32
    %11 = arith.cmpi ne, %10, %c0_i32_9 : i32
    scf.if %11 {
      %c0_10 = arith.constant 0 : index
      %c0_11 = arith.constant 0 : index
      %12 = vector.load %arg8[%c0_10, %c0_11] : memref<32x128xf32, #tpu.memory_space<vmem>>, vector<32x128xf32>
      %c0_12 = arith.constant 0 : index
      %c0_13 = arith.constant 0 : index
      %13 = vector.load %arg5[%c0_12, %c0_13] : memref<1x128xf32, #tpu.memory_space<vmem>>, vector<1x128xf32>
      %14 = vector.broadcast %13 : vector<1x128xf32> to vector<32x128xf32>
      %15 = arith.mulf %12, %14 : vector<32x128xf32>
      %c0_14 = arith.constant 0 : index
      %c0_15 = arith.constant 0 : index
      %16 = vector.load %arg6[%c0_14, %c0_15] : memref<1x128xf32, #tpu.memory_space<vmem>>, vector<1x128xf32>
      %17 = vector.broadcast %16 : vector<1x128xf32> to vector<32x128xf32>
      %18 = arith.addf %15, %17 : vector<32x128xf32>
      %cst_16 = arith.constant 0.000000e+00 : f32
      %19 = vector.broadcast %cst_16 : f32 to vector<32x128xf32>
      %20 = arith.maximumf %18, %19 : vector<32x128xf32>
      %21 = arith.truncf %20 : vector<32x128xf32> to vector<32x128xbf16>
      %c0_17 = arith.constant 0 : index
      %c0_18 = arith.constant 0 : index
      %22 = vector.load %arg7[%c0_17, %c0_18] : memref<32x128xbf16, #tpu.memory_space<vmem>>, vector<32x128xbf16>
      tpu.vector_store %arg7[%c0_17, %c0_18], %21 {strides = array<i32>} : memref<32x128xbf16, #tpu.memory_space<vmem>>, vector<32x128xbf16>,
    } else {
    }
    return
  }
  func.func @transform_0(%arg0: i32, %arg1: i32, %arg2: i32) -> (i32, i32) {
    %c0_i32 = arith.constant 0 : i32
    return %arg0, %arg2 : i32, i32
  }
  func.func @transform_1(%arg0: i32, %arg1: i32, %arg2: i32) -> (i32, i32) {
    %c0_i32 = arith.constant 0 : i32
    return %arg2, %arg1 : i32, i32
  }
  func.func @transform_2(%arg0: i32, %arg1: i32, %arg2: i32) -> (i32, i32) {
    %c0_i32 = arith.constant 0 : i32
    %c0_i32_0 = arith.constant 0 : i32
    return %c0_i32, %arg1 : i32, i32
  }
  func.func @transform_3(%arg0: i32, %arg1: i32, %arg2: i32) -> (i32, i32) {
    %c0_i32 = arith.constant 0 : i32
    %c0_i32_0 = arith.constant 0 : i32
    return %c0_i32, %arg1 : i32, i32
  }
  func.func @transform_4(%arg0: i32, %arg1: i32, %arg2: i32) -> (i32, i32) {
    %c0_i32 = arith.constant 0 : i32
    return %arg0, %arg1 : i32, i32
  }
}

module attributes {stable_mosaic.version = 11 : i64} {
  func.func @_matmul_affine_kernel(%arg0: i32, %arg1: i32, %arg2: i32, %arg3: memref<16x16xbf16, #tpu.memory_space<vmem>>, %arg4: memref<16x128xbf16, #tpu.memory_space<vmem>>, %arg5: memref<1x128xf32, #tpu.memory_space<vmem>>, %arg6: memref<1x128xf32, #tpu.memory_space<vmem>>, %arg7: memref<16x128xbf16, #tpu.memory_space<vmem>>, %arg8: memref<16x128xf32, #tpu.memory_space<vmem>>) attributes {dimension_semantics = [#tpu.dimension_semantics<parallel>, #tpu.dimension_semantics<parallel>, #tpu.dimension_semantics<arbitrary>], iteration_bounds = array<i64: 1, 1, 1>, scalar_prefetch = 0 : i64, scratch_operands = 1 : i64, tpu.core_type = #tpu.core_type<tc>, window_params = [{transform_indices = @transform_0, window_bounds = array<i64: 16, 16>}, {transform_indices = @transform_1, window_bounds = array<i64: 16, 128>}, {transform_indices = @transform_2, window_bounds = array<i64: 1, 128>}, {transform_indices = @transform_3, window_bounds = array<i64: 1, 128>}, {transform_indices = @transform_4, window_bounds = array<i64: 16, 128>}]} {
    %c0_i32 = arith.constant 0 : i32
    %0 = arith.cmpi eq, %arg2, %c0_i32 : i32
    %1 = arith.extui %0 : i1 to i32
    %c0_i32_0 = arith.constant 0 : i32
    %2 = arith.cmpi ne, %1, %c0_i32_0 : i32
    scf.if %2 {
      %cst_10 = arith.constant 0.000000e+00 : f32
      %12 = vector.broadcast %cst_10 : f32 to vector<16x128xf32>
      %c0_11 = arith.constant 0 : index
      %c0_12 = arith.constant 0 : index
      %13 = vector.load %arg8[%c0_11, %c0_12] : memref<16x128xf32, #tpu.memory_space<vmem>>, vector<16x128xf32>
      tpu.vector_store %arg8[%c0_11, %c0_12], %12 {strides = array<i32>} : memref<16x128xf32, #tpu.memory_space<vmem>>, vector<16x128xf32>,
    } else {
    }
    %c0 = arith.constant 0 : index
    %c0_1 = arith.constant 0 : index
    %3 = vector.load %arg8[%c0, %c0_1] : memref<16x128xf32, #tpu.memory_space<vmem>>, vector<16x128xf32>
    %c0_2 = arith.constant 0 : index
    %c0_3 = arith.constant 0 : index
    %4 = vector.load %arg3[%c0_2, %c0_3] : memref<16x16xbf16, #tpu.memory_space<vmem>>, vector<16x16xbf16>
    %c0_4 = arith.constant 0 : index
    %c0_5 = arith.constant 0 : index
    %5 = vector.load %arg4[%c0_4, %c0_5] : memref<16x128xbf16, #tpu.memory_space<vmem>>, vector<16x128xbf16>
    %cst = arith.constant dense<0.000000e+00> : vector<16x128xf32>
    %6 = tpu.matmul %4, %5, %cst {dimension_numbers = #tpu.dot_dimension_numbers<[1], [0], [0], [1], [0, 0, 1, 1], [], []>} : vector<16x16xbf16>, vector<16x128xbf16>, vector<16x128xf32> -> vector<16x128xf32>
    %7 = arith.addf %3, %6 : vector<16x128xf32>
    %c0_6 = arith.constant 0 : index
    %c0_7 = arith.constant 0 : index
    %8 = vector.load %arg8[%c0_6, %c0_7] : memref<16x128xf32, #tpu.memory_space<vmem>>, vector<16x128xf32>
    tpu.vector_store %arg8[%c0_6, %c0_7], %7 {strides = array<i32>} : memref<16x128xf32, #tpu.memory_space<vmem>>, vector<16x128xf32>,
    %c0_i32_8 = arith.constant 0 : i32
    %9 = arith.cmpi eq, %arg2, %c0_i32_8 : i32
    %10 = arith.extui %9 : i1 to i32
    %c0_i32_9 = arith.constant 0 : i32
    %11 = arith.cmpi ne, %10, %c0_i32_9 : i32
    scf.if %11 {
      %c0_10 = arith.constant 0 : index
      %c0_11 = arith.constant 0 : index
      %12 = vector.load %arg8[%c0_10, %c0_11] : memref<16x128xf32, #tpu.memory_space<vmem>>, vector<16x128xf32>
      %c0_12 = arith.constant 0 : index
      %c0_13 = arith.constant 0 : index
      %13 = vector.load %arg5[%c0_12, %c0_13] : memref<1x128xf32, #tpu.memory_space<vmem>>, vector<1x128xf32>
      %14 = vector.broadcast %13 : vector<1x128xf32> to vector<16x128xf32>
      %15 = arith.mulf %12, %14 : vector<16x128xf32>
      %c0_14 = arith.constant 0 : index
      %c0_15 = arith.constant 0 : index
      %16 = vector.load %arg6[%c0_14, %c0_15] : memref<1x128xf32, #tpu.memory_space<vmem>>, vector<1x128xf32>
      %17 = vector.broadcast %16 : vector<1x128xf32> to vector<16x128xf32>
      %18 = arith.addf %15, %17 : vector<16x128xf32>
      %19 = arith.truncf %18 : vector<16x128xf32> to vector<16x128xbf16>
      %c0_16 = arith.constant 0 : index
      %c0_17 = arith.constant 0 : index
      %20 = vector.load %arg7[%c0_16, %c0_17] : memref<16x128xbf16, #tpu.memory_space<vmem>>, vector<16x128xbf16>
      tpu.vector_store %arg7[%c0_16, %c0_17], %19 {strides = array<i32>} : memref<16x128xbf16, #tpu.memory_space<vmem>>, vector<16x128xbf16>,
    } else {
    }
    return
  }
  func.func @transform_0(%arg0: i32, %arg1: i32, %arg2: i32) -> (i32, i32) {
    %c0_i32 = arith.constant 0 : i32
    return %arg0, %arg2 : i32, i32
  }
  func.func @transform_1(%arg0: i32, %arg1: i32, %arg2: i32) -> (i32, i32) {
    %c0_i32 = arith.constant 0 : i32
    return %arg2, %arg1 : i32, i32
  }
  func.func @transform_2(%arg0: i32, %arg1: i32, %arg2: i32) -> (i32, i32) {
    %c0_i32 = arith.constant 0 : i32
    %c0_i32_0 = arith.constant 0 : i32
    return %c0_i32, %arg1 : i32, i32
  }
  func.func @transform_3(%arg0: i32, %arg1: i32, %arg2: i32) -> (i32, i32) {
    %c0_i32 = arith.constant 0 : i32
    %c0_i32_0 = arith.constant 0 : i32
    return %c0_i32, %arg1 : i32, i32
  }
  func.func @transform_4(%arg0: i32, %arg1: i32, %arg2: i32) -> (i32, i32) {
    %c0_i32 = arith.constant 0 : i32
    return %arg0, %arg1 : i32, i32
  }
}

module attributes {stable_mosaic.version = 11 : i64} {
  func.func @_matmul_affine_res_kernel(%arg0: i32, %arg1: i32, %arg2: i32, %arg3: memref<32x144xbf16, #tpu.memory_space<vmem>>, %arg4: memref<144x128xbf16, #tpu.memory_space<vmem>>, %arg5: memref<1x128xf32, #tpu.memory_space<vmem>>, %arg6: memref<1x128xf32, #tpu.memory_space<vmem>>, %arg7: memref<32x128xbf16, #tpu.memory_space<vmem>>, %arg8: memref<32x128xbf16, #tpu.memory_space<vmem>>, %arg9: memref<32x128xf32, #tpu.memory_space<vmem>>) attributes {dimension_semantics = [#tpu.dimension_semantics<parallel>, #tpu.dimension_semantics<parallel>, #tpu.dimension_semantics<arbitrary>], iteration_bounds = array<i64: 1, 1, 1>, scalar_prefetch = 0 : i64, scratch_operands = 1 : i64, tpu.core_type = #tpu.core_type<tc>, window_params = [{transform_indices = @transform_0, window_bounds = array<i64: 32, 144>}, {transform_indices = @transform_1, window_bounds = array<i64: 144, 128>}, {transform_indices = @transform_2, window_bounds = array<i64: 1, 128>}, {transform_indices = @transform_3, window_bounds = array<i64: 1, 128>}, {transform_indices = @transform_4, window_bounds = array<i64: 32, 128>}, {transform_indices = @transform_5, window_bounds = array<i64: 32, 128>}]} {
    %c0_i32 = arith.constant 0 : i32
    %0 = arith.cmpi eq, %arg2, %c0_i32 : i32
    %1 = arith.extui %0 : i1 to i32
    %c0_i32_0 = arith.constant 0 : i32
    %2 = arith.cmpi ne, %1, %c0_i32_0 : i32
    scf.if %2 {
      %cst_10 = arith.constant 0.000000e+00 : f32
      %12 = vector.broadcast %cst_10 : f32 to vector<32x128xf32>
      %c0_11 = arith.constant 0 : index
      %c0_12 = arith.constant 0 : index
      %13 = vector.load %arg9[%c0_11, %c0_12] : memref<32x128xf32, #tpu.memory_space<vmem>>, vector<32x128xf32>
      tpu.vector_store %arg9[%c0_11, %c0_12], %12 {strides = array<i32>} : memref<32x128xf32, #tpu.memory_space<vmem>>, vector<32x128xf32>,
    } else {
    }
    %c0 = arith.constant 0 : index
    %c0_1 = arith.constant 0 : index
    %3 = vector.load %arg9[%c0, %c0_1] : memref<32x128xf32, #tpu.memory_space<vmem>>, vector<32x128xf32>
    %c0_2 = arith.constant 0 : index
    %c0_3 = arith.constant 0 : index
    %4 = vector.load %arg3[%c0_2, %c0_3] : memref<32x144xbf16, #tpu.memory_space<vmem>>, vector<32x144xbf16>
    %c0_4 = arith.constant 0 : index
    %c0_5 = arith.constant 0 : index
    %5 = vector.load %arg4[%c0_4, %c0_5] : memref<144x128xbf16, #tpu.memory_space<vmem>>, vector<144x128xbf16>
    %cst = arith.constant dense<0.000000e+00> : vector<32x128xf32>
    %6 = tpu.matmul %4, %5, %cst {dimension_numbers = #tpu.dot_dimension_numbers<[1], [0], [0], [1], [0, 0, 1, 1], [], []>} : vector<32x144xbf16>, vector<144x128xbf16>, vector<32x128xf32> -> vector<32x128xf32>
    %7 = arith.addf %3, %6 : vector<32x128xf32>
    %c0_6 = arith.constant 0 : index
    %c0_7 = arith.constant 0 : index
    %8 = vector.load %arg9[%c0_6, %c0_7] : memref<32x128xf32, #tpu.memory_space<vmem>>, vector<32x128xf32>
    tpu.vector_store %arg9[%c0_6, %c0_7], %7 {strides = array<i32>} : memref<32x128xf32, #tpu.memory_space<vmem>>, vector<32x128xf32>,
    %c0_i32_8 = arith.constant 0 : i32
    %9 = arith.cmpi eq, %arg2, %c0_i32_8 : i32
    %10 = arith.extui %9 : i1 to i32
    %c0_i32_9 = arith.constant 0 : i32
    %11 = arith.cmpi ne, %10, %c0_i32_9 : i32
    scf.if %11 {
      %c0_10 = arith.constant 0 : index
      %c0_11 = arith.constant 0 : index
      %12 = vector.load %arg9[%c0_10, %c0_11] : memref<32x128xf32, #tpu.memory_space<vmem>>, vector<32x128xf32>
      %c0_12 = arith.constant 0 : index
      %c0_13 = arith.constant 0 : index
      %13 = vector.load %arg5[%c0_12, %c0_13] : memref<1x128xf32, #tpu.memory_space<vmem>>, vector<1x128xf32>
      %14 = vector.broadcast %13 : vector<1x128xf32> to vector<32x128xf32>
      %15 = arith.mulf %12, %14 : vector<32x128xf32>
      %c0_14 = arith.constant 0 : index
      %c0_15 = arith.constant 0 : index
      %16 = vector.load %arg6[%c0_14, %c0_15] : memref<1x128xf32, #tpu.memory_space<vmem>>, vector<1x128xf32>
      %17 = vector.broadcast %16 : vector<1x128xf32> to vector<32x128xf32>
      %18 = arith.addf %15, %17 : vector<32x128xf32>
      %c0_16 = arith.constant 0 : index
      %c0_17 = arith.constant 0 : index
      %19 = vector.load %arg7[%c0_16, %c0_17] : memref<32x128xbf16, #tpu.memory_space<vmem>>, vector<32x128xbf16>
      %20 = arith.extf %19 : vector<32x128xbf16> to vector<32x128xf32>
      %21 = arith.addf %18, %20 : vector<32x128xf32>
      %cst_18 = arith.constant 0.000000e+00 : f32
      %22 = vector.broadcast %cst_18 : f32 to vector<32x128xf32>
      %23 = arith.maximumf %21, %22 : vector<32x128xf32>
      %24 = arith.truncf %23 : vector<32x128xf32> to vector<32x128xbf16>
      %c0_19 = arith.constant 0 : index
      %c0_20 = arith.constant 0 : index
      %25 = vector.load %arg8[%c0_19, %c0_20] : memref<32x128xbf16, #tpu.memory_space<vmem>>, vector<32x128xbf16>
      tpu.vector_store %arg8[%c0_19, %c0_20], %24 {strides = array<i32>} : memref<32x128xbf16, #tpu.memory_space<vmem>>, vector<32x128xbf16>,
    } else {
    }
    return
  }
  func.func @transform_0(%arg0: i32, %arg1: i32, %arg2: i32) -> (i32, i32) {
    %c0_i32 = arith.constant 0 : i32
    return %arg0, %arg2 : i32, i32
  }
  func.func @transform_1(%arg0: i32, %arg1: i32, %arg2: i32) -> (i32, i32) {
    %c0_i32 = arith.constant 0 : i32
    return %arg2, %arg1 : i32, i32
  }
  func.func @transform_2(%arg0: i32, %arg1: i32, %arg2: i32) -> (i32, i32) {
    %c0_i32 = arith.constant 0 : i32
    %c0_i32_0 = arith.constant 0 : i32
    return %c0_i32, %arg1 : i32, i32
  }
  func.func @transform_3(%arg0: i32, %arg1: i32, %arg2: i32) -> (i32, i32) {
    %c0_i32 = arith.constant 0 : i32
    %c0_i32_0 = arith.constant 0 : i32
    return %c0_i32, %arg1 : i32, i32
  }
  func.func @transform_4(%arg0: i32, %arg1: i32, %arg2: i32) -> (i32, i32) {
    %c0_i32 = arith.constant 0 : i32
    return %arg0, %arg1 : i32, i32
  }
  func.func @transform_5(%arg0: i32, %arg1: i32, %arg2: i32) -> (i32, i32) {
    %c0_i32 = arith.constant 0 : i32
    return %arg0, %arg1 : i32, i32
  }
}

module attributes {stable_mosaic.version = 11 : i64} {
  func.func @_matmul_affine_kernel(%arg0: i32, %arg1: i32, %arg2: i32, %arg3: memref<16x144xbf16, #tpu.memory_space<vmem>>, %arg4: memref<144x128xbf16, #tpu.memory_space<vmem>>, %arg5: memref<1x128xf32, #tpu.memory_space<vmem>>, %arg6: memref<1x128xf32, #tpu.memory_space<vmem>>, %arg7: memref<16x128xbf16, #tpu.memory_space<vmem>>, %arg8: memref<16x128xf32, #tpu.memory_space<vmem>>) attributes {dimension_semantics = [#tpu.dimension_semantics<parallel>, #tpu.dimension_semantics<parallel>, #tpu.dimension_semantics<arbitrary>], iteration_bounds = array<i64: 1, 1, 1>, scalar_prefetch = 0 : i64, scratch_operands = 1 : i64, tpu.core_type = #tpu.core_type<tc>, window_params = [{transform_indices = @transform_0, window_bounds = array<i64: 16, 144>}, {transform_indices = @transform_1, window_bounds = array<i64: 144, 128>}, {transform_indices = @transform_2, window_bounds = array<i64: 1, 128>}, {transform_indices = @transform_3, window_bounds = array<i64: 1, 128>}, {transform_indices = @transform_4, window_bounds = array<i64: 16, 128>}]} {
    %c0_i32 = arith.constant 0 : i32
    %0 = arith.cmpi eq, %arg2, %c0_i32 : i32
    %1 = arith.extui %0 : i1 to i32
    %c0_i32_0 = arith.constant 0 : i32
    %2 = arith.cmpi ne, %1, %c0_i32_0 : i32
    scf.if %2 {
      %cst_10 = arith.constant 0.000000e+00 : f32
      %12 = vector.broadcast %cst_10 : f32 to vector<16x128xf32>
      %c0_11 = arith.constant 0 : index
      %c0_12 = arith.constant 0 : index
      %13 = vector.load %arg8[%c0_11, %c0_12] : memref<16x128xf32, #tpu.memory_space<vmem>>, vector<16x128xf32>
      tpu.vector_store %arg8[%c0_11, %c0_12], %12 {strides = array<i32>} : memref<16x128xf32, #tpu.memory_space<vmem>>, vector<16x128xf32>,
    } else {
    }
    %c0 = arith.constant 0 : index
    %c0_1 = arith.constant 0 : index
    %3 = vector.load %arg8[%c0, %c0_1] : memref<16x128xf32, #tpu.memory_space<vmem>>, vector<16x128xf32>
    %c0_2 = arith.constant 0 : index
    %c0_3 = arith.constant 0 : index
    %4 = vector.load %arg3[%c0_2, %c0_3] : memref<16x144xbf16, #tpu.memory_space<vmem>>, vector<16x144xbf16>
    %c0_4 = arith.constant 0 : index
    %c0_5 = arith.constant 0 : index
    %5 = vector.load %arg4[%c0_4, %c0_5] : memref<144x128xbf16, #tpu.memory_space<vmem>>, vector<144x128xbf16>
    %cst = arith.constant dense<0.000000e+00> : vector<16x128xf32>
    %6 = tpu.matmul %4, %5, %cst {dimension_numbers = #tpu.dot_dimension_numbers<[1], [0], [0], [1], [0, 0, 1, 1], [], []>} : vector<16x144xbf16>, vector<144x128xbf16>, vector<16x128xf32> -> vector<16x128xf32>
    %7 = arith.addf %3, %6 : vector<16x128xf32>
    %c0_6 = arith.constant 0 : index
    %c0_7 = arith.constant 0 : index
    %8 = vector.load %arg8[%c0_6, %c0_7] : memref<16x128xf32, #tpu.memory_space<vmem>>, vector<16x128xf32>
    tpu.vector_store %arg8[%c0_6, %c0_7], %7 {strides = array<i32>} : memref<16x128xf32, #tpu.memory_space<vmem>>, vector<16x128xf32>,
    %c0_i32_8 = arith.constant 0 : i32
    %9 = arith.cmpi eq, %arg2, %c0_i32_8 : i32
    %10 = arith.extui %9 : i1 to i32
    %c0_i32_9 = arith.constant 0 : i32
    %11 = arith.cmpi ne, %10, %c0_i32_9 : i32
    scf.if %11 {
      %c0_10 = arith.constant 0 : index
      %c0_11 = arith.constant 0 : index
      %12 = vector.load %arg8[%c0_10, %c0_11] : memref<16x128xf32, #tpu.memory_space<vmem>>, vector<16x128xf32>
      %c0_12 = arith.constant 0 : index
      %c0_13 = arith.constant 0 : index
      %13 = vector.load %arg5[%c0_12, %c0_13] : memref<1x128xf32, #tpu.memory_space<vmem>>, vector<1x128xf32>
      %14 = vector.broadcast %13 : vector<1x128xf32> to vector<16x128xf32>
      %15 = arith.mulf %12, %14 : vector<16x128xf32>
      %c0_14 = arith.constant 0 : index
      %c0_15 = arith.constant 0 : index
      %16 = vector.load %arg6[%c0_14, %c0_15] : memref<1x128xf32, #tpu.memory_space<vmem>>, vector<1x128xf32>
      %17 = vector.broadcast %16 : vector<1x128xf32> to vector<16x128xf32>
      %18 = arith.addf %15, %17 : vector<16x128xf32>
      %cst_16 = arith.constant 0.000000e+00 : f32
      %19 = vector.broadcast %cst_16 : f32 to vector<16x128xf32>
      %20 = arith.maximumf %18, %19 : vector<16x128xf32>
      %21 = arith.truncf %20 : vector<16x128xf32> to vector<16x128xbf16>
      %c0_17 = arith.constant 0 : index
      %c0_18 = arith.constant 0 : index
      %22 = vector.load %arg7[%c0_17, %c0_18] : memref<16x128xbf16, #tpu.memory_space<vmem>>, vector<16x128xbf16>
      tpu.vector_store %arg7[%c0_17, %c0_18], %21 {strides = array<i32>} : memref<16x128xbf16, #tpu.memory_space<vmem>>, vector<16x128xbf16>,
    } else {
    }
    return
  }
  func.func @transform_0(%arg0: i32, %arg1: i32, %arg2: i32) -> (i32, i32) {
    %c0_i32 = arith.constant 0 : i32
    return %arg0, %arg2 : i32, i32
  }
  func.func @transform_1(%arg0: i32, %arg1: i32, %arg2: i32) -> (i32, i32) {
    %c0_i32 = arith.constant 0 : i32
    return %arg2, %arg1 : i32, i32
  }
  func.func @transform_2(%arg0: i32, %arg1: i32, %arg2: i32) -> (i32, i32) {
    %c0_i32 = arith.constant 0 : i32
    %c0_i32_0 = arith.constant 0 : i32
    return %c0_i32, %arg1 : i32, i32
  }
  func.func @transform_3(%arg0: i32, %arg1: i32, %arg2: i32) -> (i32, i32) {
    %c0_i32 = arith.constant 0 : i32
    %c0_i32_0 = arith.constant 0 : i32
    return %c0_i32, %arg1 : i32, i32
  }
  func.func @transform_4(%arg0: i32, %arg1: i32, %arg2: i32) -> (i32, i32) {
    %c0_i32 = arith.constant 0 : i32
    return %arg0, %arg1 : i32, i32
  }
}

module attributes {stable_mosaic.version = 11 : i64} {
  func.func @_avgpool_fc_kernel(%arg0: memref<2x4x32xbf16, #tpu.memory_space<vmem>>, %arg1: memref<32x128xbf16, #tpu.memory_space<vmem>>, %arg2: memref<1x128xf32, #tpu.memory_space<vmem>>, %arg3: memref<2x128xf32, #tpu.memory_space<vmem>>) attributes {dimension_semantics = [], scalar_prefetch = 0 : i64, scratch_operands = 0 : i64, tpu.core_type = #tpu.core_type<tc>} {
    %c0 = arith.constant 0 : index
    %c0_0 = arith.constant 0 : index
    %c0_1 = arith.constant 0 : index
    %0 = vector.load %arg0[%c0, %c0_0, %c0_1] : memref<2x4x32xbf16, #tpu.memory_space<vmem>>, vector<2x4x32xbf16>
    %1 = arith.extf %0 : vector<2x4x32xbf16> to vector<2x4x32xf32>
    %cst = arith.constant dense<0.000000e+00> : vector<2x32xf32>
    %2 = vector.multi_reduction <add>, %1, %cst [1] : vector<2x4x32xf32> to vector<2x32xf32>
    %cst_2 = arith.constant 4.000000e+00 : f32
    %3 = vector.broadcast %cst_2 : f32 to vector<2x32xf32>
    %4 = arith.divf %2, %3 : vector<2x32xf32>
    %5 = arith.truncf %4 : vector<2x32xf32> to vector<2x32xbf16>
    %c0_3 = arith.constant 0 : index
    %c0_4 = arith.constant 0 : index
    %6 = vector.load %arg1[%c0_3, %c0_4] : memref<32x128xbf16, #tpu.memory_space<vmem>>, vector<32x128xbf16>
    %cst_5 = arith.constant dense<0.000000e+00> : vector<2x128xf32>
    %7 = tpu.matmul %5, %6, %cst_5 {dimension_numbers = #tpu.dot_dimension_numbers<[1], [0], [0], [1], [0, 0, 1, 1], [], []>} : vector<2x32xbf16>, vector<32x128xbf16>, vector<2x128xf32> -> vector<2x128xf32>
    %c0_6 = arith.constant 0 : index
    %c0_7 = arith.constant 0 : index
    %8 = vector.load %arg2[%c0_6, %c0_7] : memref<1x128xf32, #tpu.memory_space<vmem>>, vector<1x128xf32>
    %9 = vector.broadcast %8 : vector<1x128xf32> to vector<2x128xf32>
    %10 = arith.addf %7, %9 : vector<2x128xf32>
    %c0_8 = arith.constant 0 : index
    %c0_9 = arith.constant 0 : index
    %11 = vector.load %arg3[%c0_8, %c0_9] : memref<2x128xf32, #tpu.memory_space<vmem>>, vector<2x128xf32>
    tpu.vector_store %arg3[%c0_8, %c0_9], %10 {strides = array<i32>} : memref<2x128xf32, #tpu.memory_space<vmem>>, vector<2x128xf32>,
    return
  }
}

module attributes {stable_mosaic.version = 11 : i64} {
  func.func @_matmul_affine_res_kernel(%arg0: i32, %arg1: i32, %arg2: i32, %arg3: memref<16x288xbf16, #tpu.memory_space<vmem>>, %arg4: memref<288x128xbf16, #tpu.memory_space<vmem>>, %arg5: memref<1x128xf32, #tpu.memory_space<vmem>>, %arg6: memref<1x128xf32, #tpu.memory_space<vmem>>, %arg7: memref<16x128xbf16, #tpu.memory_space<vmem>>, %arg8: memref<16x128xbf16, #tpu.memory_space<vmem>>, %arg9: memref<16x128xf32, #tpu.memory_space<vmem>>) attributes {dimension_semantics = [#tpu.dimension_semantics<parallel>, #tpu.dimension_semantics<parallel>, #tpu.dimension_semantics<arbitrary>], iteration_bounds = array<i64: 1, 1, 1>, scalar_prefetch = 0 : i64, scratch_operands = 1 : i64, tpu.core_type = #tpu.core_type<tc>, window_params = [{transform_indices = @transform_0, window_bounds = array<i64: 16, 288>}, {transform_indices = @transform_1, window_bounds = array<i64: 288, 128>}, {transform_indices = @transform_2, window_bounds = array<i64: 1, 128>}, {transform_indices = @transform_3, window_bounds = array<i64: 1, 128>}, {transform_indices = @transform_4, window_bounds = array<i64: 16, 128>}, {transform_indices = @transform_5, window_bounds = array<i64: 16, 128>}]} {
    %c0_i32 = arith.constant 0 : i32
    %0 = arith.cmpi eq, %arg2, %c0_i32 : i32
    %1 = arith.extui %0 : i1 to i32
    %c0_i32_0 = arith.constant 0 : i32
    %2 = arith.cmpi ne, %1, %c0_i32_0 : i32
    scf.if %2 {
      %cst_10 = arith.constant 0.000000e+00 : f32
      %12 = vector.broadcast %cst_10 : f32 to vector<16x128xf32>
      %c0_11 = arith.constant 0 : index
      %c0_12 = arith.constant 0 : index
      %13 = vector.load %arg9[%c0_11, %c0_12] : memref<16x128xf32, #tpu.memory_space<vmem>>, vector<16x128xf32>
      tpu.vector_store %arg9[%c0_11, %c0_12], %12 {strides = array<i32>} : memref<16x128xf32, #tpu.memory_space<vmem>>, vector<16x128xf32>,
    } else {
    }
    %c0 = arith.constant 0 : index
    %c0_1 = arith.constant 0 : index
    %3 = vector.load %arg9[%c0, %c0_1] : memref<16x128xf32, #tpu.memory_space<vmem>>, vector<16x128xf32>
    %c0_2 = arith.constant 0 : index
    %c0_3 = arith.constant 0 : index
    %4 = vector.load %arg3[%c0_2, %c0_3] : memref<16x288xbf16, #tpu.memory_space<vmem>>, vector<16x288xbf16>
    %c0_4 = arith.constant 0 : index
    %c0_5 = arith.constant 0 : index
    %5 = vector.load %arg4[%c0_4, %c0_5] : memref<288x128xbf16, #tpu.memory_space<vmem>>, vector<288x128xbf16>
    %cst = arith.constant dense<0.000000e+00> : vector<16x128xf32>
    %6 = tpu.matmul %4, %5, %cst {dimension_numbers = #tpu.dot_dimension_numbers<[1], [0], [0], [1], [0, 0, 1, 1], [], []>} : vector<16x288xbf16>, vector<288x128xbf16>, vector<16x128xf32> -> vector<16x128xf32>
    %7 = arith.addf %3, %6 : vector<16x128xf32>
    %c0_6 = arith.constant 0 : index
    %c0_7 = arith.constant 0 : index
    %8 = vector.load %arg9[%c0_6, %c0_7] : memref<16x128xf32, #tpu.memory_space<vmem>>, vector<16x128xf32>
    tpu.vector_store %arg9[%c0_6, %c0_7], %7 {strides = array<i32>} : memref<16x128xf32, #tpu.memory_space<vmem>>, vector<16x128xf32>,
    %c0_i32_8 = arith.constant 0 : i32
    %9 = arith.cmpi eq, %arg2, %c0_i32_8 : i32
    %10 = arith.extui %9 : i1 to i32
    %c0_i32_9 = arith.constant 0 : i32
    %11 = arith.cmpi ne, %10, %c0_i32_9 : i32
    scf.if %11 {
      %c0_10 = arith.constant 0 : index
      %c0_11 = arith.constant 0 : index
      %12 = vector.load %arg9[%c0_10, %c0_11] : memref<16x128xf32, #tpu.memory_space<vmem>>, vector<16x128xf32>
      %c0_12 = arith.constant 0 : index
      %c0_13 = arith.constant 0 : index
      %13 = vector.load %arg5[%c0_12, %c0_13] : memref<1x128xf32, #tpu.memory_space<vmem>>, vector<1x128xf32>
      %14 = vector.broadcast %13 : vector<1x128xf32> to vector<16x128xf32>
      %15 = arith.mulf %12, %14 : vector<16x128xf32>
      %c0_14 = arith.constant 0 : index
      %c0_15 = arith.constant 0 : index
      %16 = vector.load %arg6[%c0_14, %c0_15] : memref<1x128xf32, #tpu.memory_space<vmem>>, vector<1x128xf32>
      %17 = vector.broadcast %16 : vector<1x128xf32> to vector<16x128xf32>
      %18 = arith.addf %15, %17 : vector<16x128xf32>
      %c0_16 = arith.constant 0 : index
      %c0_17 = arith.constant 0 : index
      %19 = vector.load %arg7[%c0_16, %c0_17] : memref<16x128xbf16, #tpu.memory_space<vmem>>, vector<16x128xbf16>
      %20 = arith.extf %19 : vector<16x128xbf16> to vector<16x128xf32>
      %21 = arith.addf %18, %20 : vector<16x128xf32>
      %cst_18 = arith.constant 0.000000e+00 : f32
      %22 = vector.broadcast %cst_18 : f32 to vector<16x128xf32>
      %23 = arith.maximumf %21, %22 : vector<16x128xf32>
      %24 = arith.truncf %23 : vector<16x128xf32> to vector<16x128xbf16>
      %c0_19 = arith.constant 0 : index
      %c0_20 = arith.constant 0 : index
      %25 = vector.load %arg8[%c0_19, %c0_20] : memref<16x128xbf16, #tpu.memory_space<vmem>>, vector<16x128xbf16>
      tpu.vector_store %arg8[%c0_19, %c0_20], %24 {strides = array<i32>} : memref<16x128xbf16, #tpu.memory_space<vmem>>, vector<16x128xbf16>,
    } else {
    }
    return
  }
  func.func @transform_0(%arg0: i32, %arg1: i32, %arg2: i32) -> (i32, i32) {
    %c0_i32 = arith.constant 0 : i32
    return %arg0, %arg2 : i32, i32
  }
  func.func @transform_1(%arg0: i32, %arg1: i32, %arg2: i32) -> (i32, i32) {
    %c0_i32 = arith.constant 0 : i32
    return %arg2, %arg1 : i32, i32
  }
  func.func @transform_2(%arg0: i32, %arg1: i32, %arg2: i32) -> (i32, i32) {
    %c0_i32 = arith.constant 0 : i32
    %c0_i32_0 = arith.constant 0 : i32
    return %c0_i32, %arg1 : i32, i32
  }
  func.func @transform_3(%arg0: i32, %arg1: i32, %arg2: i32) -> (i32, i32) {
    %c0_i32 = arith.constant 0 : i32
    %c0_i32_0 = arith.constant 0 : i32
    return %c0_i32, %arg1 : i32, i32
  }
  func.func @transform_4(%arg0: i32, %arg1: i32, %arg2: i32) -> (i32, i32) {
    %c0_i32 = arith.constant 0 : i32
    return %arg0, %arg1 : i32, i32
  }
  func.func @transform_5(%arg0: i32, %arg1: i32, %arg2: i32) -> (i32, i32) {
    %c0_i32 = arith.constant 0 : i32
    return %arg0, %arg1 : i32, i32
  }
}

</mosaic_0001>

<llo_original>
// kernel: resnet_forward.13
$region0: #{resnet_forward.13}
  #allocation0 [shape = 'u32[]', space=smem, size = 0x4, offset = 0x4, fixed_abs, tag = 'smem constant byte address 0x4 - core index']
  #allocation1 [shape = 'u32[144,128]{1,0:T(1,128)}', space=vmem, size = 0x12000, scoped, tag = 'internal scratch']
  #allocation2 [shape = 'f32[256,128]{1,0:T(8,128)}', space=vmem, size = 0x20000, scoped, tag = 'scratch operand']
  %s0 = inlined_call_operand.vmem [shape: bf16[512,32], index: 0, kind: input, shape index: {}]
  %s1 = inlined_call_operand.vmem [shape: bf16[32,128], index: 1, kind: input, shape index: {}]
  %s2 = inlined_call_operand.vmem [shape: f32[1,128], index: 2, kind: input, shape index: {}]
  %s3 = inlined_call_operand.vmem [shape: f32[1,128], index: 3, kind: input, shape index: {}]
  %s4 = inlined_call_operand.vmem [shape: bf16[512,128], index: 4, kind: output, shape index: {}]
  %s5 = sld [smem:[#allocation0]]
  $region57: #{resnet_forward.13} parent=0
    _
  %s7 = ssub.s32 1, %s5
  %s8 = scalar_select 0, %s7, %s5
  loop: start=0, step=1, limit=4
  $region2: #{resnet_forward.13} parent=0 // loop_pre_header
    _
  $region3: #{resnet_forward.13} parent=0 // loop_header
    %s10 = sphi 0, %s14
    %p11 = scmp.ge.s32.totalorder %s10, 4
    %s17 = sphi 0, %s36
    %s18 = sphi 0, %s32
    %s19 = sphi 0, %s28
    %s20 = sphi 0, %s17
    %s21 = sphi 0, %s18
    %s22 = sphi 0, %s19
    %s23 = sphi 0, %s20
    %s24 = sphi 0, %s21
    %s25 = sphi 0, %s22
    %s41 = sphi 0, %s43
    %s44 = sphi 0, %s41
    %s45 = sphi 0, %s44
    %s61 = sphi 0, %s45
    %s69 = sphi 0, %s71
    %s72 = sphi 0, %s69
    %s73 = sphi 0, %s72
    %s89 = sphi 0, %s73
    %s95 = sphi 0, %s97
    %s98 = sphi 0, %s95
    %s99 = sphi 0, %s98
    %s115 = sphi 0, %s99
    %s121 = sphi 0, %s123
    %s124 = sphi 0, %s121
    %s125 = sphi 0, %s124
    %s141 = sphi 0, %s125
    %s149 = sphi 0, %s151
    %s152 = sphi 0, %s149
    %s153 = sphi 0, %s152
    %s169 = sphi 0, %s153
  $region4: #{resnet_forward.13} parent=0 // loop_header_branch
    %13 = sbr.rel (%p11) target = $region8
  $region5: #{resnet_forward.13} parent=0 // loop_body
    %s15 = ssub.s32 %s10, 1
    %s16 = ssub.s32 %s10, 2
    %s26 = sadd.s32 1, %s19
    %p27 = scmp.ge.s32.totalorder %s26, 1
    %s28 = scalar_select %p27, 0, %s26
    %s29 = sadd.s32 1, %s18
    %s30 = scalar_select %p27, %s29, %s18
    %p31 = scmp.ge.s32.totalorder %s30, 1
    %s32 = scalar_select %p31, 0, %s30
    %s33 = sadd.s32 1, %s17
    %s34 = scalar_select %p31, %s33, %s17
    %p35 = scmp.ge.s32.totalorder %s34, 2
    %s36 = scalar_select %p35, 0, %s34
    %s37 = ssub.s32 %s17, %s36
    %s38 = ssub.s32 %s19, %s28
    %s39 = sor.u32 %s37, %s38
    %p40 = scmp.eq.s32.totalorder %s39, 0
    %s42 = sadd.s32 %s41, 1
    %s43 = scalar_select %p40, %s41, %s42
    %p46 = pneg %p40
    %p47 = scmp.eq.s32.totalorder %s10, 1
    %p48 = por %p46, %p47
    %p49 = scmp.ne.s32.totalorder %s41, %s44
    %p50 = scmp.eq.s32.totalorder %s10, 0
    %p51 = por %p49, %p50
    %p52 = scmp.ne.s32.totalorder %s41, %s44
    %p53 = scmp.eq.s32.totalorder %s15, 1
    %p54 = por %p52, %p53
    %p55 = scmp.ne.s32.totalorder %s44, %s45
    %p56 = scmp.eq.s32.totalorder %s15, 0
    %p57 = por %p55, %p56
    %p58 = scmp.ne.s32.totalorder %s44, %s45
    %p59 = scmp.eq.s32.totalorder %s16, 1
    %p60 = por %p58, %p59
    %p62 = scmp.ne.s32.totalorder %s45, %s61
    %p63 = scmp.eq.s32.totalorder %s16, 0
    %p64 = por %p62, %p63
    %s65 = ssub.s32 %s19, %s28
    %s66 = ssub.s32 %s18, %s32
    %s67 = sor.u32 %s65, %s66
    %p68 = scmp.eq.s32.totalorder %s67, 0
    %s70 = sadd.s32 %s69, 1
    %s71 = scalar_select %p68, %s69, %s70
    %p74 = pneg %p68
    %p75 = scmp.eq.s32.totalorder %s10, 1
    %p76 = por %p74, %p75
    %p77 = scmp.ne.s32.totalorder %s69, %s72
    %p78 = scmp.eq.s32.totalorder %s10, 0
    %p79 = por %p77, %p78
    %p80 = scmp.ne.s32.totalorder %s69, %s72
    %p81 = scmp.eq.s32.totalorder %s15, 1
    %p82 = por %p80, %p81
    %p83 = scmp.ne.s32.totalorder %s72, %s73
    %p84 = scmp.eq.s32.totalorder %s15, 0
    %p85 = por %p83, %p84
    %p86 = scmp.ne.s32.totalorder %s72, %s73
    %p87 = scmp.eq.s32.totalorder %s16, 1
    %p88 = por %p86, %p87
    %p90 = scmp.ne.s32.totalorder %s73, %s89
    %p91 = scmp.eq.s32.totalorder %s16, 0
    %p92 = por %p90, %p91
    %s93 = ssub.s32 %s18, %s32
    %p94 = scmp.eq.s32.totalorder %s93, 0
    %s96 = sadd.s32 %s95, 1
    %s97 = scalar_select %p94, %s95, %s96
    %p100 = pneg %p94
    %p101 = scmp.eq.s32.totalorder %s10, 1
    %p102 = por %p100, %p101
    %p103 = scmp.ne.s32.totalorder %s95, %s98
    %p104 = scmp.eq.s32.totalorder %s10, 0
    %p105 = por %p103, %p104
    %p106 = scmp.ne.s32.totalorder %s95, %s98
    %p107 = scmp.eq.s32.totalorder %s15, 1
    %p108 = por %p106, %p107
    %p109 = scmp.ne.s32.totalorder %s98, %s99
    %p110 = scmp.eq.s32.totalorder %s15, 0
    %p111 = por %p109, %p110
    %p112 = scmp.ne.s32.totalorder %s98, %s99
    %p113 = scmp.eq.s32.totalorder %s16, 1
    %p114 = por %p112, %p113
    %p116 = scmp.ne.s32.totalorder %s99, %s115
    %p117 = scmp.eq.s32.totalorder %s16, 0
    %p118 = por %p116, %p117
    %s119 = ssub.s32 %s18, %s32
    %p120 = scmp.eq.s32.totalorder %s119, 0
    %s122 = sadd.s32 %s121, 1
    %s123 = scalar_select %p120, %s121, %s122
    %p126 = pneg %p120
    %p127 = scmp.eq.s32.totalorder %s10, 1
    %p128 = por %p126, %p127
    %p129 = scmp.ne.s32.totalorder %s121, %s124
    %p130 = scmp.eq.s32.totalorder %s10, 0
    %p131 = por %p129, %p130
    %p132 = scmp.ne.s32.totalorder %s121, %s124
    %p133 = scmp.eq.s32.totalorder %s15, 1
    %p134 = por %p132, %p133
    %p135 = scmp.ne.s32.totalorder %s124, %s125
    %p136 = scmp.eq.s32.totalorder %s15, 0
    %p137 = por %p135, %p136
    %p138 = scmp.ne.s32.totalorder %s124, %s125
    %p139 = scmp.eq.s32.totalorder %s16, 1
    %p140 = por %p138, %p139
    %p142 = scmp.ne.s32.totalorder %s125, %s141
    %p143 = scmp.eq.s32.totalorder %s16, 0
    %p144 = por %p142, %p143
    %s145 = ssub.s32 %s17, %s36
    %s146 = ssub.s32 %s18, %s32
    %s147 = sor.u32 %s145, %s146
    %p148 = scmp.eq.s32.totalorder %s147, 0
    %s150 = sadd.s32 %s149, 1
    %s151 = scalar_select %p148, %s149, %s150
    %p154 = pneg %p148
    %p155 = scmp.eq.s32.totalorder %s10, 1
    %p156 = por %p154, %p155
    %p157 = scmp.ne.s32.totalorder %s149, %s152
    %p158 = scmp.eq.s32.totalorder %s10, 0
    %p159 = por %p157, %p158
    %p160 = scmp.ne.s32.totalorder %s149, %s152
    %p161 = scmp.eq.s32.totalorder %s15, 1
    %p162 = por %p160, %p161
    %p163 = scmp.ne.s32.totalorder %s152, %s153
    %p164 = scmp.eq.s32.totalorder %s15, 0
    %p165 = por %p163, %p164
    %p166 = scmp.ne.s32.totalorder %s152, %s153
    %p167 = scmp.eq.s32.totalorder %s16, 1
    %p168 = por %p166, %p167
    %p170 = scmp.ne.s32.totalorder %s153, %s169
    %p171 = scmp.eq.s32.totalorder %s16, 0
    %p172 = por %p170, %p171
    %p173 = scmp.le.s32.totalorder 1, %s10
    %p174 = scmp.lt.s32.totalorder %s10, 3
    %p175 = pnand %p173, %p174
    %p176 = pneg %p175
    // Predicated region
    $region9: #{resnet_forward.13} parent=5 // pred_check
      _
    $region10: #{resnet_forward.13} parent=5 // pred_check_branch
      %178 = sbr.rel (%p175) target = $region12
    $region11: #{resnet_forward.13} parent=5 // pred_region
      %s179 = ssub.s32 %s10, 1
      // Predicated region
      $region13: #{resnet_forward.13} parent=11 // pred_check
        %p180 = pneg %p85
      $region14: #{resnet_forward.13} parent=11 // pred_check_branch
        %182 = sbr.rel (%p180) target = $region16
      $region15: #{resnet_forward.13} parent=11 // pred_region
        %s183 = smul.u32 4, %s22
        %p184 = scmp.lt.s32.totalorder %s183, 3
        %s185 = scalar_select %p184, %s183, 3
        %p186 = scmp.lt.s32.totalorder %s21, 0
        %s187 = scalar_select %p186, %s21, 0
        %s188 = sadd.s32 %s187, %s185
        %s189 = smul.addr %s188, 4
        %s190 = scalar_lea.vmem %s1, %s189
        %s191 = smul.u32 4, %s22
      $region16: #{resnet_forward.13} parent=11 // pred_fallthru
        _
      // Predicated region
      $region17: #{resnet_forward.13} parent=11 // pred_check
        %p192 = pneg %p111
      $region18: #{resnet_forward.13} parent=11 // pred_check_branch
        %194 = sbr.rel (%p192) target = $region20
      $region19: #{resnet_forward.13} parent=11 // pred_region
        %p195 = scmp.lt.s32.totalorder %s21, 0
        %s196 = scalar_select %p195, %s21, 0
        %s197 = scalar_lea.vmem %s2, %s196
      $region20: #{resnet_forward.13} parent=11 // pred_fallthru
        _
      // Predicated region
      $region21: #{resnet_forward.13} parent=11 // pred_check
        %p198 = pneg %p137
      $region22: #{resnet_forward.13} parent=11 // pred_check_branch
        %200 = sbr.rel (%p198) target = $region24
      $region23: #{resnet_forward.13} parent=11 // pred_region
        %p201 = scmp.lt.s32.totalorder %s21, 0
        %s202 = scalar_select %p201, %s21, 0
        %s203 = scalar_lea.vmem %s3, %s202
      $region24: #{resnet_forward.13} parent=11 // pred_fallthru
        _
    $region12: #{resnet_forward.13} parent=5 // pred_fallthru
      _
    %p204 = scmp.lt.s32.totalorder %s10, 2
    // Predicated region
    $region25: #{resnet_forward.13} parent=5 // pred_check
      %p205 = pneg %p204
    $region26: #{resnet_forward.13} parent=5 // pred_check_branch
      %207 = sbr.rel (%p205) target = $region28
    $region27: #{resnet_forward.13} parent=5 // pred_region
      // Predicated region
      $region29: #{resnet_forward.13} parent=27 // pred_check
        %p208 = pneg %p51
      $region30: #{resnet_forward.13} parent=27 // pred_check_branch
        %210 = sbr.rel (%p208) target = $region32
      $region31: #{resnet_forward.13} parent=27 // pred_region
        %s211 = smul.u32 32, %s17
        %p212 = scmp.lt.s32.totalorder %s211, 63
        %s213 = scalar_select %p212, %s211, 63
        %p214 = scmp.lt.s32.totalorder %s19, 0
        %s215 = scalar_select %p214, %s19, 0
        %s216 = sadd.s32 %s215, %s213
        %s217 = smul.addr %s216, 4
        %s218 = scalar_lea.vmem %s0, %s217
        %s219 = smul.u32 32, %s17
      $region32: #{resnet_forward.13} parent=27 // pred_fallthru
        _
    $region28: #{resnet_forward.13} parent=5 // pred_fallthru
      _
    %p220 = scmp.le.s32.totalorder 1, %s10
    %p221 = scmp.lt.s32.totalorder %s10, 3
    %p222 = pnand %p220, %p221
    %p223 = pneg %p222
    // Predicated region
    $region33: #{resnet_forward.13} parent=5 // pred_check
      _
    $region34: #{resnet_forward.13} parent=5 // pred_check_branch
      %225 = sbr.rel (%p222) target = $region36
    $region35: #{resnet_forward.13} parent=5 // pred_region
      %s226 = ssub.s32 %s10, 1
      %s227 = smul.u32 32, %s20
      %p228 = scmp.lt.s32.totalorder %s227, 63
      %s229 = scalar_select %p228, %s227, 63
      %p230 = scmp.lt.s32.totalorder %s22, 0
      %s231 = scalar_select %p230, %s22, 0
      %s232 = sadd.s32 %s231, %s229
      %s233 = smul.addr %s232, 4
      %s234 = scalar_lea.vmem %s0, %s233
      %p235 = pneg %p57
      %p236 = pneg %p54
      %s237 = smul.u32 4, %s22
      %p238 = scmp.lt.s32.totalorder %s237, 3
      %s239 = scalar_select %p238, %s237, 3
      %p240 = scmp.lt.s32.totalorder %s21, 0
      %s241 = scalar_select %p240, %s21, 0
      %s242 = sadd.s32 %s241, %s239
      %s243 = smul.addr %s242, 4
      %s244 = scalar_lea.vmem %s1, %s243
      %p245 = pneg %p85
      %p246 = pneg %p82
      %p247 = scmp.lt.s32.totalorder %s21, 0
      %s248 = scalar_select %p247, %s21, 0
      %s249 = scalar_lea.vmem %s2, %s248
      %p250 = pneg %p111
      %p251 = pneg %p108
      %p252 = scmp.lt.s32.totalorder %s21, 0
      %s253 = scalar_select %p252, %s21, 0
      %s254 = scalar_lea.vmem %s3, %s253
      %p255 = pneg %p137
      %p256 = pneg %p134
      %p257 = pneg %p165
      %p258 = pneg %p162
      %s259 = smul.u32 32, %s20
      %p260 = scmp.lt.s32.totalorder %s259, 63
      %s261 = scalar_select %p260, %s259, 63
      %p262 = scmp.lt.s32.totalorder %s21, 0
      %s263 = scalar_select %p262, %s21, 0
      %s264 = sadd.s32 %s263, %s261
      %s265 = smul.addr %s264, 4
      %s266 = scalar_lea.vmem %s4, %s265
      %s267 = smul.u32 32, %s20
      %p268 = scmp.lt.s32.totalorder %s267, 63
      %s269 = scalar_select %p268, %s267, 63
      %p270 = scmp.lt.s32.totalorder %s22, 0
      %s271 = scalar_select %p270, %s22, 0
      %s272 = sadd.s32 %s271, %s269
      %s273 = smul.addr %s272, 4
      %s274 = scalar_lea.vmem %s0, %s273
      %s275 = smul.u32 32, %s20
      %s276 = smul.u32 4, %s22
      %p277 = scmp.lt.s32.totalorder %s276, 3
      %s278 = scalar_select %p277, %s276, 3
      %p279 = scmp.lt.s32.totalorder %s21, 0
      %s280 = scalar_select %p279, %s21, 0
      %s281 = sadd.s32 %s280, %s278
      %s282 = smul.addr %s281, 4
      %s283 = scalar_lea.vmem %s1, %s282
      %s284 = smul.u32 4, %s22
      %p285 = scmp.lt.s32.totalorder %s21, 0
      %s286 = scalar_select %p285, %s21, 0
      %s287 = scalar_lea.vmem %s2, %s286
      %p288 = scmp.lt.s32.totalorder %s21, 0
      %s289 = scalar_select %p288, %s21, 0
      %s290 = scalar_lea.vmem %s3, %s289
      %s291 = smul.u32 32, %s20
      %p292 = scmp.lt.s32.totalorder %s291, 63
      %s293 = scalar_select %p292, %s291, 63
      %p294 = scmp.lt.s32.totalorder %s21, 0
      %s295 = scalar_select %p294, %s21, 0
      %s296 = sadd.s32 %s295, %s293
      %s297 = smul.addr %s296, 4
      %s298 = scalar_lea.vmem %s4, %s297
      %s299 = smul.u32 32, %s20
      %p301 = scmp.eq.s32.totalorder %s22, 0
      // Predicated region
      $region37: #{resnet_forward.13} parent=35 // pred_check
        %p302 = pneg %p301
      $region38: #{resnet_forward.13} parent=35 // pred_check_branch
        %304 = sbr.rel (%p302) target = $region40
      $region39: #{resnet_forward.13} parent=35 // pred_region
        %305 = vst [vmem:[#allocation2] sm:$0xff] 0.0
        %306 = vst [vmem:[#allocation2 + $0x8] sm:$0xff] 0.0
        %307 = vst [vmem:[#allocation2 + $0x10] sm:$0xff] 0.0
        %308 = vst [vmem:[#allocation2 + $0x18] sm:$0xff] 0.0
        %309 = vst [vmem:[#allocation2 + $0x20] sm:$0xff] 0.0
        %310 = vst [vmem:[#allocation2 + $0x28] sm:$0xff] 0.0
        %311 = vst [vmem:[#allocation2 + $0x30] sm:$0xff] 0.0
        %312 = vst [vmem:[#allocation2 + $0x38] sm:$0xff] 0.0
        %313 = vst [vmem:[#allocation2 + $0x40] sm:$0xff] 0.0
        %314 = vst [vmem:[#allocation2 + $0x48] sm:$0xff] 0.0
        %315 = vst [vmem:[#allocation2 + $0x50] sm:$0xff] 0.0
        %316 = vst [vmem:[#allocation2 + $0x58] sm:$0xff] 0.0
        %317 = vst [vmem:[#allocation2 + $0x60] sm:$0xff] 0.0
        %318 = vst [vmem:[#allocation2 + $0x68] sm:$0xff] 0.0
        %319 = vst [vmem:[#allocation2 + $0x70] sm:$0xff] 0.0
        %320 = vst [vmem:[#allocation2 + $0x78] sm:$0xff] 0.0
        %321 = vst [vmem:[#allocation2 + $0x80] sm:$0xff] 0.0
        %322 = vst [vmem:[#allocation2 + $0x88] sm:$0xff] 0.0
        %323 = vst [vmem:[#allocation2 + $0x90] sm:$0xff] 0.0
        %324 = vst [vmem:[#allocation2 + $0x98] sm:$0xff] 0.0
        %325 = vst [vmem:[#allocation2 + $0xa0] sm:$0xff] 0.0
        %326 = vst [vmem:[#allocation2 + $0xa8] sm:$0xff] 0.0
        %327 = vst [vmem:[#allocation2 + $0xb0] sm:$0xff] 0.0
        %328 = vst [vmem:[#allocation2 + $0xb8] sm:$0xff] 0.0
        %329 = vst [vmem:[#allocation2 + $0xc0] sm:$0xff] 0.0
        %330 = vst [vmem:[#allocation2 + $0xc8] sm:$0xff] 0.0
        %331 = vst [vmem:[#allocation2 + $0xd0] sm:$0xff] 0.0
        %332 = vst [vmem:[#allocation2 + $0xd8] sm:$0xff] 0.0
        %333 = vst [vmem:[#allocation2 + $0xe0] sm:$0xff] 0.0
        %334 = vst [vmem:[#allocation2 + $0xe8] sm:$0xff] 0.0
        %335 = vst [vmem:[#allocation2 + $0xf0] sm:$0xff] 0.0
        %336 = vst [vmem:[#allocation2 + $0xf8] sm:$0xff] 0.0
      $region40: #{resnet_forward.13} parent=35 // pred_fallthru
        _
      %v337 = vld [vmem:[#allocation2] sm:$0xff]
      %v338 = vld [vmem:[#allocation2 + $0x8] sm:$0xff]
      %v339 = vld [vmem:[#allocation2 + $0x10] sm:$0xff]
      %v340 = vld [vmem:[#allocation2 + $0x18] sm:$0xff]
      %v341 = vld [vmem:[#allocation2 + $0x20] sm:$0xff]
      %v342 = vld [vmem:[#allocation2 + $0x28] sm:$0xff]
      %v343 = vld [vmem:[#allocation2 + $0x30] sm:$0xff]
      %v344 = vld [vmem:[#allocation2 + $0x38] sm:$0xff]
      %v345 = vld [vmem:[#allocation2 + $0x40] sm:$0xff]
      %v346 = vld [vmem:[#allocation2 + $0x48] sm:$0xff]
      %v347 = vld [vmem:[#allocation2 + $0x50] sm:$0xff]
      %v348 = vld [vmem:[#allocation2 + $0x58] sm:$0xff]
      %v349 = vld [vmem:[#allocation2 + $0x60] sm:$0xff]
      %v350 = vld [vmem:[#allocation2 + $0x68] sm:$0xff]
      %v351 = vld [vmem:[#allocation2 + $0x70] sm:$0xff]
      %v352 = vld [vmem:[#allocation2 + $0x78] sm:$0xff]
      %v353 = vld [vmem:[#allocation2 + $0x80] sm:$0xff]
      %v354 = vld [vmem:[#allocation2 + $0x88] sm:$0xff]
      %v355 = vld [vmem:[#allocation2 + $0x90] sm:$0xff]
      %v356 = vld [vmem:[#allocation2 + $0x98] sm:$0xff]
      %v357 = vld [vmem:[#allocation2 + $0xa0] sm:$0xff]
      %v358 = vld [vmem:[#allocation2 + $0xa8] sm:$0xff]
      %v359 = vld [vmem:[#allocation2 + $0xb0] sm:$0xff]
      %v360 = vld [vmem:[#allocation2 + $0xb8] sm:$0xff]
      %v361 = vld [vmem:[#allocation2 + $0xc0] sm:$0xff]
      %v362 = vld [vmem:[#allocation2 + $0xc8] sm:$0xff]
      %v363 = vld [vmem:[#allocation2 + $0xd0] sm:$0xff]
      %v364 = vld [vmem:[#allocation2 + $0xd8] sm:$0xff]
      %v365 = vld [vmem:[#allocation2 + $0xe0] sm:$0xff]
      %v366 = vld [vmem:[#allocation2 + $0xe8] sm:$0xff]
      %v367 = vld [vmem:[#allocation2 + $0xf0] sm:$0xff]
      %v368 = vld [vmem:[#allocation2 + $0xf8] sm:$0xff]
      %v369 = vld [vmem:[%s274] sm:$0xf]
      %v370 = vld [vmem:[%s274 + $0x4] sm:$0xf]
      %v371 = vld [vmem:[%s274 + $0x8] sm:$0xf]
      %v372 = vld [vmem:[%s274 + $0xc] sm:$0xf]
      %v373 = vld [vmem:[%s274 + $0x10] sm:$0xf]
      %v374 = vld [vmem:[%s274 + $0x14] sm:$0xf]
      %v375 = vld [vmem:[%s274 + $0x18] sm:$0xf]
      %v376 = vld [vmem:[%s274 + $0x1c] sm:$0xf]
      %v377 = vld [vmem:[%s274 + $0x20] sm:$0xf]
      %v378 = vld [vmem:[%s274 + $0x24] sm:$0xf]
      %v379 = vld [vmem:[%s274 + $0x28] sm:$0xf]
      %v380 = vld [vmem:[%s274 + $0x2c] sm:$0xf]
      %v381 = vld [vmem:[%s274 + $0x30] sm:$0xf]
      %v382 = vld [vmem:[%s274 + $0x34] sm:$0xf]
      %v383 = vld [vmem:[%s274 + $0x38] sm:$0xf]
      %v384 = vld [vmem:[%s274 + $0x3c] sm:$0xf]
      %v385 = vld [vmem:[%s274 + $0x40] sm:$0xf]
      %v386 = vld [vmem:[%s274 + $0x44] sm:$0xf]
      %v387 = vld [vmem:[%s274 + $0x48] sm:$0xf]
      %v388 = vld [vmem:[%s274 + $0x4c] sm:$0xf]
      %v389 = vld [vmem:[%s274 + $0x50] sm:$0xf]
      %v390 = vld [vmem:[%s274 + $0x54] sm:$0xf]
      %v391 = vld [vmem:[%s274 + $0x58] sm:$0xf]
      %v392 = vld [vmem:[%s274 + $0x5c] sm:$0xf]
      %v393 = vld [vmem:[%s274 + $0x60] sm:$0xf]
      %v394 = vld [vmem:[%s274 + $0x64] sm:$0xf]
      %v395 = vld [vmem:[%s274 + $0x68] sm:$0xf]
      %v396 = vld [vmem:[%s274 + $0x6c] sm:$0xf]
      %v397 = vld [vmem:[%s274 + $0x70] sm:$0xf]
      %v398 = vld [vmem:[%s274 + $0x74] sm:$0xf]
      %v399 = vld [vmem:[%s274 + $0x78] sm:$0xf]
      %v400 = vld [vmem:[%s274 + $0x7c] sm:$0xf]
      %v401 = vld [vmem:[%s283] sm:$0xf]
      %v402 = vld [vmem:[%s283 + $0x4] sm:$0xf]
      %v403 = vld [vmem:[%s283 + $0x8] sm:$0xf]
      %v404 = vld [vmem:[%s283 + $0xc] sm:$0xf]
      %v437 = vunpack.c.l.b16 %v369
      %v438 = vunpack.c.l.b16 %v370
      %v439 = vunpack.c.l.b16 %v371
      %v440 = vunpack.c.l.b16 %v372
      %v441 = vunpack.c.l.b16 %v373
      %v442 = vunpack.c.l.b16 %v374
      %v443 = vunpack.c.l.b16 %v375
      %v444 = vunpack.c.l.b16 %v376
      %v445 = vunpack.c.l.b16 %v377
      %v446 = vunpack.c.l.b16 %v378
      %v447 = vunpack.c.l.b16 %v379
      %v448 = vunpack.c.l.b16 %v380
      %v449 = vunpack.c.l.b16 %v381
      %v450 = vunpack.c.l.b16 %v382
      %v451 = vunpack.c.l.b16 %v383
      %v452 = vunpack.c.l.b16 %v384
      %v453 = vunpack.c.l.b16 %v385
      %v454 = vunpack.c.l.b16 %v386
      %v455 = vunpack.c.l.b16 %v387
      %v456 = vunpack.c.l.b16 %v388
      %v457 = vunpack.c.l.b16 %v389
      %v458 = vunpack.c.l.b16 %v390
      %v459 = vunpack.c.l.b16 %v391
      %v460 = vunpack.c.l.b16 %v392
      %v461 = vunpack.c.l.b16 %v393
      %v462 = vunpack.c.l.b16 %v394
      %v463 = vunpack.c.l.b16 %v395
      %v464 = vunpack.c.l.b16 %v396
      %v465 = vunpack.c.l.b16 %v397
      %v466 = vunpack.c.l.b16 %v398
      %v467 = vunpack.c.l.b16 %v399
      %v468 = vunpack.c.l.b16 %v400
      %v469 = vpack.c.b16 %v438, %v437
      %v470 = vpack.c.b16 %v440, %v439
      %v471 = vpack.c.b16 %v442, %v441
      %v472 = vpack.c.b16 %v444, %v443
      %v473 = vpack.c.b16 %v446, %v445
      %v474 = vpack.c.b16 %v448, %v447
      %v475 = vpack.c.b16 %v450, %v449
      %v476 = vpack.c.b16 %v452, %v451
      %v477 = vpack.c.b16 %v454, %v453
      %v478 = vpack.c.b16 %v456, %v455
      %v479 = vpack.c.b16 %v458, %v457
      %v480 = vpack.c.b16 %v460, %v459
      %v481 = vpack.c.b16 %v462, %v461
      %v482 = vpack.c.b16 %v464, %v463
      %v483 = vpack.c.b16 %v466, %v465
      %v484 = vpack.c.b16 %v468, %v467
      %v489 = vunpack.c.l.b16 %v401
      %v490 = vunpack.c.l.b16 %v402
      %v491 = vunpack.c.l.b16 %v403
      %v492 = vunpack.c.l.b16 %v404
      %v493 = vpack.c.b16 %v490, %v489
      %v494 = vpack.c.b16 %v492, %v491
      %vm497 = vcmask 261120
      %v499 = vsel %vm497, %v469, 0
      %v502 = vsel %vm497, %v470, 0
      %v505 = vsel %vm497, %v471, 0
      %v508 = vsel %vm497, %v472, 0
      %v511 = vsel %vm497, %v473, 0
      %v514 = vsel %vm497, %v474, 0
      %v517 = vsel %vm497, %v475, 0
      %v520 = vsel %vm497, %v476, 0
      %v523 = vsel %vm497, %v477, 0
      %v526 = vsel %vm497, %v478, 0
      %v529 = vsel %vm497, %v479, 0
      %v532 = vsel %vm497, %v480, 0
      %v535 = vsel %vm497, %v481, 0
      %v538 = vsel %vm497, %v482, 0
      %v541 = vsel %vm497, %v483, 0
      %v544 = vsel %vm497, %v484, 0
      %546 = vmatprep.subr.bf16.mxu0 0
      %547 = vmatpush1.bf16.msra.mxu0 0
      %548 = vmatprep.subr.bf16.mxu0 0
      %549 = vmatpush1.bf16.msra.mxu0 0
      %550 = vmatprep.subr.bf16.mxu0 0
      %551 = vmatpush1.bf16.msra.mxu0 0
      %552 = vmatprep.subr.bf16.mxu0 0
      %553 = vmatpush1.bf16.msra.mxu0 0
      %554 = vmatprep.subr.bf16.mxu0 0
      %555 = vmatpush1.bf16.msra.mxu0 0
      %556 = vmatprep.subr.bf16.mxu0 0
      %557 = vmatpush1.bf16.msra.mxu0 0
      %558 = vmatprep.subr.bf16.mxu0 0
      %559 = vmatpush1.bf16.msra.mxu0 %v494
      %560 = vmatprep.subr.bf16.mxu0 0
      %561 = vmatpush1.bf16.msra.mxu0 %v493
      %562 = vmatprep.subr.bf16.mxu0 0
      %563 = vmatpush2.bf16.msra.mxu0 0
      %564 = vmatprep.subr.bf16.mxu0 0
      %565 = vmatpush2.bf16.msra.mxu0 0
      %566 = vmatprep.subr.bf16.mxu0 0
      %567 = vmatpush2.bf16.msra.mxu0 0
      %568 = vmatprep.subr.bf16.mxu0 0
      %569 = vmatpush2.bf16.msra.mxu0 0
      %570 = vmatprep.subr.bf16.mxu0 0
      %571 = vmatpush2.bf16.msra.mxu0 0
      %572 = vmatprep.subr.bf16.mxu0 0
      %573 = vmatpush2.bf16.msra.mxu0 0
      %574 = vmatprep.subr.bf16.mxu0 0
      %575 = vmatpush2.bf16.msra.mxu0 0
      %576 = vmatprep.subr.bf16.mxu0 0
      %577 = vmatpush2.bf16.msra.mxu0 0
      %578 = vmatprep.mubr.bf16.mxu0 0
      %579 = vmatmul.mubr.bf16.gmra.mxu0 %v499
      %v580 = vpop.f32.mrf.mxu0
      %v581 = vadd.f32 0.0, %v580
      %v582 = vpop.f32.mrf.mxu0
      %v583 = vpop.f32.mrf.mxu0
      %v584 = vadd.f32 0.0, %v583
      %v585 = vpop.f32.mrf.mxu0
      %586 = vmatprep.mubr.bf16.mxu0 0
      %587 = vmatmul.mubr.bf16.gmra.mxu0 %v502
      %v588 = vpop.f32.mrf.mxu0
      %v589 = vadd.f32 0.0, %v588
      %v590 = vpop.f32.mrf.mxu0
      %v591 = vpop.f32.mrf.mxu0
      %v592 = vadd.f32 0.0, %v591
      %v593 = vpop.f32.mrf.mxu0
      %594 = vmatprep.mubr.bf16.mxu0 0
      %595 = vmatmul.mubr.bf16.gmra.mxu0 %v505
      %v596 = vpop.f32.mrf.mxu0
      %v597 = vadd.f32 0.0, %v596
      %v598 = vpop.f32.mrf.mxu0
      %v599 = vpop.f32.mrf.mxu0
      %v600 = vadd.f32 0.0, %v599
      %v601 = vpop.f32.mrf.mxu0
      %602 = vmatprep.mubr.bf16.mxu0 0
      %603 = vmatmul.mubr.bf16.gmra.mxu0 %v508
      %v604 = vpop.f32.mrf.mxu0
      %v605 = vadd.f32 0.0, %v604
      %v606 = vpop.f32.mrf.mxu0
      %v607 = vpop.f32.mrf.mxu0
      %v608 = vadd.f32 0.0, %v607
      %v609 = vpop.f32.mrf.mxu0
      %610 = vmatprep.mubr.bf16.mxu0 0
      %611 = vmatmul.mubr.bf16.gmra.mxu0 %v511
      %v612 = vpop.f32.mrf.mxu0
      %v613 = vadd.f32 0.0, %v612
      %v614 = vpop.f32.mrf.mxu0
      %v615 = vpop.f32.mrf.mxu0
      %v616 = vadd.f32 0.0, %v615
      %v617 = vpop.f32.mrf.mxu0
      %618 = vmatprep.mubr.bf16.mxu0 0
      %619 = vmatmul.mubr.bf16.gmra.mxu0 %v514
      %v620 = vpop.f32.mrf.mxu0
      %v621 = vadd.f32 0.0, %v620
      %v622 = vpop.f32.mrf.mxu0
      %v623 = vpop.f32.mrf.mxu0
      %v624 = vadd.f32 0.0, %v623
      %v625 = vpop.f32.mrf.mxu0
      %626 = vmatprep.mubr.bf16.mxu0 0
      %627 = vmatmul.mubr.bf16.gmra.mxu0 %v517
      %v628 = vpop.f32.mrf.mxu0
      %v629 = vadd.f32 0.0, %v628
      %v630 = vpop.f32.mrf.mxu0
      %v631 = vpop.f32.mrf.mxu0
      %v632 = vadd.f32 0.0, %v631
      %v633 = vpop.f32.mrf.mxu0
      %634 = vmatprep.mubr.bf16.mxu0 0
      %635 = vmatmul.mubr.bf16.gmra.mxu0 %v520
      %v636 = vpop.f32.mrf.mxu0
      %v637 = vadd.f32 0.0, %v636
      %v638 = vpop.f32.mrf.mxu0
      %v639 = vpop.f32.mrf.mxu0
      %v640 = vadd.f32 0.0, %v639
      %v641 = vpop.f32.mrf.mxu0
      %642 = vmatprep.mubr.bf16.mxu0 0
      %643 = vmatmul.mubr.bf16.gmra.mxu0 %v523
      %v644 = vpop.f32.mrf.mxu0
      %v645 = vadd.f32 0.0, %v644
      %v646 = vpop.f32.mrf.mxu0
      %v647 = vpop.f32.mrf.mxu0
      %v648 = vadd.f32 0.0, %v647
      %v649 = vpop.f32.mrf.mxu0
      %650 = vmatprep.mubr.bf16.mxu0 0
      %651 = vmatmul.mubr.bf16.gmra.mxu0 %v526
      %v652 = vpop.f32.mrf.mxu0
      %v653 = vadd.f32 0.0, %v652
      %v654 = vpop.f32.mrf.mxu0
      %v655 = vpop.f32.mrf.mxu0
      %v656 = vadd.f32 0.0, %v655
      %v657 = vpop.f32.mrf.mxu0
      %658 = vmatprep.mubr.bf16.mxu0 0
      %659 = vmatmul.mubr.bf16.gmra.mxu0 %v529
      %v660 = vpop.f32.mrf.mxu0
      %v661 = vadd.f32 0.0, %v660
      %v662 = vpop.f32.mrf.mxu0
      %v663 = vpop.f32.mrf.mxu0
      %v664 = vadd.f32 0.0, %v663
      %v665 = vpop.f32.mrf.mxu0
      %666 = vmatprep.mubr.bf16.mxu0 0
      %667 = vmatmul.mubr.bf16.gmra.mxu0 %v532
      %v668 = vpop.f32.mrf.mxu0
      %v669 = vadd.f32 0.0, %v668
      %v670 = vpop.f32.mrf.mxu0
      %v671 = vpop.f32.mrf.mxu0
      %v672 = vadd.f32 0.0, %v671
      %v673 = vpop.f32.mrf.mxu0
      %674 = vmatprep.mubr.bf16.mxu0 0
      %675 = vmatmul.mubr.bf16.gmra.mxu0 %v535
      %v676 = vpop.f32.mrf.mxu0
      %v677 = vadd.f32 0.0, %v676
      %v678 = vpop.f32.mrf.mxu0
      %v679 = vpop.f32.mrf.mxu0
      %v680 = vadd.f32 0.0, %v679
      %v681 = vpop.f32.mrf.mxu0
      %682 = vmatprep.mubr.bf16.mxu0 0
      %683 = vmatmul.mubr.bf16.gmra.mxu0 %v538
      %v684 = vpop.f32.mrf.mxu0
      %v685 = vadd.f32 0.0, %v684
      %v686 = vpop.f32.mrf.mxu0
      %v687 = vpop.f32.mrf.mxu0
      %v688 = vadd.f32 0.0, %v687
      %v689 = vpop.f32.mrf.mxu0
      %690 = vmatprep.mubr.bf16.mxu0 0
      %691 = vmatmul.mubr.bf16.gmra.mxu0 %v541
      %v692 = vpop.f32.mrf.mxu0
      %v693 = vadd.f32 0.0, %v692
      %v694 = vpop.f32.mrf.mxu0
      %v695 = vpop.f32.mrf.mxu0
      %v696 = vadd.f32 0.0, %v695
      %v697 = vpop.f32.mrf.mxu0
      %698 = vmatprep.mubr.bf16.mxu0 0
      %699 = vmatmul.mubr.bf16.gmra.mxu0 %v544
      %v700 = vpop.f32.mrf.mxu0
      %v701 = vadd.f32 0.0, %v700
      %v702 = vpop.f32.mrf.mxu0
      %v703 = vpop.f32.mrf.mxu0
      %v704 = vadd.f32 0.0, %v703
      %v705 = vpop.f32.mrf.mxu0
      %706 = vdwg.mxu0
      %v707 = vadd.f32 %v337, %v581
      %v708 = vadd.f32 %v338, %v584
      %v709 = vadd.f32 %v339, %v589
      %v710 = vadd.f32 %v340, %v592
      %v711 = vadd.f32 %v341, %v597
      %v712 = vadd.f32 %v342, %v600
      %v713 = vadd.f32 %v343, %v605
      %v714 = vadd.f32 %v344, %v608
      %v715 = vadd.f32 %v345, %v613
      %v716 = vadd.f32 %v346, %v616
      %v717 = vadd.f32 %v347, %v621
      %v718 = vadd.f32 %v348, %v624
      %v719 = vadd.f32 %v349, %v629
      %v720 = vadd.f32 %v350, %v632
      %v721 = vadd.f32 %v351, %v637
      %v722 = vadd.f32 %v352, %v640
      %v723 = vadd.f32 %v353, %v645
      %v724 = vadd.f32 %v354, %v648
      %v725 = vadd.f32 %v355, %v653
      %v726 = vadd.f32 %v356, %v656
      %v727 = vadd.f32 %v357, %v661
      %v728 = vadd.f32 %v358, %v664
      %v729 = vadd.f32 %v359, %v669
      %v730 = vadd.f32 %v360, %v672
      %v731 = vadd.f32 %v361, %v677
      %v732 = vadd.f32 %v362, %v680
      %v733 = vadd.f32 %v363, %v685
      %v734 = vadd.f32 %v364, %v688
      %v735 = vadd.f32 %v365, %v693
      %v736 = vadd.f32 %v366, %v696
      %v737 = vadd.f32 %v367, %v701
      %v738 = vadd.f32 %v368, %v704
      %739 = vst [vmem:[#allocation2] sm:$0xff] %v707
      %740 = vst [vmem:[#allocation2 + $0x8] sm:$0xff] %v708
      %741 = vst [vmem:[#allocation2 + $0x10] sm:$0xff] %v709
      %742 = vst [vmem:[#allocation2 + $0x18] sm:$0xff] %v710
      %743 = vst [vmem:[#allocation2 + $0x20] sm:$0xff] %v711
      %744 = vst [vmem:[#allocation2 + $0x28] sm:$0xff] %v712
      %745 = vst [vmem:[#allocation2 + $0x30] sm:$0xff] %v713
      %746 = vst [vmem:[#allocation2 + $0x38] sm:$0xff] %v714
      %747 = vst [vmem:[#allocation2 + $0x40] sm:$0xff] %v715
      %748 = vst [vmem:[#allocation2 + $0x48] sm:$0xff] %v716
      %749 = vst [vmem:[#allocation2 + $0x50] sm:$0xff] %v717
      %750 = vst [vmem:[#allocation2 + $0x58] sm:$0xff] %v718
      %751 = vst [vmem:[#allocation2 + $0x60] sm:$0xff] %v719
      %752 = vst [vmem:[#allocation2 + $0x68] sm:$0xff] %v720
      %753 = vst [vmem:[#allocation2 + $0x70] sm:$0xff] %v721
      %754 = vst [vmem:[#allocation2 + $0x78] sm:$0xff] %v722
      %755 = vst [vmem:[#allocation2 + $0x80] sm:$0xff] %v723
      %756 = vst [vmem:[#allocation2 + $0x88] sm:$0xff] %v724
      %757 = vst [vmem:[#allocation2 + $0x90] sm:$0xff] %v725
      %758 = vst [vmem:[#allocation2 + $0x98] sm:$0xff] %v726
      %759 = vst [vmem:[#allocation2 + $0xa0] sm:$0xff] %v727
      %760 = vst [vmem:[#allocation2 + $0xa8] sm:$0xff] %v728
      %761 = vst [vmem:[#allocation2 + $0xb0] sm:$0xff] %v729
      %762 = vst [vmem:[#allocation2 + $0xb8] sm:$0xff] %v730
      %763 = vst [vmem:[#allocation2 + $0xc0] sm:$0xff] %v731
      %764 = vst [vmem:[#allocation2 + $0xc8] sm:$0xff] %v732
      %765 = vst [vmem:[#allocation2 + $0xd0] sm:$0xff] %v733
      %766 = vst [vmem:[#allocation2 + $0xd8] sm:$0xff] %v734
      %767 = vst [vmem:[#allocation2 + $0xe0] sm:$0xff] %v735
      %768 = vst [vmem:[#allocation2 + $0xe8] sm:$0xff] %v736
      %769 = vst [vmem:[#allocation2 + $0xf0] sm:$0xff] %v737
      %770 = vst [vmem:[#allocation2 + $0xf8] sm:$0xff] %v738
      // Predicated region
      $region41: #{resnet_forward.13} parent=35 // pred_check
        %p771 = pneg %p301
      $region42: #{resnet_forward.13} parent=35 // pred_check_branch
        %773 = sbr.rel (%p771) target = $region44
      $region43: #{resnet_forward.13} parent=35 // pred_region
        %v774 = vld [vmem:[#allocation2] sm:$0xff]
        %v775 = vld [vmem:[#allocation2 + $0x8] sm:$0xff]
        %v776 = vld [vmem:[#allocation2 + $0x10] sm:$0xff]
        %v777 = vld [vmem:[#allocation2 + $0x18] sm:$0xff]
        %v778 = vld [vmem:[#allocation2 + $0x20] sm:$0xff]
        %v779 = vld [vmem:[#allocation2 + $0x28] sm:$0xff]
        %v780 = vld [vmem:[#allocation2 + $0x30] sm:$0xff]
        %v781 = vld [vmem:[#allocation2 + $0x38] sm:$0xff]
        %v782 = vld [vmem:[#allocation2 + $0x40] sm:$0xff]
        %v783 = vld [vmem:[#allocation2 + $0x48] sm:$0xff]
        %v784 = vld [vmem:[#allocation2 + $0x50] sm:$0xff]
        %v785 = vld [vmem:[#allocation2 + $0x58] sm:$0xff]
        %v786 = vld [vmem:[#allocation2 + $0x60] sm:$0xff]
        %v787 = vld [vmem:[#allocation2 + $0x68] sm:$0xff]
        %v788 = vld [vmem:[#allocation2 + $0x70] sm:$0xff]
        %v789 = vld [vmem:[#allocation2 + $0x78] sm:$0xff]
        %v790 = vld [vmem:[#allocation2 + $0x80] sm:$0xff]
        %v791 = vld [vmem:[#allocation2 + $0x88] sm:$0xff]
        %v792 = vld [vmem:[#allocation2 + $0x90] sm:$0xff]
        %v793 = vld [vmem:[#allocation2 + $0x98] sm:$0xff]
        %v794 = vld [vmem:[#allocation2 + $0xa0] sm:$0xff]
        %v795 = vld [vmem:[#allocation2 + $0xa8] sm:$0xff]
        %v796 = vld [vmem:[#allocation2 + $0xb0] sm:$0xff]
        %v797 = vld [vmem:[#allocation2 + $0xb8] sm:$0xff]
        %v798 = vld [vmem:[#allocation2 + $0xc0] sm:$0xff]
        %v799 = vld [vmem:[#allocation2 + $0xc8] sm:$0xff]
        %v800 = vld [vmem:[#allocation2 + $0xd0] sm:$0xff]
        %v801 = vld [vmem:[#allocation2 + $0xd8] sm:$0xff]
        %v802 = vld [vmem:[#allocation2 + $0xe0] sm:$0xff]
        %v803 = vld [vmem:[#allocation2 + $0xe8] sm:$0xff]
        %v804 = vld [vmem:[#allocation2 + $0xf0] sm:$0xff]
        %v805 = vld [vmem:[#allocation2 + $0xf8] sm:$0xff]
        %v806 = vld [vmem:[%s287] sm:$0x1]
        %v808 = vlaneseq
        %v809 = vshrl.u32 %v808, 7
        %v810 = vsub.s32 0, %v809
        %v811 = vrot.slane %v806, %v810
        %v813 = vmul.f32 %v774, %v811
        %v814 = vmul.f32 %v775, %v811
        %v815 = vmul.f32 %v776, %v811
        %v816 = vmul.f32 %v777, %v811
        %v817 = vmul.f32 %v778, %v811
        %v818 = vmul.f32 %v779, %v811
        %v819 = vmul.f32 %v780, %v811
        %v820 = vmul.f32 %v781, %v811
        %v821 = vmul.f32 %v782, %v811
        %v822 = vmul.f32 %v783, %v811
        %v823 = vmul.f32 %v784, %v811
        %v824 = vmul.f32 %v785, %v811
        %v825 = vmul.f32 %v786, %v811
        %v826 = vmul.f32 %v787, %v811
        %v827 = vmul.f32 %v788, %v811
        %v828 = vmul.f32 %v789, %v811
        %v829 = vmul.f32 %v790, %v811
        %v830 = vmul.f32 %v791, %v811
        %v831 = vmul.f32 %v792, %v811
        %v832 = vmul.f32 %v793, %v811
        %v833 = vmul.f32 %v794, %v811
        %v834 = vmul.f32 %v795, %v811
        %v835 = vmul.f32 %v796, %v811
        %v836 = vmul.f32 %v797, %v811
        %v837 = vmul.f32 %v798, %v811
        %v838 = vmul.f32 %v799, %v811
        %v839 = vmul.f32 %v800, %v811
        %v840 = vmul.f32 %v801, %v811
        %v841 = vmul.f32 %v802, %v811
        %v842 = vmul.f32 %v803, %v811
        %v843 = vmul.f32 %v804, %v811
        %v844 = vmul.f32 %v805, %v811
        %v845 = vld [vmem:[%s290] sm:$0x1]
        %v847 = vlaneseq
        %v848 = vshrl.u32 %v847, 7
        %v849 = vsub.s32 0, %v848
        %v850 = vrot.slane %v845, %v849
        %v852 = vadd.f32 %v813, %v850
        %v853 = vadd.f32 %v814, %v850
        %v854 = vadd.f32 %v815, %v850
        %v855 = vadd.f32 %v816, %v850
        %v856 = vadd.f32 %v817, %v850
        %v857 = vadd.f32 %v818, %v850
        %v858 = vadd.f32 %v819, %v850
        %v859 = vadd.f32 %v820, %v850
        %v860 = vadd.f32 %v821, %v850
        %v861 = vadd.f32 %v822, %v850
        %v862 = vadd.f32 %v823, %v850
        %v863 = vadd.f32 %v824, %v850
        %v864 = vadd.f32 %v825, %v850
        %v865 = vadd.f32 %v826, %v850
        %v866 = vadd.f32 %v827, %v850
        %v867 = vadd.f32 %v828, %v850
        %v868 = vadd.f32 %v829, %v850
        %v869 = vadd.f32 %v830, %v850
        %v870 = vadd.f32 %v831, %v850
        %v871 = vadd.f32 %v832, %v850
        %v872 = vadd.f32 %v833, %v850
        %v873 = vadd.f32 %v834, %v850
        %v874 = vadd.f32 %v835, %v850
        %v875 = vadd.f32 %v836, %v850
        %v876 = vadd.f32 %v837, %v850
        %v877 = vadd.f32 %v838, %v850
        %v878 = vadd.f32 %v839, %v850
        %v879 = vadd.f32 %v840, %v850
        %v880 = vadd.f32 %v841, %v850
        %v881 = vadd.f32 %v842, %v850
        %v882 = vadd.f32 %v843, %v850
        %v883 = vadd.f32 %v844, %v850
        %v884 = vmax.f32 %v852, 0.0
        %v885 = vmax.f32 %v853, 0.0
        %v886 = vmax.f32 %v854, 0.0
        %v887 = vmax.f32 %v855, 0.0
        %v888 = vmax.f32 %v856, 0.0
        %v889 = vmax.f32 %v857, 0.0
        %v890 = vmax.f32 %v858, 0.0
        %v891 = vmax.f32 %v859, 0.0
        %v892 = vmax.f32 %v860, 0.0
        %v893 = vmax.f32 %v861, 0.0
        %v894 = vmax.f32 %v862, 0.0
        %v895 = vmax.f32 %v863, 0.0
        %v896 = vmax.f32 %v864, 0.0
        %v897 = vmax.f32 %v865, 0.0
        %v898 = vmax.f32 %v866, 0.0
        %v899 = vmax.f32 %v867, 0.0
        %v900 = vmax.f32 %v868, 0.0
        %v901 = vmax.f32 %v869, 0.0
        %v902 = vmax.f32 %v870, 0.0
        %v903 = vmax.f32 %v871, 0.0
        %v904 = vmax.f32 %v872, 0.0
        %v905 = vmax.f32 %v873, 0.0
        %v906 = vmax.f32 %v874, 0.0
        %v907 = vmax.f32 %v875, 0.0
        %v908 = vmax.f32 %v876, 0.0
        %v909 = vmax.f32 %v877, 0.0
        %v910 = vmax.f32 %v878, 0.0
        %v911 = vmax.f32 %v879, 0.0
        %v912 = vmax.f32 %v880, 0.0
        %v913 = vmax.f32 %v881, 0.0
        %v914 = vmax.f32 %v882, 0.0
        %v915 = vmax.f32 %v883, 0.0
        %v916 = vpack.c.bf16 %v885, %v884
        %v917 = vpack.c.bf16 %v887, %v886
        %v918 = vpack.c.bf16 %v889, %v888
        %v919 = vpack.c.bf16 %v891, %v890
        %v920 = vpack.c.bf16 %v893, %v892
        %v921 = vpack.c.bf16 %v895, %v894
        %v922 = vpack.c.bf16 %v897, %v896
        %v923 = vpack.c.bf16 %v899, %v898
        %v924 = vpack.c.bf16 %v901, %v900
        %v925 = vpack.c.bf16 %v903, %v902
        %v926 = vpack.c.bf16 %v905, %v904
        %v927 = vpack.c.bf16 %v907, %v906
        %v928 = vpack.c.bf16 %v909, %v908
        %v929 = vpack.c.bf16 %v911, %v910
        %v930 = vpack.c.bf16 %v913, %v912
        %v931 = vpack.c.bf16 %v915, %v914
        %v948 = vunpack.c.l.b16 %v916
        %v949 = vunpack.c.h.b16 %v916
        %v950 = vunpack.c.l.b16 %v917
        %v951 = vunpack.c.h.b16 %v917
        %v952 = vunpack.c.l.b16 %v918
        %v953 = vunpack.c.h.b16 %v918
        %v954 = vunpack.c.l.b16 %v919
        %v955 = vunpack.c.h.b16 %v919
        %v956 = vunpack.c.l.b16 %v920
        %v957 = vunpack.c.h.b16 %v920
        %v958 = vunpack.c.l.b16 %v921
        %v959 = vunpack.c.h.b16 %v921
        %v960 = vunpack.c.l.b16 %v922
        %v961 = vunpack.c.h.b16 %v922
        %v962 = vunpack.c.l.b16 %v923
        %v963 = vunpack.c.h.b16 %v923
        %v964 = vunpack.c.l.b16 %v924
        %v965 = vunpack.c.h.b16 %v924
        %v966 = vunpack.c.l.b16 %v925
        %v967 = vunpack.c.h.b16 %v925
        %v968 = vunpack.c.l.b16 %v926
        %v969 = vunpack.c.h.b16 %v926
        %v970 = vunpack.c.l.b16 %v927
        %v971 = vunpack.c.h.b16 %v927
        %v972 = vunpack.c.l.b16 %v928
        %v973 = vunpack.c.h.b16 %v928
        %v974 = vunpack.c.l.b16 %v929
        %v975 = vunpack.c.h.b16 %v929
        %v976 = vunpack.c.l.b16 %v930
        %v977 = vunpack.c.h.b16 %v930
        %v978 = vunpack.c.l.b16 %v931
        %v979 = vunpack.c.h.b16 %v931
        %v980 = vpack.c.b16 %v948, %v948
        %v981 = vpack.c.b16 %v949, %v949
        %v982 = vpack.c.b16 %v950, %v950
        %v983 = vpack.c.b16 %v951, %v951
        %v984 = vpack.c.b16 %v952, %v952
        %v985 = vpack.c.b16 %v953, %v953
        %v986 = vpack.c.b16 %v954, %v954
        %v987 = vpack.c.b16 %v955, %v955
        %v988 = vpack.c.b16 %v956, %v956
        %v989 = vpack.c.b16 %v957, %v957
        %v990 = vpack.c.b16 %v958, %v958
        %v991 = vpack.c.b16 %v959, %v959
        %v992 = vpack.c.b16 %v960, %v960
        %v993 = vpack.c.b16 %v961, %v961
        %v994 = vpack.c.b16 %v962, %v962
        %v995 = vpack.c.b16 %v963, %v963
        %v996 = vpack.c.b16 %v964, %v964
        %v997 = vpack.c.b16 %v965, %v965
        %v998 = vpack.c.b16 %v966, %v966
        %v999 = vpack.c.b16 %v967, %v967
        %v1000 = vpack.c.b16 %v968, %v968
        %v1001 = vpack.c.b16 %v969, %v969
        %v1002 = vpack.c.b16 %v970, %v970
        %v1003 = vpack.c.b16 %v971, %v971
        %v1004 = vpack.c.b16 %v972, %v972
        %v1005 = vpack.c.b16 %v973, %v973
        %v1006 = vpack.c.b16 %v974, %v974
        %v1007 = vpack.c.b16 %v975, %v975
        %v1008 = vpack.c.b16 %v976, %v976
        %v1009 = vpack.c.b16 %v977, %v977
        %v1010 = vpack.c.b16 %v978, %v978
        %v1011 = vpack.c.b16 %v979, %v979
        %1044 = vst [vmem:[%s298] sm:$0xf] %v980
        %1045 = vst [vmem:[%s298 + $0x4] sm:$0xf] %v981
        %1046 = vst [vmem:[%s298 + $0x8] sm:$0xf] %v982
        %1047 = vst [vmem:[%s298 + $0xc] sm:$0xf] %v983
        %1048 = vst [vmem:[%s298 + $0x10] sm:$0xf] %v984
        %1049 = vst [vmem:[%s298 + $0x14] sm:$0xf] %v985
        %1050 = vst [vmem:[%s298 + $0x18] sm:$0xf] %v986
        %1051 = vst [vmem:[%s298 + $0x1c] sm:$0xf] %v987
        %1052 = vst [vmem:[%s298 + $0x20] sm:$0xf] %v988
        %1053 = vst [vmem:[%s298 + $0x24] sm:$0xf] %v989
        %1054 = vst [vmem:[%s298 + $0x28] sm:$0xf] %v990
        %1055 = vst [vmem:[%s298 + $0x2c] sm:$0xf] %v991
        %1056 = vst [vmem:[%s298 + $0x30] sm:$0xf] %v992
        %1057 = vst [vmem:[%s298 + $0x34] sm:$0xf] %v993
        %1058 = vst [vmem:[%s298 + $0x38] sm:$0xf] %v994
        %1059 = vst [vmem:[%s298 + $0x3c] sm:$0xf] %v995
        %1060 = vst [vmem:[%s298 + $0x40] sm:$0xf] %v996
        %1061 = vst [vmem:[%s298 + $0x44] sm:$0xf] %v997
        %1062 = vst [vmem:[%s298 + $0x48] sm:$0xf] %v998
        %1063 = vst [vmem:[%s298 + $0x4c] sm:$0xf] %v999
        %1064 = vst [vmem:[%s298 + $0x50] sm:$0xf] %v1000
        %1065 = vst [vmem:[%s298 + $0x54] sm:$0xf] %v1001
        %1066 = vst [vmem:[%s298 + $0x58] sm:$0xf] %v1002
        %1067 = vst [vmem:[%s298 + $0x5c] sm:$0xf] %v1003
        %1068 = vst [vmem:[%s298 + $0x60] sm:$0xf] %v1004
        %1069 = vst [vmem:[%s298 + $0x64] sm:$0xf] %v1005
        %1070 = vst [vmem:[%s298 + $0x68] sm:$0xf] %v1006
        %1071 = vst [vmem:[%s298 + $0x6c] sm:$0xf] %v1007
        %1072 = vst [vmem:[%s298 + $0x70] sm:$0xf] %v1008
        %1073 = vst [vmem:[%s298 + $0x74] sm:$0xf] %v1009
        %1074 = vst [vmem:[%s298 + $0x78] sm:$0xf] %v1010
        %1075 = vst [vmem:[%s298 + $0x7c] sm:$0xf] %v1011
      $region44: #{resnet_forward.13} parent=35 // pred_fallthru
        _
      %s1076 = smul.u32 32, %s20
      %p1077 = scmp.lt.s32.totalorder %s1076, 63
      %s1078 = scalar_select %p1077, %s1076, 63
      %p1079 = scmp.lt.s32.totalorder %s21, 0
      %s1080 = scalar_select %p1079, %s21, 0
      %s1081 = sadd.s32 %s1080, %s1078
      %s1082 = smul.addr %s1081, 4
      %s1083 = scalar_lea.vmem %s4, %s1082
      // Predicated region
      $region45: #{resnet_forward.13} parent=35 // pred_check
        %p1084 = pneg %p162
      $region46: #{resnet_forward.13} parent=35 // pred_check_branch
        %1086 = sbr.rel (%p1084) target = $region48
      $region47: #{resnet_forward.13} parent=35 // pred_region
        %s1087 = smul.u32 32, %s20
      $region48: #{resnet_forward.13} parent=35 // pred_fallthru
        _
    $region36: #{resnet_forward.13} parent=5 // pred_fallthru
      _
    %p1088 = scmp.le.s32.totalorder 2, %s10
    // Predicated region
    $region49: #{resnet_forward.13} parent=5 // pred_check
      %p1089 = pneg %p1088
    $region50: #{resnet_forward.13} parent=5 // pred_check_branch
      %1091 = sbr.rel (%p1089) target = $region52
    $region51: #{resnet_forward.13} parent=5 // pred_region
      %s1092 = ssub.s32 %s10, 2
      // Predicated region
      $region53: #{resnet_forward.13} parent=51 // pred_check
        %p1093 = pneg %p168
      $region54: #{resnet_forward.13} parent=51 // pred_check_branch
        %1095 = sbr.rel (%p1093) target = $region56
      $region55: #{resnet_forward.13} parent=51 // pred_region
        %s1096 = smul.u32 32, %s23
        %p1097 = scmp.lt.s32.totalorder %s1096, 63
        %s1098 = scalar_select %p1097, %s1096, 63
        %p1099 = scmp.lt.s32.totalorder %s24, 0
        %s1100 = scalar_select %p1099, %s24, 0
        %s1101 = sadd.s32 %s1100, %s1098
        %s1102 = smul.addr %s1101, 4
        %s1103 = scalar_lea.vmem %s4, %s1102
      $region56: #{resnet_forward.13} parent=51 // pred_fallthru
        _
    $region52: #{resnet_forward.13} parent=5 // pred_fallthru
      _
  $region6: #{resnet_forward.13} parent=0 // loop_footer
    %s14 = sadd.s32 1, %s10
  $region7: #{resnet_forward.13} parent=0 // loop_footer_branch
    %9 = sbr.rel target = $region3
  $region8: #{resnet_forward.13} parent=0 // loop_exit
    _

// kernel: resnet_forward.14
$region0: #{resnet_forward.14}
  #allocation0 [shape = 'u32[]', space=smem, size = 0x4, offset = 0x4, fixed_abs, tag = 'smem constant byte address 0x4 - core index']
  #allocation1 [shape = 'u32[144,128]{1,0:T(1,128)}', space=vmem, size = 0x12000, scoped, tag = 'internal scratch']
  #allocation2 [shape = 'f32[256,128]{1,0:T(8,128)}', space=vmem, size = 0x20000, scoped, tag = 'scratch operand']
  %s0 = inlined_call_operand.vmem [shape: bf16[512,40], index: 0, kind: input, shape index: {}]
  %s1 = inlined_call_operand.vmem [shape: bf16[40,128], index: 1, kind: input, shape index: {}]
  %s2 = inlined_call_operand.vmem [shape: f32[1,128], index: 2, kind: input, shape index: {}]
  %s3 = inlined_call_operand.vmem [shape: f32[1,128], index: 3, kind: input, shape index: {}]
  %s4 = inlined_call_operand.vmem [shape: bf16[512,128], index: 4, kind: output, shape index: {}]
  %s5 = sld [smem:[#allocation0]]
  $region57: #{resnet_forward.14} parent=0
    _
  %s7 = ssub.s32 1, %s5
  %s8 = scalar_select 0, %s7, %s5
  loop: start=0, step=1, limit=4
  $region2: #{resnet_forward.14} parent=0 // loop_pre_header
    _
  $region3: #{resnet_forward.14} parent=0 // loop_header
    %s10 = sphi 0, %s14
    %p11 = scmp.ge.s32.totalorder %s10, 4
    %s17 = sphi 0, %s36
    %s18 = sphi 0, %s32
    %s19 = sphi 0, %s28
    %s20 = sphi 0, %s17
    %s21 = sphi 0, %s18
    %s22 = sphi 0, %s19
    %s23 = sphi 0, %s20
    %s24 = sphi 0, %s21
    %s25 = sphi 0, %s22
    %s41 = sphi 0, %s43
    %s44 = sphi 0, %s41
    %s45 = sphi 0, %s44
    %s61 = sphi 0, %s45
    %s69 = sphi 0, %s71
    %s72 = sphi 0, %s69
    %s73 = sphi 0, %s72
    %s89 = sphi 0, %s73
    %s95 = sphi 0, %s97
    %s98 = sphi 0, %s95
    %s99 = sphi 0, %s98
    %s115 = sphi 0, %s99
    %s121 = sphi 0, %s123
    %s124 = sphi 0, %s121
    %s125 = sphi 0, %s124
    %s141 = sphi 0, %s125
    %s149 = sphi 0, %s151
    %s152 = sphi 0, %s149
    %s153 = sphi 0, %s152
    %s169 = sphi 0, %s153
  $region4: #{resnet_forward.14} parent=0 // loop_header_branch
    %13 = sbr.rel (%p11) target = $region8
  $region5: #{resnet_forward.14} parent=0 // loop_body
    %s15 = ssub.s32 %s10, 1
    %s16 = ssub.s32 %s10, 2
    %s26 = sadd.s32 1, %s19
    %p27 = scmp.ge.s32.totalorder %s26, 1
    %s28 = scalar_select %p27, 0, %s26
    %s29 = sadd.s32 1, %s18
    %s30 = scalar_select %p27, %s29, %s18
    %p31 = scmp.ge.s32.totalorder %s30, 1
    %s32 = scalar_select %p31, 0, %s30
    %s33 = sadd.s32 1, %s17
    %s34 = scalar_select %p31, %s33, %s17
    %p35 = scmp.ge.s32.totalorder %s34, 2
    %s36 = scalar_select %p35, 0, %s34
    %s37 = ssub.s32 %s17, %s36
    %s38 = ssub.s32 %s19, %s28
    %s39 = sor.u32 %s37, %s38
    %p40 = scmp.eq.s32.totalorder %s39, 0
    %s42 = sadd.s32 %s41, 1
    %s43 = scalar_select %p40, %s41, %s42
    %p46 = pneg %p40
    %p47 = scmp.eq.s32.totalorder %s10, 1
    %p48 = por %p46, %p47
    %p49 = scmp.ne.s32.totalorder %s41, %s44
    %p50 = scmp.eq.s32.totalorder %s10, 0
    %p51 = por %p49, %p50
    %p52 = scmp.ne.s32.totalorder %s41, %s44
    %p53 = scmp.eq.s32.totalorder %s15, 1
    %p54 = por %p52, %p53
    %p55 = scmp.ne.s32.totalorder %s44, %s45
    %p56 = scmp.eq.s32.totalorder %s15, 0
    %p57 = por %p55, %p56
    %p58 = scmp.ne.s32.totalorder %s44, %s45
    %p59 = scmp.eq.s32.totalorder %s16, 1
    %p60 = por %p58, %p59
    %p62 = scmp.ne.s32.totalorder %s45, %s61
    %p63 = scmp.eq.s32.totalorder %s16, 0
    %p64 = por %p62, %p63
    %s65 = ssub.s32 %s19, %s28
    %s66 = ssub.s32 %s18, %s32
    %s67 = sor.u32 %s65, %s66
    %p68 = scmp.eq.s32.totalorder %s67, 0
    %s70 = sadd.s32 %s69, 1
    %s71 = scalar_select %p68, %s69, %s70
    %p74 = pneg %p68
    %p75 = scmp.eq.s32.totalorder %s10, 1
    %p76 = por %p74, %p75
    %p77 = scmp.ne.s32.totalorder %s69, %s72
    %p78 = scmp.eq.s32.totalorder %s10, 0
    %p79 = por %p77, %p78
    %p80 = scmp.ne.s32.totalorder %s69, %s72
    %p81 = scmp.eq.s32.totalorder %s15, 1
    %p82 = por %p80, %p81
    %p83 = scmp.ne.s32.totalorder %s72, %s73
    %p84 = scmp.eq.s32.totalorder %s15, 0
    %p85 = por %p83, %p84
    %p86 = scmp.ne.s32.totalorder %s72, %s73
    %p87 = scmp.eq.s32.totalorder %s16, 1
    %p88 = por %p86, %p87
    %p90 = scmp.ne.s32.totalorder %s73, %s89
    %p91 = scmp.eq.s32.totalorder %s16, 0
    %p92 = por %p90, %p91
    %s93 = ssub.s32 %s18, %s32
    %p94 = scmp.eq.s32.totalorder %s93, 0
    %s96 = sadd.s32 %s95, 1
    %s97 = scalar_select %p94, %s95, %s96
    %p100 = pneg %p94
    %p101 = scmp.eq.s32.totalorder %s10, 1
    %p102 = por %p100, %p101
    %p103 = scmp.ne.s32.totalorder %s95, %s98
    %p104 = scmp.eq.s32.totalorder %s10, 0
    %p105 = por %p103, %p104
    %p106 = scmp.ne.s32.totalorder %s95, %s98
    %p107 = scmp.eq.s32.totalorder %s15, 1
    %p108 = por %p106, %p107
    %p109 = scmp.ne.s32.totalorder %s98, %s99
    %p110 = scmp.eq.s32.totalorder %s15, 0
    %p111 = por %p109, %p110
    %p112 = scmp.ne.s32.totalorder %s98, %s99
    %p113 = scmp.eq.s32.totalorder %s16, 1
    %p114 = por %p112, %p113
    %p116 = scmp.ne.s32.totalorder %s99, %s115
    %p117 = scmp.eq.s32.totalorder %s16, 0
    %p118 = por %p116, %p117
    %s119 = ssub.s32 %s18, %s32
    %p120 = scmp.eq.s32.totalorder %s119, 0
    %s122 = sadd.s32 %s121, 1
    %s123 = scalar_select %p120, %s121, %s122
    %p126 = pneg %p120
    %p127 = scmp.eq.s32.totalorder %s10, 1
    %p128 = por %p126, %p127
    %p129 = scmp.ne.s32.totalorder %s121, %s124
    %p130 = scmp.eq.s32.totalorder %s10, 0
    %p131 = por %p129, %p130
    %p132 = scmp.ne.s32.totalorder %s121, %s124
    %p133 = scmp.eq.s32.totalorder %s15, 1
    %p134 = por %p132, %p133
    %p135 = scmp.ne.s32.totalorder %s124, %s125
    %p136 = scmp.eq.s32.totalorder %s15, 0
    %p137 = por %p135, %p136
    %p138 = scmp.ne.s32.totalorder %s124, %s125
    %p139 = scmp.eq.s32.totalorder %s16, 1
    %p140 = por %p138, %p139
    %p142 = scmp.ne.s32.totalorder %s125, %s141
    %p143 = scmp.eq.s32.totalorder %s16, 0
    %p144 = por %p142, %p143
    %s145 = ssub.s32 %s17, %s36
    %s146 = ssub.s32 %s18, %s32
    %s147 = sor.u32 %s145, %s146
    %p148 = scmp.eq.s32.totalorder %s147, 0
    %s150 = sadd.s32 %s149, 1
    %s151 = scalar_select %p148, %s149, %s150
    %p154 = pneg %p148
    %p155 = scmp.eq.s32.totalorder %s10, 1
    %p156 = por %p154, %p155
    %p157 = scmp.ne.s32.totalorder %s149, %s152
    %p158 = scmp.eq.s32.totalorder %s10, 0
    %p159 = por %p157, %p158
    %p160 = scmp.ne.s32.totalorder %s149, %s152
    %p161 = scmp.eq.s32.totalorder %s15, 1
    %p162 = por %p160, %p161
    %p163 = scmp.ne.s32.totalorder %s152, %s153
    %p164 = scmp.eq.s32.totalorder %s15, 0
    %p165 = por %p163, %p164
    %p166 = scmp.ne.s32.totalorder %s152, %s153
    %p167 = scmp.eq.s32.totalorder %s16, 1
    %p168 = por %p166, %p167
    %p170 = scmp.ne.s32.totalorder %s153, %s169
    %p171 = scmp.eq.s32.totalorder %s16, 0
    %p172 = por %p170, %p171
    %p173 = scmp.le.s32.totalorder 1, %s10
    %p174 = scmp.lt.s32.totalorder %s10, 3
    %p175 = pnand %p173, %p174
    %p176 = pneg %p175
    // Predicated region
    $region9: #{resnet_forward.14} parent=5 // pred_check
      _
    $region10: #{resnet_forward.14} parent=5 // pred_check_branch
      %178 = sbr.rel (%p175) target = $region12
    $region11: #{resnet_forward.14} parent=5 // pred_region
      %s179 = ssub.s32 %s10, 1
      // Predicated region
      $region13: #{resnet_forward.14} parent=11 // pred_check
        %p180 = pneg %p85
      $region14: #{resnet_forward.14} parent=11 // pred_check_branch
        %182 = sbr.rel (%p180) target = $region16
      $region15: #{resnet_forward.14} parent=11 // pred_region
        %s183 = smul.u32 5, %s22
        %p184 = scmp.lt.s32.totalorder %s183, 4
        %s185 = scalar_select %p184, %s183, 4
        %p186 = scmp.lt.s32.totalorder %s21, 0
        %s187 = scalar_select %p186, %s21, 0
        %s188 = sadd.s32 %s187, %s185
        %s189 = smul.addr %s188, 4
        %s190 = scalar_lea.vmem %s1, %s189
        %s191 = smul.u32 5, %s22
      $region16: #{resnet_forward.14} parent=11 // pred_fallthru
        _
      // Predicated region
      $region17: #{resnet_forward.14} parent=11 // pred_check
        %p192 = pneg %p111
      $region18: #{resnet_forward.14} parent=11 // pred_check_branch
        %194 = sbr.rel (%p192) target = $region20
      $region19: #{resnet_forward.14} parent=11 // pred_region
        %p195 = scmp.lt.s32.totalorder %s21, 0
        %s196 = scalar_select %p195, %s21, 0
        %s197 = scalar_lea.vmem %s2, %s196
      $region20: #{resnet_forward.14} parent=11 // pred_fallthru
        _
      // Predicated region
      $region21: #{resnet_forward.14} parent=11 // pred_check
        %p198 = pneg %p137
      $region22: #{resnet_forward.14} parent=11 // pred_check_branch
        %200 = sbr.rel (%p198) target = $region24
      $region23: #{resnet_forward.14} parent=11 // pred_region
        %p201 = scmp.lt.s32.totalorder %s21, 0
        %s202 = scalar_select %p201, %s21, 0
        %s203 = scalar_lea.vmem %s3, %s202
      $region24: #{resnet_forward.14} parent=11 // pred_fallthru
        _
    $region12: #{resnet_forward.14} parent=5 // pred_fallthru
      _
    %p204 = scmp.lt.s32.totalorder %s10, 2
    // Predicated region
    $region25: #{resnet_forward.14} parent=5 // pred_check
      %p205 = pneg %p204
    $region26: #{resnet_forward.14} parent=5 // pred_check_branch
      %207 = sbr.rel (%p205) target = $region28
    $region27: #{resnet_forward.14} parent=5 // pred_region
      // Predicated region
      $region29: #{resnet_forward.14} parent=27 // pred_check
        %p208 = pneg %p51
      $region30: #{resnet_forward.14} parent=27 // pred_check_branch
        %210 = sbr.rel (%p208) target = $region32
      $region31: #{resnet_forward.14} parent=27 // pred_region
        %s211 = smul.u32 32, %s17
        %p212 = scmp.lt.s32.totalorder %s211, 63
        %s213 = scalar_select %p212, %s211, 63
        %p214 = scmp.lt.s32.totalorder %s19, 0
        %s215 = scalar_select %p214, %s19, 0
        %s216 = sadd.s32 %s215, %s213
        %s217 = smul.addr %s216, 4
        %s218 = scalar_lea.vmem %s0, %s217
        %s219 = smul.u32 32, %s17
      $region32: #{resnet_forward.14} parent=27 // pred_fallthru
        _
    $region28: #{resnet_forward.14} parent=5 // pred_fallthru
      _
    %p220 = scmp.le.s32.totalorder 1, %s10
    %p221 = scmp.lt.s32.totalorder %s10, 3
    %p222 = pnand %p220, %p221
    %p223 = pneg %p222
    // Predicated region
    $region33: #{resnet_forward.14} parent=5 // pred_check
      _
    $region34: #{resnet_forward.14} parent=5 // pred_check_branch
      %225 = sbr.rel (%p222) target = $region36
    $region35: #{resnet_forward.14} parent=5 // pred_region
      %s226 = ssub.s32 %s10, 1
      %s227 = smul.u32 32, %s20
      %p228 = scmp.lt.s32.totalorder %s227, 63
      %s229 = scalar_select %p228, %s227, 63
      %p230 = scmp.lt.s32.totalorder %s22, 0
      %s231 = scalar_select %p230, %s22, 0
      %s232 = sadd.s32 %s231, %s229
      %s233 = smul.addr %s232, 4
      %s234 = scalar_lea.vmem %s0, %s233
      %p235 = pneg %p57
      %p236 = pneg %p54
      %s237 = smul.u32 5, %s22
      %p238 = scmp.lt.s32.totalorder %s237, 4
      %s239 = scalar_select %p238, %s237, 4
      %p240 = scmp.lt.s32.totalorder %s21, 0
      %s241 = scalar_select %p240, %s21, 0
      %s242 = sadd.s32 %s241, %s239
      %s243 = smul.addr %s242, 4
      %s244 = scalar_lea.vmem %s1, %s243
      %p245 = pneg %p85
      %p246 = pneg %p82
      %p247 = scmp.lt.s32.totalorder %s21, 0
      %s248 = scalar_select %p247, %s21, 0
      %s249 = scalar_lea.vmem %s2, %s248
      %p250 = pneg %p111
      %p251 = pneg %p108
      %p252 = scmp.lt.s32.totalorder %s21, 0
      %s253 = scalar_select %p252, %s21, 0
      %s254 = scalar_lea.vmem %s3, %s253
      %p255 = pneg %p137
      %p256 = pneg %p134
      %p257 = pneg %p165
      %p258 = pneg %p162
      %s259 = smul.u32 32, %s20
      %p260 = scmp.lt.s32.totalorder %s259, 63
      %s261 = scalar_select %p260, %s259, 63
      %p262 = scmp.lt.s32.totalorder %s21, 0
      %s263 = scalar_select %p262, %s21, 0
      %s264 = sadd.s32 %s263, %s261
      %s265 = smul.addr %s264, 4
      %s266 = scalar_lea.vmem %s4, %s265
      %s267 = smul.u32 32, %s20
      %p268 = scmp.lt.s32.totalorder %s267, 63
      %s269 = scalar_select %p268, %s267, 63
      %p270 = scmp.lt.s32.totalorder %s22, 0
      %s271 = scalar_select %p270, %s22, 0
      %s272 = sadd.s32 %s271, %s269
      %s273 = smul.addr %s272, 4
      %s274 = scalar_lea.vmem %s0, %s273
      %s275 = smul.u32 32, %s20
      %s276 = smul.u32 5, %s22
      %p277 = scmp.lt.s32.totalorder %s276, 4
      %s278 = scalar_select %p277, %s276, 4
      %p279 = scmp.lt.s32.totalorder %s21, 0
      %s280 = scalar_select %p279, %s21, 0
      %s281 = sadd.s32 %s280, %s278
      %s282 = smul.addr %s281, 4
      %s283 = scalar_lea.vmem %s1, %s282
      %s284 = smul.u32 5, %s22
      %p285 = scmp.lt.s32.totalorder %s21, 0
      %s286 = scalar_select %p285, %s21, 0
      %s287 = scalar_lea.vmem %s2, %s286
      %p288 = scmp.lt.s32.totalorder %s21, 0
      %s289 = scalar_select %p288, %s21, 0
      %s290 = scalar_lea.vmem %s3, %s289
      %s291 = smul.u32 32, %s20
      %p292 = scmp.lt.s32.totalorder %s291, 63
      %s293 = scalar_select %p292, %s291, 63
      %p294 = scmp.lt.s32.totalorder %s21, 0
      %s295 = scalar_select %p294, %s21, 0
      %s296 = sadd.s32 %s295, %s293
      %s297 = smul.addr %s296, 4
      %s298 = scalar_lea.vmem %s4, %s297
      %s299 = smul.u32 32, %s20
      %p301 = scmp.eq.s32.totalorder %s22, 0
      // Predicated region
      $region37: #{resnet_forward.14} parent=35 // pred_check
        %p302 = pneg %p301
      $region38: #{resnet_forward.14} parent=35 // pred_check_branch
        %304 = sbr.rel (%p302) target = $region40
      $region39: #{resnet_forward.14} parent=35 // pred_region
        %305 = vst [vmem:[#allocation2] sm:$0xff] 0.0
        %306 = vst [vmem:[#allocation2 + $0x8] sm:$0xff] 0.0
        %307 = vst [vmem:[#allocation2 + $0x10] sm:$0xff] 0.0
        %308 = vst [vmem:[#allocation2 + $0x18] sm:$0xff] 0.0
        %309 = vst [vmem:[#allocation2 + $0x20] sm:$0xff] 0.0
        %310 = vst [vmem:[#allocation2 + $0x28] sm:$0xff] 0.0
        %311 = vst [vmem:[#allocation2 + $0x30] sm:$0xff] 0.0
        %312 = vst [vmem:[#allocation2 + $0x38] sm:$0xff] 0.0
        %313 = vst [vmem:[#allocation2 + $0x40] sm:$0xff] 0.0
        %314 = vst [vmem:[#allocation2 + $0x48] sm:$0xff] 0.0
        %315 = vst [vmem:[#allocation2 + $0x50] sm:$0xff] 0.0
        %316 = vst [vmem:[#allocation2 + $0x58] sm:$0xff] 0.0
        %317 = vst [vmem:[#allocation2 + $0x60] sm:$0xff] 0.0
        %318 = vst [vmem:[#allocation2 + $0x68] sm:$0xff] 0.0
        %319 = vst [vmem:[#allocation2 + $0x70] sm:$0xff] 0.0
        %320 = vst [vmem:[#allocation2 + $0x78] sm:$0xff] 0.0
        %321 = vst [vmem:[#allocation2 + $0x80] sm:$0xff] 0.0
        %322 = vst [vmem:[#allocation2 + $0x88] sm:$0xff] 0.0
        %323 = vst [vmem:[#allocation2 + $0x90] sm:$0xff] 0.0
        %324 = vst [vmem:[#allocation2 + $0x98] sm:$0xff] 0.0
        %325 = vst [vmem:[#allocation2 + $0xa0] sm:$0xff] 0.0
        %326 = vst [vmem:[#allocation2 + $0xa8] sm:$0xff] 0.0
        %327 = vst [vmem:[#allocation2 + $0xb0] sm:$0xff] 0.0
        %328 = vst [vmem:[#allocation2 + $0xb8] sm:$0xff] 0.0
        %329 = vst [vmem:[#allocation2 + $0xc0] sm:$0xff] 0.0
        %330 = vst [vmem:[#allocation2 + $0xc8] sm:$0xff] 0.0
        %331 = vst [vmem:[#allocation2 + $0xd0] sm:$0xff] 0.0
        %332 = vst [vmem:[#allocation2 + $0xd8] sm:$0xff] 0.0
        %333 = vst [vmem:[#allocation2 + $0xe0] sm:$0xff] 0.0
        %334 = vst [vmem:[#allocation2 + $0xe8] sm:$0xff] 0.0
        %335 = vst [vmem:[#allocation2 + $0xf0] sm:$0xff] 0.0
        %336 = vst [vmem:[#allocation2 + $0xf8] sm:$0xff] 0.0
      $region40: #{resnet_forward.14} parent=35 // pred_fallthru
        _
      %v337 = vld [vmem:[#allocation2] sm:$0xff]
      %v338 = vld [vmem:[#allocation2 + $0x8] sm:$0xff]
      %v339 = vld [vmem:[#allocation2 + $0x10] sm:$0xff]
      %v340 = vld [vmem:[#allocation2 + $0x18] sm:$0xff]
      %v341 = vld [vmem:[#allocation2 + $0x20] sm:$0xff]
      %v342 = vld [vmem:[#allocation2 + $0x28] sm:$0xff]
      %v343 = vld [vmem:[#allocation2 + $0x30] sm:$0xff]
      %v344 = vld [vmem:[#allocation2 + $0x38] sm:$0xff]
      %v345 = vld [vmem:[#allocation2 + $0x40] sm:$0xff]
      %v346 = vld [vmem:[#allocation2 + $0x48] sm:$0xff]
      %v347 = vld [vmem:[#allocation2 + $0x50] sm:$0xff]
      %v348 = vld [vmem:[#allocation2 + $0x58] sm:$0xff]
      %v349 = vld [vmem:[#allocation2 + $0x60] sm:$0xff]
      %v350 = vld [vmem:[#allocation2 + $0x68] sm:$0xff]
      %v351 = vld [vmem:[#allocation2 + $0x70] sm:$0xff]
      %v352 = vld [vmem:[#allocation2 + $0x78] sm:$0xff]
      %v353 = vld [vmem:[#allocation2 + $0x80] sm:$0xff]
      %v354 = vld [vmem:[#allocation2 + $0x88] sm:$0xff]
      %v355 = vld [vmem:[#allocation2 + $0x90] sm:$0xff]
      %v356 = vld [vmem:[#allocation2 + $0x98] sm:$0xff]
      %v357 = vld [vmem:[#allocation2 + $0xa0] sm:$0xff]
      %v358 = vld [vmem:[#allocation2 + $0xa8] sm:$0xff]
      %v359 = vld [vmem:[#allocation2 + $0xb0] sm:$0xff]
      %v360 = vld [vmem:[#allocation2 + $0xb8] sm:$0xff]
      %v361 = vld [vmem:[#allocation2 + $0xc0] sm:$0xff]
      %v362 = vld [vmem:[#allocation2 + $0xc8] sm:$0xff]
      %v363 = vld [vmem:[#allocation2 + $0xd0] sm:$0xff]
      %v364 = vld [vmem:[#allocation2 + $0xd8] sm:$0xff]
      %v365 = vld [vmem:[#allocation2 + $0xe0] sm:$0xff]
      %v366 = vld [vmem:[#allocation2 + $0xe8] sm:$0xff]
      %v367 = vld [vmem:[#allocation2 + $0xf0] sm:$0xff]
      %v368 = vld [vmem:[#allocation2 + $0xf8] sm:$0xff]
      %v369 = vld [vmem:[%s274] sm:$0xf]
      %v370 = vld [vmem:[%s274 + $0x4] sm:$0xf]
      %v371 = vld [vmem:[%s274 + $0x8] sm:$0xf]
      %v372 = vld [vmem:[%s274 + $0xc] sm:$0xf]
      %v373 = vld [vmem:[%s274 + $0x10] sm:$0xf]
      %v374 = vld [vmem:[%s274 + $0x14] sm:$0xf]
      %v375 = vld [vmem:[%s274 + $0x18] sm:$0xf]
      %v376 = vld [vmem:[%s274 + $0x1c] sm:$0xf]
      %v377 = vld [vmem:[%s274 + $0x20] sm:$0xf]
      %v378 = vld [vmem:[%s274 + $0x24] sm:$0xf]
      %v379 = vld [vmem:[%s274 + $0x28] sm:$0xf]
      %v380 = vld [vmem:[%s274 + $0x2c] sm:$0xf]
      %v381 = vld [vmem:[%s274 + $0x30] sm:$0xf]
      %v382 = vld [vmem:[%s274 + $0x34] sm:$0xf]
      %v383 = vld [vmem:[%s274 + $0x38] sm:$0xf]
      %v384 = vld [vmem:[%s274 + $0x3c] sm:$0xf]
      %v385 = vld [vmem:[%s274 + $0x40] sm:$0xf]
      %v386 = vld [vmem:[%s274 + $0x44] sm:$0xf]
      %v387 = vld [vmem:[%s274 + $0x48] sm:$0xf]
      %v388 = vld [vmem:[%s274 + $0x4c] sm:$0xf]
      %v389 = vld [vmem:[%s274 + $0x50] sm:$0xf]
      %v390 = vld [vmem:[%s274 + $0x54] sm:$0xf]
      %v391 = vld [vmem:[%s274 + $0x58] sm:$0xf]
      %v392 = vld [vmem:[%s274 + $0x5c] sm:$0xf]
      %v393 = vld [vmem:[%s274 + $0x60] sm:$0xf]
      %v394 = vld [vmem:[%s274 + $0x64] sm:$0xf]
      %v395 = vld [vmem:[%s274 + $0x68] sm:$0xf]
      %v396 = vld [vmem:[%s274 + $0x6c] sm:$0xf]
      %v397 = vld [vmem:[%s274 + $0x70] sm:$0xf]
      %v398 = vld [vmem:[%s274 + $0x74] sm:$0xf]
      %v399 = vld [vmem:[%s274 + $0x78] sm:$0xf]
      %v400 = vld [vmem:[%s274 + $0x7c] sm:$0xf]
      %v401 = vld [vmem:[%s283] sm:$0xf]
      %v402 = vld [vmem:[%s283 + $0x4] sm:$0xf]
      %v403 = vld [vmem:[%s283 + $0x8] sm:$0xf]
      %v404 = vld [vmem:[%s283 + $0xc] sm:$0xf]
      %v405 = vld [vmem:[%s283 + $0x10] sm:$0xf]
      %v438 = vunpack.c.l.b16 %v369
      %v439 = vunpack.c.l.b16 %v370
      %v440 = vunpack.c.l.b16 %v371
      %v441 = vunpack.c.l.b16 %v372
      %v442 = vunpack.c.l.b16 %v373
      %v443 = vunpack.c.l.b16 %v374
      %v444 = vunpack.c.l.b16 %v375
      %v445 = vunpack.c.l.b16 %v376
      %v446 = vunpack.c.l.b16 %v377
      %v447 = vunpack.c.l.b16 %v378
      %v448 = vunpack.c.l.b16 %v379
      %v449 = vunpack.c.l.b16 %v380
      %v450 = vunpack.c.l.b16 %v381
      %v451 = vunpack.c.l.b16 %v382
      %v452 = vunpack.c.l.b16 %v383
      %v453 = vunpack.c.l.b16 %v384
      %v454 = vunpack.c.l.b16 %v385
      %v455 = vunpack.c.l.b16 %v386
      %v456 = vunpack.c.l.b16 %v387
      %v457 = vunpack.c.l.b16 %v388
      %v458 = vunpack.c.l.b16 %v389
      %v459 = vunpack.c.l.b16 %v390
      %v460 = vunpack.c.l.b16 %v391
      %v461 = vunpack.c.l.b16 %v392
      %v462 = vunpack.c.l.b16 %v393
      %v463 = vunpack.c.l.b16 %v394
      %v464 = vunpack.c.l.b16 %v395
      %v465 = vunpack.c.l.b16 %v396
      %v466 = vunpack.c.l.b16 %v397
      %v467 = vunpack.c.l.b16 %v398
      %v468 = vunpack.c.l.b16 %v399
      %v469 = vunpack.c.l.b16 %v400
      %v470 = vpack.c.b16 %v439, %v438
      %v471 = vpack.c.b16 %v441, %v440
      %v472 = vpack.c.b16 %v443, %v442
      %v473 = vpack.c.b16 %v445, %v444
      %v474 = vpack.c.b16 %v447, %v446
      %v475 = vpack.c.b16 %v449, %v448
      %v476 = vpack.c.b16 %v451, %v450
      %v477 = vpack.c.b16 %v453, %v452
      %v478 = vpack.c.b16 %v455, %v454
      %v479 = vpack.c.b16 %v457, %v456
      %v480 = vpack.c.b16 %v459, %v458
      %v481 = vpack.c.b16 %v461, %v460
      %v482 = vpack.c.b16 %v463, %v462
      %v483 = vpack.c.b16 %v465, %v464
      %v484 = vpack.c.b16 %v467, %v466
      %v485 = vpack.c.b16 %v469, %v468
      %v491 = vunpack.c.l.b16 %v401
      %v492 = vunpack.c.l.b16 %v402
      %v493 = vunpack.c.l.b16 %v403
      %v494 = vunpack.c.l.b16 %v404
      %v495 = vunpack.c.l.b16 %v405
      %v496 = vpack.c.b16 %v492, %v491
      %v497 = vpack.c.b16 %v494, %v493
      %v498 = vpack.c.b16 %v495, %v495
      %vm501 = vcmask 326656
      %v503 = vsel %vm501, %v470, 0
      %v506 = vsel %vm501, %v471, 0
      %v509 = vsel %vm501, %v472, 0
      %v512 = vsel %vm501, %v473, 0
      %v515 = vsel %vm501, %v474, 0
      %v518 = vsel %vm501, %v475, 0
      %v521 = vsel %vm501, %v476, 0
      %v524 = vsel %vm501, %v477, 0
      %v527 = vsel %vm501, %v478, 0
      %v530 = vsel %vm501, %v479, 0
      %v533 = vsel %vm501, %v480, 0
      %v536 = vsel %vm501, %v481, 0
      %v539 = vsel %vm501, %v482, 0
      %v542 = vsel %vm501, %v483, 0
      %v545 = vsel %vm501, %v484, 0
      %v548 = vsel %vm501, %v485, 0
      %vm550 = vcmask 1043456
      %v552 = vsel %vm550, %v498, 0
      %554 = vmatprep.subr.bf16.mxu0 0
      %555 = vmatpush1.bf16.msra.mxu0 0
      %556 = vmatprep.subr.bf16.mxu0 0
      %557 = vmatpush1.bf16.msra.mxu0 0
      %558 = vmatprep.subr.bf16.mxu0 0
      %559 = vmatpush1.bf16.msra.mxu0 0
      %560 = vmatprep.subr.bf16.mxu0 0
      %561 = vmatpush1.bf16.msra.mxu0 0
      %562 = vmatprep.subr.bf16.mxu0 0
      %563 = vmatpush1.bf16.msra.mxu0 0
      %564 = vmatprep.subr.bf16.mxu0 0
      %565 = vmatpush1.bf16.msra.mxu0 %v552
      %566 = vmatprep.subr.bf16.mxu0 0
      %567 = vmatpush1.bf16.msra.mxu0 %v497
      %568 = vmatprep.subr.bf16.mxu0 0
      %569 = vmatpush1.bf16.msra.mxu0 %v496
      %570 = vmatprep.subr.bf16.mxu0 0
      %571 = vmatpush2.bf16.msra.mxu0 0
      %572 = vmatprep.subr.bf16.mxu0 0
      %573 = vmatpush2.bf16.msra.mxu0 0
      %574 = vmatprep.subr.bf16.mxu0 0
      %575 = vmatpush2.bf16.msra.mxu0 0
      %576 = vmatprep.subr.bf16.mxu0 0
      %577 = vmatpush2.bf16.msra.mxu0 0
      %578 = vmatprep.subr.bf16.mxu0 0
      %579 = vmatpush2.bf16.msra.mxu0 0
      %580 = vmatprep.subr.bf16.mxu0 0
      %581 = vmatpush2.bf16.msra.mxu0 0
      %582 = vmatprep.subr.bf16.mxu0 0
      %583 = vmatpush2.bf16.msra.mxu0 0
      %584 = vmatprep.subr.bf16.mxu0 0
      %585 = vmatpush2.bf16.msra.mxu0 0
      %586 = vmatprep.mubr.bf16.mxu0 0
      %587 = vmatmul.mubr.bf16.gmra.mxu0 %v503
      %v588 = vpop.f32.mrf.mxu0
      %v589 = vadd.f32 0.0, %v588
      %v590 = vpop.f32.mrf.mxu0
      %v591 = vpop.f32.mrf.mxu0
      %v592 = vadd.f32 0.0, %v591
      %v593 = vpop.f32.mrf.mxu0
      %594 = vmatprep.mubr.bf16.mxu0 0
      %595 = vmatmul.mubr.bf16.gmra.mxu0 %v506
      %v596 = vpop.f32.mrf.mxu0
      %v597 = vadd.f32 0.0, %v596
      %v598 = vpop.f32.mrf.mxu0
      %v599 = vpop.f32.mrf.mxu0
      %v600 = vadd.f32 0.0, %v599
      %v601 = vpop.f32.mrf.mxu0
      %602 = vmatprep.mubr.bf16.mxu0 0
      %603 = vmatmul.mubr.bf16.gmra.mxu0 %v509
      %v604 = vpop.f32.mrf.mxu0
      %v605 = vadd.f32 0.0, %v604
      %v606 = vpop.f32.mrf.mxu0
      %v607 = vpop.f32.mrf.mxu0
      %v608 = vadd.f32 0.0, %v607
      %v609 = vpop.f32.mrf.mxu0
      %610 = vmatprep.mubr.bf16.mxu0 0
      %611 = vmatmul.mubr.bf16.gmra.mxu0 %v512
      %v612 = vpop.f32.mrf.mxu0
      %v613 = vadd.f32 0.0, %v612
      %v614 = vpop.f32.mrf.mxu0
      %v615 = vpop.f32.mrf.mxu0
      %v616 = vadd.f32 0.0, %v615
      %v617 = vpop.f32.mrf.mxu0
      %618 = vmatprep.mubr.bf16.mxu0 0
      %619 = vmatmul.mubr.bf16.gmra.mxu0 %v515
      %v620 = vpop.f32.mrf.mxu0
      %v621 = vadd.f32 0.0, %v620
      %v622 = vpop.f32.mrf.mxu0
      %v623 = vpop.f32.mrf.mxu0
      %v624 = vadd.f32 0.0, %v623
      %v625 = vpop.f32.mrf.mxu0
      %626 = vmatprep.mubr.bf16.mxu0 0
      %627 = vmatmul.mubr.bf16.gmra.mxu0 %v518
      %v628 = vpop.f32.mrf.mxu0
      %v629 = vadd.f32 0.0, %v628
      %v630 = vpop.f32.mrf.mxu0
      %v631 = vpop.f32.mrf.mxu0
      %v632 = vadd.f32 0.0, %v631
      %v633 = vpop.f32.mrf.mxu0
      %634 = vmatprep.mubr.bf16.mxu0 0
      %635 = vmatmul.mubr.bf16.gmra.mxu0 %v521
      %v636 = vpop.f32.mrf.mxu0
      %v637 = vadd.f32 0.0, %v636
      %v638 = vpop.f32.mrf.mxu0
      %v639 = vpop.f32.mrf.mxu0
      %v640 = vadd.f32 0.0, %v639
      %v641 = vpop.f32.mrf.mxu0
      %642 = vmatprep.mubr.bf16.mxu0 0
      %643 = vmatmul.mubr.bf16.gmra.mxu0 %v524
      %v644 = vpop.f32.mrf.mxu0
      %v645 = vadd.f32 0.0, %v644
      %v646 = vpop.f32.mrf.mxu0
      %v647 = vpop.f32.mrf.mxu0
      %v648 = vadd.f32 0.0, %v647
      %v649 = vpop.f32.mrf.mxu0
      %650 = vmatprep.mubr.bf16.mxu0 0
      %651 = vmatmul.mubr.bf16.gmra.mxu0 %v527
      %v652 = vpop.f32.mrf.mxu0
      %v653 = vadd.f32 0.0, %v652
      %v654 = vpop.f32.mrf.mxu0
      %v655 = vpop.f32.mrf.mxu0
      %v656 = vadd.f32 0.0, %v655
      %v657 = vpop.f32.mrf.mxu0
      %658 = vmatprep.mubr.bf16.mxu0 0
      %659 = vmatmul.mubr.bf16.gmra.mxu0 %v530
      %v660 = vpop.f32.mrf.mxu0
      %v661 = vadd.f32 0.0, %v660
      %v662 = vpop.f32.mrf.mxu0
      %v663 = vpop.f32.mrf.mxu0
      %v664 = vadd.f32 0.0, %v663
      %v665 = vpop.f32.mrf.mxu0
      %666 = vmatprep.mubr.bf16.mxu0 0
      %667 = vmatmul.mubr.bf16.gmra.mxu0 %v533
      %v668 = vpop.f32.mrf.mxu0
      %v669 = vadd.f32 0.0, %v668
      %v670 = vpop.f32.mrf.mxu0
      %v671 = vpop.f32.mrf.mxu0
      %v672 = vadd.f32 0.0, %v671
      %v673 = vpop.f32.mrf.mxu0
      %674 = vmatprep.mubr.bf16.mxu0 0
      %675 = vmatmul.mubr.bf16.gmra.mxu0 %v536
      %v676 = vpop.f32.mrf.mxu0
      %v677 = vadd.f32 0.0, %v676
      %v678 = vpop.f32.mrf.mxu0
      %v679 = vpop.f32.mrf.mxu0
      %v680 = vadd.f32 0.0, %v679
      %v681 = vpop.f32.mrf.mxu0
      %682 = vmatprep.mubr.bf16.mxu0 0
      %683 = vmatmul.mubr.bf16.gmra.mxu0 %v539
      %v684 = vpop.f32.mrf.mxu0
      %v685 = vadd.f32 0.0, %v684
      %v686 = vpop.f32.mrf.mxu0
      %v687 = vpop.f32.mrf.mxu0
      %v688 = vadd.f32 0.0, %v687
      %v689 = vpop.f32.mrf.mxu0
      %690 = vmatprep.mubr.bf16.mxu0 0
      %691 = vmatmul.mubr.bf16.gmra.mxu0 %v542
      %v692 = vpop.f32.mrf.mxu0
      %v693 = vadd.f32 0.0, %v692
      %v694 = vpop.f32.mrf.mxu0
      %v695 = vpop.f32.mrf.mxu0
      %v696 = vadd.f32 0.0, %v695
      %v697 = vpop.f32.mrf.mxu0
      %698 = vmatprep.mubr.bf16.mxu0 0
      %699 = vmatmul.mubr.bf16.gmra.mxu0 %v545
      %v700 = vpop.f32.mrf.mxu0
      %v701 = vadd.f32 0.0, %v700
      %v702 = vpop.f32.mrf.mxu0
      %v703 = vpop.f32.mrf.mxu0
      %v704 = vadd.f32 0.0, %v703
      %v705 = vpop.f32.mrf.mxu0
      %706 = vmatprep.mubr.bf16.mxu0 0
      %707 = vmatmul.mubr.bf16.gmra.mxu0 %v548
      %v708 = vpop.f32.mrf.mxu0
      %v709 = vadd.f32 0.0, %v708
      %v710 = vpop.f32.mrf.mxu0
      %v711 = vpop.f32.mrf.mxu0
      %v712 = vadd.f32 0.0, %v711
      %v713 = vpop.f32.mrf.mxu0
      %714 = vdwg.mxu0
      %v715 = vadd.f32 %v337, %v589
      %v716 = vadd.f32 %v338, %v592
      %v717 = vadd.f32 %v339, %v597
      %v718 = vadd.f32 %v340, %v600
      %v719 = vadd.f32 %v341, %v605
      %v720 = vadd.f32 %v342, %v608
      %v721 = vadd.f32 %v343, %v613
      %v722 = vadd.f32 %v344, %v616
      %v723 = vadd.f32 %v345, %v621
      %v724 = vadd.f32 %v346, %v624
      %v725 = vadd.f32 %v347, %v629
      %v726 = vadd.f32 %v348, %v632
      %v727 = vadd.f32 %v349, %v637
      %v728 = vadd.f32 %v350, %v640
      %v729 = vadd.f32 %v351, %v645
      %v730 = vadd.f32 %v352, %v648
      %v731 = vadd.f32 %v353, %v653
      %v732 = vadd.f32 %v354, %v656
      %v733 = vadd.f32 %v355, %v661
      %v734 = vadd.f32 %v356, %v664
      %v735 = vadd.f32 %v357, %v669
      %v736 = vadd.f32 %v358, %v672
      %v737 = vadd.f32 %v359, %v677
      %v738 = vadd.f32 %v360, %v680
      %v739 = vadd.f32 %v361, %v685
      %v740 = vadd.f32 %v362, %v688
      %v741 = vadd.f32 %v363, %v693
      %v742 = vadd.f32 %v364, %v696
      %v743 = vadd.f32 %v365, %v701
      %v744 = vadd.f32 %v366, %v704
      %v745 = vadd.f32 %v367, %v709
      %v746 = vadd.f32 %v368, %v712
      %747 = vst [vmem:[#allocation2] sm:$0xff] %v715
      %748 = vst [vmem:[#allocation2 + $0x8] sm:$0xff] %v716
      %749 = vst [vmem:[#allocation2 + $0x10] sm:$0xff] %v717
      %750 = vst [vmem:[#allocation2 + $0x18] sm:$0xff] %v718
      %751 = vst [vmem:[#allocation2 + $0x20] sm:$0xff] %v719
      %752 = vst [vmem:[#allocation2 + $0x28] sm:$0xff] %v720
      %753 = vst [vmem:[#allocation2 + $0x30] sm:$0xff] %v721
      %754 = vst [vmem:[#allocation2 + $0x38] sm:$0xff] %v722
      %755 = vst [vmem:[#allocation2 + $0x40] sm:$0xff] %v723
      %756 = vst [vmem:[#allocation2 + $0x48] sm:$0xff] %v724
      %757 = vst [vmem:[#allocation2 + $0x50] sm:$0xff] %v725
      %758 = vst [vmem:[#allocation2 + $0x58] sm:$0xff] %v726
      %759 = vst [vmem:[#allocation2 + $0x60] sm:$0xff] %v727
      %760 = vst [vmem:[#allocation2 + $0x68] sm:$0xff] %v728
      %761 = vst [vmem:[#allocation2 + $0x70] sm:$0xff] %v729
      %762 = vst [vmem:[#allocation2 + $0x78] sm:$0xff] %v730
      %763 = vst [vmem:[#allocation2 + $0x80] sm:$0xff] %v731
      %764 = vst [vmem:[#allocation2 + $0x88] sm:$0xff] %v732
      %765 = vst [vmem:[#allocation2 + $0x90] sm:$0xff] %v733
      %766 = vst [vmem:[#allocation2 + $0x98] sm:$0xff] %v734
      %767 = vst [vmem:[#allocation2 + $0xa0] sm:$0xff] %v735
      %768 = vst [vmem:[#allocation2 + $0xa8] sm:$0xff] %v736
      %769 = vst [vmem:[#allocation2 + $0xb0] sm:$0xff] %v737
      %770 = vst [vmem:[#allocation2 + $0xb8] sm:$0xff] %v738
      %771 = vst [vmem:[#allocation2 + $0xc0] sm:$0xff] %v739
      %772 = vst [vmem:[#allocation2 + $0xc8] sm:$0xff] %v740
      %773 = vst [vmem:[#allocation2 + $0xd0] sm:$0xff] %v741
      %774 = vst [vmem:[#allocation2 + $0xd8] sm:$0xff] %v742
      %775 = vst [vmem:[#allocation2 + $0xe0] sm:$0xff] %v743
      %776 = vst [vmem:[#allocation2 + $0xe8] sm:$0xff] %v744
      %777 = vst [vmem:[#allocation2 + $0xf0] sm:$0xff] %v745
      %778 = vst [vmem:[#allocation2 + $0xf8] sm:$0xff] %v746
      // Predicated region
      $region41: #{resnet_forward.14} parent=35 // pred_check
        %p779 = pneg %p301
      $region42: #{resnet_forward.14} parent=35 // pred_check_branch
        %781 = sbr.rel (%p779) target = $region44
      $region43: #{resnet_forward.14} parent=35 // pred_region
        %v782 = vld [vmem:[#allocation2] sm:$0xff]
        %v783 = vld [vmem:[#allocation2 + $0x8] sm:$0xff]
        %v784 = vld [vmem:[#allocation2 + $0x10] sm:$0xff]
        %v785 = vld [vmem:[#allocation2 + $0x18] sm:$0xff]
        %v786 = vld [vmem:[#allocation2 + $0x20] sm:$0xff]
        %v787 = vld [vmem:[#allocation2 + $0x28] sm:$0xff]
        %v788 = vld [vmem:[#allocation2 + $0x30] sm:$0xff]
        %v789 = vld [vmem:[#allocation2 + $0x38] sm:$0xff]
        %v790 = vld [vmem:[#allocation2 + $0x40] sm:$0xff]
        %v791 = vld [vmem:[#allocation2 + $0x48] sm:$0xff]
        %v792 = vld [vmem:[#allocation2 + $0x50] sm:$0xff]
        %v793 = vld [vmem:[#allocation2 + $0x58] sm:$0xff]
        %v794 = vld [vmem:[#allocation2 + $0x60] sm:$0xff]
        %v795 = vld [vmem:[#allocation2 + $0x68] sm:$0xff]
        %v796 = vld [vmem:[#allocation2 + $0x70] sm:$0xff]
        %v797 = vld [vmem:[#allocation2 + $0x78] sm:$0xff]
        %v798 = vld [vmem:[#allocation2 + $0x80] sm:$0xff]
        %v799 = vld [vmem:[#allocation2 + $0x88] sm:$0xff]
        %v800 = vld [vmem:[#allocation2 + $0x90] sm:$0xff]
        %v801 = vld [vmem:[#allocation2 + $0x98] sm:$0xff]
        %v802 = vld [vmem:[#allocation2 + $0xa0] sm:$0xff]
        %v803 = vld [vmem:[#allocation2 + $0xa8] sm:$0xff]
        %v804 = vld [vmem:[#allocation2 + $0xb0] sm:$0xff]
        %v805 = vld [vmem:[#allocation2 + $0xb8] sm:$0xff]
        %v806 = vld [vmem:[#allocation2 + $0xc0] sm:$0xff]
        %v807 = vld [vmem:[#allocation2 + $0xc8] sm:$0xff]
        %v808 = vld [vmem:[#allocation2 + $0xd0] sm:$0xff]
        %v809 = vld [vmem:[#allocation2 + $0xd8] sm:$0xff]
        %v810 = vld [vmem:[#allocation2 + $0xe0] sm:$0xff]
        %v811 = vld [vmem:[#allocation2 + $0xe8] sm:$0xff]
        %v812 = vld [vmem:[#allocation2 + $0xf0] sm:$0xff]
        %v813 = vld [vmem:[#allocation2 + $0xf8] sm:$0xff]
        %v814 = vld [vmem:[%s287] sm:$0x1]
        %v816 = vlaneseq
        %v817 = vshrl.u32 %v816, 7
        %v818 = vsub.s32 0, %v817
        %v819 = vrot.slane %v814, %v818
        %v821 = vmul.f32 %v782, %v819
        %v822 = vmul.f32 %v783, %v819
        %v823 = vmul.f32 %v784, %v819
        %v824 = vmul.f32 %v785, %v819
        %v825 = vmul.f32 %v786, %v819
        %v826 = vmul.f32 %v787, %v819
        %v827 = vmul.f32 %v788, %v819
        %v828 = vmul.f32 %v789, %v819
        %v829 = vmul.f32 %v790, %v819
        %v830 = vmul.f32 %v791, %v819
        %v831 = vmul.f32 %v792, %v819
        %v832 = vmul.f32 %v793, %v819
        %v833 = vmul.f32 %v794, %v819
        %v834 = vmul.f32 %v795, %v819
        %v835 = vmul.f32 %v796, %v819
        %v836 = vmul.f32 %v797, %v819
        %v837 = vmul.f32 %v798, %v819
        %v838 = vmul.f32 %v799, %v819
        %v839 = vmul.f32 %v800, %v819
        %v840 = vmul.f32 %v801, %v819
        %v841 = vmul.f32 %v802, %v819
        %v842 = vmul.f32 %v803, %v819
        %v843 = vmul.f32 %v804, %v819
        %v844 = vmul.f32 %v805, %v819
        %v845 = vmul.f32 %v806, %v819
        %v846 = vmul.f32 %v807, %v819
        %v847 = vmul.f32 %v808, %v819
        %v848 = vmul.f32 %v809, %v819
        %v849 = vmul.f32 %v810, %v819
        %v850 = vmul.f32 %v811, %v819
        %v851 = vmul.f32 %v812, %v819
        %v852 = vmul.f32 %v813, %v819
        %v853 = vld [vmem:[%s290] sm:$0x1]
        %v855 = vlaneseq
        %v856 = vshrl.u32 %v855, 7
        %v857 = vsub.s32 0, %v856
        %v858 = vrot.slane %v853, %v857
        %v860 = vadd.f32 %v821, %v858
        %v861 = vadd.f32 %v822, %v858
        %v862 = vadd.f32 %v823, %v858
        %v863 = vadd.f32 %v824, %v858
        %v864 = vadd.f32 %v825, %v858
        %v865 = vadd.f32 %v826, %v858
        %v866 = vadd.f32 %v827, %v858
        %v867 = vadd.f32 %v828, %v858
        %v868 = vadd.f32 %v829, %v858
        %v869 = vadd.f32 %v830, %v858
        %v870 = vadd.f32 %v831, %v858
        %v871 = vadd.f32 %v832, %v858
        %v872 = vadd.f32 %v833, %v858
        %v873 = vadd.f32 %v834, %v858
        %v874 = vadd.f32 %v835, %v858
        %v875 = vadd.f32 %v836, %v858
        %v876 = vadd.f32 %v837, %v858
        %v877 = vadd.f32 %v838, %v858
        %v878 = vadd.f32 %v839, %v858
        %v879 = vadd.f32 %v840, %v858
        %v880 = vadd.f32 %v841, %v858
        %v881 = vadd.f32 %v842, %v858
        %v882 = vadd.f32 %v843, %v858
        %v883 = vadd.f32 %v844, %v858
        %v884 = vadd.f32 %v845, %v858
        %v885 = vadd.f32 %v846, %v858
        %v886 = vadd.f32 %v847, %v858
        %v887 = vadd.f32 %v848, %v858
        %v888 = vadd.f32 %v849, %v858
        %v889 = vadd.f32 %v850, %v858
        %v890 = vadd.f32 %v851, %v858
        %v891 = vadd.f32 %v852, %v858
        %v892 = vmax.f32 %v860, 0.0
        %v893 = vmax.f32 %v861, 0.0
        %v894 = vmax.f32 %v862, 0.0
        %v895 = vmax.f32 %v863, 0.0
        %v896 = vmax.f32 %v864, 0.0
        %v897 = vmax.f32 %v865, 0.0
        %v898 = vmax.f32 %v866, 0.0
        %v899 = vmax.f32 %v867, 0.0
        %v900 = vmax.f32 %v868, 0.0
        %v901 = vmax.f32 %v869, 0.0
        %v902 = vmax.f32 %v870, 0.0
        %v903 = vmax.f32 %v871, 0.0
        %v904 = vmax.f32 %v872, 0.0
        %v905 = vmax.f32 %v873, 0.0
        %v906 = vmax.f32 %v874, 0.0
        %v907 = vmax.f32 %v875, 0.0
        %v908 = vmax.f32 %v876, 0.0
        %v909 = vmax.f32 %v877, 0.0
        %v910 = vmax.f32 %v878, 0.0
        %v911 = vmax.f32 %v879, 0.0
        %v912 = vmax.f32 %v880, 0.0
        %v913 = vmax.f32 %v881, 0.0
        %v914 = vmax.f32 %v882, 0.0
        %v915 = vmax.f32 %v883, 0.0
        %v916 = vmax.f32 %v884, 0.0
        %v917 = vmax.f32 %v885, 0.0
        %v918 = vmax.f32 %v886, 0.0
        %v919 = vmax.f32 %v887, 0.0
        %v920 = vmax.f32 %v888, 0.0
        %v921 = vmax.f32 %v889, 0.0
        %v922 = vmax.f32 %v890, 0.0
        %v923 = vmax.f32 %v891, 0.0
        %v924 = vpack.c.bf16 %v893, %v892
        %v925 = vpack.c.bf16 %v895, %v894
        %v926 = vpack.c.bf16 %v897, %v896
        %v927 = vpack.c.bf16 %v899, %v898
        %v928 = vpack.c.bf16 %v901, %v900
        %v929 = vpack.c.bf16 %v903, %v902
        %v930 = vpack.c.bf16 %v905, %v904
        %v931 = vpack.c.bf16 %v907, %v906
        %v932 = vpack.c.bf16 %v909, %v908
        %v933 = vpack.c.bf16 %v911, %v910
        %v934 = vpack.c.bf16 %v913, %v912
        %v935 = vpack.c.bf16 %v915, %v914
        %v936 = vpack.c.bf16 %v917, %v916
        %v937 = vpack.c.bf16 %v919, %v918
        %v938 = vpack.c.bf16 %v921, %v920
        %v939 = vpack.c.bf16 %v923, %v922
        %v956 = vunpack.c.l.b16 %v924
        %v957 = vunpack.c.h.b16 %v924
        %v958 = vunpack.c.l.b16 %v925
        %v959 = vunpack.c.h.b16 %v925
        %v960 = vunpack.c.l.b16 %v926
        %v961 = vunpack.c.h.b16 %v926
        %v962 = vunpack.c.l.b16 %v927
        %v963 = vunpack.c.h.b16 %v927
        %v964 = vunpack.c.l.b16 %v928
        %v965 = vunpack.c.h.b16 %v928
        %v966 = vunpack.c.l.b16 %v929
        %v967 = vunpack.c.h.b16 %v929
        %v968 = vunpack.c.l.b16 %v930
        %v969 = vunpack.c.h.b16 %v930
        %v970 = vunpack.c.l.b16 %v931
        %v971 = vunpack.c.h.b16 %v931
        %v972 = vunpack.c.l.b16 %v932
        %v973 = vunpack.c.h.b16 %v932
        %v974 = vunpack.c.l.b16 %v933
        %v975 = vunpack.c.h.b16 %v933
        %v976 = vunpack.c.l.b16 %v934
        %v977 = vunpack.c.h.b16 %v934
        %v978 = vunpack.c.l.b16 %v935
        %v979 = vunpack.c.h.b16 %v935
        %v980 = vunpack.c.l.b16 %v936
        %v981 = vunpack.c.h.b16 %v936
        %v982 = vunpack.c.l.b16 %v937
        %v983 = vunpack.c.h.b16 %v937
        %v984 = vunpack.c.l.b16 %v938
        %v985 = vunpack.c.h.b16 %v938
        %v986 = vunpack.c.l.b16 %v939
        %v987 = vunpack.c.h.b16 %v939
        %v988 = vpack.c.b16 %v956, %v956
        %v989 = vpack.c.b16 %v957, %v957
        %v990 = vpack.c.b16 %v958, %v958
        %v991 = vpack.c.b16 %v959, %v959
        %v992 = vpack.c.b16 %v960, %v960
        %v993 = vpack.c.b16 %v961, %v961
        %v994 = vpack.c.b16 %v962, %v962
        %v995 = vpack.c.b16 %v963, %v963
        %v996 = vpack.c.b16 %v964, %v964
        %v997 = vpack.c.b16 %v965, %v965
        %v998 = vpack.c.b16 %v966, %v966
        %v999 = vpack.c.b16 %v967, %v967
        %v1000 = vpack.c.b16 %v968, %v968
        %v1001 = vpack.c.b16 %v969, %v969
        %v1002 = vpack.c.b16 %v970, %v970
        %v1003 = vpack.c.b16 %v971, %v971
        %v1004 = vpack.c.b16 %v972, %v972
        %v1005 = vpack.c.b16 %v973, %v973
        %v1006 = vpack.c.b16 %v974, %v974
        %v1007 = vpack.c.b16 %v975, %v975
        %v1008 = vpack.c.b16 %v976, %v976
        %v1009 = vpack.c.b16 %v977, %v977
        %v1010 = vpack.c.b16 %v978, %v978
        %v1011 = vpack.c.b16 %v979, %v979
        %v1012 = vpack.c.b16 %v980, %v980
        %v1013 = vpack.c.b16 %v981, %v981
        %v1014 = vpack.c.b16 %v982, %v982
        %v1015 = vpack.c.b16 %v983, %v983
        %v1016 = vpack.c.b16 %v984, %v984
        %v1017 = vpack.c.b16 %v985, %v985
        %v1018 = vpack.c.b16 %v986, %v986
        %v1019 = vpack.c.b16 %v987, %v987
        %1052 = vst [vmem:[%s298] sm:$0xf] %v988
        %1053 = vst [vmem:[%s298 + $0x4] sm:$0xf] %v989
        %1054 = vst [vmem:[%s298 + $0x8] sm:$0xf] %v990
        %1055 = vst [vmem:[%s298 + $0xc] sm:$0xf] %v991
        %1056 = vst [vmem:[%s298 + $0x10] sm:$0xf] %v992
        %1057 = vst [vmem:[%s298 + $0x14] sm:$0xf] %v993
        %1058 = vst [vmem:[%s298 + $0x18] sm:$0xf] %v994
        %1059 = vst [vmem:[%s298 + $0x1c] sm:$0xf] %v995
        %1060 = vst [vmem:[%s298 + $0x20] sm:$0xf] %v996
        %1061 = vst [vmem:[%s298 + $0x24] sm:$0xf] %v997
        %1062 = vst [vmem:[%s298 + $0x28] sm:$0xf] %v998
        %1063 = vst [vmem:[%s298 + $0x2c] sm:$0xf] %v999
        %1064 = vst [vmem:[%s298 + $0x30] sm:$0xf] %v1000
        %1065 = vst [vmem:[%s298 + $0x34] sm:$0xf] %v1001
        %1066 = vst [vmem:[%s298 + $0x38] sm:$0xf] %v1002
        %1067 = vst [vmem:[%s298 + $0x3c] sm:$0xf] %v1003
        %1068 = vst [vmem:[%s298 + $0x40] sm:$0xf] %v1004
        %1069 = vst [vmem:[%s298 + $0x44] sm:$0xf] %v1005
        %1070 = vst [vmem:[%s298 + $0x48] sm:$0xf] %v1006
        %1071 = vst [vmem:[%s298 + $0x4c] sm:$0xf] %v1007
        %1072 = vst [vmem:[%s298 + $0x50] sm:$0xf] %v1008
        %1073 = vst [vmem:[%s298 + $0x54] sm:$0xf] %v1009
        %1074 = vst [vmem:[%s298 + $0x58] sm:$0xf] %v1010
        %1075 = vst [vmem:[%s298 + $0x5c] sm:$0xf] %v1011
        %1076 = vst [vmem:[%s298 + $0x60] sm:$0xf] %v1012
        %1077 = vst [vmem:[%s298 + $0x64] sm:$0xf] %v1013
        %1078 = vst [vmem:[%s298 + $0x68] sm:$0xf] %v1014
        %1079 = vst [vmem:[%s298 + $0x6c] sm:$0xf] %v1015
        %1080 = vst [vmem:[%s298 + $0x70] sm:$0xf] %v1016
        %1081 = vst [vmem:[%s298 + $0x74] sm:$0xf] %v1017
        %1082 = vst [vmem:[%s298 + $0x78] sm:$0xf] %v1018
        %1083 = vst [vmem:[%s298 + $0x7c] sm:$0xf] %v1019
      $region44: #{resnet_forward.14} parent=35 // pred_fallthru
        _
      %s1084 = smul.u32 32, %s20
      %p1085 = scmp.lt.s32.totalorder %s1084, 63
      %s1086 = scalar_select %p1085, %s1084, 63
      %p1087 = scmp.lt.s32.totalorder %s21, 0
      %s1088 = scalar_select %p1087, %s21, 0
      %s1089 = sadd.s32 %s1088, %s1086
      %s1090 = smul.addr %s1089, 4
      %s1091 = scalar_lea.vmem %s4, %s1090
      // Predicated region
      $region45: #{resnet_forward.14} parent=35 // pred_check
        %p1092 = pneg %p162
      $region46: #{resnet_forward.14} parent=35 // pred_check_branch
        %1094 = sbr.rel (%p1092) target = $region48
      $region47: #{resnet_forward.14} parent=35 // pred_region
        %s1095 = smul.u32 32, %s20
      $region48: #{resnet_forward.14} parent=35 // pred_fallthru
        _
    $region36: #{resnet_forward.14} parent=5 // pred_fallthru
      _
    %p1096 = scmp.le.s32.totalorder 2, %s10
    // Predicated region
    $region49: #{resnet_forward.14} parent=5 // pred_check
      %p1097 = pneg %p1096
    $region50: #{resnet_forward.14} parent=5 // pred_check_branch
      %1099 = sbr.rel (%p1097) target = $region52
    $region51: #{resnet_forward.14} parent=5 // pred_region
      %s1100 = ssub.s32 %s10, 2
      // Predicated region
      $region53: #{resnet_forward.14} parent=51 // pred_check
        %p1101 = pneg %p168
      $region54: #{resnet_forward.14} parent=51 // pred_check_branch
        %1103 = sbr.rel (%p1101) target = $region56
      $region55: #{resnet_forward.14} parent=51 // pred_region
        %s1104 = smul.u32 32, %s23
        %p1105 = scmp.lt.s32.totalorder %s1104, 63
        %s1106 = scalar_select %p1105, %s1104, 63
        %p1107 = scmp.lt.s32.totalorder %s24, 0
        %s1108 = scalar_select %p1107, %s24, 0
        %s1109 = sadd.s32 %s1108, %s1106
        %s1110 = smul.addr %s1109, 4
        %s1111 = scalar_lea.vmem %s4, %s1110
      $region56: #{resnet_forward.14} parent=51 // pred_fallthru
        _
    $region52: #{resnet_forward.14} parent=5 // pred_fallthru
      _
  $region6: #{resnet_forward.14} parent=0 // loop_footer
    %s14 = sadd.s32 1, %s10
  $region7: #{resnet_forward.14} parent=0 // loop_footer_branch
    %9 = sbr.rel target = $region3
  $region8: #{resnet_forward.14} parent=0 // loop_exit
    _

// kernel: resnet_forward.15
$region0: #{resnet_forward.15}
  #allocation0 [shape = 'u32[]', space=smem, size = 0x4, offset = 0x4, fixed_abs, tag = 'smem constant byte address 0x4 - core index']
  #allocation1 [shape = 'u32[144,128]{1,0:T(1,128)}', space=vmem, size = 0x12000, scoped, tag = 'internal scratch']
  #allocation2 [shape = 'f32[256,128]{1,0:T(8,128)}', space=vmem, size = 0x20000, scoped, tag = 'scratch operand']
  %s0 = inlined_call_operand.vmem [shape: bf16[512,40], index: 0, kind: input, shape index: {}]
  %s1 = inlined_call_operand.vmem [shape: bf16[40,128], index: 1, kind: input, shape index: {}]
  %s2 = inlined_call_operand.vmem [shape: f32[1,128], index: 2, kind: input, shape index: {}]
  %s3 = inlined_call_operand.vmem [shape: f32[1,128], index: 3, kind: input, shape index: {}]
  %s4 = inlined_call_operand.vmem [shape: bf16[512,128], index: 4, kind: input, shape index: {}]
  %s5 = inlined_call_operand.vmem [shape: bf16[512,128], index: 5, kind: output, shape index: {}]
  %s6 = sld [smem:[#allocation0]]
  $region61: #{resnet_forward.15} parent=0
    _
  %s8 = ssub.s32 1, %s6
  %s9 = scalar_select 0, %s8, %s6
  loop: start=0, step=1, limit=4
  $region2: #{resnet_forward.15} parent=0 // loop_pre_header
    _
  $region3: #{resnet_forward.15} parent=0 // loop_header
    %s11 = sphi 0, %s15
    %p12 = scmp.ge.s32.totalorder %s11, 4
    %s18 = sphi 0, %s37
    %s19 = sphi 0, %s33
    %s20 = sphi 0, %s29
    %s21 = sphi 0, %s18
    %s22 = sphi 0, %s19
    %s23 = sphi 0, %s20
    %s24 = sphi 0, %s21
    %s25 = sphi 0, %s22
    %s26 = sphi 0, %s23
    %s42 = sphi 0, %s44
    %s45 = sphi 0, %s42
    %s46 = sphi 0, %s45
    %s62 = sphi 0, %s46
    %s70 = sphi 0, %s72
    %s73 = sphi 0, %s70
    %s74 = sphi 0, %s73
    %s90 = sphi 0, %s74
    %s96 = sphi 0, %s98
    %s99 = sphi 0, %s96
    %s100 = sphi 0, %s99
    %s116 = sphi 0, %s100
    %s122 = sphi 0, %s124
    %s125 = sphi 0, %s122
    %s126 = sphi 0, %s125
    %s142 = sphi 0, %s126
    %s150 = sphi 0, %s152
    %s153 = sphi 0, %s150
    %s154 = sphi 0, %s153
    %s170 = sphi 0, %s154
    %s178 = sphi 0, %s180
    %s181 = sphi 0, %s178
    %s182 = sphi 0, %s181
    %s198 = sphi 0, %s182
  $region4: #{resnet_forward.15} parent=0 // loop_header_branch
    %14 = sbr.rel (%p12) target = $region8
  $region5: #{resnet_forward.15} parent=0 // loop_body
    %s16 = ssub.s32 %s11, 1
    %s17 = ssub.s32 %s11, 2
    %s27 = sadd.s32 1, %s20
    %p28 = scmp.ge.s32.totalorder %s27, 1
    %s29 = scalar_select %p28, 0, %s27
    %s30 = sadd.s32 1, %s19
    %s31 = scalar_select %p28, %s30, %s19
    %p32 = scmp.ge.s32.totalorder %s31, 1
    %s33 = scalar_select %p32, 0, %s31
    %s34 = sadd.s32 1, %s18
    %s35 = scalar_select %p32, %s34, %s18
    %p36 = scmp.ge.s32.totalorder %s35, 2
    %s37 = scalar_select %p36, 0, %s35
    %s38 = ssub.s32 %s18, %s37
    %s39 = ssub.s32 %s20, %s29
    %s40 = sor.u32 %s38, %s39
    %p41 = scmp.eq.s32.totalorder %s40, 0
    %s43 = sadd.s32 %s42, 1
    %s44 = scalar_select %p41, %s42, %s43
    %p47 = pneg %p41
    %p48 = scmp.eq.s32.totalorder %s11, 1
    %p49 = por %p47, %p48
    %p50 = scmp.ne.s32.totalorder %s42, %s45
    %p51 = scmp.eq.s32.totalorder %s11, 0
    %p52 = por %p50, %p51
    %p53 = scmp.ne.s32.totalorder %s42, %s45
    %p54 = scmp.eq.s32.totalorder %s16, 1
    %p55 = por %p53, %p54
    %p56 = scmp.ne.s32.totalorder %s45, %s46
    %p57 = scmp.eq.s32.totalorder %s16, 0
    %p58 = por %p56, %p57
    %p59 = scmp.ne.s32.totalorder %s45, %s46
    %p60 = scmp.eq.s32.totalorder %s17, 1
    %p61 = por %p59, %p60
    %p63 = scmp.ne.s32.totalorder %s46, %s62
    %p64 = scmp.eq.s32.totalorder %s17, 0
    %p65 = por %p63, %p64
    %s66 = ssub.s32 %s20, %s29
    %s67 = ssub.s32 %s19, %s33
    %s68 = sor.u32 %s66, %s67
    %p69 = scmp.eq.s32.totalorder %s68, 0
    %s71 = sadd.s32 %s70, 1
    %s72 = scalar_select %p69, %s70, %s71
    %p75 = pneg %p69
    %p76 = scmp.eq.s32.totalorder %s11, 1
    %p77 = por %p75, %p76
    %p78 = scmp.ne.s32.totalorder %s70, %s73
    %p79 = scmp.eq.s32.totalorder %s11, 0
    %p80 = por %p78, %p79
    %p81 = scmp.ne.s32.totalorder %s70, %s73
    %p82 = scmp.eq.s32.totalorder %s16, 1
    %p83 = por %p81, %p82
    %p84 = scmp.ne.s32.totalorder %s73, %s74
    %p85 = scmp.eq.s32.totalorder %s16, 0
    %p86 = por %p84, %p85
    %p87 = scmp.ne.s32.totalorder %s73, %s74
    %p88 = scmp.eq.s32.totalorder %s17, 1
    %p89 = por %p87, %p88
    %p91 = scmp.ne.s32.totalorder %s74, %s90
    %p92 = scmp.eq.s32.totalorder %s17, 0
    %p93 = por %p91, %p92
    %s94 = ssub.s32 %s19, %s33
    %p95 = scmp.eq.s32.totalorder %s94, 0
    %s97 = sadd.s32 %s96, 1
    %s98 = scalar_select %p95, %s96, %s97
    %p101 = pneg %p95
    %p102 = scmp.eq.s32.totalorder %s11, 1
    %p103 = por %p101, %p102
    %p104 = scmp.ne.s32.totalorder %s96, %s99
    %p105 = scmp.eq.s32.totalorder %s11, 0
    %p106 = por %p104, %p105
    %p107 = scmp.ne.s32.totalorder %s96, %s99
    %p108 = scmp.eq.s32.totalorder %s16, 1
    %p109 = por %p107, %p108
    %p110 = scmp.ne.s32.totalorder %s99, %s100
    %p111 = scmp.eq.s32.totalorder %s16, 0
    %p112 = por %p110, %p111
    %p113 = scmp.ne.s32.totalorder %s99, %s100
    %p114 = scmp.eq.s32.totalorder %s17, 1
    %p115 = por %p113, %p114
    %p117 = scmp.ne.s32.totalorder %s100, %s116
    %p118 = scmp.eq.s32.totalorder %s17, 0
    %p119 = por %p117, %p118
    %s120 = ssub.s32 %s19, %s33
    %p121 = scmp.eq.s32.totalorder %s120, 0
    %s123 = sadd.s32 %s122, 1
    %s124 = scalar_select %p121, %s122, %s123
    %p127 = pneg %p121
    %p128 = scmp.eq.s32.totalorder %s11, 1
    %p129 = por %p127, %p128
    %p130 = scmp.ne.s32.totalorder %s122, %s125
    %p131 = scmp.eq.s32.totalorder %s11, 0
    %p132 = por %p130, %p131
    %p133 = scmp.ne.s32.totalorder %s122, %s125
    %p134 = scmp.eq.s32.totalorder %s16, 1
    %p135 = por %p133, %p134
    %p136 = scmp.ne.s32.totalorder %s125, %s126
    %p137 = scmp.eq.s32.totalorder %s16, 0
    %p138 = por %p136, %p137
    %p139 = scmp.ne.s32.totalorder %s125, %s126
    %p140 = scmp.eq.s32.totalorder %s17, 1
    %p141 = por %p139, %p140
    %p143 = scmp.ne.s32.totalorder %s126, %s142
    %p144 = scmp.eq.s32.totalorder %s17, 0
    %p145 = por %p143, %p144
    %s146 = ssub.s32 %s18, %s37
    %s147 = ssub.s32 %s19, %s33
    %s148 = sor.u32 %s146, %s147
    %p149 = scmp.eq.s32.totalorder %s148, 0
    %s151 = sadd.s32 %s150, 1
    %s152 = scalar_select %p149, %s150, %s151
    %p155 = pneg %p149
    %p156 = scmp.eq.s32.totalorder %s11, 1
    %p157 = por %p155, %p156
    %p158 = scmp.ne.s32.totalorder %s150, %s153
    %p159 = scmp.eq.s32.totalorder %s11, 0
    %p160 = por %p158, %p159
    %p161 = scmp.ne.s32.totalorder %s150, %s153
    %p162 = scmp.eq.s32.totalorder %s16, 1
    %p163 = por %p161, %p162
    %p164 = scmp.ne.s32.totalorder %s153, %s154
    %p165 = scmp.eq.s32.totalorder %s16, 0
    %p166 = por %p164, %p165
    %p167 = scmp.ne.s32.totalorder %s153, %s154
    %p168 = scmp.eq.s32.totalorder %s17, 1
    %p169 = por %p167, %p168
    %p171 = scmp.ne.s32.totalorder %s154, %s170
    %p172 = scmp.eq.s32.totalorder %s17, 0
    %p173 = por %p171, %p172
    %s174 = ssub.s32 %s18, %s37
    %s175 = ssub.s32 %s19, %s33
    %s176 = sor.u32 %s174, %s175
    %p177 = scmp.eq.s32.totalorder %s176, 0
    %s179 = sadd.s32 %s178, 1
    %s180 = scalar_select %p177, %s178, %s179
    %p183 = pneg %p177
    %p184 = scmp.eq.s32.totalorder %s11, 1
    %p185 = por %p183, %p184
    %p186 = scmp.ne.s32.totalorder %s178, %s181
    %p187 = scmp.eq.s32.totalorder %s11, 0
    %p188 = por %p186, %p187
    %p189 = scmp.ne.s32.totalorder %s178, %s181
    %p190 = scmp.eq.s32.totalorder %s16, 1
    %p191 = por %p189, %p190
    %p192 = scmp.ne.s32.totalorder %s181, %s182
    %p193 = scmp.eq.s32.totalorder %s16, 0
    %p194 = por %p192, %p193
    %p195 = scmp.ne.s32.totalorder %s181, %s182
    %p196 = scmp.eq.s32.totalorder %s17, 1
    %p197 = por %p195, %p196
    %p199 = scmp.ne.s32.totalorder %s182, %s198
    %p200 = scmp.eq.s32.totalorder %s17, 0
    %p201 = por %p199, %p200
    %p202 = scmp.le.s32.totalorder 1, %s11
    %p203 = scmp.lt.s32.totalorder %s11, 3
    %p204 = pnand %p202, %p203
    %p205 = pneg %p204
    // Predicated region
    $region9: #{resnet_forward.15} parent=5 // pred_check
      _
    $region10: #{resnet_forward.15} parent=5 // pred_check_branch
      %207 = sbr.rel (%p204) target = $region12
    $region11: #{resnet_forward.15} parent=5 // pred_region
      %s208 = ssub.s32 %s11, 1
      // Predicated region
      $region13: #{resnet_forward.15} parent=11 // pred_check
        %p209 = pneg %p86
      $region14: #{resnet_forward.15} parent=11 // pred_check_branch
        %211 = sbr.rel (%p209) target = $region16
      $region15: #{resnet_forward.15} parent=11 // pred_region
        %s212 = smul.u32 5, %s23
        %p213 = scmp.lt.s32.totalorder %s212, 4
        %s214 = scalar_select %p213, %s212, 4
        %p215 = scmp.lt.s32.totalorder %s22, 0
        %s216 = scalar_select %p215, %s22, 0
        %s217 = sadd.s32 %s216, %s214
        %s218 = smul.addr %s217, 4
        %s219 = scalar_lea.vmem %s1, %s218
        %s220 = smul.u32 5, %s23
      $region16: #{resnet_forward.15} parent=11 // pred_fallthru
        _
      // Predicated region
      $region17: #{resnet_forward.15} parent=11 // pred_check
        %p221 = pneg %p112
      $region18: #{resnet_forward.15} parent=11 // pred_check_branch
        %223 = sbr.rel (%p221) target = $region20
      $region19: #{resnet_forward.15} parent=11 // pred_region
        %p224 = scmp.lt.s32.totalorder %s22, 0
        %s225 = scalar_select %p224, %s22, 0
        %s226 = scalar_lea.vmem %s2, %s225
      $region20: #{resnet_forward.15} parent=11 // pred_fallthru
        _
      // Predicated region
      $region21: #{resnet_forward.15} parent=11 // pred_check
        %p227 = pneg %p138
      $region22: #{resnet_forward.15} parent=11 // pred_check_branch
        %229 = sbr.rel (%p227) target = $region24
      $region23: #{resnet_forward.15} parent=11 // pred_region
        %p230 = scmp.lt.s32.totalorder %s22, 0
        %s231 = scalar_select %p230, %s22, 0
        %s232 = scalar_lea.vmem %s3, %s231
      $region24: #{resnet_forward.15} parent=11 // pred_fallthru
        _
    $region12: #{resnet_forward.15} parent=5 // pred_fallthru
      _
    %p233 = scmp.lt.s32.totalorder %s11, 2
    // Predicated region
    $region25: #{resnet_forward.15} parent=5 // pred_check
      %p234 = pneg %p233
    $region26: #{resnet_forward.15} parent=5 // pred_check_branch
      %236 = sbr.rel (%p234) target = $region28
    $region27: #{resnet_forward.15} parent=5 // pred_region
      // Predicated region
      $region29: #{resnet_forward.15} parent=27 // pred_check
        %p237 = pneg %p52
      $region30: #{resnet_forward.15} parent=27 // pred_check_branch
        %239 = sbr.rel (%p237) target = $region32
      $region31: #{resnet_forward.15} parent=27 // pred_region
        %s240 = smul.u32 32, %s18
        %p241 = scmp.lt.s32.totalorder %s240, 63
        %s242 = scalar_select %p241, %s240, 63
        %p243 = scmp.lt.s32.totalorder %s20, 0
        %s244 = scalar_select %p243, %s20, 0
        %s245 = sadd.s32 %s244, %s242
        %s246 = smul.addr %s245, 4
        %s247 = scalar_lea.vmem %s0, %s246
        %s248 = smul.u32 32, %s18
      $region32: #{resnet_forward.15} parent=27 // pred_fallthru
        _
      // Predicated region
      $region33: #{resnet_forward.15} parent=27 // pred_check
        %p249 = pneg %p160
      $region34: #{resnet_forward.15} parent=27 // pred_check_branch
        %251 = sbr.rel (%p249) target = $region36
      $region35: #{resnet_forward.15} parent=27 // pred_region
        %s252 = smul.u32 32, %s18
        %p253 = scmp.lt.s32.totalorder %s252, 63
        %s254 = scalar_select %p253, %s252, 63
        %p255 = scmp.lt.s32.totalorder %s19, 0
        %s256 = scalar_select %p255, %s19, 0
        %s257 = sadd.s32 %s256, %s254
        %s258 = smul.addr %s257, 4
        %s259 = scalar_lea.vmem %s4, %s258
        %s260 = smul.u32 32, %s18
      $region36: #{resnet_forward.15} parent=27 // pred_fallthru
        _
    $region28: #{resnet_forward.15} parent=5 // pred_fallthru
      _
    %p261 = scmp.le.s32.totalorder 1, %s11
    %p262 = scmp.lt.s32.totalorder %s11, 3
    %p263 = pnand %p261, %p262
    %p264 = pneg %p263
    // Predicated region
    $region37: #{resnet_forward.15} parent=5 // pred_check
      _
    $region38: #{resnet_forward.15} parent=5 // pred_check_branch
      %266 = sbr.rel (%p263) target = $region40
    $region39: #{resnet_forward.15} parent=5 // pred_region
      %s267 = ssub.s32 %s11, 1
      %s268 = smul.u32 32, %s21
      %p269 = scmp.lt.s32.totalorder %s268, 63
      %s270 = scalar_select %p269, %s268, 63
      %p271 = scmp.lt.s32.totalorder %s23, 0
      %s272 = scalar_select %p271, %s23, 0
      %s273 = sadd.s32 %s272, %s270
      %s274 = smul.addr %s273, 4
      %s275 = scalar_lea.vmem %s0, %s274
      %p276 = pneg %p58
      %p277 = pneg %p55
      %s278 = smul.u32 5, %s23
      %p279 = scmp.lt.s32.totalorder %s278, 4
      %s280 = scalar_select %p279, %s278, 4
      %p281 = scmp.lt.s32.totalorder %s22, 0
      %s282 = scalar_select %p281, %s22, 0
      %s283 = sadd.s32 %s282, %s280
      %s284 = smul.addr %s283, 4
      %s285 = scalar_lea.vmem %s1, %s284
      %p286 = pneg %p86
      %p287 = pneg %p83
      %p288 = scmp.lt.s32.totalorder %s22, 0
      %s289 = scalar_select %p288, %s22, 0
      %s290 = scalar_lea.vmem %s2, %s289
      %p291 = pneg %p112
      %p292 = pneg %p109
      %p293 = scmp.lt.s32.totalorder %s22, 0
      %s294 = scalar_select %p293, %s22, 0
      %s295 = scalar_lea.vmem %s3, %s294
      %p296 = pneg %p138
      %p297 = pneg %p135
      %s298 = smul.u32 32, %s21
      %p299 = scmp.lt.s32.totalorder %s298, 63
      %s300 = scalar_select %p299, %s298, 63
      %p301 = scmp.lt.s32.totalorder %s22, 0
      %s302 = scalar_select %p301, %s22, 0
      %s303 = sadd.s32 %s302, %s300
      %s304 = smul.addr %s303, 4
      %s305 = scalar_lea.vmem %s4, %s304
      %p306 = pneg %p166
      %p307 = pneg %p163
      %p308 = pneg %p194
      %p309 = pneg %p191
      %s310 = smul.u32 32, %s21
      %p311 = scmp.lt.s32.totalorder %s310, 63
      %s312 = scalar_select %p311, %s310, 63
      %p313 = scmp.lt.s32.totalorder %s22, 0
      %s314 = scalar_select %p313, %s22, 0
      %s315 = sadd.s32 %s314, %s312
      %s316 = smul.addr %s315, 4
      %s317 = scalar_lea.vmem %s5, %s316
      %s318 = smul.u32 32, %s21
      %p319 = scmp.lt.s32.totalorder %s318, 63
      %s320 = scalar_select %p319, %s318, 63
      %p321 = scmp.lt.s32.totalorder %s23, 0
      %s322 = scalar_select %p321, %s23, 0
      %s323 = sadd.s32 %s322, %s320
      %s324 = smul.addr %s323, 4
      %s325 = scalar_lea.vmem %s0, %s324
      %s326 = smul.u32 32, %s21
      %s327 = smul.u32 5, %s23
      %p328 = scmp.lt.s32.totalorder %s327, 4
      %s329 = scalar_select %p328, %s327, 4
      %p330 = scmp.lt.s32.totalorder %s22, 0
      %s331 = scalar_select %p330, %s22, 0
      %s332 = sadd.s32 %s331, %s329
      %s333 = smul.addr %s332, 4
      %s334 = scalar_lea.vmem %s1, %s333
      %s335 = smul.u32 5, %s23
      %p336 = scmp.lt.s32.totalorder %s22, 0
      %s337 = scalar_select %p336, %s22, 0
      %s338 = scalar_lea.vmem %s2, %s337
      %p339 = scmp.lt.s32.totalorder %s22, 0
      %s340 = scalar_select %p339, %s22, 0
      %s341 = scalar_lea.vmem %s3, %s340
      %s342 = smul.u32 32, %s21
      %p343 = scmp.lt.s32.totalorder %s342, 63
      %s344 = scalar_select %p343, %s342, 63
      %p345 = scmp.lt.s32.totalorder %s22, 0
      %s346 = scalar_select %p345, %s22, 0
      %s347 = sadd.s32 %s346, %s344
      %s348 = smul.addr %s347, 4
      %s349 = scalar_lea.vmem %s4, %s348
      %s350 = smul.u32 32, %s21
      %s351 = smul.u32 32, %s21
      %p352 = scmp.lt.s32.totalorder %s351, 63
      %s353 = scalar_select %p352, %s351, 63
      %p354 = scmp.lt.s32.totalorder %s22, 0
      %s355 = scalar_select %p354, %s22, 0
      %s356 = sadd.s32 %s355, %s353
      %s357 = smul.addr %s356, 4
      %s358 = scalar_lea.vmem %s5, %s357
      %s359 = smul.u32 32, %s21
      %p361 = scmp.eq.s32.totalorder %s23, 0
      // Predicated region
      $region41: #{resnet_forward.15} parent=39 // pred_check
        %p362 = pneg %p361
      $region42: #{resnet_forward.15} parent=39 // pred_check_branch
        %364 = sbr.rel (%p362) target = $region44
      $region43: #{resnet_forward.15} parent=39 // pred_region
        %365 = vst [vmem:[#allocation2] sm:$0xff] 0.0
        %366 = vst [vmem:[#allocation2 + $0x8] sm:$0xff] 0.0
        %367 = vst [vmem:[#allocation2 + $0x10] sm:$0xff] 0.0
        %368 = vst [vmem:[#allocation2 + $0x18] sm:$0xff] 0.0
        %369 = vst [vmem:[#allocation2 + $0x20] sm:$0xff] 0.0
        %370 = vst [vmem:[#allocation2 + $0x28] sm:$0xff] 0.0
        %371 = vst [vmem:[#allocation2 + $0x30] sm:$0xff] 0.0
        %372 = vst [vmem:[#allocation2 + $0x38] sm:$0xff] 0.0
        %373 = vst [vmem:[#allocation2 + $0x40] sm:$0xff] 0.0
        %374 = vst [vmem:[#allocation2 + $0x48] sm:$0xff] 0.0
        %375 = vst [vmem:[#allocation2 + $0x50] sm:$0xff] 0.0
        %376 = vst [vmem:[#allocation2 + $0x58] sm:$0xff] 0.0
        %377 = vst [vmem:[#allocation2 + $0x60] sm:$0xff] 0.0
        %378 = vst [vmem:[#allocation2 + $0x68] sm:$0xff] 0.0
        %379 = vst [vmem:[#allocation2 + $0x70] sm:$0xff] 0.0
        %380 = vst [vmem:[#allocation2 + $0x78] sm:$0xff] 0.0
        %381 = vst [vmem:[#allocation2 + $0x80] sm:$0xff] 0.0
        %382 = vst [vmem:[#allocation2 + $0x88] sm:$0xff] 0.0
        %383 = vst [vmem:[#allocation2 + $0x90] sm:$0xff] 0.0
        %384 = vst [vmem:[#allocation2 + $0x98] sm:$0xff] 0.0
        %385 = vst [vmem:[#allocation2 + $0xa0] sm:$0xff] 0.0
        %386 = vst [vmem:[#allocation2 + $0xa8] sm:$0xff] 0.0
        %387 = vst [vmem:[#allocation2 + $0xb0] sm:$0xff] 0.0
        %388 = vst [vmem:[#allocation2 + $0xb8] sm:$0xff] 0.0
        %389 = vst [vmem:[#allocation2 + $0xc0] sm:$0xff] 0.0
        %390 = vst [vmem:[#allocation2 + $0xc8] sm:$0xff] 0.0
        %391 = vst [vmem:[#allocation2 + $0xd0] sm:$0xff] 0.0
        %392 = vst [vmem:[#allocation2 + $0xd8] sm:$0xff] 0.0
        %393 = vst [vmem:[#allocation2 + $0xe0] sm:$0xff] 0.0
        %394 = vst [vmem:[#allocation2 + $0xe8] sm:$0xff] 0.0
        %395 = vst [vmem:[#allocation2 + $0xf0] sm:$0xff] 0.0
        %396 = vst [vmem:[#allocation2 + $0xf8] sm:$0xff] 0.0
      $region44: #{resnet_forward.15} parent=39 // pred_fallthru
        _
      %v397 = vld [vmem:[#allocation2] sm:$0xff]
      %v398 = vld [vmem:[#allocation2 + $0x8] sm:$0xff]
      %v399 = vld [vmem:[#allocation2 + $0x10] sm:$0xff]
      %v400 = vld [vmem:[#allocation2 + $0x18] sm:$0xff]
      %v401 = vld [vmem:[#allocation2 + $0x20] sm:$0xff]
      %v402 = vld [vmem:[#allocation2 + $0x28] sm:$0xff]
      %v403 = vld [vmem:[#allocation2 + $0x30] sm:$0xff]
      %v404 = vld [vmem:[#allocation2 + $0x38] sm:$0xff]
      %v405 = vld [vmem:[#allocation2 + $0x40] sm:$0xff]
      %v406 = vld [vmem:[#allocation2 + $0x48] sm:$0xff]
      %v407 = vld [vmem:[#allocation2 + $0x50] sm:$0xff]
      %v408 = vld [vmem:[#allocation2 + $0x58] sm:$0xff]
      %v409 = vld [vmem:[#allocation2 + $0x60] sm:$0xff]
      %v410 = vld [vmem:[#allocation2 + $0x68] sm:$0xff]
      %v411 = vld [vmem:[#allocation2 + $0x70] sm:$0xff]
      %v412 = vld [vmem:[#allocation2 + $0x78] sm:$0xff]
      %v413 = vld [vmem:[#allocation2 + $0x80] sm:$0xff]
      %v414 = vld [vmem:[#allocation2 + $0x88] sm:$0xff]
      %v415 = vld [vmem:[#allocation2 + $0x90] sm:$0xff]
      %v416 = vld [vmem:[#allocation2 + $0x98] sm:$0xff]
      %v417 = vld [vmem:[#allocation2 + $0xa0] sm:$0xff]
      %v418 = vld [vmem:[#allocation2 + $0xa8] sm:$0xff]
      %v419 = vld [vmem:[#allocation2 + $0xb0] sm:$0xff]
      %v420 = vld [vmem:[#allocation2 + $0xb8] sm:$0xff]
      %v421 = vld [vmem:[#allocation2 + $0xc0] sm:$0xff]
      %v422 = vld [vmem:[#allocation2 + $0xc8] sm:$0xff]
      %v423 = vld [vmem:[#allocation2 + $0xd0] sm:$0xff]
      %v424 = vld [vmem:[#allocation2 + $0xd8] sm:$0xff]
      %v425 = vld [vmem:[#allocation2 + $0xe0] sm:$0xff]
      %v426 = vld [vmem:[#allocation2 + $0xe8] sm:$0xff]
      %v427 = vld [vmem:[#allocation2 + $0xf0] sm:$0xff]
      %v428 = vld [vmem:[#allocation2 + $0xf8] sm:$0xff]
      %v429 = vld [vmem:[%s325] sm:$0xf]
      %v430 = vld [vmem:[%s325 + $0x4] sm:$0xf]
      %v431 = vld [vmem:[%s325 + $0x8] sm:$0xf]
      %v432 = vld [vmem:[%s325 + $0xc] sm:$0xf]
      %v433 = vld [vmem:[%s325 + $0x10] sm:$0xf]
      %v434 = vld [vmem:[%s325 + $0x14] sm:$0xf]
      %v435 = vld [vmem:[%s325 + $0x18] sm:$0xf]
      %v436 = vld [vmem:[%s325 + $0x1c] sm:$0xf]
      %v437 = vld [vmem:[%s325 + $0x20] sm:$0xf]
      %v438 = vld [vmem:[%s325 + $0x24] sm:$0xf]
      %v439 = vld [vmem:[%s325 + $0x28] sm:$0xf]
      %v440 = vld [vmem:[%s325 + $0x2c] sm:$0xf]
      %v441 = vld [vmem:[%s325 + $0x30] sm:$0xf]
      %v442 = vld [vmem:[%s325 + $0x34] sm:$0xf]
      %v443 = vld [vmem:[%s325 + $0x38] sm:$0xf]
      %v444 = vld [vmem:[%s325 + $0x3c] sm:$0xf]
      %v445 = vld [vmem:[%s325 + $0x40] sm:$0xf]
      %v446 = vld [vmem:[%s325 + $0x44] sm:$0xf]
      %v447 = vld [vmem:[%s325 + $0x48] sm:$0xf]
      %v448 = vld [vmem:[%s325 + $0x4c] sm:$0xf]
      %v449 = vld [vmem:[%s325 + $0x50] sm:$0xf]
      %v450 = vld [vmem:[%s325 + $0x54] sm:$0xf]
      %v451 = vld [vmem:[%s325 + $0x58] sm:$0xf]
      %v452 = vld [vmem:[%s325 + $0x5c] sm:$0xf]
      %v453 = vld [vmem:[%s325 + $0x60] sm:$0xf]
      %v454 = vld [vmem:[%s325 + $0x64] sm:$0xf]
      %v455 = vld [vmem:[%s325 + $0x68] sm:$0xf]
      %v456 = vld [vmem:[%s325 + $0x6c] sm:$0xf]
      %v457 = vld [vmem:[%s325 + $0x70] sm:$0xf]
      %v458 = vld [vmem:[%s325 + $0x74] sm:$0xf]
      %v459 = vld [vmem:[%s325 + $0x78] sm:$0xf]
      %v460 = vld [vmem:[%s325 + $0x7c] sm:$0xf]
      %v461 = vld [vmem:[%s334] sm:$0xf]
      %v462 = vld [vmem:[%s334 + $0x4] sm:$0xf]
      %v463 = vld [vmem:[%s334 + $0x8] sm:$0xf]
      %v464 = vld [vmem:[%s334 + $0xc] sm:$0xf]
      %v465 = vld [vmem:[%s334 + $0x10] sm:$0xf]
      %v498 = vunpack.c.l.b16 %v429
      %v499 = vunpack.c.l.b16 %v430
      %v500 = vunpack.c.l.b16 %v431
      %v501 = vunpack.c.l.b16 %v432
      %v502 = vunpack.c.l.b16 %v433
      %v503 = vunpack.c.l.b16 %v434
      %v504 = vunpack.c.l.b16 %v435
      %v505 = vunpack.c.l.b16 %v436
      %v506 = vunpack.c.l.b16 %v437
      %v507 = vunpack.c.l.b16 %v438
      %v508 = vunpack.c.l.b16 %v439
      %v509 = vunpack.c.l.b16 %v440
      %v510 = vunpack.c.l.b16 %v441
      %v511 = vunpack.c.l.b16 %v442
      %v512 = vunpack.c.l.b16 %v443
      %v513 = vunpack.c.l.b16 %v444
      %v514 = vunpack.c.l.b16 %v445
      %v515 = vunpack.c.l.b16 %v446
      %v516 = vunpack.c.l.b16 %v447
      %v517 = vunpack.c.l.b16 %v448
      %v518 = vunpack.c.l.b16 %v449
      %v519 = vunpack.c.l.b16 %v450
      %v520 = vunpack.c.l.b16 %v451
      %v521 = vunpack.c.l.b16 %v452
      %v522 = vunpack.c.l.b16 %v453
      %v523 = vunpack.c.l.b16 %v454
      %v524 = vunpack.c.l.b16 %v455
      %v525 = vunpack.c.l.b16 %v456
      %v526 = vunpack.c.l.b16 %v457
      %v527 = vunpack.c.l.b16 %v458
      %v528 = vunpack.c.l.b16 %v459
      %v529 = vunpack.c.l.b16 %v460
      %v530 = vpack.c.b16 %v499, %v498
      %v531 = vpack.c.b16 %v501, %v500
      %v532 = vpack.c.b16 %v503, %v502
      %v533 = vpack.c.b16 %v505, %v504
      %v534 = vpack.c.b16 %v507, %v506
      %v535 = vpack.c.b16 %v509, %v508
      %v536 = vpack.c.b16 %v511, %v510
      %v537 = vpack.c.b16 %v513, %v512
      %v538 = vpack.c.b16 %v515, %v514
      %v539 = vpack.c.b16 %v517, %v516
      %v540 = vpack.c.b16 %v519, %v518
      %v541 = vpack.c.b16 %v521, %v520
      %v542 = vpack.c.b16 %v523, %v522
      %v543 = vpack.c.b16 %v525, %v524
      %v544 = vpack.c.b16 %v527, %v526
      %v545 = vpack.c.b16 %v529, %v528
      %v551 = vunpack.c.l.b16 %v461
      %v552 = vunpack.c.l.b16 %v462
      %v553 = vunpack.c.l.b16 %v463
      %v554 = vunpack.c.l.b16 %v464
      %v555 = vunpack.c.l.b16 %v465
      %v556 = vpack.c.b16 %v552, %v551
      %v557 = vpack.c.b16 %v554, %v553
      %v558 = vpack.c.b16 %v555, %v555
      %vm561 = vcmask 326656
      %v563 = vsel %vm561, %v530, 0
      %v566 = vsel %vm561, %v531, 0
      %v569 = vsel %vm561, %v532, 0
      %v572 = vsel %vm561, %v533, 0
      %v575 = vsel %vm561, %v534, 0
      %v578 = vsel %vm561, %v535, 0
      %v581 = vsel %vm561, %v536, 0
      %v584 = vsel %vm561, %v537, 0
      %v587 = vsel %vm561, %v538, 0
      %v590 = vsel %vm561, %v539, 0
      %v593 = vsel %vm561, %v540, 0
      %v596 = vsel %vm561, %v541, 0
      %v599 = vsel %vm561, %v542, 0
      %v602 = vsel %vm561, %v543, 0
      %v605 = vsel %vm561, %v544, 0
      %v608 = vsel %vm561, %v545, 0
      %vm610 = vcmask 1043456
      %v612 = vsel %vm610, %v558, 0
      %614 = vmatprep.subr.bf16.mxu0 0
      %615 = vmatpush1.bf16.msra.mxu0 0
      %616 = vmatprep.subr.bf16.mxu0 0
      %617 = vmatpush1.bf16.msra.mxu0 0
      %618 = vmatprep.subr.bf16.mxu0 0
      %619 = vmatpush1.bf16.msra.mxu0 0
      %620 = vmatprep.subr.bf16.mxu0 0
      %621 = vmatpush1.bf16.msra.mxu0 0
      %622 = vmatprep.subr.bf16.mxu0 0
      %623 = vmatpush1.bf16.msra.mxu0 0
      %624 = vmatprep.subr.bf16.mxu0 0
      %625 = vmatpush1.bf16.msra.mxu0 %v612
      %626 = vmatprep.subr.bf16.mxu0 0
      %627 = vmatpush1.bf16.msra.mxu0 %v557
      %628 = vmatprep.subr.bf16.mxu0 0
      %629 = vmatpush1.bf16.msra.mxu0 %v556
      %630 = vmatprep.subr.bf16.mxu0 0
      %631 = vmatpush2.bf16.msra.mxu0 0
      %632 = vmatprep.subr.bf16.mxu0 0
      %633 = vmatpush2.bf16.msra.mxu0 0
      %634 = vmatprep.subr.bf16.mxu0 0
      %635 = vmatpush2.bf16.msra.mxu0 0
      %636 = vmatprep.subr.bf16.mxu0 0
      %637 = vmatpush2.bf16.msra.mxu0 0
      %638 = vmatprep.subr.bf16.mxu0 0
      %639 = vmatpush2.bf16.msra.mxu0 0
      %640 = vmatprep.subr.bf16.mxu0 0
      %641 = vmatpush2.bf16.msra.mxu0 0
      %642 = vmatprep.subr.bf16.mxu0 0
      %643 = vmatpush2.bf16.msra.mxu0 0
      %644 = vmatprep.subr.bf16.mxu0 0
      %645 = vmatpush2.bf16.msra.mxu0 0
      %646 = vmatprep.mubr.bf16.mxu0 0
      %647 = vmatmul.mubr.bf16.gmra.mxu0 %v563
      %v648 = vpop.f32.mrf.mxu0
      %v649 = vadd.f32 0.0, %v648
      %v650 = vpop.f32.mrf.mxu0
      %v651 = vpop.f32.mrf.mxu0
      %v652 = vadd.f32 0.0, %v651
      %v653 = vpop.f32.mrf.mxu0
      %654 = vmatprep.mubr.bf16.mxu0 0
      %655 = vmatmul.mubr.bf16.gmra.mxu0 %v566
      %v656 = vpop.f32.mrf.mxu0
      %v657 = vadd.f32 0.0, %v656
      %v658 = vpop.f32.mrf.mxu0
      %v659 = vpop.f32.mrf.mxu0
      %v660 = vadd.f32 0.0, %v659
      %v661 = vpop.f32.mrf.mxu0
      %662 = vmatprep.mubr.bf16.mxu0 0
      %663 = vmatmul.mubr.bf16.gmra.mxu0 %v569
      %v664 = vpop.f32.mrf.mxu0
      %v665 = vadd.f32 0.0, %v664
      %v666 = vpop.f32.mrf.mxu0
      %v667 = vpop.f32.mrf.mxu0
      %v668 = vadd.f32 0.0, %v667
      %v669 = vpop.f32.mrf.mxu0
      %670 = vmatprep.mubr.bf16.mxu0 0
      %671 = vmatmul.mubr.bf16.gmra.mxu0 %v572
      %v672 = vpop.f32.mrf.mxu0
      %v673 = vadd.f32 0.0, %v672
      %v674 = vpop.f32.mrf.mxu0
      %v675 = vpop.f32.mrf.mxu0
      %v676 = vadd.f32 0.0, %v675
      %v677 = vpop.f32.mrf.mxu0
      %678 = vmatprep.mubr.bf16.mxu0 0
      %679 = vmatmul.mubr.bf16.gmra.mxu0 %v575
      %v680 = vpop.f32.mrf.mxu0
      %v681 = vadd.f32 0.0, %v680
      %v682 = vpop.f32.mrf.mxu0
      %v683 = vpop.f32.mrf.mxu0
      %v684 = vadd.f32 0.0, %v683
      %v685 = vpop.f32.mrf.mxu0
      %686 = vmatprep.mubr.bf16.mxu0 0
      %687 = vmatmul.mubr.bf16.gmra.mxu0 %v578
      %v688 = vpop.f32.mrf.mxu0
      %v689 = vadd.f32 0.0, %v688
      %v690 = vpop.f32.mrf.mxu0
      %v691 = vpop.f32.mrf.mxu0
      %v692 = vadd.f32 0.0, %v691
      %v693 = vpop.f32.mrf.mxu0
      %694 = vmatprep.mubr.bf16.mxu0 0
      %695 = vmatmul.mubr.bf16.gmra.mxu0 %v581
      %v696 = vpop.f32.mrf.mxu0
      %v697 = vadd.f32 0.0, %v696
      %v698 = vpop.f32.mrf.mxu0
      %v699 = vpop.f32.mrf.mxu0
      %v700 = vadd.f32 0.0, %v699
      %v701 = vpop.f32.mrf.mxu0
      %702 = vmatprep.mubr.bf16.mxu0 0
      %703 = vmatmul.mubr.bf16.gmra.mxu0 %v584
      %v704 = vpop.f32.mrf.mxu0
      %v705 = vadd.f32 0.0, %v704
      %v706 = vpop.f32.mrf.mxu0
      %v707 = vpop.f32.mrf.mxu0
      %v708 = vadd.f32 0.0, %v707
      %v709 = vpop.f32.mrf.mxu0
      %710 = vmatprep.mubr.bf16.mxu0 0
      %711 = vmatmul.mubr.bf16.gmra.mxu0 %v587
      %v712 = vpop.f32.mrf.mxu0
      %v713 = vadd.f32 0.0, %v712
      %v714 = vpop.f32.mrf.mxu0
      %v715 = vpop.f32.mrf.mxu0
      %v716 = vadd.f32 0.0, %v715
      %v717 = vpop.f32.mrf.mxu0
      %718 = vmatprep.mubr.bf16.mxu0 0
      %719 = vmatmul.mubr.bf16.gmra.mxu0 %v590
      %v720 = vpop.f32.mrf.mxu0
      %v721 = vadd.f32 0.0, %v720
      %v722 = vpop.f32.mrf.mxu0
      %v723 = vpop.f32.mrf.mxu0
      %v724 = vadd.f32 0.0, %v723
      %v725 = vpop.f32.mrf.mxu0
      %726 = vmatprep.mubr.bf16.mxu0 0
      %727 = vmatmul.mubr.bf16.gmra.mxu0 %v593
      %v728 = vpop.f32.mrf.mxu0
      %v729 = vadd.f32 0.0, %v728
      %v730 = vpop.f32.mrf.mxu0
      %v731 = vpop.f32.mrf.mxu0
      %v732 = vadd.f32 0.0, %v731
      %v733 = vpop.f32.mrf.mxu0
      %734 = vmatprep.mubr.bf16.mxu0 0
      %735 = vmatmul.mubr.bf16.gmra.mxu0 %v596
      %v736 = vpop.f32.mrf.mxu0
      %v737 = vadd.f32 0.0, %v736
      %v738 = vpop.f32.mrf.mxu0
      %v739 = vpop.f32.mrf.mxu0
      %v740 = vadd.f32 0.0, %v739
      %v741 = vpop.f32.mrf.mxu0
      %742 = vmatprep.mubr.bf16.mxu0 0
      %743 = vmatmul.mubr.bf16.gmra.mxu0 %v599
      %v744 = vpop.f32.mrf.mxu0
      %v745 = vadd.f32 0.0, %v744
      %v746 = vpop.f32.mrf.mxu0
      %v747 = vpop.f32.mrf.mxu0
      %v748 = vadd.f32 0.0, %v747
      %v749 = vpop.f32.mrf.mxu0
      %750 = vmatprep.mubr.bf16.mxu0 0
      %751 = vmatmul.mubr.bf16.gmra.mxu0 %v602
      %v752 = vpop.f32.mrf.mxu0
      %v753 = vadd.f32 0.0, %v752
      %v754 = vpop.f32.mrf.mxu0
      %v755 = vpop.f32.mrf.mxu0
      %v756 = vadd.f32 0.0, %v755
      %v757 = vpop.f32.mrf.mxu0
      %758 = vmatprep.mubr.bf16.mxu0 0
      %759 = vmatmul.mubr.bf16.gmra.mxu0 %v605
      %v760 = vpop.f32.mrf.mxu0
      %v761 = vadd.f32 0.0, %v760
      %v762 = vpop.f32.mrf.mxu0
      %v763 = vpop.f32.mrf.mxu0
      %v764 = vadd.f32 0.0, %v763
      %v765 = vpop.f32.mrf.mxu0
      %766 = vmatprep.mubr.bf16.mxu0 0
      %767 = vmatmul.mubr.bf16.gmra.mxu0 %v608
      %v768 = vpop.f32.mrf.mxu0
      %v769 = vadd.f32 0.0, %v768
      %v770 = vpop.f32.mrf.mxu0
      %v771 = vpop.f32.mrf.mxu0
      %v772 = vadd.f32 0.0, %v771
      %v773 = vpop.f32.mrf.mxu0
      %774 = vdwg.mxu0
      %v775 = vadd.f32 %v397, %v649
      %v776 = vadd.f32 %v398, %v652
      %v777 = vadd.f32 %v399, %v657
      %v778 = vadd.f32 %v400, %v660
      %v779 = vadd.f32 %v401, %v665
      %v780 = vadd.f32 %v402, %v668
      %v781 = vadd.f32 %v403, %v673
      %v782 = vadd.f32 %v404, %v676
      %v783 = vadd.f32 %v405, %v681
      %v784 = vadd.f32 %v406, %v684
      %v785 = vadd.f32 %v407, %v689
      %v786 = vadd.f32 %v408, %v692
      %v787 = vadd.f32 %v409, %v697
      %v788 = vadd.f32 %v410, %v700
      %v789 = vadd.f32 %v411, %v705
      %v790 = vadd.f32 %v412, %v708
      %v791 = vadd.f32 %v413, %v713
      %v792 = vadd.f32 %v414, %v716
      %v793 = vadd.f32 %v415, %v721
      %v794 = vadd.f32 %v416, %v724
      %v795 = vadd.f32 %v417, %v729
      %v796 = vadd.f32 %v418, %v732
      %v797 = vadd.f32 %v419, %v737
      %v798 = vadd.f32 %v420, %v740
      %v799 = vadd.f32 %v421, %v745
      %v800 = vadd.f32 %v422, %v748
      %v801 = vadd.f32 %v423, %v753
      %v802 = vadd.f32 %v424, %v756
      %v803 = vadd.f32 %v425, %v761
      %v804 = vadd.f32 %v426, %v764
      %v805 = vadd.f32 %v427, %v769
      %v806 = vadd.f32 %v428, %v772
      %807 = vst [vmem:[#allocation2] sm:$0xff] %v775
      %808 = vst [vmem:[#allocation2 + $0x8] sm:$0xff] %v776
      %809 = vst [vmem:[#allocation2 + $0x10] sm:$0xff] %v777
      %810 = vst [vmem:[#allocation2 + $0x18] sm:$0xff] %v778
      %811 = vst [vmem:[#allocation2 + $0x20] sm:$0xff] %v779
      %812 = vst [vmem:[#allocation2 + $0x28] sm:$0xff] %v780
      %813 = vst [vmem:[#allocation2 + $0x30] sm:$0xff] %v781
      %814 = vst [vmem:[#allocation2 + $0x38] sm:$0xff] %v782
      %815 = vst [vmem:[#allocation2 + $0x40] sm:$0xff] %v783
      %816 = vst [vmem:[#allocation2 + $0x48] sm:$0xff] %v784
      %817 = vst [vmem:[#allocation2 + $0x50] sm:$0xff] %v785
      %818 = vst [vmem:[#allocation2 + $0x58] sm:$0xff] %v786
      %819 = vst [vmem:[#allocation2 + $0x60] sm:$0xff] %v787
      %820 = vst [vmem:[#allocation2 + $0x68] sm:$0xff] %v788
      %821 = vst [vmem:[#allocation2 + $0x70] sm:$0xff] %v789
      %822 = vst [vmem:[#allocation2 + $0x78] sm:$0xff] %v790
      %823 = vst [vmem:[#allocation2 + $0x80] sm:$0xff] %v791
      %824 = vst [vmem:[#allocation2 + $0x88] sm:$0xff] %v792
      %825 = vst [vmem:[#allocation2 + $0x90] sm:$0xff] %v793
      %826 = vst [vmem:[#allocation2 + $0x98] sm:$0xff] %v794
      %827 = vst [vmem:[#allocation2 + $0xa0] sm:$0xff] %v795
      %828 = vst [vmem:[#allocation2 + $0xa8] sm:$0xff] %v796
      %829 = vst [vmem:[#allocation2 + $0xb0] sm:$0xff] %v797
      %830 = vst [vmem:[#allocation2 + $0xb8] sm:$0xff] %v798
      %831 = vst [vmem:[#allocation2 + $0xc0] sm:$0xff] %v799
      %832 = vst [vmem:[#allocation2 + $0xc8] sm:$0xff] %v800
      %833 = vst [vmem:[#allocation2 + $0xd0] sm:$0xff] %v801
      %834 = vst [vmem:[#allocation2 + $0xd8] sm:$0xff] %v802
      %835 = vst [vmem:[#allocation2 + $0xe0] sm:$0xff] %v803
      %836 = vst [vmem:[#allocation2 + $0xe8] sm:$0xff] %v804
      %837 = vst [vmem:[#allocation2 + $0xf0] sm:$0xff] %v805
      %838 = vst [vmem:[#allocation2 + $0xf8] sm:$0xff] %v806
      // Predicated region
      $region45: #{resnet_forward.15} parent=39 // pred_check
        %p839 = pneg %p361
      $region46: #{resnet_forward.15} parent=39 // pred_check_branch
        %841 = sbr.rel (%p839) target = $region48
      $region47: #{resnet_forward.15} parent=39 // pred_region
        %v842 = vld [vmem:[#allocation2] sm:$0xff]
        %v843 = vld [vmem:[#allocation2 + $0x8] sm:$0xff]
        %v844 = vld [vmem:[#allocation2 + $0x10] sm:$0xff]
        %v845 = vld [vmem:[#allocation2 + $0x18] sm:$0xff]
        %v846 = vld [vmem:[#allocation2 + $0x20] sm:$0xff]
        %v847 = vld [vmem:[#allocation2 + $0x28] sm:$0xff]
        %v848 = vld [vmem:[#allocation2 + $0x30] sm:$0xff]
        %v849 = vld [vmem:[#allocation2 + $0x38] sm:$0xff]
        %v850 = vld [vmem:[#allocation2 + $0x40] sm:$0xff]
        %v851 = vld [vmem:[#allocation2 + $0x48] sm:$0xff]
        %v852 = vld [vmem:[#allocation2 + $0x50] sm:$0xff]
        %v853 = vld [vmem:[#allocation2 + $0x58] sm:$0xff]
        %v854 = vld [vmem:[#allocation2 + $0x60] sm:$0xff]
        %v855 = vld [vmem:[#allocation2 + $0x68] sm:$0xff]
        %v856 = vld [vmem:[#allocation2 + $0x70] sm:$0xff]
        %v857 = vld [vmem:[#allocation2 + $0x78] sm:$0xff]
        %v858 = vld [vmem:[#allocation2 + $0x80] sm:$0xff]
        %v859 = vld [vmem:[#allocation2 + $0x88] sm:$0xff]
        %v860 = vld [vmem:[#allocation2 + $0x90] sm:$0xff]
        %v861 = vld [vmem:[#allocation2 + $0x98] sm:$0xff]
        %v862 = vld [vmem:[#allocation2 + $0xa0] sm:$0xff]
        %v863 = vld [vmem:[#allocation2 + $0xa8] sm:$0xff]
        %v864 = vld [vmem:[#allocation2 + $0xb0] sm:$0xff]
        %v865 = vld [vmem:[#allocation2 + $0xb8] sm:$0xff]
        %v866 = vld [vmem:[#allocation2 + $0xc0] sm:$0xff]
        %v867 = vld [vmem:[#allocation2 + $0xc8] sm:$0xff]
        %v868 = vld [vmem:[#allocation2 + $0xd0] sm:$0xff]
        %v869 = vld [vmem:[#allocation2 + $0xd8] sm:$0xff]
        %v870 = vld [vmem:[#allocation2 + $0xe0] sm:$0xff]
        %v871 = vld [vmem:[#allocation2 + $0xe8] sm:$0xff]
        %v872 = vld [vmem:[#allocation2 + $0xf0] sm:$0xff]
        %v873 = vld [vmem:[#allocation2 + $0xf8] sm:$0xff]
        %v874 = vld [vmem:[%s338] sm:$0x1]
        %v876 = vlaneseq
        %v877 = vshrl.u32 %v876, 7
        %v878 = vsub.s32 0, %v877
        %v879 = vrot.slane %v874, %v878
        %v881 = vmul.f32 %v842, %v879
        %v882 = vmul.f32 %v843, %v879
        %v883 = vmul.f32 %v844, %v879
        %v884 = vmul.f32 %v845, %v879
        %v885 = vmul.f32 %v846, %v879
        %v886 = vmul.f32 %v847, %v879
        %v887 = vmul.f32 %v848, %v879
        %v888 = vmul.f32 %v849, %v879
        %v889 = vmul.f32 %v850, %v879
        %v890 = vmul.f32 %v851, %v879
        %v891 = vmul.f32 %v852, %v879
        %v892 = vmul.f32 %v853, %v879
        %v893 = vmul.f32 %v854, %v879
        %v894 = vmul.f32 %v855, %v879
        %v895 = vmul.f32 %v856, %v879
        %v896 = vmul.f32 %v857, %v879
        %v897 = vmul.f32 %v858, %v879
        %v898 = vmul.f32 %v859, %v879
        %v899 = vmul.f32 %v860, %v879
        %v900 = vmul.f32 %v861, %v879
        %v901 = vmul.f32 %v862, %v879
        %v902 = vmul.f32 %v863, %v879
        %v903 = vmul.f32 %v864, %v879
        %v904 = vmul.f32 %v865, %v879
        %v905 = vmul.f32 %v866, %v879
        %v906 = vmul.f32 %v867, %v879
        %v907 = vmul.f32 %v868, %v879
        %v908 = vmul.f32 %v869, %v879
        %v909 = vmul.f32 %v870, %v879
        %v910 = vmul.f32 %v871, %v879
        %v911 = vmul.f32 %v872, %v879
        %v912 = vmul.f32 %v873, %v879
        %v913 = vld [vmem:[%s341] sm:$0x1]
        %v915 = vlaneseq
        %v916 = vshrl.u32 %v915, 7
        %v917 = vsub.s32 0, %v916
        %v918 = vrot.slane %v913, %v917
        %v920 = vadd.f32 %v881, %v918
        %v921 = vadd.f32 %v882, %v918
        %v922 = vadd.f32 %v883, %v918
        %v923 = vadd.f32 %v884, %v918
        %v924 = vadd.f32 %v885, %v918
        %v925 = vadd.f32 %v886, %v918
        %v926 = vadd.f32 %v887, %v918
        %v927 = vadd.f32 %v888, %v918
        %v928 = vadd.f32 %v889, %v918
        %v929 = vadd.f32 %v890, %v918
        %v930 = vadd.f32 %v891, %v918
        %v931 = vadd.f32 %v892, %v918
        %v932 = vadd.f32 %v893, %v918
        %v933 = vadd.f32 %v894, %v918
        %v934 = vadd.f32 %v895, %v918
        %v935 = vadd.f32 %v896, %v918
        %v936 = vadd.f32 %v897, %v918
        %v937 = vadd.f32 %v898, %v918
        %v938 = vadd.f32 %v899, %v918
        %v939 = vadd.f32 %v900, %v918
        %v940 = vadd.f32 %v901, %v918
        %v941 = vadd.f32 %v902, %v918
        %v942 = vadd.f32 %v903, %v918
        %v943 = vadd.f32 %v904, %v918
        %v944 = vadd.f32 %v905, %v918
        %v945 = vadd.f32 %v906, %v918
        %v946 = vadd.f32 %v907, %v918
        %v947 = vadd.f32 %v908, %v918
        %v948 = vadd.f32 %v909, %v918
        %v949 = vadd.f32 %v910, %v918
        %v950 = vadd.f32 %v911, %v918
        %v951 = vadd.f32 %v912, %v918
        %v952 = vld [vmem:[%s349] sm:$0xf]
        %v953 = vld [vmem:[%s349 + $0x4] sm:$0xf]
        %v954 = vld [vmem:[%s349 + $0x8] sm:$0xf]
        %v955 = vld [vmem:[%s349 + $0xc] sm:$0xf]
        %v956 = vld [vmem:[%s349 + $0x10] sm:$0xf]
        %v957 = vld [vmem:[%s349 + $0x14] sm:$0xf]
        %v958 = vld [vmem:[%s349 + $0x18] sm:$0xf]
        %v959 = vld [vmem:[%s349 + $0x1c] sm:$0xf]
        %v960 = vld [vmem:[%s349 + $0x20] sm:$0xf]
        %v961 = vld [vmem:[%s349 + $0x24] sm:$0xf]
        %v962 = vld [vmem:[%s349 + $0x28] sm:$0xf]
        %v963 = vld [vmem:[%s349 + $0x2c] sm:$0xf]
        %v964 = vld [vmem:[%s349 + $0x30] sm:$0xf]
        %v965 = vld [vmem:[%s349 + $0x34] sm:$0xf]
        %v966 = vld [vmem:[%s349 + $0x38] sm:$0xf]
        %v967 = vld [vmem:[%s349 + $0x3c] sm:$0xf]
        %v968 = vld [vmem:[%s349 + $0x40] sm:$0xf]
        %v969 = vld [vmem:[%s349 + $0x44] sm:$0xf]
        %v970 = vld [vmem:[%s349 + $0x48] sm:$0xf]
        %v971 = vld [vmem:[%s349 + $0x4c] sm:$0xf]
        %v972 = vld [vmem:[%s349 + $0x50] sm:$0xf]
        %v973 = vld [vmem:[%s349 + $0x54] sm:$0xf]
        %v974 = vld [vmem:[%s349 + $0x58] sm:$0xf]
        %v975 = vld [vmem:[%s349 + $0x5c] sm:$0xf]
        %v976 = vld [vmem:[%s349 + $0x60] sm:$0xf]
        %v977 = vld [vmem:[%s349 + $0x64] sm:$0xf]
        %v978 = vld [vmem:[%s349 + $0x68] sm:$0xf]
        %v979 = vld [vmem:[%s349 + $0x6c] sm:$0xf]
        %v980 = vld [vmem:[%s349 + $0x70] sm:$0xf]
        %v981 = vld [vmem:[%s349 + $0x74] sm:$0xf]
        %v982 = vld [vmem:[%s349 + $0x78] sm:$0xf]
        %v983 = vld [vmem:[%s349 + $0x7c] sm:$0xf]
        %v984 = vunpack.c.l.bf16 %v952
        %v985 = vunpack.c.l.bf16 %v953
        %v986 = vunpack.c.l.bf16 %v954
        %v987 = vunpack.c.l.bf16 %v955
        %v988 = vunpack.c.l.bf16 %v956
        %v989 = vunpack.c.l.bf16 %v957
        %v990 = vunpack.c.l.bf16 %v958
        %v991 = vunpack.c.l.bf16 %v959
        %v992 = vunpack.c.l.bf16 %v960
        %v993 = vunpack.c.l.bf16 %v961
        %v994 = vunpack.c.l.bf16 %v962
        %v995 = vunpack.c.l.bf16 %v963
        %v996 = vunpack.c.l.bf16 %v964
        %v997 = vunpack.c.l.bf16 %v965
        %v998 = vunpack.c.l.bf16 %v966
        %v999 = vunpack.c.l.bf16 %v967
        %v1000 = vunpack.c.l.bf16 %v968
        %v1001 = vunpack.c.l.bf16 %v969
        %v1002 = vunpack.c.l.bf16 %v970
        %v1003 = vunpack.c.l.bf16 %v971
        %v1004 = vunpack.c.l.bf16 %v972
        %v1005 = vunpack.c.l.bf16 %v973
        %v1006 = vunpack.c.l.bf16 %v974
        %v1007 = vunpack.c.l.bf16 %v975
        %v1008 = vunpack.c.l.bf16 %v976
        %v1009 = vunpack.c.l.bf16 %v977
        %v1010 = vunpack.c.l.bf16 %v978
        %v1011 = vunpack.c.l.bf16 %v979
        %v1012 = vunpack.c.l.bf16 %v980
        %v1013 = vunpack.c.l.bf16 %v981
        %v1014 = vunpack.c.l.bf16 %v982
        %v1015 = vunpack.c.l.bf16 %v983
        %v1016 = vadd.f32 %v920, %v984
        %v1017 = vadd.f32 %v921, %v985
        %v1018 = vadd.f32 %v922, %v986
        %v1019 = vadd.f32 %v923, %v987
        %v1020 = vadd.f32 %v924, %v988
        %v1021 = vadd.f32 %v925, %v989
        %v1022 = vadd.f32 %v926, %v990
        %v1023 = vadd.f32 %v927, %v991
        %v1024 = vadd.f32 %v928, %v992
        %v1025 = vadd.f32 %v929, %v993
        %v1026 = vadd.f32 %v930, %v994
        %v1027 = vadd.f32 %v931, %v995
        %v1028 = vadd.f32 %v932, %v996
        %v1029 = vadd.f32 %v933, %v997
        %v1030 = vadd.f32 %v934, %v998
        %v1031 = vadd.f32 %v935, %v999
        %v1032 = vadd.f32 %v936, %v1000
        %v1033 = vadd.f32 %v937, %v1001
        %v1034 = vadd.f32 %v938, %v1002
        %v1035 = vadd.f32 %v939, %v1003
        %v1036 = vadd.f32 %v940, %v1004
        %v1037 = vadd.f32 %v941, %v1005
        %v1038 = vadd.f32 %v942, %v1006
        %v1039 = vadd.f32 %v943, %v1007
        %v1040 = vadd.f32 %v944, %v1008
        %v1041 = vadd.f32 %v945, %v1009
        %v1042 = vadd.f32 %v946, %v1010
        %v1043 = vadd.f32 %v947, %v1011
        %v1044 = vadd.f32 %v948, %v1012
        %v1045 = vadd.f32 %v949, %v1013
        %v1046 = vadd.f32 %v950, %v1014
        %v1047 = vadd.f32 %v951, %v1015
        %v1048 = vmax.f32 %v1016, 0.0
        %v1049 = vmax.f32 %v1017, 0.0
        %v1050 = vmax.f32 %v1018, 0.0
        %v1051 = vmax.f32 %v1019, 0.0
        %v1052 = vmax.f32 %v1020, 0.0
        %v1053 = vmax.f32 %v1021, 0.0
        %v1054 = vmax.f32 %v1022, 0.0
        %v1055 = vmax.f32 %v1023, 0.0
        %v1056 = vmax.f32 %v1024, 0.0
        %v1057 = vmax.f32 %v1025, 0.0
        %v1058 = vmax.f32 %v1026, 0.0
        %v1059 = vmax.f32 %v1027, 0.0
        %v1060 = vmax.f32 %v1028, 0.0
        %v1061 = vmax.f32 %v1029, 0.0
        %v1062 = vmax.f32 %v1030, 0.0
        %v1063 = vmax.f32 %v1031, 0.0
        %v1064 = vmax.f32 %v1032, 0.0
        %v1065 = vmax.f32 %v1033, 0.0
        %v1066 = vmax.f32 %v1034, 0.0
        %v1067 = vmax.f32 %v1035, 0.0
        %v1068 = vmax.f32 %v1036, 0.0
        %v1069 = vmax.f32 %v1037, 0.0
        %v1070 = vmax.f32 %v1038, 0.0
        %v1071 = vmax.f32 %v1039, 0.0
        %v1072 = vmax.f32 %v1040, 0.0
        %v1073 = vmax.f32 %v1041, 0.0
        %v1074 = vmax.f32 %v1042, 0.0
        %v1075 = vmax.f32 %v1043, 0.0
        %v1076 = vmax.f32 %v1044, 0.0
        %v1077 = vmax.f32 %v1045, 0.0
        %v1078 = vmax.f32 %v1046, 0.0
        %v1079 = vmax.f32 %v1047, 0.0
        %v1080 = vpack.c.bf16 %v1049, %v1048
        %v1081 = vpack.c.bf16 %v1051, %v1050
        %v1082 = vpack.c.bf16 %v1053, %v1052
        %v1083 = vpack.c.bf16 %v1055, %v1054
        %v1084 = vpack.c.bf16 %v1057, %v1056
        %v1085 = vpack.c.bf16 %v1059, %v1058
        %v1086 = vpack.c.bf16 %v1061, %v1060
        %v1087 = vpack.c.bf16 %v1063, %v1062
        %v1088 = vpack.c.bf16 %v1065, %v1064
        %v1089 = vpack.c.bf16 %v1067, %v1066
        %v1090 = vpack.c.bf16 %v1069, %v1068
        %v1091 = vpack.c.bf16 %v1071, %v1070
        %v1092 = vpack.c.bf16 %v1073, %v1072
        %v1093 = vpack.c.bf16 %v1075, %v1074
        %v1094 = vpack.c.bf16 %v1077, %v1076
        %v1095 = vpack.c.bf16 %v1079, %v1078
        %v1112 = vunpack.c.l.b16 %v1080
        %v1113 = vunpack.c.h.b16 %v1080
        %v1114 = vunpack.c.l.b16 %v1081
        %v1115 = vunpack.c.h.b16 %v1081
        %v1116 = vunpack.c.l.b16 %v1082
        %v1117 = vunpack.c.h.b16 %v1082
        %v1118 = vunpack.c.l.b16 %v1083
        %v1119 = vunpack.c.h.b16 %v1083
        %v1120 = vunpack.c.l.b16 %v1084
        %v1121 = vunpack.c.h.b16 %v1084
        %v1122 = vunpack.c.l.b16 %v1085
        %v1123 = vunpack.c.h.b16 %v1085
        %v1124 = vunpack.c.l.b16 %v1086
        %v1125 = vunpack.c.h.b16 %v1086
        %v1126 = vunpack.c.l.b16 %v1087
        %v1127 = vunpack.c.h.b16 %v1087
        %v1128 = vunpack.c.l.b16 %v1088
        %v1129 = vunpack.c.h.b16 %v1088
        %v1130 = vunpack.c.l.b16 %v1089
        %v1131 = vunpack.c.h.b16 %v1089
        %v1132 = vunpack.c.l.b16 %v1090
        %v1133 = vunpack.c.h.b16 %v1090
        %v1134 = vunpack.c.l.b16 %v1091
        %v1135 = vunpack.c.h.b16 %v1091
        %v1136 = vunpack.c.l.b16 %v1092
        %v1137 = vunpack.c.h.b16 %v1092
        %v1138 = vunpack.c.l.b16 %v1093
        %v1139 = vunpack.c.h.b16 %v1093
        %v1140 = vunpack.c.l.b16 %v1094
        %v1141 = vunpack.c.h.b16 %v1094
        %v1142 = vunpack.c.l.b16 %v1095
        %v1143 = vunpack.c.h.b16 %v1095
        %v1144 = vpack.c.b16 %v1112, %v1112
        %v1145 = vpack.c.b16 %v1113, %v1113
        %v1146 = vpack.c.b16 %v1114, %v1114
        %v1147 = vpack.c.b16 %v1115, %v1115
        %v1148 = vpack.c.b16 %v1116, %v1116
        %v1149 = vpack.c.b16 %v1117, %v1117
        %v1150 = vpack.c.b16 %v1118, %v1118
        %v1151 = vpack.c.b16 %v1119, %v1119
        %v1152 = vpack.c.b16 %v1120, %v1120
        %v1153 = vpack.c.b16 %v1121, %v1121
        %v1154 = vpack.c.b16 %v1122, %v1122
        %v1155 = vpack.c.b16 %v1123, %v1123
        %v1156 = vpack.c.b16 %v1124, %v1124
        %v1157 = vpack.c.b16 %v1125, %v1125
        %v1158 = vpack.c.b16 %v1126, %v1126
        %v1159 = vpack.c.b16 %v1127, %v1127
        %v1160 = vpack.c.b16 %v1128, %v1128
        %v1161 = vpack.c.b16 %v1129, %v1129
        %v1162 = vpack.c.b16 %v1130, %v1130
        %v1163 = vpack.c.b16 %v1131, %v1131
        %v1164 = vpack.c.b16 %v1132, %v1132
        %v1165 = vpack.c.b16 %v1133, %v1133
        %v1166 = vpack.c.b16 %v1134, %v1134
        %v1167 = vpack.c.b16 %v1135, %v1135
        %v1168 = vpack.c.b16 %v1136, %v1136
        %v1169 = vpack.c.b16 %v1137, %v1137
        %v1170 = vpack.c.b16 %v1138, %v1138
        %v1171 = vpack.c.b16 %v1139, %v1139
        %v1172 = vpack.c.b16 %v1140, %v1140
        %v1173 = vpack.c.b16 %v1141, %v1141
        %v1174 = vpack.c.b16 %v1142, %v1142
        %v1175 = vpack.c.b16 %v1143, %v1143
        %1208 = vst [vmem:[%s358] sm:$0xf] %v1144
        %1209 = vst [vmem:[%s358 + $0x4] sm:$0xf] %v1145
        %1210 = vst [vmem:[%s358 + $0x8] sm:$0xf] %v1146
        %1211 = vst [vmem:[%s358 + $0xc] sm:$0xf] %v1147
        %1212 = vst [vmem:[%s358 + $0x10] sm:$0xf] %v1148
        %1213 = vst [vmem:[%s358 + $0x14] sm:$0xf] %v1149
        %1214 = vst [vmem:[%s358 + $0x18] sm:$0xf] %v1150
        %1215 = vst [vmem:[%s358 + $0x1c] sm:$0xf] %v1151
        %1216 = vst [vmem:[%s358 + $0x20] sm:$0xf] %v1152
        %1217 = vst [vmem:[%s358 + $0x24] sm:$0xf] %v1153
        %1218 = vst [vmem:[%s358 + $0x28] sm:$0xf] %v1154
        %1219 = vst [vmem:[%s358 + $0x2c] sm:$0xf] %v1155
        %1220 = vst [vmem:[%s358 + $0x30] sm:$0xf] %v1156
        %1221 = vst [vmem:[%s358 + $0x34] sm:$0xf] %v1157
        %1222 = vst [vmem:[%s358 + $0x38] sm:$0xf] %v1158
        %1223 = vst [vmem:[%s358 + $0x3c] sm:$0xf] %v1159
        %1224 = vst [vmem:[%s358 + $0x40] sm:$0xf] %v1160
        %1225 = vst [vmem:[%s358 + $0x44] sm:$0xf] %v1161
        %1226 = vst [vmem:[%s358 + $0x48] sm:$0xf] %v1162
        %1227 = vst [vmem:[%s358 + $0x4c] sm:$0xf] %v1163
        %1228 = vst [vmem:[%s358 + $0x50] sm:$0xf] %v1164
        %1229 = vst [vmem:[%s358 + $0x54] sm:$0xf] %v1165
        %1230 = vst [vmem:[%s358 + $0x58] sm:$0xf] %v1166
        %1231 = vst [vmem:[%s358 + $0x5c] sm:$0xf] %v1167
        %1232 = vst [vmem:[%s358 + $0x60] sm:$0xf] %v1168
        %1233 = vst [vmem:[%s358 + $0x64] sm:$0xf] %v1169
        %1234 = vst [vmem:[%s358 + $0x68] sm:$0xf] %v1170
        %1235 = vst [vmem:[%s358 + $0x6c] sm:$0xf] %v1171
        %1236 = vst [vmem:[%s358 + $0x70] sm:$0xf] %v1172
        %1237 = vst [vmem:[%s358 + $0x74] sm:$0xf] %v1173
        %1238 = vst [vmem:[%s358 + $0x78] sm:$0xf] %v1174
        %1239 = vst [vmem:[%s358 + $0x7c] sm:$0xf] %v1175
      $region48: #{resnet_forward.15} parent=39 // pred_fallthru
        _
      %s1240 = smul.u32 32, %s21
      %p1241 = scmp.lt.s32.totalorder %s1240, 63
      %s1242 = scalar_select %p1241, %s1240, 63
      %p1243 = scmp.lt.s32.totalorder %s22, 0
      %s1244 = scalar_select %p1243, %s22, 0
      %s1245 = sadd.s32 %s1244, %s1242
      %s1246 = smul.addr %s1245, 4
      %s1247 = scalar_lea.vmem %s5, %s1246
      // Predicated region
      $region49: #{resnet_forward.15} parent=39 // pred_check
        %p1248 = pneg %p191
      $region50: #{resnet_forward.15} parent=39 // pred_check_branch
        %1250 = sbr.rel (%p1248) target = $region52
      $region51: #{resnet_forward.15} parent=39 // pred_region
        %s1251 = smul.u32 32, %s21
      $region52: #{resnet_forward.15} parent=39 // pred_fallthru
        _
    $region40: #{resnet_forward.15} parent=5 // pred_fallthru
      _
    %p1252 = scmp.le.s32.totalorder 2, %s11
    // Predicated region
    $region53: #{resnet_forward.15} parent=5 // pred_check
      %p1253 = pneg %p1252
    $region54: #{resnet_forward.15} parent=5 // pred_check_branch
      %1255 = sbr.rel (%p1253) target = $region56
    $region55: #{resnet_forward.15} parent=5 // pred_region
      %s1256 = ssub.s32 %s11, 2
      // Predicated region
      $region57: #{resnet_forward.15} parent=55 // pred_check
        %p1257 = pneg %p197
      $region58: #{resnet_forward.15} parent=55 // pred_check_branch
        %1259 = sbr.rel (%p1257) target = $region60
      $region59: #{resnet_forward.15} parent=55 // pred_region
        %s1260 = smul.u32 32, %s24
        %p1261 = scmp.lt.s32.totalorder %s1260, 63
        %s1262 = scalar_select %p1261, %s1260, 63
        %p1263 = scmp.lt.s32.totalorder %s25, 0
        %s1264 = scalar_select %p1263, %s25, 0
        %s1265 = sadd.s32 %s1264, %s1262
        %s1266 = smul.addr %s1265, 4
        %s1267 = scalar_lea.vmem %s5, %s1266
      $region60: #{resnet_forward.15} parent=55 // pred_fallthru
        _
    $region56: #{resnet_forward.15} parent=5 // pred_fallthru
      _
  $region6: #{resnet_forward.15} parent=0 // loop_footer
    %s15 = sadd.s32 1, %s11
  $region7: #{resnet_forward.15} parent=0 // loop_footer_branch
    %10 = sbr.rel target = $region3
  $region8: #{resnet_forward.15} parent=0 // loop_exit
    _

// kernel: resnet_forward.17
$region0: #{resnet_forward.17}
  #allocation0 [shape = 'u32[]', space=smem, size = 0x4, offset = 0x4, fixed_abs, tag = 'smem constant byte address 0x4 - core index']
  #allocation1 [shape = 'u32[144,128]{1,0:T(1,128)}', space=vmem, size = 0x12000, scoped, tag = 'internal scratch']
  #allocation2 [shape = 'f32[128,128]{1,0:T(8,128)}', space=vmem, size = 0x10000, scoped, tag = 'scratch operand']
  %s0 = inlined_call_operand.vmem [shape: bf16[128,8], index: 0, kind: input, shape index: {}]
  %s1 = inlined_call_operand.vmem [shape: bf16[8,128], index: 1, kind: input, shape index: {}]
  %s2 = inlined_call_operand.vmem [shape: f32[1,128], index: 2, kind: input, shape index: {}]
  %s3 = inlined_call_operand.vmem [shape: f32[1,128], index: 3, kind: input, shape index: {}]
  %s4 = inlined_call_operand.vmem [shape: bf16[128,128], index: 4, kind: output, shape index: {}]
  %s5 = sld [smem:[#allocation0]]
  $region34: #{resnet_forward.17} parent=0
    _
  %s7 = ssub.s32 1, %s5
  %s8 = scalar_select 0, %s7, %s5
  // Predicated region
  $region2: #{resnet_forward.17} parent=0 // pred_check
    _
  $region3: #{resnet_forward.17} parent=0 // pred_check_branch
    %10 = sbr.rel (0) target = $region5
  $region4: #{resnet_forward.17} parent=0 // pred_region
    _
  $region5: #{resnet_forward.17} parent=0 // pred_fallthru
    _
  // Predicated region
  $region6: #{resnet_forward.17} parent=0 // pred_check
    _
  $region7: #{resnet_forward.17} parent=0 // pred_check_branch
    %12 = sbr.rel (0) target = $region9
  $region8: #{resnet_forward.17} parent=0 // pred_region
    _
  $region9: #{resnet_forward.17} parent=0 // pred_fallthru
    _
  // Predicated region
  $region10: #{resnet_forward.17} parent=0 // pred_check
    _
  $region11: #{resnet_forward.17} parent=0 // pred_check_branch
    %14 = sbr.rel (0) target = $region13
  $region12: #{resnet_forward.17} parent=0 // pred_region
    _
  $region13: #{resnet_forward.17} parent=0 // pred_fallthru
    _
  // Predicated region
  $region14: #{resnet_forward.17} parent=0 // pred_check
    _
  $region15: #{resnet_forward.17} parent=0 // pred_check_branch
    %16 = sbr.rel (0) target = $region17
  $region16: #{resnet_forward.17} parent=0 // pred_region
    _
  $region17: #{resnet_forward.17} parent=0 // pred_fallthru
    _
  %p18 = scmp.eq.s32.totalorder 0, 0
  // Predicated region
  $region18: #{resnet_forward.17} parent=0 // pred_check
    %p19 = pneg %p18
  $region19: #{resnet_forward.17} parent=0 // pred_check_branch
    %21 = sbr.rel (%p19) target = $region21
  $region20: #{resnet_forward.17} parent=0 // pred_region
    %22 = vst [vmem:[#allocation2] sm:$0xff] 0.0
    %23 = vst [vmem:[#allocation2 + $0x8] sm:$0xff] 0.0
    %24 = vst [vmem:[#allocation2 + $0x10] sm:$0xff] 0.0
    %25 = vst [vmem:[#allocation2 + $0x18] sm:$0xff] 0.0
    %26 = vst [vmem:[#allocation2 + $0x20] sm:$0xff] 0.0
    %27 = vst [vmem:[#allocation2 + $0x28] sm:$0xff] 0.0
    %28 = vst [vmem:[#allocation2 + $0x30] sm:$0xff] 0.0
    %29 = vst [vmem:[#allocation2 + $0x38] sm:$0xff] 0.0
    %30 = vst [vmem:[#allocation2 + $0x40] sm:$0xff] 0.0
    %31 = vst [vmem:[#allocation2 + $0x48] sm:$0xff] 0.0
    %32 = vst [vmem:[#allocation2 + $0x50] sm:$0xff] 0.0
    %33 = vst [vmem:[#allocation2 + $0x58] sm:$0xff] 0.0
    %34 = vst [vmem:[#allocation2 + $0x60] sm:$0xff] 0.0
    %35 = vst [vmem:[#allocation2 + $0x68] sm:$0xff] 0.0
    %36 = vst [vmem:[#allocation2 + $0x70] sm:$0xff] 0.0
    %37 = vst [vmem:[#allocation2 + $0x78] sm:$0xff] 0.0
  $region21: #{resnet_forward.17} parent=0 // pred_fallthru
    _
  %v38 = vld [vmem:[#allocation2] sm:$0xff]
  %v39 = vld [vmem:[#allocation2 + $0x8] sm:$0xff]
  %v40 = vld [vmem:[#allocation2 + $0x10] sm:$0xff]
  %v41 = vld [vmem:[#allocation2 + $0x18] sm:$0xff]
  %v42 = vld [vmem:[#allocation2 + $0x20] sm:$0xff]
  %v43 = vld [vmem:[#allocation2 + $0x28] sm:$0xff]
  %v44 = vld [vmem:[#allocation2 + $0x30] sm:$0xff]
  %v45 = vld [vmem:[#allocation2 + $0x38] sm:$0xff]
  %v46 = vld [vmem:[#allocation2 + $0x40] sm:$0xff]
  %v47 = vld [vmem:[#allocation2 + $0x48] sm:$0xff]
  %v48 = vld [vmem:[#allocation2 + $0x50] sm:$0xff]
  %v49 = vld [vmem:[#allocation2 + $0x58] sm:$0xff]
  %v50 = vld [vmem:[#allocation2 + $0x60] sm:$0xff]
  %v51 = vld [vmem:[#allocation2 + $0x68] sm:$0xff]
  %v52 = vld [vmem:[#allocation2 + $0x70] sm:$0xff]
  %v53 = vld [vmem:[#allocation2 + $0x78] sm:$0xff]
  %v54 = vld [vmem:[%s0] sm:$0xf]
  %v55 = vld [vmem:[%s0 + $0x4] sm:$0xf]
  %v56 = vld [vmem:[%s0 + $0x8] sm:$0xf]
  %v57 = vld [vmem:[%s0 + $0xc] sm:$0xf]
  %v58 = vld [vmem:[%s0 + $0x10] sm:$0xf]
  %v59 = vld [vmem:[%s0 + $0x14] sm:$0xf]
  %v60 = vld [vmem:[%s0 + $0x18] sm:$0xf]
  %v61 = vld [vmem:[%s0 + $0x1c] sm:$0xf]
  %v62 = vld [vmem:[%s0 + $0x20] sm:$0xf]
  %v63 = vld [vmem:[%s0 + $0x24] sm:$0xf]
  %v64 = vld [vmem:[%s0 + $0x28] sm:$0xf]
  %v65 = vld [vmem:[%s0 + $0x2c] sm:$0xf]
  %v66 = vld [vmem:[%s0 + $0x30] sm:$0xf]
  %v67 = vld [vmem:[%s0 + $0x34] sm:$0xf]
  %v68 = vld [vmem:[%s0 + $0x38] sm:$0xf]
  %v69 = vld [vmem:[%s0 + $0x3c] sm:$0xf]
  %v70 = vld [vmem:[%s1] sm:$0xf]
  %v87 = vunpack.c.l.b16 %v54
  %v88 = vunpack.c.l.b16 %v55
  %v89 = vunpack.c.l.b16 %v56
  %v90 = vunpack.c.l.b16 %v57
  %v91 = vunpack.c.l.b16 %v58
  %v92 = vunpack.c.l.b16 %v59
  %v93 = vunpack.c.l.b16 %v60
  %v94 = vunpack.c.l.b16 %v61
  %v95 = vunpack.c.l.b16 %v62
  %v96 = vunpack.c.l.b16 %v63
  %v97 = vunpack.c.l.b16 %v64
  %v98 = vunpack.c.l.b16 %v65
  %v99 = vunpack.c.l.b16 %v66
  %v100 = vunpack.c.l.b16 %v67
  %v101 = vunpack.c.l.b16 %v68
  %v102 = vunpack.c.l.b16 %v69
  %v103 = vpack.c.b16 %v88, %v87
  %v104 = vpack.c.b16 %v90, %v89
  %v105 = vpack.c.b16 %v92, %v91
  %v106 = vpack.c.b16 %v94, %v93
  %v107 = vpack.c.b16 %v96, %v95
  %v108 = vpack.c.b16 %v98, %v97
  %v109 = vpack.c.b16 %v100, %v99
  %v110 = vpack.c.b16 %v102, %v101
  %vm111 = vcmask 64512
  %v113 = vsel %vm111, %v103, 0
  %v116 = vsel %vm111, %v104, 0
  %v119 = vsel %vm111, %v105, 0
  %v122 = vsel %vm111, %v106, 0
  %v125 = vsel %vm111, %v107, 0
  %v128 = vsel %vm111, %v108, 0
  %v131 = vsel %vm111, %v109, 0
  %v134 = vsel %vm111, %v110, 0
  %vm136 = vcmask 1043456
  %v138 = vsel %vm136, %v70, 0
  %140 = vmatprep.subr.bf16.mxu0 0
  %141 = vmatpush1.bf16.msra.mxu0 0
  %142 = vmatprep.subr.bf16.mxu0 0
  %143 = vmatpush1.bf16.msra.mxu0 0
  %144 = vmatprep.subr.bf16.mxu0 0
  %145 = vmatpush1.bf16.msra.mxu0 0
  %146 = vmatprep.subr.bf16.mxu0 0
  %147 = vmatpush1.bf16.msra.mxu0 0
  %148 = vmatprep.subr.bf16.mxu0 0
  %149 = vmatpush1.bf16.msra.mxu0 0
  %150 = vmatprep.subr.bf16.mxu0 0
  %151 = vmatpush1.bf16.msra.mxu0 0
  %152 = vmatprep.subr.bf16.mxu0 0
  %153 = vmatpush1.bf16.msra.mxu0 0
  %154 = vmatprep.subr.bf16.mxu0 0
  %155 = vmatpush1.bf16.msra.mxu0 %v138
  %156 = vmatprep.subr.bf16.mxu0 0
  %157 = vmatpush2.bf16.msra.mxu0 0
  %158 = vmatprep.subr.bf16.mxu0 0
  %159 = vmatpush2.bf16.msra.mxu0 0
  %160 = vmatprep.subr.bf16.mxu0 0
  %161 = vmatpush2.bf16.msra.mxu0 0
  %162 = vmatprep.subr.bf16.mxu0 0
  %163 = vmatpush2.bf16.msra.mxu0 0
  %164 = vmatprep.subr.bf16.mxu0 0
  %165 = vmatpush2.bf16.msra.mxu0 0
  %166 = vmatprep.subr.bf16.mxu0 0
  %167 = vmatpush2.bf16.msra.mxu0 0
  %168 = vmatprep.subr.bf16.mxu0 0
  %169 = vmatpush2.bf16.msra.mxu0 0
  %170 = vmatprep.subr.bf16.mxu0 0
  %171 = vmatpush2.bf16.msra.mxu0 0
  %172 = vmatprep.mubr.bf16.mxu0 0
  %173 = vmatmul.mubr.bf16.gmra.mxu0 %v113
  %v174 = vpop.f32.mrf.mxu0
  %v175 = vadd.f32 0.0, %v174
  %v176 = vpop.f32.mrf.mxu0
  %v177 = vpop.f32.mrf.mxu0
  %v178 = vadd.f32 0.0, %v177
  %v179 = vpop.f32.mrf.mxu0
  %180 = vmatprep.mubr.bf16.mxu0 0
  %181 = vmatmul.mubr.bf16.gmra.mxu0 %v116
  %v182 = vpop.f32.mrf.mxu0
  %v183 = vadd.f32 0.0, %v182
  %v184 = vpop.f32.mrf.mxu0
  %v185 = vpop.f32.mrf.mxu0
  %v186 = vadd.f32 0.0, %v185
  %v187 = vpop.f32.mrf.mxu0
  %188 = vmatprep.mubr.bf16.mxu0 0
  %189 = vmatmul.mubr.bf16.gmra.mxu0 %v119
  %v190 = vpop.f32.mrf.mxu0
  %v191 = vadd.f32 0.0, %v190
  %v192 = vpop.f32.mrf.mxu0
  %v193 = vpop.f32.mrf.mxu0
  %v194 = vadd.f32 0.0, %v193
  %v195 = vpop.f32.mrf.mxu0
  %196 = vmatprep.mubr.bf16.mxu0 0
  %197 = vmatmul.mubr.bf16.gmra.mxu0 %v122
  %v198 = vpop.f32.mrf.mxu0
  %v199 = vadd.f32 0.0, %v198
  %v200 = vpop.f32.mrf.mxu0
  %v201 = vpop.f32.mrf.mxu0
  %v202 = vadd.f32 0.0, %v201
  %v203 = vpop.f32.mrf.mxu0
  %204 = vmatprep.mubr.bf16.mxu0 0
  %205 = vmatmul.mubr.bf16.gmra.mxu0 %v125
  %v206 = vpop.f32.mrf.mxu0
  %v207 = vadd.f32 0.0, %v206
  %v208 = vpop.f32.mrf.mxu0
  %v209 = vpop.f32.mrf.mxu0
  %v210 = vadd.f32 0.0, %v209
  %v211 = vpop.f32.mrf.mxu0
  %212 = vmatprep.mubr.bf16.mxu0 0
  %213 = vmatmul.mubr.bf16.gmra.mxu0 %v128
  %v214 = vpop.f32.mrf.mxu0
  %v215 = vadd.f32 0.0, %v214
  %v216 = vpop.f32.mrf.mxu0
  %v217 = vpop.f32.mrf.mxu0
  %v218 = vadd.f32 0.0, %v217
  %v219 = vpop.f32.mrf.mxu0
  %220 = vmatprep.mubr.bf16.mxu0 0
  %221 = vmatmul.mubr.bf16.gmra.mxu0 %v131
  %v222 = vpop.f32.mrf.mxu0
  %v223 = vadd.f32 0.0, %v222
  %v224 = vpop.f32.mrf.mxu0
  %v225 = vpop.f32.mrf.mxu0
  %v226 = vadd.f32 0.0, %v225
  %v227 = vpop.f32.mrf.mxu0
  %228 = vmatprep.mubr.bf16.mxu0 0
  %229 = vmatmul.mubr.bf16.gmra.mxu0 %v134
  %v230 = vpop.f32.mrf.mxu0
  %v231 = vadd.f32 0.0, %v230
  %v232 = vpop.f32.mrf.mxu0
  %v233 = vpop.f32.mrf.mxu0
  %v234 = vadd.f32 0.0, %v233
  %v235 = vpop.f32.mrf.mxu0
  %236 = vdwg.mxu0
  %v237 = vadd.f32 %v38, %v175
  %v238 = vadd.f32 %v39, %v178
  %v239 = vadd.f32 %v40, %v183
  %v240 = vadd.f32 %v41, %v186
  %v241 = vadd.f32 %v42, %v191
  %v242 = vadd.f32 %v43, %v194
  %v243 = vadd.f32 %v44, %v199
  %v244 = vadd.f32 %v45, %v202
  %v245 = vadd.f32 %v46, %v207
  %v246 = vadd.f32 %v47, %v210
  %v247 = vadd.f32 %v48, %v215
  %v248 = vadd.f32 %v49, %v218
  %v249 = vadd.f32 %v50, %v223
  %v250 = vadd.f32 %v51, %v226
  %v251 = vadd.f32 %v52, %v231
  %v252 = vadd.f32 %v53, %v234
  %253 = vst [vmem:[#allocation2] sm:$0xff] %v237
  %254 = vst [vmem:[#allocation2 + $0x8] sm:$0xff] %v238
  %255 = vst [vmem:[#allocation2 + $0x10] sm:$0xff] %v239
  %256 = vst [vmem:[#allocation2 + $0x18] sm:$0xff] %v240
  %257 = vst [vmem:[#allocation2 + $0x20] sm:$0xff] %v241
  %258 = vst [vmem:[#allocation2 + $0x28] sm:$0xff] %v242
  %259 = vst [vmem:[#allocation2 + $0x30] sm:$0xff] %v243
  %260 = vst [vmem:[#allocation2 + $0x38] sm:$0xff] %v244
  %261 = vst [vmem:[#allocation2 + $0x40] sm:$0xff] %v245
  %262 = vst [vmem:[#allocation2 + $0x48] sm:$0xff] %v246
  %263 = vst [vmem:[#allocation2 + $0x50] sm:$0xff] %v247
  %264 = vst [vmem:[#allocation2 + $0x58] sm:$0xff] %v248
  %265 = vst [vmem:[#allocation2 + $0x60] sm:$0xff] %v249
  %266 = vst [vmem:[#allocation2 + $0x68] sm:$0xff] %v250
  %267 = vst [vmem:[#allocation2 + $0x70] sm:$0xff] %v251
  %268 = vst [vmem:[#allocation2 + $0x78] sm:$0xff] %v252
  // Predicated region
  $region22: #{resnet_forward.17} parent=0 // pred_check
    %p269 = pneg %p18
  $region23: #{resnet_forward.17} parent=0 // pred_check_branch
    %271 = sbr.rel (%p269) target = $region25
  $region24: #{resnet_forward.17} parent=0 // pred_region
    %v272 = vld [vmem:[#allocation2] sm:$0xff]
    %v273 = vld [vmem:[#allocation2 + $0x8] sm:$0xff]
    %v274 = vld [vmem:[#allocation2 + $0x10] sm:$0xff]
    %v275 = vld [vmem:[#allocation2 + $0x18] sm:$0xff]
    %v276 = vld [vmem:[#allocation2 + $0x20] sm:$0xff]
    %v277 = vld [vmem:[#allocation2 + $0x28] sm:$0xff]
    %v278 = vld [vmem:[#allocation2 + $0x30] sm:$0xff]
    %v279 = vld [vmem:[#allocation2 + $0x38] sm:$0xff]
    %v280 = vld [vmem:[#allocation2 + $0x40] sm:$0xff]
    %v281 = vld [vmem:[#allocation2 + $0x48] sm:$0xff]
    %v282 = vld [vmem:[#allocation2 + $0x50] sm:$0xff]
    %v283 = vld [vmem:[#allocation2 + $0x58] sm:$0xff]
    %v284 = vld [vmem:[#allocation2 + $0x60] sm:$0xff]
    %v285 = vld [vmem:[#allocation2 + $0x68] sm:$0xff]
    %v286 = vld [vmem:[#allocation2 + $0x70] sm:$0xff]
    %v287 = vld [vmem:[#allocation2 + $0x78] sm:$0xff]
    %v288 = vld [vmem:[%s2] sm:$0x1]
    %v290 = vlaneseq
    %v291 = vshrl.u32 %v290, 7
    %v292 = vsub.s32 0, %v291
    %v293 = vrot.slane %v288, %v292
    %v295 = vmul.f32 %v272, %v293
    %v296 = vmul.f32 %v273, %v293
    %v297 = vmul.f32 %v274, %v293
    %v298 = vmul.f32 %v275, %v293
    %v299 = vmul.f32 %v276, %v293
    %v300 = vmul.f32 %v277, %v293
    %v301 = vmul.f32 %v278, %v293
    %v302 = vmul.f32 %v279, %v293
    %v303 = vmul.f32 %v280, %v293
    %v304 = vmul.f32 %v281, %v293
    %v305 = vmul.f32 %v282, %v293
    %v306 = vmul.f32 %v283, %v293
    %v307 = vmul.f32 %v284, %v293
    %v308 = vmul.f32 %v285, %v293
    %v309 = vmul.f32 %v286, %v293
    %v310 = vmul.f32 %v287, %v293
    %v311 = vld [vmem:[%s3] sm:$0x1]
    %v313 = vlaneseq
    %v314 = vshrl.u32 %v313, 7
    %v315 = vsub.s32 0, %v314
    %v316 = vrot.slane %v311, %v315
    %v318 = vadd.f32 %v295, %v316
    %v319 = vadd.f32 %v296, %v316
    %v320 = vadd.f32 %v297, %v316
    %v321 = vadd.f32 %v298, %v316
    %v322 = vadd.f32 %v299, %v316
    %v323 = vadd.f32 %v300, %v316
    %v324 = vadd.f32 %v301, %v316
    %v325 = vadd.f32 %v302, %v316
    %v326 = vadd.f32 %v303, %v316
    %v327 = vadd.f32 %v304, %v316
    %v328 = vadd.f32 %v305, %v316
    %v329 = vadd.f32 %v306, %v316
    %v330 = vadd.f32 %v307, %v316
    %v331 = vadd.f32 %v308, %v316
    %v332 = vadd.f32 %v309, %v316
    %v333 = vadd.f32 %v310, %v316
    %v334 = vpack.c.bf16 %v319, %v318
    %v335 = vpack.c.bf16 %v321, %v320
    %v336 = vpack.c.bf16 %v323, %v322
    %v337 = vpack.c.bf16 %v325, %v324
    %v338 = vpack.c.bf16 %v327, %v326
    %v339 = vpack.c.bf16 %v329, %v328
    %v340 = vpack.c.bf16 %v331, %v330
    %v341 = vpack.c.bf16 %v333, %v332
    %v350 = vunpack.c.l.b16 %v334
    %v351 = vunpack.c.h.b16 %v334
    %v352 = vunpack.c.l.b16 %v335
    %v353 = vunpack.c.h.b16 %v335
    %v354 = vunpack.c.l.b16 %v336
    %v355 = vunpack.c.h.b16 %v336
    %v356 = vunpack.c.l.b16 %v337
    %v357 = vunpack.c.h.b16 %v337
    %v358 = vunpack.c.l.b16 %v338
    %v359 = vunpack.c.h.b16 %v338
    %v360 = vunpack.c.l.b16 %v339
    %v361 = vunpack.c.h.b16 %v339
    %v362 = vunpack.c.l.b16 %v340
    %v363 = vunpack.c.h.b16 %v340
    %v364 = vunpack.c.l.b16 %v341
    %v365 = vunpack.c.h.b16 %v341
    %v366 = vpack.c.b16 %v350, %v350
    %v367 = vpack.c.b16 %v351, %v351
    %v368 = vpack.c.b16 %v352, %v352
    %v369 = vpack.c.b16 %v353, %v353
    %v370 = vpack.c.b16 %v354, %v354
    %v371 = vpack.c.b16 %v355, %v355
    %v372 = vpack.c.b16 %v356, %v356
    %v373 = vpack.c.b16 %v357, %v357
    %v374 = vpack.c.b16 %v358, %v358
    %v375 = vpack.c.b16 %v359, %v359
    %v376 = vpack.c.b16 %v360, %v360
    %v377 = vpack.c.b16 %v361, %v361
    %v378 = vpack.c.b16 %v362, %v362
    %v379 = vpack.c.b16 %v363, %v363
    %v380 = vpack.c.b16 %v364, %v364
    %v381 = vpack.c.b16 %v365, %v365
    %398 = vst [vmem:[%s4] sm:$0xf] %v366
    %399 = vst [vmem:[%s4 + $0x4] sm:$0xf] %v367
    %400 = vst [vmem:[%s4 + $0x8] sm:$0xf] %v368
    %401 = vst [vmem:[%s4 + $0xc] sm:$0xf] %v369
    %402 = vst [vmem:[%s4 + $0x10] sm:$0xf] %v370
    %403 = vst [vmem:[%s4 + $0x14] sm:$0xf] %v371
    %404 = vst [vmem:[%s4 + $0x18] sm:$0xf] %v372
    %405 = vst [vmem:[%s4 + $0x1c] sm:$0xf] %v373
    %406 = vst [vmem:[%s4 + $0x20] sm:$0xf] %v374
    %407 = vst [vmem:[%s4 + $0x24] sm:$0xf] %v375
    %408 = vst [vmem:[%s4 + $0x28] sm:$0xf] %v376
    %409 = vst [vmem:[%s4 + $0x2c] sm:$0xf] %v377
    %410 = vst [vmem:[%s4 + $0x30] sm:$0xf] %v378
    %411 = vst [vmem:[%s4 + $0x34] sm:$0xf] %v379
    %412 = vst [vmem:[%s4 + $0x38] sm:$0xf] %v380
    %413 = vst [vmem:[%s4 + $0x3c] sm:$0xf] %v381
  $region25: #{resnet_forward.17} parent=0 // pred_fallthru
    _
  // Predicated region
  $region26: #{resnet_forward.17} parent=0 // pred_check
    _
  $region27: #{resnet_forward.17} parent=0 // pred_check_branch
    %415 = sbr.rel (0) target = $region29
  $region28: #{resnet_forward.17} parent=0 // pred_region
    _
  $region29: #{resnet_forward.17} parent=0 // pred_fallthru
    _
  // Predicated region
  $region30: #{resnet_forward.17} parent=0 // pred_check
    _
  $region31: #{resnet_forward.17} parent=0 // pred_check_branch
    %417 = sbr.rel (0) target = $region33
  $region32: #{resnet_forward.17} parent=0 // pred_region
    _
  $region33: #{resnet_forward.17} parent=0 // pred_fallthru
    _

// kernel: resnet_forward.16
$region0: #{resnet_forward.16}
  #allocation0 [shape = 'u32[]', space=smem, size = 0x4, offset = 0x4, fixed_abs, tag = 'smem constant byte address 0x4 - core index']
  #allocation1 [shape = 'u32[144,128]{1,0:T(1,128)}', space=vmem, size = 0x12000, scoped, tag = 'internal scratch']
  #allocation2 [shape = 'f32[128,128]{1,0:T(8,128)}', space=vmem, size = 0x10000, scoped, tag = 'scratch operand']
  %s0 = inlined_call_operand.vmem [shape: bf16[128,40], index: 0, kind: input, shape index: {}]
  %s1 = inlined_call_operand.vmem [shape: bf16[40,128], index: 1, kind: input, shape index: {}]
  %s2 = inlined_call_operand.vmem [shape: f32[1,128], index: 2, kind: input, shape index: {}]
  %s3 = inlined_call_operand.vmem [shape: f32[1,128], index: 3, kind: input, shape index: {}]
  %s4 = inlined_call_operand.vmem [shape: bf16[128,128], index: 4, kind: output, shape index: {}]
  %s5 = sld [smem:[#allocation0]]
  $region34: #{resnet_forward.16} parent=0
    _
  %s7 = ssub.s32 1, %s5
  %s8 = scalar_select 0, %s7, %s5
  // Predicated region
  $region2: #{resnet_forward.16} parent=0 // pred_check
    _
  $region3: #{resnet_forward.16} parent=0 // pred_check_branch
    %10 = sbr.rel (0) target = $region5
  $region4: #{resnet_forward.16} parent=0 // pred_region
    _
  $region5: #{resnet_forward.16} parent=0 // pred_fallthru
    _
  // Predicated region
  $region6: #{resnet_forward.16} parent=0 // pred_check
    _
  $region7: #{resnet_forward.16} parent=0 // pred_check_branch
    %12 = sbr.rel (0) target = $region9
  $region8: #{resnet_forward.16} parent=0 // pred_region
    _
  $region9: #{resnet_forward.16} parent=0 // pred_fallthru
    _
  // Predicated region
  $region10: #{resnet_forward.16} parent=0 // pred_check
    _
  $region11: #{resnet_forward.16} parent=0 // pred_check_branch
    %14 = sbr.rel (0) target = $region13
  $region12: #{resnet_forward.16} parent=0 // pred_region
    _
  $region13: #{resnet_forward.16} parent=0 // pred_fallthru
    _
  // Predicated region
  $region14: #{resnet_forward.16} parent=0 // pred_check
    _
  $region15: #{resnet_forward.16} parent=0 // pred_check_branch
    %16 = sbr.rel (0) target = $region17
  $region16: #{resnet_forward.16} parent=0 // pred_region
    _
  $region17: #{resnet_forward.16} parent=0 // pred_fallthru
    _
  %p18 = scmp.eq.s32.totalorder 0, 0
  // Predicated region
  $region18: #{resnet_forward.16} parent=0 // pred_check
    %p19 = pneg %p18
  $region19: #{resnet_forward.16} parent=0 // pred_check_branch
    %21 = sbr.rel (%p19) target = $region21
  $region20: #{resnet_forward.16} parent=0 // pred_region
    %22 = vst [vmem:[#allocation2] sm:$0xff] 0.0
    %23 = vst [vmem:[#allocation2 + $0x8] sm:$0xff] 0.0
    %24 = vst [vmem:[#allocation2 + $0x10] sm:$0xff] 0.0
    %25 = vst [vmem:[#allocation2 + $0x18] sm:$0xff] 0.0
    %26 = vst [vmem:[#allocation2 + $0x20] sm:$0xff] 0.0
    %27 = vst [vmem:[#allocation2 + $0x28] sm:$0xff] 0.0
    %28 = vst [vmem:[#allocation2 + $0x30] sm:$0xff] 0.0
    %29 = vst [vmem:[#allocation2 + $0x38] sm:$0xff] 0.0
    %30 = vst [vmem:[#allocation2 + $0x40] sm:$0xff] 0.0
    %31 = vst [vmem:[#allocation2 + $0x48] sm:$0xff] 0.0
    %32 = vst [vmem:[#allocation2 + $0x50] sm:$0xff] 0.0
    %33 = vst [vmem:[#allocation2 + $0x58] sm:$0xff] 0.0
    %34 = vst [vmem:[#allocation2 + $0x60] sm:$0xff] 0.0
    %35 = vst [vmem:[#allocation2 + $0x68] sm:$0xff] 0.0
    %36 = vst [vmem:[#allocation2 + $0x70] sm:$0xff] 0.0
    %37 = vst [vmem:[#allocation2 + $0x78] sm:$0xff] 0.0
  $region21: #{resnet_forward.16} parent=0 // pred_fallthru
    _
  %v38 = vld [vmem:[#allocation2] sm:$0xff]
  %v39 = vld [vmem:[#allocation2 + $0x8] sm:$0xff]
  %v40 = vld [vmem:[#allocation2 + $0x10] sm:$0xff]
  %v41 = vld [vmem:[#allocation2 + $0x18] sm:$0xff]
  %v42 = vld [vmem:[#allocation2 + $0x20] sm:$0xff]
  %v43 = vld [vmem:[#allocation2 + $0x28] sm:$0xff]
  %v44 = vld [vmem:[#allocation2 + $0x30] sm:$0xff]
  %v45 = vld [vmem:[#allocation2 + $0x38] sm:$0xff]
  %v46 = vld [vmem:[#allocation2 + $0x40] sm:$0xff]
  %v47 = vld [vmem:[#allocation2 + $0x48] sm:$0xff]
  %v48 = vld [vmem:[#allocation2 + $0x50] sm:$0xff]
  %v49 = vld [vmem:[#allocation2 + $0x58] sm:$0xff]
  %v50 = vld [vmem:[#allocation2 + $0x60] sm:$0xff]
  %v51 = vld [vmem:[#allocation2 + $0x68] sm:$0xff]
  %v52 = vld [vmem:[#allocation2 + $0x70] sm:$0xff]
  %v53 = vld [vmem:[#allocation2 + $0x78] sm:$0xff]
  %v54 = vld [vmem:[%s0] sm:$0xf]
  %v55 = vld [vmem:[%s0 + $0x4] sm:$0xf]
  %v56 = vld [vmem:[%s0 + $0x8] sm:$0xf]
  %v57 = vld [vmem:[%s0 + $0xc] sm:$0xf]
  %v58 = vld [vmem:[%s0 + $0x10] sm:$0xf]
  %v59 = vld [vmem:[%s0 + $0x14] sm:$0xf]
  %v60 = vld [vmem:[%s0 + $0x18] sm:$0xf]
  %v61 = vld [vmem:[%s0 + $0x1c] sm:$0xf]
  %v62 = vld [vmem:[%s0 + $0x20] sm:$0xf]
  %v63 = vld [vmem:[%s0 + $0x24] sm:$0xf]
  %v64 = vld [vmem:[%s0 + $0x28] sm:$0xf]
  %v65 = vld [vmem:[%s0 + $0x2c] sm:$0xf]
  %v66 = vld [vmem:[%s0 + $0x30] sm:$0xf]
  %v67 = vld [vmem:[%s0 + $0x34] sm:$0xf]
  %v68 = vld [vmem:[%s0 + $0x38] sm:$0xf]
  %v69 = vld [vmem:[%s0 + $0x3c] sm:$0xf]
  %v70 = vld [vmem:[%s1] sm:$0xf]
  %v71 = vld [vmem:[%s1 + $0x4] sm:$0xf]
  %v72 = vld [vmem:[%s1 + $0x8] sm:$0xf]
  %v73 = vld [vmem:[%s1 + $0xc] sm:$0xf]
  %v74 = vld [vmem:[%s1 + $0x10] sm:$0xf]
  %v91 = vunpack.c.l.b16 %v54
  %v92 = vunpack.c.l.b16 %v55
  %v93 = vunpack.c.l.b16 %v56
  %v94 = vunpack.c.l.b16 %v57
  %v95 = vunpack.c.l.b16 %v58
  %v96 = vunpack.c.l.b16 %v59
  %v97 = vunpack.c.l.b16 %v60
  %v98 = vunpack.c.l.b16 %v61
  %v99 = vunpack.c.l.b16 %v62
  %v100 = vunpack.c.l.b16 %v63
  %v101 = vunpack.c.l.b16 %v64
  %v102 = vunpack.c.l.b16 %v65
  %v103 = vunpack.c.l.b16 %v66
  %v104 = vunpack.c.l.b16 %v67
  %v105 = vunpack.c.l.b16 %v68
  %v106 = vunpack.c.l.b16 %v69
  %v107 = vpack.c.b16 %v92, %v91
  %v108 = vpack.c.b16 %v94, %v93
  %v109 = vpack.c.b16 %v96, %v95
  %v110 = vpack.c.b16 %v98, %v97
  %v111 = vpack.c.b16 %v100, %v99
  %v112 = vpack.c.b16 %v102, %v101
  %v113 = vpack.c.b16 %v104, %v103
  %v114 = vpack.c.b16 %v106, %v105
  %v120 = vunpack.c.l.b16 %v70
  %v121 = vunpack.c.l.b16 %v71
  %v122 = vunpack.c.l.b16 %v72
  %v123 = vunpack.c.l.b16 %v73
  %v124 = vunpack.c.l.b16 %v74
  %v125 = vpack.c.b16 %v121, %v120
  %v126 = vpack.c.b16 %v123, %v122
  %v127 = vpack.c.b16 %v124, %v124
  %vm130 = vcmask 326656
  %v132 = vsel %vm130, %v107, 0
  %v135 = vsel %vm130, %v108, 0
  %v138 = vsel %vm130, %v109, 0
  %v141 = vsel %vm130, %v110, 0
  %v144 = vsel %vm130, %v111, 0
  %v147 = vsel %vm130, %v112, 0
  %v150 = vsel %vm130, %v113, 0
  %v153 = vsel %vm130, %v114, 0
  %vm155 = vcmask 1043456
  %v157 = vsel %vm155, %v127, 0
  %159 = vmatprep.subr.bf16.mxu0 0
  %160 = vmatpush1.bf16.msra.mxu0 0
  %161 = vmatprep.subr.bf16.mxu0 0
  %162 = vmatpush1.bf16.msra.mxu0 0
  %163 = vmatprep.subr.bf16.mxu0 0
  %164 = vmatpush1.bf16.msra.mxu0 0
  %165 = vmatprep.subr.bf16.mxu0 0
  %166 = vmatpush1.bf16.msra.mxu0 0
  %167 = vmatprep.subr.bf16.mxu0 0
  %168 = vmatpush1.bf16.msra.mxu0 0
  %169 = vmatprep.subr.bf16.mxu0 0
  %170 = vmatpush1.bf16.msra.mxu0 %v157
  %171 = vmatprep.subr.bf16.mxu0 0
  %172 = vmatpush1.bf16.msra.mxu0 %v126
  %173 = vmatprep.subr.bf16.mxu0 0
  %174 = vmatpush1.bf16.msra.mxu0 %v125
  %175 = vmatprep.subr.bf16.mxu0 0
  %176 = vmatpush2.bf16.msra.mxu0 0
  %177 = vmatprep.subr.bf16.mxu0 0
  %178 = vmatpush2.bf16.msra.mxu0 0
  %179 = vmatprep.subr.bf16.mxu0 0
  %180 = vmatpush2.bf16.msra.mxu0 0
  %181 = vmatprep.subr.bf16.mxu0 0
  %182 = vmatpush2.bf16.msra.mxu0 0
  %183 = vmatprep.subr.bf16.mxu0 0
  %184 = vmatpush2.bf16.msra.mxu0 0
  %185 = vmatprep.subr.bf16.mxu0 0
  %186 = vmatpush2.bf16.msra.mxu0 0
  %187 = vmatprep.subr.bf16.mxu0 0
  %188 = vmatpush2.bf16.msra.mxu0 0
  %189 = vmatprep.subr.bf16.mxu0 0
  %190 = vmatpush2.bf16.msra.mxu0 0
  %191 = vmatprep.mubr.bf16.mxu0 0
  %192 = vmatmul.mubr.bf16.gmra.mxu0 %v132
  %v193 = vpop.f32.mrf.mxu0
  %v194 = vadd.f32 0.0, %v193
  %v195 = vpop.f32.mrf.mxu0
  %v196 = vpop.f32.mrf.mxu0
  %v197 = vadd.f32 0.0, %v196
  %v198 = vpop.f32.mrf.mxu0
  %199 = vmatprep.mubr.bf16.mxu0 0
  %200 = vmatmul.mubr.bf16.gmra.mxu0 %v135
  %v201 = vpop.f32.mrf.mxu0
  %v202 = vadd.f32 0.0, %v201
  %v203 = vpop.f32.mrf.mxu0
  %v204 = vpop.f32.mrf.mxu0
  %v205 = vadd.f32 0.0, %v204
  %v206 = vpop.f32.mrf.mxu0
  %207 = vmatprep.mubr.bf16.mxu0 0
  %208 = vmatmul.mubr.bf16.gmra.mxu0 %v138
  %v209 = vpop.f32.mrf.mxu0
  %v210 = vadd.f32 0.0, %v209
  %v211 = vpop.f32.mrf.mxu0
  %v212 = vpop.f32.mrf.mxu0
  %v213 = vadd.f32 0.0, %v212
  %v214 = vpop.f32.mrf.mxu0
  %215 = vmatprep.mubr.bf16.mxu0 0
  %216 = vmatmul.mubr.bf16.gmra.mxu0 %v141
  %v217 = vpop.f32.mrf.mxu0
  %v218 = vadd.f32 0.0, %v217
  %v219 = vpop.f32.mrf.mxu0
  %v220 = vpop.f32.mrf.mxu0
  %v221 = vadd.f32 0.0, %v220
  %v222 = vpop.f32.mrf.mxu0
  %223 = vmatprep.mubr.bf16.mxu0 0
  %224 = vmatmul.mubr.bf16.gmra.mxu0 %v144
  %v225 = vpop.f32.mrf.mxu0
  %v226 = vadd.f32 0.0, %v225
  %v227 = vpop.f32.mrf.mxu0
  %v228 = vpop.f32.mrf.mxu0
  %v229 = vadd.f32 0.0, %v228
  %v230 = vpop.f32.mrf.mxu0
  %231 = vmatprep.mubr.bf16.mxu0 0
  %232 = vmatmul.mubr.bf16.gmra.mxu0 %v147
  %v233 = vpop.f32.mrf.mxu0
  %v234 = vadd.f32 0.0, %v233
  %v235 = vpop.f32.mrf.mxu0
  %v236 = vpop.f32.mrf.mxu0
  %v237 = vadd.f32 0.0, %v236
  %v238 = vpop.f32.mrf.mxu0
  %239 = vmatprep.mubr.bf16.mxu0 0
  %240 = vmatmul.mubr.bf16.gmra.mxu0 %v150
  %v241 = vpop.f32.mrf.mxu0
  %v242 = vadd.f32 0.0, %v241
  %v243 = vpop.f32.mrf.mxu0
  %v244 = vpop.f32.mrf.mxu0
  %v245 = vadd.f32 0.0, %v244
  %v246 = vpop.f32.mrf.mxu0
  %247 = vmatprep.mubr.bf16.mxu0 0
  %248 = vmatmul.mubr.bf16.gmra.mxu0 %v153
  %v249 = vpop.f32.mrf.mxu0
  %v250 = vadd.f32 0.0, %v249
  %v251 = vpop.f32.mrf.mxu0
  %v252 = vpop.f32.mrf.mxu0
  %v253 = vadd.f32 0.0, %v252
  %v254 = vpop.f32.mrf.mxu0
  %255 = vdwg.mxu0
  %v256 = vadd.f32 %v38, %v194
  %v257 = vadd.f32 %v39, %v197
  %v258 = vadd.f32 %v40, %v202
  %v259 = vadd.f32 %v41, %v205
  %v260 = vadd.f32 %v42, %v210
  %v261 = vadd.f32 %v43, %v213
  %v262 = vadd.f32 %v44, %v218
  %v263 = vadd.f32 %v45, %v221
  %v264 = vadd.f32 %v46, %v226
  %v265 = vadd.f32 %v47, %v229
  %v266 = vadd.f32 %v48, %v234
  %v267 = vadd.f32 %v49, %v237
  %v268 = vadd.f32 %v50, %v242
  %v269 = vadd.f32 %v51, %v245
  %v270 = vadd.f32 %v52, %v250
  %v271 = vadd.f32 %v53, %v253
  %272 = vst [vmem:[#allocation2] sm:$0xff] %v256
  %273 = vst [vmem:[#allocation2 + $0x8] sm:$0xff] %v257
  %274 = vst [vmem:[#allocation2 + $0x10] sm:$0xff] %v258
  %275 = vst [vmem:[#allocation2 + $0x18] sm:$0xff] %v259
  %276 = vst [vmem:[#allocation2 + $0x20] sm:$0xff] %v260
  %277 = vst [vmem:[#allocation2 + $0x28] sm:$0xff] %v261
  %278 = vst [vmem:[#allocation2 + $0x30] sm:$0xff] %v262
  %279 = vst [vmem:[#allocation2 + $0x38] sm:$0xff] %v263
  %280 = vst [vmem:[#allocation2 + $0x40] sm:$0xff] %v264
  %281 = vst [vmem:[#allocation2 + $0x48] sm:$0xff] %v265
  %282 = vst [vmem:[#allocation2 + $0x50] sm:$0xff] %v266
  %283 = vst [vmem:[#allocation2 + $0x58] sm:$0xff] %v267
  %284 = vst [vmem:[#allocation2 + $0x60] sm:$0xff] %v268
  %285 = vst [vmem:[#allocation2 + $0x68] sm:$0xff] %v269
  %286 = vst [vmem:[#allocation2 + $0x70] sm:$0xff] %v270
  %287 = vst [vmem:[#allocation2 + $0x78] sm:$0xff] %v271
  // Predicated region
  $region22: #{resnet_forward.16} parent=0 // pred_check
    %p288 = pneg %p18
  $region23: #{resnet_forward.16} parent=0 // pred_check_branch
    %290 = sbr.rel (%p288) target = $region25
  $region24: #{resnet_forward.16} parent=0 // pred_region
    %v291 = vld [vmem:[#allocation2] sm:$0xff]
    %v292 = vld [vmem:[#allocation2 + $0x8] sm:$0xff]
    %v293 = vld [vmem:[#allocation2 + $0x10] sm:$0xff]
    %v294 = vld [vmem:[#allocation2 + $0x18] sm:$0xff]
    %v295 = vld [vmem:[#allocation2 + $0x20] sm:$0xff]
    %v296 = vld [vmem:[#allocation2 + $0x28] sm:$0xff]
    %v297 = vld [vmem:[#allocation2 + $0x30] sm:$0xff]
    %v298 = vld [vmem:[#allocation2 + $0x38] sm:$0xff]
    %v299 = vld [vmem:[#allocation2 + $0x40] sm:$0xff]
    %v300 = vld [vmem:[#allocation2 + $0x48] sm:$0xff]
    %v301 = vld [vmem:[#allocation2 + $0x50] sm:$0xff]
    %v302 = vld [vmem:[#allocation2 + $0x58] sm:$0xff]
    %v303 = vld [vmem:[#allocation2 + $0x60] sm:$0xff]
    %v304 = vld [vmem:[#allocation2 + $0x68] sm:$0xff]
    %v305 = vld [vmem:[#allocation2 + $0x70] sm:$0xff]
    %v306 = vld [vmem:[#allocation2 + $0x78] sm:$0xff]
    %v307 = vld [vmem:[%s2] sm:$0x1]
    %v309 = vlaneseq
    %v310 = vshrl.u32 %v309, 7
    %v311 = vsub.s32 0, %v310
    %v312 = vrot.slane %v307, %v311
    %v314 = vmul.f32 %v291, %v312
    %v315 = vmul.f32 %v292, %v312
    %v316 = vmul.f32 %v293, %v312
    %v317 = vmul.f32 %v294, %v312
    %v318 = vmul.f32 %v295, %v312
    %v319 = vmul.f32 %v296, %v312
    %v320 = vmul.f32 %v297, %v312
    %v321 = vmul.f32 %v298, %v312
    %v322 = vmul.f32 %v299, %v312
    %v323 = vmul.f32 %v300, %v312
    %v324 = vmul.f32 %v301, %v312
    %v325 = vmul.f32 %v302, %v312
    %v326 = vmul.f32 %v303, %v312
    %v327 = vmul.f32 %v304, %v312
    %v328 = vmul.f32 %v305, %v312
    %v329 = vmul.f32 %v306, %v312
    %v330 = vld [vmem:[%s3] sm:$0x1]
    %v332 = vlaneseq
    %v333 = vshrl.u32 %v332, 7
    %v334 = vsub.s32 0, %v333
    %v335 = vrot.slane %v330, %v334
    %v337 = vadd.f32 %v314, %v335
    %v338 = vadd.f32 %v315, %v335
    %v339 = vadd.f32 %v316, %v335
    %v340 = vadd.f32 %v317, %v335
    %v341 = vadd.f32 %v318, %v335
    %v342 = vadd.f32 %v319, %v335
    %v343 = vadd.f32 %v320, %v335
    %v344 = vadd.f32 %v321, %v335
    %v345 = vadd.f32 %v322, %v335
    %v346 = vadd.f32 %v323, %v335
    %v347 = vadd.f32 %v324, %v335
    %v348 = vadd.f32 %v325, %v335
    %v349 = vadd.f32 %v326, %v335
    %v350 = vadd.f32 %v327, %v335
    %v351 = vadd.f32 %v328, %v335
    %v352 = vadd.f32 %v329, %v335
    %v353 = vmax.f32 %v337, 0.0
    %v354 = vmax.f32 %v338, 0.0
    %v355 = vmax.f32 %v339, 0.0
    %v356 = vmax.f32 %v340, 0.0
    %v357 = vmax.f32 %v341, 0.0
    %v358 = vmax.f32 %v342, 0.0
    %v359 = vmax.f32 %v343, 0.0
    %v360 = vmax.f32 %v344, 0.0
    %v361 = vmax.f32 %v345, 0.0
    %v362 = vmax.f32 %v346, 0.0
    %v363 = vmax.f32 %v347, 0.0
    %v364 = vmax.f32 %v348, 0.0
    %v365 = vmax.f32 %v349, 0.0
    %v366 = vmax.f32 %v350, 0.0
    %v367 = vmax.f32 %v351, 0.0
    %v368 = vmax.f32 %v352, 0.0
    %v369 = vpack.c.bf16 %v354, %v353
    %v370 = vpack.c.bf16 %v356, %v355
    %v371 = vpack.c.bf16 %v358, %v357
    %v372 = vpack.c.bf16 %v360, %v359
    %v373 = vpack.c.bf16 %v362, %v361
    %v374 = vpack.c.bf16 %v364, %v363
    %v375 = vpack.c.bf16 %v366, %v365
    %v376 = vpack.c.bf16 %v368, %v367
    %v385 = vunpack.c.l.b16 %v369
    %v386 = vunpack.c.h.b16 %v369
    %v387 = vunpack.c.l.b16 %v370
    %v388 = vunpack.c.h.b16 %v370
    %v389 = vunpack.c.l.b16 %v371
    %v390 = vunpack.c.h.b16 %v371
    %v391 = vunpack.c.l.b16 %v372
    %v392 = vunpack.c.h.b16 %v372
    %v393 = vunpack.c.l.b16 %v373
    %v394 = vunpack.c.h.b16 %v373
    %v395 = vunpack.c.l.b16 %v374
    %v396 = vunpack.c.h.b16 %v374
    %v397 = vunpack.c.l.b16 %v375
    %v398 = vunpack.c.h.b16 %v375
    %v399 = vunpack.c.l.b16 %v376
    %v400 = vunpack.c.h.b16 %v376
    %v401 = vpack.c.b16 %v385, %v385
    %v402 = vpack.c.b16 %v386, %v386
    %v403 = vpack.c.b16 %v387, %v387
    %v404 = vpack.c.b16 %v388, %v388
    %v405 = vpack.c.b16 %v389, %v389
    %v406 = vpack.c.b16 %v390, %v390
    %v407 = vpack.c.b16 %v391, %v391
    %v408 = vpack.c.b16 %v392, %v392
    %v409 = vpack.c.b16 %v393, %v393
    %v410 = vpack.c.b16 %v394, %v394
    %v411 = vpack.c.b16 %v395, %v395
    %v412 = vpack.c.b16 %v396, %v396
    %v413 = vpack.c.b16 %v397, %v397
    %v414 = vpack.c.b16 %v398, %v398
    %v415 = vpack.c.b16 %v399, %v399
    %v416 = vpack.c.b16 %v400, %v400
    %433 = vst [vmem:[%s4] sm:$0xf] %v401
    %434 = vst [vmem:[%s4 + $0x4] sm:$0xf] %v402
    %435 = vst [vmem:[%s4 + $0x8] sm:$0xf] %v403
    %436 = vst [vmem:[%s4 + $0xc] sm:$0xf] %v404
    %437 = vst [vmem:[%s4 + $0x10] sm:$0xf] %v405
    %438 = vst [vmem:[%s4 + $0x14] sm:$0xf] %v406
    %439 = vst [vmem:[%s4 + $0x18] sm:$0xf] %v407
    %440 = vst [vmem:[%s4 + $0x1c] sm:$0xf] %v408
    %441 = vst [vmem:[%s4 + $0x20] sm:$0xf] %v409
    %442 = vst [vmem:[%s4 + $0x24] sm:$0xf] %v410
    %443 = vst [vmem:[%s4 + $0x28] sm:$0xf] %v411
    %444 = vst [vmem:[%s4 + $0x2c] sm:$0xf] %v412
    %445 = vst [vmem:[%s4 + $0x30] sm:$0xf] %v413
    %446 = vst [vmem:[%s4 + $0x34] sm:$0xf] %v414
    %447 = vst [vmem:[%s4 + $0x38] sm:$0xf] %v415
    %448 = vst [vmem:[%s4 + $0x3c] sm:$0xf] %v416
  $region25: #{resnet_forward.16} parent=0 // pred_fallthru
    _
  // Predicated region
  $region26: #{resnet_forward.16} parent=0 // pred_check
    _
  $region27: #{resnet_forward.16} parent=0 // pred_check_branch
    %450 = sbr.rel (0) target = $region29
  $region28: #{resnet_forward.16} parent=0 // pred_region
    _
  $region29: #{resnet_forward.16} parent=0 // pred_fallthru
    _
  // Predicated region
  $region30: #{resnet_forward.16} parent=0 // pred_check
    _
  $region31: #{resnet_forward.16} parent=0 // pred_check_branch
    %452 = sbr.rel (0) target = $region33
  $region32: #{resnet_forward.16} parent=0 // pred_region
    _
  $region33: #{resnet_forward.16} parent=0 // pred_fallthru
    _

// kernel: resnet_forward.20
$region0: #{resnet_forward.20}
  #allocation0 [shape = 'u32[]', space=smem, size = 0x4, offset = 0x4, fixed_abs, tag = 'smem constant byte address 0x4 - core index']
  #allocation1 [shape = 'u32[144,128]{1,0:T(1,128)}', space=vmem, size = 0x12000, scoped, tag = 'internal scratch']
  #allocation2 [shape = 'f32[32,128]{1,0:T(8,128)}', space=vmem, size = 0x4000, scoped, tag = 'scratch operand']
  %s0 = inlined_call_operand.vmem [shape: bf16[32,8], index: 0, kind: input, shape index: {}]
  %s1 = inlined_call_operand.vmem [shape: bf16[8,128], index: 1, kind: input, shape index: {}]
  %s2 = inlined_call_operand.vmem [shape: f32[1,128], index: 2, kind: input, shape index: {}]
  %s3 = inlined_call_operand.vmem [shape: f32[1,128], index: 3, kind: input, shape index: {}]
  %s4 = inlined_call_operand.vmem [shape: bf16[32,128], index: 4, kind: output, shape index: {}]
  %s5 = sld [smem:[#allocation0]]
  $region34: #{resnet_forward.20} parent=0
    _
  %s7 = ssub.s32 1, %s5
  %s8 = scalar_select 0, %s7, %s5
  // Predicated region
  $region2: #{resnet_forward.20} parent=0 // pred_check
    _
  $region3: #{resnet_forward.20} parent=0 // pred_check_branch
    %10 = sbr.rel (0) target = $region5
  $region4: #{resnet_forward.20} parent=0 // pred_region
    _
  $region5: #{resnet_forward.20} parent=0 // pred_fallthru
    _
  // Predicated region
  $region6: #{resnet_forward.20} parent=0 // pred_check
    _
  $region7: #{resnet_forward.20} parent=0 // pred_check_branch
    %12 = sbr.rel (0) target = $region9
  $region8: #{resnet_forward.20} parent=0 // pred_region
    _
  $region9: #{resnet_forward.20} parent=0 // pred_fallthru
    _
  // Predicated region
  $region10: #{resnet_forward.20} parent=0 // pred_check
    _
  $region11: #{resnet_forward.20} parent=0 // pred_check_branch
    %14 = sbr.rel (0) target = $region13
  $region12: #{resnet_forward.20} parent=0 // pred_region
    _
  $region13: #{resnet_forward.20} parent=0 // pred_fallthru
    _
  // Predicated region
  $region14: #{resnet_forward.20} parent=0 // pred_check
    _
  $region15: #{resnet_forward.20} parent=0 // pred_check_branch
    %16 = sbr.rel (0) target = $region17
  $region16: #{resnet_forward.20} parent=0 // pred_region
    _
  $region17: #{resnet_forward.20} parent=0 // pred_fallthru
    _
  %p18 = scmp.eq.s32.totalorder 0, 0
  // Predicated region
  $region18: #{resnet_forward.20} parent=0 // pred_check
    %p19 = pneg %p18
  $region19: #{resnet_forward.20} parent=0 // pred_check_branch
    %21 = sbr.rel (%p19) target = $region21
  $region20: #{resnet_forward.20} parent=0 // pred_region
    %22 = vst [vmem:[#allocation2] sm:$0xff] 0.0
    %23 = vst [vmem:[#allocation2 + $0x8] sm:$0xff] 0.0
    %24 = vst [vmem:[#allocation2 + $0x10] sm:$0xff] 0.0
    %25 = vst [vmem:[#allocation2 + $0x18] sm:$0xff] 0.0
  $region21: #{resnet_forward.20} parent=0 // pred_fallthru
    _
  %v26 = vld [vmem:[#allocation2] sm:$0xff]
  %v27 = vld [vmem:[#allocation2 + $0x8] sm:$0xff]
  %v28 = vld [vmem:[#allocation2 + $0x10] sm:$0xff]
  %v29 = vld [vmem:[#allocation2 + $0x18] sm:$0xff]
  %v30 = vld [vmem:[%s0] sm:$0xf]
  %v31 = vld [vmem:[%s0 + $0x4] sm:$0xf]
  %v32 = vld [vmem:[%s0 + $0x8] sm:$0xf]
  %v33 = vld [vmem:[%s0 + $0xc] sm:$0xf]
  %v34 = vld [vmem:[%s1] sm:$0xf]
  %v39 = vunpack.c.l.b16 %v30
  %v40 = vunpack.c.l.b16 %v31
  %v41 = vunpack.c.l.b16 %v32
  %v42 = vunpack.c.l.b16 %v33
  %v43 = vpack.c.b16 %v40, %v39
  %v44 = vpack.c.b16 %v42, %v41
  %vm45 = vcmask 64512
  %v47 = vsel %vm45, %v43, 0
  %v50 = vsel %vm45, %v44, 0
  %vm52 = vcmask 1043456
  %v54 = vsel %vm52, %v34, 0
  %56 = vmatprep.subr.bf16.mxu0 0
  %57 = vmatpush1.bf16.msra.mxu0 0
  %58 = vmatprep.subr.bf16.mxu0 0
  %59 = vmatpush1.bf16.msra.mxu0 0
  %60 = vmatprep.subr.bf16.mxu0 0
  %61 = vmatpush1.bf16.msra.mxu0 0
  %62 = vmatprep.subr.bf16.mxu0 0
  %63 = vmatpush1.bf16.msra.mxu0 0
  %64 = vmatprep.subr.bf16.mxu0 0
  %65 = vmatpush1.bf16.msra.mxu0 0
  %66 = vmatprep.subr.bf16.mxu0 0
  %67 = vmatpush1.bf16.msra.mxu0 0
  %68 = vmatprep.subr.bf16.mxu0 0
  %69 = vmatpush1.bf16.msra.mxu0 0
  %70 = vmatprep.subr.bf16.mxu0 0
  %71 = vmatpush1.bf16.msra.mxu0 %v54
  %72 = vmatprep.subr.bf16.mxu0 0
  %73 = vmatpush2.bf16.msra.mxu0 0
  %74 = vmatprep.subr.bf16.mxu0 0
  %75 = vmatpush2.bf16.msra.mxu0 0
  %76 = vmatprep.subr.bf16.mxu0 0
  %77 = vmatpush2.bf16.msra.mxu0 0
  %78 = vmatprep.subr.bf16.mxu0 0
  %79 = vmatpush2.bf16.msra.mxu0 0
  %80 = vmatprep.subr.bf16.mxu0 0
  %81 = vmatpush2.bf16.msra.mxu0 0
  %82 = vmatprep.subr.bf16.mxu0 0
  %83 = vmatpush2.bf16.msra.mxu0 0
  %84 = vmatprep.subr.bf16.mxu0 0
  %85 = vmatpush2.bf16.msra.mxu0 0
  %86 = vmatprep.subr.bf16.mxu0 0
  %87 = vmatpush2.bf16.msra.mxu0 0
  %88 = vmatprep.mubr.bf16.mxu0 0
  %89 = vmatmul.mubr.bf16.gmra.mxu0 %v47
  %v90 = vpop.f32.mrf.mxu0
  %v91 = vadd.f32 0.0, %v90
  %v92 = vpop.f32.mrf.mxu0
  %v93 = vpop.f32.mrf.mxu0
  %v94 = vadd.f32 0.0, %v93
  %v95 = vpop.f32.mrf.mxu0
  %96 = vmatprep.mubr.bf16.mxu0 0
  %97 = vmatmul.mubr.bf16.gmra.mxu0 %v50
  %v98 = vpop.f32.mrf.mxu0
  %v99 = vadd.f32 0.0, %v98
  %v100 = vpop.f32.mrf.mxu0
  %v101 = vpop.f32.mrf.mxu0
  %v102 = vadd.f32 0.0, %v101
  %v103 = vpop.f32.mrf.mxu0
  %104 = vdwg.mxu0
  %v105 = vadd.f32 %v26, %v91
  %v106 = vadd.f32 %v27, %v94
  %v107 = vadd.f32 %v28, %v99
  %v108 = vadd.f32 %v29, %v102
  %109 = vst [vmem:[#allocation2] sm:$0xff] %v105
  %110 = vst [vmem:[#allocation2 + $0x8] sm:$0xff] %v106
  %111 = vst [vmem:[#allocation2 + $0x10] sm:$0xff] %v107
  %112 = vst [vmem:[#allocation2 + $0x18] sm:$0xff] %v108
  // Predicated region
  $region22: #{resnet_forward.20} parent=0 // pred_check
    %p113 = pneg %p18
  $region23: #{resnet_forward.20} parent=0 // pred_check_branch
    %115 = sbr.rel (%p113) target = $region25
  $region24: #{resnet_forward.20} parent=0 // pred_region
    %v116 = vld [vmem:[#allocation2] sm:$0xff]
    %v117 = vld [vmem:[#allocation2 + $0x8] sm:$0xff]
    %v118 = vld [vmem:[#allocation2 + $0x10] sm:$0xff]
    %v119 = vld [vmem:[#allocation2 + $0x18] sm:$0xff]
    %v120 = vld [vmem:[%s2] sm:$0x1]
    %v122 = vlaneseq
    %v123 = vshrl.u32 %v122, 7
    %v124 = vsub.s32 0, %v123
    %v125 = vrot.slane %v120, %v124
    %v127 = vmul.f32 %v116, %v125
    %v128 = vmul.f32 %v117, %v125
    %v129 = vmul.f32 %v118, %v125
    %v130 = vmul.f32 %v119, %v125
    %v131 = vld [vmem:[%s3] sm:$0x1]
    %v133 = vlaneseq
    %v134 = vshrl.u32 %v133, 7
    %v135 = vsub.s32 0, %v134
    %v136 = vrot.slane %v131, %v135
    %v138 = vadd.f32 %v127, %v136
    %v139 = vadd.f32 %v128, %v136
    %v140 = vadd.f32 %v129, %v136
    %v141 = vadd.f32 %v130, %v136
    %v142 = vpack.c.bf16 %v139, %v138
    %v143 = vpack.c.bf16 %v141, %v140
    %v146 = vunpack.c.l.b16 %v142
    %v147 = vunpack.c.h.b16 %v142
    %v148 = vunpack.c.l.b16 %v143
    %v149 = vunpack.c.h.b16 %v143
    %v150 = vpack.c.b16 %v146, %v146
    %v151 = vpack.c.b16 %v147, %v147
    %v152 = vpack.c.b16 %v148, %v148
    %v153 = vpack.c.b16 %v149, %v149
    %158 = vst [vmem:[%s4] sm:$0xf] %v150
    %159 = vst [vmem:[%s4 + $0x4] sm:$0xf] %v151
    %160 = vst [vmem:[%s4 + $0x8] sm:$0xf] %v152
    %161 = vst [vmem:[%s4 + $0xc] sm:$0xf] %v153
  $region25: #{resnet_forward.20} parent=0 // pred_fallthru
    _
  // Predicated region
  $region26: #{resnet_forward.20} parent=0 // pred_check
    _
  $region27: #{resnet_forward.20} parent=0 // pred_check_branch
    %163 = sbr.rel (0) target = $region29
  $region28: #{resnet_forward.20} parent=0 // pred_region
    _
  $region29: #{resnet_forward.20} parent=0 // pred_fallthru
    _
  // Predicated region
  $region30: #{resnet_forward.20} parent=0 // pred_check
    _
  $region31: #{resnet_forward.20} parent=0 // pred_check_branch
    %165 = sbr.rel (0) target = $region33
  $region32: #{resnet_forward.20} parent=0 // pred_region
    _
  $region33: #{resnet_forward.20} parent=0 // pred_fallthru
    _

// kernel: resnet_forward.18
$region0: #{resnet_forward.18}
  #allocation0 [shape = 'u32[]', space=smem, size = 0x4, offset = 0x4, fixed_abs, tag = 'smem constant byte address 0x4 - core index']
  #allocation1 [shape = 'u32[144,128]{1,0:T(1,128)}', space=vmem, size = 0x12000, scoped, tag = 'internal scratch']
  #allocation2 [shape = 'f32[128,128]{1,0:T(8,128)}', space=vmem, size = 0x10000, scoped, tag = 'scratch operand']
  %s0 = inlined_call_operand.vmem [shape: bf16[128,72], index: 0, kind: input, shape index: {}]
  %s1 = inlined_call_operand.vmem [shape: bf16[72,128], index: 1, kind: input, shape index: {}]
  %s2 = inlined_call_operand.vmem [shape: f32[1,128], index: 2, kind: input, shape index: {}]
  %s3 = inlined_call_operand.vmem [shape: f32[1,128], index: 3, kind: input, shape index: {}]
  %s4 = inlined_call_operand.vmem [shape: bf16[128,128], index: 4, kind: input, shape index: {}]
  %s5 = inlined_call_operand.vmem [shape: bf16[128,128], index: 5, kind: output, shape index: {}]
  %s6 = sld [smem:[#allocation0]]
  $region38: #{resnet_forward.18} parent=0
    _
  %s8 = ssub.s32 1, %s6
  %s9 = scalar_select 0, %s8, %s6
  // Predicated region
  $region2: #{resnet_forward.18} parent=0 // pred_check
    _
  $region3: #{resnet_forward.18} parent=0 // pred_check_branch
    %11 = sbr.rel (0) target = $region5
  $region4: #{resnet_forward.18} parent=0 // pred_region
    _
  $region5: #{resnet_forward.18} parent=0 // pred_fallthru
    _
  // Predicated region
  $region6: #{resnet_forward.18} parent=0 // pred_check
    _
  $region7: #{resnet_forward.18} parent=0 // pred_check_branch
    %13 = sbr.rel (0) target = $region9
  $region8: #{resnet_forward.18} parent=0 // pred_region
    _
  $region9: #{resnet_forward.18} parent=0 // pred_fallthru
    _
  // Predicated region
  $region10: #{resnet_forward.18} parent=0 // pred_check
    _
  $region11: #{resnet_forward.18} parent=0 // pred_check_branch
    %15 = sbr.rel (0) target = $region13
  $region12: #{resnet_forward.18} parent=0 // pred_region
    _
  $region13: #{resnet_forward.18} parent=0 // pred_fallthru
    _
  // Predicated region
  $region14: #{resnet_forward.18} parent=0 // pred_check
    _
  $region15: #{resnet_forward.18} parent=0 // pred_check_branch
    %17 = sbr.rel (0) target = $region17
  $region16: #{resnet_forward.18} parent=0 // pred_region
    _
  $region17: #{resnet_forward.18} parent=0 // pred_fallthru
    _
  // Predicated region
  $region18: #{resnet_forward.18} parent=0 // pred_check
    _
  $region19: #{resnet_forward.18} parent=0 // pred_check_branch
    %19 = sbr.rel (0) target = $region21
  $region20: #{resnet_forward.18} parent=0 // pred_region
    _
  $region21: #{resnet_forward.18} parent=0 // pred_fallthru
    _
  %p21 = scmp.eq.s32.totalorder 0, 0
  // Predicated region
  $region22: #{resnet_forward.18} parent=0 // pred_check
    %p22 = pneg %p21
  $region23: #{resnet_forward.18} parent=0 // pred_check_branch
    %24 = sbr.rel (%p22) target = $region25
  $region24: #{resnet_forward.18} parent=0 // pred_region
    %25 = vst [vmem:[#allocation2] sm:$0xff] 0.0
    %26 = vst [vmem:[#allocation2 + $0x8] sm:$0xff] 0.0
    %27 = vst [vmem:[#allocation2 + $0x10] sm:$0xff] 0.0
    %28 = vst [vmem:[#allocation2 + $0x18] sm:$0xff] 0.0
    %29 = vst [vmem:[#allocation2 + $0x20] sm:$0xff] 0.0
    %30 = vst [vmem:[#allocation2 + $0x28] sm:$0xff] 0.0
    %31 = vst [vmem:[#allocation2 + $0x30] sm:$0xff] 0.0
    %32 = vst [vmem:[#allocation2 + $0x38] sm:$0xff] 0.0
    %33 = vst [vmem:[#allocation2 + $0x40] sm:$0xff] 0.0
    %34 = vst [vmem:[#allocation2 + $0x48] sm:$0xff] 0.0
    %35 = vst [vmem:[#allocation2 + $0x50] sm:$0xff] 0.0
    %36 = vst [vmem:[#allocation2 + $0x58] sm:$0xff] 0.0
    %37 = vst [vmem:[#allocation2 + $0x60] sm:$0xff] 0.0
    %38 = vst [vmem:[#allocation2 + $0x68] sm:$0xff] 0.0
    %39 = vst [vmem:[#allocation2 + $0x70] sm:$0xff] 0.0
    %40 = vst [vmem:[#allocation2 + $0x78] sm:$0xff] 0.0
  $region25: #{resnet_forward.18} parent=0 // pred_fallthru
    _
  %v41 = vld [vmem:[#allocation2] sm:$0xff]
  %v42 = vld [vmem:[#allocation2 + $0x8] sm:$0xff]
  %v43 = vld [vmem:[#allocation2 + $0x10] sm:$0xff]
  %v44 = vld [vmem:[#allocation2 + $0x18] sm:$0xff]
  %v45 = vld [vmem:[#allocation2 + $0x20] sm:$0xff]
  %v46 = vld [vmem:[#allocation2 + $0x28] sm:$0xff]
  %v47 = vld [vmem:[#allocation2 + $0x30] sm:$0xff]
  %v48 = vld [vmem:[#allocation2 + $0x38] sm:$0xff]
  %v49 = vld [vmem:[#allocation2 + $0x40] sm:$0xff]
  %v50 = vld [vmem:[#allocation2 + $0x48] sm:$0xff]
  %v51 = vld [vmem:[#allocation2 + $0x50] sm:$0xff]
  %v52 = vld [vmem:[#allocation2 + $0x58] sm:$0xff]
  %v53 = vld [vmem:[#allocation2 + $0x60] sm:$0xff]
  %v54 = vld [vmem:[#allocation2 + $0x68] sm:$0xff]
  %v55 = vld [vmem:[#allocation2 + $0x70] sm:$0xff]
  %v56 = vld [vmem:[#allocation2 + $0x78] sm:$0xff]
  %v57 = vld [vmem:[%s0] sm:$0xf]
  %v58 = vld [vmem:[%s0 + $0x4] sm:$0xf]
  %v59 = vld [vmem:[%s0 + $0x8] sm:$0xf]
  %v60 = vld [vmem:[%s0 + $0xc] sm:$0xf]
  %v61 = vld [vmem:[%s0 + $0x10] sm:$0xf]
  %v62 = vld [vmem:[%s0 + $0x14] sm:$0xf]
  %v63 = vld [vmem:[%s0 + $0x18] sm:$0xf]
  %v64 = vld [vmem:[%s0 + $0x1c] sm:$0xf]
  %v65 = vld [vmem:[%s0 + $0x20] sm:$0xf]
  %v66 = vld [vmem:[%s0 + $0x24] sm:$0xf]
  %v67 = vld [vmem:[%s0 + $0x28] sm:$0xf]
  %v68 = vld [vmem:[%s0 + $0x2c] sm:$0xf]
  %v69 = vld [vmem:[%s0 + $0x30] sm:$0xf]
  %v70 = vld [vmem:[%s0 + $0x34] sm:$0xf]
  %v71 = vld [vmem:[%s0 + $0x38] sm:$0xf]
  %v72 = vld [vmem:[%s0 + $0x3c] sm:$0xf]
  %v73 = vld [vmem:[%s1] sm:$0xf]
  %v74 = vld [vmem:[%s1 + $0x4] sm:$0xf]
  %v75 = vld [vmem:[%s1 + $0x8] sm:$0xf]
  %v76 = vld [vmem:[%s1 + $0xc] sm:$0xf]
  %v77 = vld [vmem:[%s1 + $0x10] sm:$0xf]
  %v78 = vld [vmem:[%s1 + $0x14] sm:$0xf]
  %v79 = vld [vmem:[%s1 + $0x18] sm:$0xf]
  %v80 = vld [vmem:[%s1 + $0x1c] sm:$0xf]
  %v81 = vld [vmem:[%s1 + $0x20] sm:$0xf]
  %v98 = vunpack.c.l.b16 %v57
  %v99 = vunpack.c.l.b16 %v58
  %v100 = vunpack.c.l.b16 %v59
  %v101 = vunpack.c.l.b16 %v60
  %v102 = vunpack.c.l.b16 %v61
  %v103 = vunpack.c.l.b16 %v62
  %v104 = vunpack.c.l.b16 %v63
  %v105 = vunpack.c.l.b16 %v64
  %v106 = vunpack.c.l.b16 %v65
  %v107 = vunpack.c.l.b16 %v66
  %v108 = vunpack.c.l.b16 %v67
  %v109 = vunpack.c.l.b16 %v68
  %v110 = vunpack.c.l.b16 %v69
  %v111 = vunpack.c.l.b16 %v70
  %v112 = vunpack.c.l.b16 %v71
  %v113 = vunpack.c.l.b16 %v72
  %v114 = vpack.c.b16 %v99, %v98
  %v115 = vpack.c.b16 %v101, %v100
  %v116 = vpack.c.b16 %v103, %v102
  %v117 = vpack.c.b16 %v105, %v104
  %v118 = vpack.c.b16 %v107, %v106
  %v119 = vpack.c.b16 %v109, %v108
  %v120 = vpack.c.b16 %v111, %v110
  %v121 = vpack.c.b16 %v113, %v112
  %v131 = vunpack.c.l.b16 %v73
  %v132 = vunpack.c.l.b16 %v74
  %v133 = vunpack.c.l.b16 %v75
  %v134 = vunpack.c.l.b16 %v76
  %v135 = vunpack.c.l.b16 %v77
  %v136 = vunpack.c.l.b16 %v78
  %v137 = vunpack.c.l.b16 %v79
  %v138 = vunpack.c.l.b16 %v80
  %v139 = vunpack.c.l.b16 %v81
  %v140 = vpack.c.b16 %v132, %v131
  %v141 = vpack.c.b16 %v134, %v133
  %v142 = vpack.c.b16 %v136, %v135
  %v143 = vpack.c.b16 %v138, %v137
  %v144 = vpack.c.b16 %v139, %v139
  %vm149 = vcmask 588800
  %v151 = vsel %vm149, %v114, 0
  %v154 = vsel %vm149, %v115, 0
  %v157 = vsel %vm149, %v116, 0
  %v160 = vsel %vm149, %v117, 0
  %v163 = vsel %vm149, %v118, 0
  %v166 = vsel %vm149, %v119, 0
  %v169 = vsel %vm149, %v120, 0
  %v172 = vsel %vm149, %v121, 0
  %vm174 = vcmask 1043456
  %v176 = vsel %vm174, %v144, 0
  %178 = vmatprep.subr.bf16.mxu0 0
  %179 = vmatpush1.bf16.msra.mxu0 0
  %180 = vmatprep.subr.bf16.mxu0 0
  %181 = vmatpush1.bf16.msra.mxu0 0
  %182 = vmatprep.subr.bf16.mxu0 0
  %183 = vmatpush1.bf16.msra.mxu0 0
  %184 = vmatprep.subr.bf16.mxu0 0
  %185 = vmatpush1.bf16.msra.mxu0 %v176
  %186 = vmatprep.subr.bf16.mxu0 0
  %187 = vmatpush1.bf16.msra.mxu0 %v143
  %188 = vmatprep.subr.bf16.mxu0 0
  %189 = vmatpush1.bf16.msra.mxu0 %v142
  %190 = vmatprep.subr.bf16.mxu0 0
  %191 = vmatpush1.bf16.msra.mxu0 %v141
  %192 = vmatprep.subr.bf16.mxu0 0
  %193 = vmatpush1.bf16.msra.mxu0 %v140
  %194 = vmatprep.subr.bf16.mxu0 0
  %195 = vmatpush2.bf16.msra.mxu0 0
  %196 = vmatprep.subr.bf16.mxu0 0
  %197 = vmatpush2.bf16.msra.mxu0 0
  %198 = vmatprep.subr.bf16.mxu0 0
  %199 = vmatpush2.bf16.msra.mxu0 0
  %200 = vmatprep.subr.bf16.mxu0 0
  %201 = vmatpush2.bf16.msra.mxu0 0
  %202 = vmatprep.subr.bf16.mxu0 0
  %203 = vmatpush2.bf16.msra.mxu0 0
  %204 = vmatprep.subr.bf16.mxu0 0
  %205 = vmatpush2.bf16.msra.mxu0 0
  %206 = vmatprep.subr.bf16.mxu0 0
  %207 = vmatpush2.bf16.msra.mxu0 0
  %208 = vmatprep.subr.bf16.mxu0 0
  %209 = vmatpush2.bf16.msra.mxu0 0
  %210 = vmatprep.mubr.bf16.mxu0 0
  %211 = vmatmul.mubr.bf16.gmra.mxu0 %v151
  %v212 = vpop.f32.mrf.mxu0
  %v213 = vadd.f32 0.0, %v212
  %v214 = vpop.f32.mrf.mxu0
  %v215 = vpop.f32.mrf.mxu0
  %v216 = vadd.f32 0.0, %v215
  %v217 = vpop.f32.mrf.mxu0
  %218 = vmatprep.mubr.bf16.mxu0 0
  %219 = vmatmul.mubr.bf16.gmra.mxu0 %v154
  %v220 = vpop.f32.mrf.mxu0
  %v221 = vadd.f32 0.0, %v220
  %v222 = vpop.f32.mrf.mxu0
  %v223 = vpop.f32.mrf.mxu0
  %v224 = vadd.f32 0.0, %v223
  %v225 = vpop.f32.mrf.mxu0
  %226 = vmatprep.mubr.bf16.mxu0 0
  %227 = vmatmul.mubr.bf16.gmra.mxu0 %v157
  %v228 = vpop.f32.mrf.mxu0
  %v229 = vadd.f32 0.0, %v228
  %v230 = vpop.f32.mrf.mxu0
  %v231 = vpop.f32.mrf.mxu0
  %v232 = vadd.f32 0.0, %v231
  %v233 = vpop.f32.mrf.mxu0
  %234 = vmatprep.mubr.bf16.mxu0 0
  %235 = vmatmul.mubr.bf16.gmra.mxu0 %v160
  %v236 = vpop.f32.mrf.mxu0
  %v237 = vadd.f32 0.0, %v236
  %v238 = vpop.f32.mrf.mxu0
  %v239 = vpop.f32.mrf.mxu0
  %v240 = vadd.f32 0.0, %v239
  %v241 = vpop.f32.mrf.mxu0
  %242 = vmatprep.mubr.bf16.mxu0 0
  %243 = vmatmul.mubr.bf16.gmra.mxu0 %v163
  %v244 = vpop.f32.mrf.mxu0
  %v245 = vadd.f32 0.0, %v244
  %v246 = vpop.f32.mrf.mxu0
  %v247 = vpop.f32.mrf.mxu0
  %v248 = vadd.f32 0.0, %v247
  %v249 = vpop.f32.mrf.mxu0
  %250 = vmatprep.mubr.bf16.mxu0 0
  %251 = vmatmul.mubr.bf16.gmra.mxu0 %v166
  %v252 = vpop.f32.mrf.mxu0
  %v253 = vadd.f32 0.0, %v252
  %v254 = vpop.f32.mrf.mxu0
  %v255 = vpop.f32.mrf.mxu0
  %v256 = vadd.f32 0.0, %v255
  %v257 = vpop.f32.mrf.mxu0
  %258 = vmatprep.mubr.bf16.mxu0 0
  %259 = vmatmul.mubr.bf16.gmra.mxu0 %v169
  %v260 = vpop.f32.mrf.mxu0
  %v261 = vadd.f32 0.0, %v260
  %v262 = vpop.f32.mrf.mxu0
  %v263 = vpop.f32.mrf.mxu0
  %v264 = vadd.f32 0.0, %v263
  %v265 = vpop.f32.mrf.mxu0
  %266 = vmatprep.mubr.bf16.mxu0 0
  %267 = vmatmul.mubr.bf16.gmra.mxu0 %v172
  %v268 = vpop.f32.mrf.mxu0
  %v269 = vadd.f32 0.0, %v268
  %v270 = vpop.f32.mrf.mxu0
  %v271 = vpop.f32.mrf.mxu0
  %v272 = vadd.f32 0.0, %v271
  %v273 = vpop.f32.mrf.mxu0
  %274 = vdwg.mxu0
  %v275 = vadd.f32 %v41, %v213
  %v276 = vadd.f32 %v42, %v216
  %v277 = vadd.f32 %v43, %v221
  %v278 = vadd.f32 %v44, %v224
  %v279 = vadd.f32 %v45, %v229
  %v280 = vadd.f32 %v46, %v232
  %v281 = vadd.f32 %v47, %v237
  %v282 = vadd.f32 %v48, %v240
  %v283 = vadd.f32 %v49, %v245
  %v284 = vadd.f32 %v50, %v248
  %v285 = vadd.f32 %v51, %v253
  %v286 = vadd.f32 %v52, %v256
  %v287 = vadd.f32 %v53, %v261
  %v288 = vadd.f32 %v54, %v264
  %v289 = vadd.f32 %v55, %v269
  %v290 = vadd.f32 %v56, %v272
  %291 = vst [vmem:[#allocation2] sm:$0xff] %v275
  %292 = vst [vmem:[#allocation2 + $0x8] sm:$0xff] %v276
  %293 = vst [vmem:[#allocation2 + $0x10] sm:$0xff] %v277
  %294 = vst [vmem:[#allocation2 + $0x18] sm:$0xff] %v278
  %295 = vst [vmem:[#allocation2 + $0x20] sm:$0xff] %v279
  %296 = vst [vmem:[#allocation2 + $0x28] sm:$0xff] %v280
  %297 = vst [vmem:[#allocation2 + $0x30] sm:$0xff] %v281
  %298 = vst [vmem:[#allocation2 + $0x38] sm:$0xff] %v282
  %299 = vst [vmem:[#allocation2 + $0x40] sm:$0xff] %v283
  %300 = vst [vmem:[#allocation2 + $0x48] sm:$0xff] %v284
  %301 = vst [vmem:[#allocation2 + $0x50] sm:$0xff] %v285
  %302 = vst [vmem:[#allocation2 + $0x58] sm:$0xff] %v286
  %303 = vst [vmem:[#allocation2 + $0x60] sm:$0xff] %v287
  %304 = vst [vmem:[#allocation2 + $0x68] sm:$0xff] %v288
  %305 = vst [vmem:[#allocation2 + $0x70] sm:$0xff] %v289
  %306 = vst [vmem:[#allocation2 + $0x78] sm:$0xff] %v290
  // Predicated region
  $region26: #{resnet_forward.18} parent=0 // pred_check
    %p307 = pneg %p21
  $region27: #{resnet_forward.18} parent=0 // pred_check_branch
    %309 = sbr.rel (%p307) target = $region29
  $region28: #{resnet_forward.18} parent=0 // pred_region
    %v310 = vld [vmem:[#allocation2] sm:$0xff]
    %v311 = vld [vmem:[#allocation2 + $0x8] sm:$0xff]
    %v312 = vld [vmem:[#allocation2 + $0x10] sm:$0xff]
    %v313 = vld [vmem:[#allocation2 + $0x18] sm:$0xff]
    %v314 = vld [vmem:[#allocation2 + $0x20] sm:$0xff]
    %v315 = vld [vmem:[#allocation2 + $0x28] sm:$0xff]
    %v316 = vld [vmem:[#allocation2 + $0x30] sm:$0xff]
    %v317 = vld [vmem:[#allocation2 + $0x38] sm:$0xff]
    %v318 = vld [vmem:[#allocation2 + $0x40] sm:$0xff]
    %v319 = vld [vmem:[#allocation2 + $0x48] sm:$0xff]
    %v320 = vld [vmem:[#allocation2 + $0x50] sm:$0xff]
    %v321 = vld [vmem:[#allocation2 + $0x58] sm:$0xff]
    %v322 = vld [vmem:[#allocation2 + $0x60] sm:$0xff]
    %v323 = vld [vmem:[#allocation2 + $0x68] sm:$0xff]
    %v324 = vld [vmem:[#allocation2 + $0x70] sm:$0xff]
    %v325 = vld [vmem:[#allocation2 + $0x78] sm:$0xff]
    %v326 = vld [vmem:[%s2] sm:$0x1]
    %v328 = vlaneseq
    %v329 = vshrl.u32 %v328, 7
    %v330 = vsub.s32 0, %v329
    %v331 = vrot.slane %v326, %v330
    %v333 = vmul.f32 %v310, %v331
    %v334 = vmul.f32 %v311, %v331
    %v335 = vmul.f32 %v312, %v331
    %v336 = vmul.f32 %v313, %v331
    %v337 = vmul.f32 %v314, %v331
    %v338 = vmul.f32 %v315, %v331
    %v339 = vmul.f32 %v316, %v331
    %v340 = vmul.f32 %v317, %v331
    %v341 = vmul.f32 %v318, %v331
    %v342 = vmul.f32 %v319, %v331
    %v343 = vmul.f32 %v320, %v331
    %v344 = vmul.f32 %v321, %v331
    %v345 = vmul.f32 %v322, %v331
    %v346 = vmul.f32 %v323, %v331
    %v347 = vmul.f32 %v324, %v331
    %v348 = vmul.f32 %v325, %v331
    %v349 = vld [vmem:[%s3] sm:$0x1]
    %v351 = vlaneseq
    %v352 = vshrl.u32 %v351, 7
    %v353 = vsub.s32 0, %v352
    %v354 = vrot.slane %v349, %v353
    %v356 = vadd.f32 %v333, %v354
    %v357 = vadd.f32 %v334, %v354
    %v358 = vadd.f32 %v335, %v354
    %v359 = vadd.f32 %v336, %v354
    %v360 = vadd.f32 %v337, %v354
    %v361 = vadd.f32 %v338, %v354
    %v362 = vadd.f32 %v339, %v354
    %v363 = vadd.f32 %v340, %v354
    %v364 = vadd.f32 %v341, %v354
    %v365 = vadd.f32 %v342, %v354
    %v366 = vadd.f32 %v343, %v354
    %v367 = vadd.f32 %v344, %v354
    %v368 = vadd.f32 %v345, %v354
    %v369 = vadd.f32 %v346, %v354
    %v370 = vadd.f32 %v347, %v354
    %v371 = vadd.f32 %v348, %v354
    %v372 = vld [vmem:[%s4] sm:$0xf]
    %v373 = vld [vmem:[%s4 + $0x4] sm:$0xf]
    %v374 = vld [vmem:[%s4 + $0x8] sm:$0xf]
    %v375 = vld [vmem:[%s4 + $0xc] sm:$0xf]
    %v376 = vld [vmem:[%s4 + $0x10] sm:$0xf]
    %v377 = vld [vmem:[%s4 + $0x14] sm:$0xf]
    %v378 = vld [vmem:[%s4 + $0x18] sm:$0xf]
    %v379 = vld [vmem:[%s4 + $0x1c] sm:$0xf]
    %v380 = vld [vmem:[%s4 + $0x20] sm:$0xf]
    %v381 = vld [vmem:[%s4 + $0x24] sm:$0xf]
    %v382 = vld [vmem:[%s4 + $0x28] sm:$0xf]
    %v383 = vld [vmem:[%s4 + $0x2c] sm:$0xf]
    %v384 = vld [vmem:[%s4 + $0x30] sm:$0xf]
    %v385 = vld [vmem:[%s4 + $0x34] sm:$0xf]
    %v386 = vld [vmem:[%s4 + $0x38] sm:$0xf]
    %v387 = vld [vmem:[%s4 + $0x3c] sm:$0xf]
    %v388 = vunpack.c.l.bf16 %v372
    %v389 = vunpack.c.l.bf16 %v373
    %v390 = vunpack.c.l.bf16 %v374
    %v391 = vunpack.c.l.bf16 %v375
    %v392 = vunpack.c.l.bf16 %v376
    %v393 = vunpack.c.l.bf16 %v377
    %v394 = vunpack.c.l.bf16 %v378
    %v395 = vunpack.c.l.bf16 %v379
    %v396 = vunpack.c.l.bf16 %v380
    %v397 = vunpack.c.l.bf16 %v381
    %v398 = vunpack.c.l.bf16 %v382
    %v399 = vunpack.c.l.bf16 %v383
    %v400 = vunpack.c.l.bf16 %v384
    %v401 = vunpack.c.l.bf16 %v385
    %v402 = vunpack.c.l.bf16 %v386
    %v403 = vunpack.c.l.bf16 %v387
    %v404 = vadd.f32 %v356, %v388
    %v405 = vadd.f32 %v357, %v389
    %v406 = vadd.f32 %v358, %v390
    %v407 = vadd.f32 %v359, %v391
    %v408 = vadd.f32 %v360, %v392
    %v409 = vadd.f32 %v361, %v393
    %v410 = vadd.f32 %v362, %v394
    %v411 = vadd.f32 %v363, %v395
    %v412 = vadd.f32 %v364, %v396
    %v413 = vadd.f32 %v365, %v397
    %v414 = vadd.f32 %v366, %v398
    %v415 = vadd.f32 %v367, %v399
    %v416 = vadd.f32 %v368, %v400
    %v417 = vadd.f32 %v369, %v401
    %v418 = vadd.f32 %v370, %v402
    %v419 = vadd.f32 %v371, %v403
    %v420 = vmax.f32 %v404, 0.0
    %v421 = vmax.f32 %v405, 0.0
    %v422 = vmax.f32 %v406, 0.0
    %v423 = vmax.f32 %v407, 0.0
    %v424 = vmax.f32 %v408, 0.0
    %v425 = vmax.f32 %v409, 0.0
    %v426 = vmax.f32 %v410, 0.0
    %v427 = vmax.f32 %v411, 0.0
    %v428 = vmax.f32 %v412, 0.0
    %v429 = vmax.f32 %v413, 0.0
    %v430 = vmax.f32 %v414, 0.0
    %v431 = vmax.f32 %v415, 0.0
    %v432 = vmax.f32 %v416, 0.0
    %v433 = vmax.f32 %v417, 0.0
    %v434 = vmax.f32 %v418, 0.0
    %v435 = vmax.f32 %v419, 0.0
    %v436 = vpack.c.bf16 %v421, %v420
    %v437 = vpack.c.bf16 %v423, %v422
    %v438 = vpack.c.bf16 %v425, %v424
    %v439 = vpack.c.bf16 %v427, %v426
    %v440 = vpack.c.bf16 %v429, %v428
    %v441 = vpack.c.bf16 %v431, %v430
    %v442 = vpack.c.bf16 %v433, %v432
    %v443 = vpack.c.bf16 %v435, %v434
    %v452 = vunpack.c.l.b16 %v436
    %v453 = vunpack.c.h.b16 %v436
    %v454 = vunpack.c.l.b16 %v437
    %v455 = vunpack.c.h.b16 %v437
    %v456 = vunpack.c.l.b16 %v438
    %v457 = vunpack.c.h.b16 %v438
    %v458 = vunpack.c.l.b16 %v439
    %v459 = vunpack.c.h.b16 %v439
    %v460 = vunpack.c.l.b16 %v440
    %v461 = vunpack.c.h.b16 %v440
    %v462 = vunpack.c.l.b16 %v441
    %v463 = vunpack.c.h.b16 %v441
    %v464 = vunpack.c.l.b16 %v442
    %v465 = vunpack.c.h.b16 %v442
    %v466 = vunpack.c.l.b16 %v443
    %v467 = vunpack.c.h.b16 %v443
    %v468 = vpack.c.b16 %v452, %v452
    %v469 = vpack.c.b16 %v453, %v453
    %v470 = vpack.c.b16 %v454, %v454
    %v471 = vpack.c.b16 %v455, %v455
    %v472 = vpack.c.b16 %v456, %v456
    %v473 = vpack.c.b16 %v457, %v457
    %v474 = vpack.c.b16 %v458, %v458
    %v475 = vpack.c.b16 %v459, %v459
    %v476 = vpack.c.b16 %v460, %v460
    %v477 = vpack.c.b16 %v461, %v461
    %v478 = vpack.c.b16 %v462, %v462
    %v479 = vpack.c.b16 %v463, %v463
    %v480 = vpack.c.b16 %v464, %v464
    %v481 = vpack.c.b16 %v465, %v465
    %v482 = vpack.c.b16 %v466, %v466
    %v483 = vpack.c.b16 %v467, %v467
    %500 = vst [vmem:[%s5] sm:$0xf] %v468
    %501 = vst [vmem:[%s5 + $0x4] sm:$0xf] %v469
    %502 = vst [vmem:[%s5 + $0x8] sm:$0xf] %v470
    %503 = vst [vmem:[%s5 + $0xc] sm:$0xf] %v471
    %504 = vst [vmem:[%s5 + $0x10] sm:$0xf] %v472
    %505 = vst [vmem:[%s5 + $0x14] sm:$0xf] %v473
    %506 = vst [vmem:[%s5 + $0x18] sm:$0xf] %v474
    %507 = vst [vmem:[%s5 + $0x1c] sm:$0xf] %v475
    %508 = vst [vmem:[%s5 + $0x20] sm:$0xf] %v476
    %509 = vst [vmem:[%s5 + $0x24] sm:$0xf] %v477
    %510 = vst [vmem:[%s5 + $0x28] sm:$0xf] %v478
    %511 = vst [vmem:[%s5 + $0x2c] sm:$0xf] %v479
    %512 = vst [vmem:[%s5 + $0x30] sm:$0xf] %v480
    %513 = vst [vmem:[%s5 + $0x34] sm:$0xf] %v481
    %514 = vst [vmem:[%s5 + $0x38] sm:$0xf] %v482
    %515 = vst [vmem:[%s5 + $0x3c] sm:$0xf] %v483
  $region29: #{resnet_forward.18} parent=0 // pred_fallthru
    _
  // Predicated region
  $region30: #{resnet_forward.18} parent=0 // pred_check
    _
  $region31: #{resnet_forward.18} parent=0 // pred_check_branch
    %517 = sbr.rel (0) target = $region33
  $region32: #{resnet_forward.18} parent=0 // pred_region
    _
  $region33: #{resnet_forward.18} parent=0 // pred_fallthru
    _
  // Predicated region
  $region34: #{resnet_forward.18} parent=0 // pred_check
    _
  $region35: #{resnet_forward.18} parent=0 // pred_check_branch
    %519 = sbr.rel (0) target = $region37
  $region36: #{resnet_forward.18} parent=0 // pred_region
    _
  $region37: #{resnet_forward.18} parent=0 // pred_fallthru
    _

// kernel: resnet_forward.19
$region0: #{resnet_forward.19}
  #allocation0 [shape = 'u32[]', space=smem, size = 0x4, offset = 0x4, fixed_abs, tag = 'smem constant byte address 0x4 - core index']
  #allocation1 [shape = 'u32[144,128]{1,0:T(1,128)}', space=vmem, size = 0x12000, scoped, tag = 'internal scratch']
  #allocation2 [shape = 'f32[32,128]{1,0:T(8,128)}', space=vmem, size = 0x4000, scoped, tag = 'scratch operand']
  %s0 = inlined_call_operand.vmem [shape: bf16[32,72], index: 0, kind: input, shape index: {}]
  %s1 = inlined_call_operand.vmem [shape: bf16[72,128], index: 1, kind: input, shape index: {}]
  %s2 = inlined_call_operand.vmem [shape: f32[1,128], index: 2, kind: input, shape index: {}]
  %s3 = inlined_call_operand.vmem [shape: f32[1,128], index: 3, kind: input, shape index: {}]
  %s4 = inlined_call_operand.vmem [shape: bf16[32,128], index: 4, kind: output, shape index: {}]
  %s5 = sld [smem:[#allocation0]]
  $region34: #{resnet_forward.19} parent=0
    _
  %s7 = ssub.s32 1, %s5
  %s8 = scalar_select 0, %s7, %s5
  // Predicated region
  $region2: #{resnet_forward.19} parent=0 // pred_check
    _
  $region3: #{resnet_forward.19} parent=0 // pred_check_branch
    %10 = sbr.rel (0) target = $region5
  $region4: #{resnet_forward.19} parent=0 // pred_region
    _
  $region5: #{resnet_forward.19} parent=0 // pred_fallthru
    _
  // Predicated region
  $region6: #{resnet_forward.19} parent=0 // pred_check
    _
  $region7: #{resnet_forward.19} parent=0 // pred_check_branch
    %12 = sbr.rel (0) target = $region9
  $region8: #{resnet_forward.19} parent=0 // pred_region
    _
  $region9: #{resnet_forward.19} parent=0 // pred_fallthru
    _
  // Predicated region
  $region10: #{resnet_forward.19} parent=0 // pred_check
    _
  $region11: #{resnet_forward.19} parent=0 // pred_check_branch
    %14 = sbr.rel (0) target = $region13
  $region12: #{resnet_forward.19} parent=0 // pred_region
    _
  $region13: #{resnet_forward.19} parent=0 // pred_fallthru
    _
  // Predicated region
  $region14: #{resnet_forward.19} parent=0 // pred_check
    _
  $region15: #{resnet_forward.19} parent=0 // pred_check_branch
    %16 = sbr.rel (0) target = $region17
  $region16: #{resnet_forward.19} parent=0 // pred_region
    _
  $region17: #{resnet_forward.19} parent=0 // pred_fallthru
    _
  %p18 = scmp.eq.s32.totalorder 0, 0
  // Predicated region
  $region18: #{resnet_forward.19} parent=0 // pred_check
    %p19 = pneg %p18
  $region19: #{resnet_forward.19} parent=0 // pred_check_branch
    %21 = sbr.rel (%p19) target = $region21
  $region20: #{resnet_forward.19} parent=0 // pred_region
    %22 = vst [vmem:[#allocation2] sm:$0xff] 0.0
    %23 = vst [vmem:[#allocation2 + $0x8] sm:$0xff] 0.0
    %24 = vst [vmem:[#allocation2 + $0x10] sm:$0xff] 0.0
    %25 = vst [vmem:[#allocation2 + $0x18] sm:$0xff] 0.0
  $region21: #{resnet_forward.19} parent=0 // pred_fallthru
    _
  %v26 = vld [vmem:[#allocation2] sm:$0xff]
  %v27 = vld [vmem:[#allocation2 + $0x8] sm:$0xff]
  %v28 = vld [vmem:[#allocation2 + $0x10] sm:$0xff]
  %v29 = vld [vmem:[#allocation2 + $0x18] sm:$0xff]
  %v30 = vld [vmem:[%s0] sm:$0xf]
  %v31 = vld [vmem:[%s0 + $0x4] sm:$0xf]
  %v32 = vld [vmem:[%s0 + $0x8] sm:$0xf]
  %v33 = vld [vmem:[%s0 + $0xc] sm:$0xf]
  %v34 = vld [vmem:[%s1] sm:$0xf]
  %v35 = vld [vmem:[%s1 + $0x4] sm:$0xf]
  %v36 = vld [vmem:[%s1 + $0x8] sm:$0xf]
  %v37 = vld [vmem:[%s1 + $0xc] sm:$0xf]
  %v38 = vld [vmem:[%s1 + $0x10] sm:$0xf]
  %v39 = vld [vmem:[%s1 + $0x14] sm:$0xf]
  %v40 = vld [vmem:[%s1 + $0x18] sm:$0xf]
  %v41 = vld [vmem:[%s1 + $0x1c] sm:$0xf]
  %v42 = vld [vmem:[%s1 + $0x20] sm:$0xf]
  %v47 = vunpack.c.l.b16 %v30
  %v48 = vunpack.c.l.b16 %v31
  %v49 = vunpack.c.l.b16 %v32
  %v50 = vunpack.c.l.b16 %v33
  %v51 = vpack.c.b16 %v48, %v47
  %v52 = vpack.c.b16 %v50, %v49
  %v62 = vunpack.c.l.b16 %v34
  %v63 = vunpack.c.l.b16 %v35
  %v64 = vunpack.c.l.b16 %v36
  %v65 = vunpack.c.l.b16 %v37
  %v66 = vunpack.c.l.b16 %v38
  %v67 = vunpack.c.l.b16 %v39
  %v68 = vunpack.c.l.b16 %v40
  %v69 = vunpack.c.l.b16 %v41
  %v70 = vunpack.c.l.b16 %v42
  %v71 = vpack.c.b16 %v63, %v62
  %v72 = vpack.c.b16 %v65, %v64
  %v73 = vpack.c.b16 %v67, %v66
  %v74 = vpack.c.b16 %v69, %v68
  %v75 = vpack.c.b16 %v70, %v70
  %vm80 = vcmask 588800
  %v82 = vsel %vm80, %v51, 0
  %v85 = vsel %vm80, %v52, 0
  %vm87 = vcmask 1043456
  %v89 = vsel %vm87, %v75, 0
  %91 = vmatprep.subr.bf16.mxu0 0
  %92 = vmatpush1.bf16.msra.mxu0 0
  %93 = vmatprep.subr.bf16.mxu0 0
  %94 = vmatpush1.bf16.msra.mxu0 0
  %95 = vmatprep.subr.bf16.mxu0 0
  %96 = vmatpush1.bf16.msra.mxu0 0
  %97 = vmatprep.subr.bf16.mxu0 0
  %98 = vmatpush1.bf16.msra.mxu0 %v89
  %99 = vmatprep.subr.bf16.mxu0 0
  %100 = vmatpush1.bf16.msra.mxu0 %v74
  %101 = vmatprep.subr.bf16.mxu0 0
  %102 = vmatpush1.bf16.msra.mxu0 %v73
  %103 = vmatprep.subr.bf16.mxu0 0
  %104 = vmatpush1.bf16.msra.mxu0 %v72
  %105 = vmatprep.subr.bf16.mxu0 0
  %106 = vmatpush1.bf16.msra.mxu0 %v71
  %107 = vmatprep.subr.bf16.mxu0 0
  %108 = vmatpush2.bf16.msra.mxu0 0
  %109 = vmatprep.subr.bf16.mxu0 0
  %110 = vmatpush2.bf16.msra.mxu0 0
  %111 = vmatprep.subr.bf16.mxu0 0
  %112 = vmatpush2.bf16.msra.mxu0 0
  %113 = vmatprep.subr.bf16.mxu0 0
  %114 = vmatpush2.bf16.msra.mxu0 0
  %115 = vmatprep.subr.bf16.mxu0 0
  %116 = vmatpush2.bf16.msra.mxu0 0
  %117 = vmatprep.subr.bf16.mxu0 0
  %118 = vmatpush2.bf16.msra.mxu0 0
  %119 = vmatprep.subr.bf16.mxu0 0
  %120 = vmatpush2.bf16.msra.mxu0 0
  %121 = vmatprep.subr.bf16.mxu0 0
  %122 = vmatpush2.bf16.msra.mxu0 0
  %123 = vmatprep.mubr.bf16.mxu0 0
  %124 = vmatmul.mubr.bf16.gmra.mxu0 %v82
  %v125 = vpop.f32.mrf.mxu0
  %v126 = vadd.f32 0.0, %v125
  %v127 = vpop.f32.mrf.mxu0
  %v128 = vpop.f32.mrf.mxu0
  %v129 = vadd.f32 0.0, %v128
  %v130 = vpop.f32.mrf.mxu0
  %131 = vmatprep.mubr.bf16.mxu0 0
  %132 = vmatmul.mubr.bf16.gmra.mxu0 %v85
  %v133 = vpop.f32.mrf.mxu0
  %v134 = vadd.f32 0.0, %v133
  %v135 = vpop.f32.mrf.mxu0
  %v136 = vpop.f32.mrf.mxu0
  %v137 = vadd.f32 0.0, %v136
  %v138 = vpop.f32.mrf.mxu0
  %139 = vdwg.mxu0
  %v140 = vadd.f32 %v26, %v126
  %v141 = vadd.f32 %v27, %v129
  %v142 = vadd.f32 %v28, %v134
  %v143 = vadd.f32 %v29, %v137
  %144 = vst [vmem:[#allocation2] sm:$0xff] %v140
  %145 = vst [vmem:[#allocation2 + $0x8] sm:$0xff] %v141
  %146 = vst [vmem:[#allocation2 + $0x10] sm:$0xff] %v142
  %147 = vst [vmem:[#allocation2 + $0x18] sm:$0xff] %v143
  // Predicated region
  $region22: #{resnet_forward.19} parent=0 // pred_check
    %p148 = pneg %p18
  $region23: #{resnet_forward.19} parent=0 // pred_check_branch
    %150 = sbr.rel (%p148) target = $region25
  $region24: #{resnet_forward.19} parent=0 // pred_region
    %v151 = vld [vmem:[#allocation2] sm:$0xff]
    %v152 = vld [vmem:[#allocation2 + $0x8] sm:$0xff]
    %v153 = vld [vmem:[#allocation2 + $0x10] sm:$0xff]
    %v154 = vld [vmem:[#allocation2 + $0x18] sm:$0xff]
    %v155 = vld [vmem:[%s2] sm:$0x1]
    %v157 = vlaneseq
    %v158 = vshrl.u32 %v157, 7
    %v159 = vsub.s32 0, %v158
    %v160 = vrot.slane %v155, %v159
    %v162 = vmul.f32 %v151, %v160
    %v163 = vmul.f32 %v152, %v160
    %v164 = vmul.f32 %v153, %v160
    %v165 = vmul.f32 %v154, %v160
    %v166 = vld [vmem:[%s3] sm:$0x1]
    %v168 = vlaneseq
    %v169 = vshrl.u32 %v168, 7
    %v170 = vsub.s32 0, %v169
    %v171 = vrot.slane %v166, %v170
    %v173 = vadd.f32 %v162, %v171
    %v174 = vadd.f32 %v163, %v171
    %v175 = vadd.f32 %v164, %v171
    %v176 = vadd.f32 %v165, %v171
    %v177 = vmax.f32 %v173, 0.0
    %v178 = vmax.f32 %v174, 0.0
    %v179 = vmax.f32 %v175, 0.0
    %v180 = vmax.f32 %v176, 0.0
    %v181 = vpack.c.bf16 %v178, %v177
    %v182 = vpack.c.bf16 %v180, %v179
    %v185 = vunpack.c.l.b16 %v181
    %v186 = vunpack.c.h.b16 %v181
    %v187 = vunpack.c.l.b16 %v182
    %v188 = vunpack.c.h.b16 %v182
    %v189 = vpack.c.b16 %v185, %v185
    %v190 = vpack.c.b16 %v186, %v186
    %v191 = vpack.c.b16 %v187, %v187
    %v192 = vpack.c.b16 %v188, %v188
    %197 = vst [vmem:[%s4] sm:$0xf] %v189
    %198 = vst [vmem:[%s4 + $0x4] sm:$0xf] %v190
    %199 = vst [vmem:[%s4 + $0x8] sm:$0xf] %v191
    %200 = vst [vmem:[%s4 + $0xc] sm:$0xf] %v192
  $region25: #{resnet_forward.19} parent=0 // pred_fallthru
    _
  // Predicated region
  $region26: #{resnet_forward.19} parent=0 // pred_check
    _
  $region27: #{resnet_forward.19} parent=0 // pred_check_branch
    %202 = sbr.rel (0) target = $region29
  $region28: #{resnet_forward.19} parent=0 // pred_region
    _
  $region29: #{resnet_forward.19} parent=0 // pred_fallthru
    _
  // Predicated region
  $region30: #{resnet_forward.19} parent=0 // pred_check
    _
  $region31: #{resnet_forward.19} parent=0 // pred_check_branch
    %204 = sbr.rel (0) target = $region33
  $region32: #{resnet_forward.19} parent=0 // pred_region
    _
  $region33: #{resnet_forward.19} parent=0 // pred_fallthru
    _

// kernel: resnet_forward.23
$region0: #{resnet_forward.23}
  #allocation0 [shape = 'u32[]', space=smem, size = 0x4, offset = 0x4, fixed_abs, tag = 'smem constant byte address 0x4 - core index']
  #allocation1 [shape = 'u32[144,128]{1,0:T(1,128)}', space=vmem, size = 0x12000, scoped, tag = 'internal scratch']
  #allocation2 [shape = 'f32[16,128]{1,0:T(8,128)}', space=vmem, size = 0x2000, scoped, tag = 'scratch operand']
  %s0 = inlined_call_operand.vmem [shape: bf16[16,16], index: 0, kind: input, shape index: {}]
  %s1 = inlined_call_operand.vmem [shape: bf16[16,128], index: 1, kind: input, shape index: {}]
  %s2 = inlined_call_operand.vmem [shape: f32[1,128], index: 2, kind: input, shape index: {}]
  %s3 = inlined_call_operand.vmem [shape: f32[1,128], index: 3, kind: input, shape index: {}]
  %s4 = inlined_call_operand.vmem [shape: bf16[16,128], index: 4, kind: output, shape index: {}]
  %s5 = sld [smem:[#allocation0]]
  $region34: #{resnet_forward.23} parent=0
    _
  %s7 = ssub.s32 1, %s5
  %s8 = scalar_select 0, %s7, %s5
  // Predicated region
  $region2: #{resnet_forward.23} parent=0 // pred_check
    _
  $region3: #{resnet_forward.23} parent=0 // pred_check_branch
    %10 = sbr.rel (0) target = $region5
  $region4: #{resnet_forward.23} parent=0 // pred_region
    _
  $region5: #{resnet_forward.23} parent=0 // pred_fallthru
    _
  // Predicated region
  $region6: #{resnet_forward.23} parent=0 // pred_check
    _
  $region7: #{resnet_forward.23} parent=0 // pred_check_branch
    %12 = sbr.rel (0) target = $region9
  $region8: #{resnet_forward.23} parent=0 // pred_region
    _
  $region9: #{resnet_forward.23} parent=0 // pred_fallthru
    _
  // Predicated region
  $region10: #{resnet_forward.23} parent=0 // pred_check
    _
  $region11: #{resnet_forward.23} parent=0 // pred_check_branch
    %14 = sbr.rel (0) target = $region13
  $region12: #{resnet_forward.23} parent=0 // pred_region
    _
  $region13: #{resnet_forward.23} parent=0 // pred_fallthru
    _
  // Predicated region
  $region14: #{resnet_forward.23} parent=0 // pred_check
    _
  $region15: #{resnet_forward.23} parent=0 // pred_check_branch
    %16 = sbr.rel (0) target = $region17
  $region16: #{resnet_forward.23} parent=0 // pred_region
    _
  $region17: #{resnet_forward.23} parent=0 // pred_fallthru
    _
  %p18 = scmp.eq.s32.totalorder 0, 0
  // Predicated region
  $region18: #{resnet_forward.23} parent=0 // pred_check
    %p19 = pneg %p18
  $region19: #{resnet_forward.23} parent=0 // pred_check_branch
    %21 = sbr.rel (%p19) target = $region21
  $region20: #{resnet_forward.23} parent=0 // pred_region
    %22 = vst [vmem:[#allocation2] sm:$0xff] 0.0
    %23 = vst [vmem:[#allocation2 + $0x8] sm:$0xff] 0.0
  $region21: #{resnet_forward.23} parent=0 // pred_fallthru
    _
  %v24 = vld [vmem:[#allocation2] sm:$0xff]
  %v25 = vld [vmem:[#allocation2 + $0x8] sm:$0xff]
  %v26 = vld [vmem:[%s0] sm:$0xf]
  %v27 = vld [vmem:[%s0 + $0x4] sm:$0xf]
  %v28 = vld [vmem:[%s1] sm:$0xf]
  %v29 = vld [vmem:[%s1 + $0x4] sm:$0xf]
  %v32 = vunpack.c.l.b16 %v26
  %v33 = vunpack.c.l.b16 %v27
  %v34 = vpack.c.b16 %v33, %v32
  %v37 = vunpack.c.l.b16 %v28
  %v38 = vunpack.c.l.b16 %v29
  %v39 = vpack.c.b16 %v38, %v37
  %vm41 = vcmask 130048
  %v43 = vsel %vm41, %v34, 0
  %45 = vmatprep.subr.bf16.mxu0 0
  %46 = vmatpush1.bf16.msra.mxu0 0
  %47 = vmatprep.subr.bf16.mxu0 0
  %48 = vmatpush1.bf16.msra.mxu0 0
  %49 = vmatprep.subr.bf16.mxu0 0
  %50 = vmatpush1.bf16.msra.mxu0 0
  %51 = vmatprep.subr.bf16.mxu0 0
  %52 = vmatpush1.bf16.msra.mxu0 0
  %53 = vmatprep.subr.bf16.mxu0 0
  %54 = vmatpush1.bf16.msra.mxu0 0
  %55 = vmatprep.subr.bf16.mxu0 0
  %56 = vmatpush1.bf16.msra.mxu0 0
  %57 = vmatprep.subr.bf16.mxu0 0
  %58 = vmatpush1.bf16.msra.mxu0 0
  %59 = vmatprep.subr.bf16.mxu0 0
  %60 = vmatpush1.bf16.msra.mxu0 %v39
  %61 = vmatprep.subr.bf16.mxu0 0
  %62 = vmatpush2.bf16.msra.mxu0 0
  %63 = vmatprep.subr.bf16.mxu0 0
  %64 = vmatpush2.bf16.msra.mxu0 0
  %65 = vmatprep.subr.bf16.mxu0 0
  %66 = vmatpush2.bf16.msra.mxu0 0
  %67 = vmatprep.subr.bf16.mxu0 0
  %68 = vmatpush2.bf16.msra.mxu0 0
  %69 = vmatprep.subr.bf16.mxu0 0
  %70 = vmatpush2.bf16.msra.mxu0 0
  %71 = vmatprep.subr.bf16.mxu0 0
  %72 = vmatpush2.bf16.msra.mxu0 0
  %73 = vmatprep.subr.bf16.mxu0 0
  %74 = vmatpush2.bf16.msra.mxu0 0
  %75 = vmatprep.subr.bf16.mxu0 0
  %76 = vmatpush2.bf16.msra.mxu0 0
  %77 = vmatprep.mubr.bf16.mxu0 0
  %78 = vmatmul.mubr.bf16.gmra.mxu0 %v43
  %v79 = vpop.f32.mrf.mxu0
  %v80 = vadd.f32 0.0, %v79
  %v81 = vpop.f32.mrf.mxu0
  %v82 = vpop.f32.mrf.mxu0
  %v83 = vadd.f32 0.0, %v82
  %v84 = vpop.f32.mrf.mxu0
  %85 = vdwg.mxu0
  %v86 = vadd.f32 %v24, %v80
  %v87 = vadd.f32 %v25, %v83
  %88 = vst [vmem:[#allocation2] sm:$0xff] %v86
  %89 = vst [vmem:[#allocation2 + $0x8] sm:$0xff] %v87
  // Predicated region
  $region22: #{resnet_forward.23} parent=0 // pred_check
    %p90 = pneg %p18
  $region23: #{resnet_forward.23} parent=0 // pred_check_branch
    %92 = sbr.rel (%p90) target = $region25
  $region24: #{resnet_forward.23} parent=0 // pred_region
    %v93 = vld [vmem:[#allocation2] sm:$0xff]
    %v94 = vld [vmem:[#allocation2 + $0x8] sm:$0xff]
    %v95 = vld [vmem:[%s2] sm:$0x1]
    %v97 = vlaneseq
    %v98 = vshrl.u32 %v97, 7
    %v99 = vsub.s32 0, %v98
    %v100 = vrot.slane %v95, %v99
    %v102 = vmul.f32 %v93, %v100
    %v103 = vmul.f32 %v94, %v100
    %v104 = vld [vmem:[%s3] sm:$0x1]
    %v106 = vlaneseq
    %v107 = vshrl.u32 %v106, 7
    %v108 = vsub.s32 0, %v107
    %v109 = vrot.slane %v104, %v108
    %v111 = vadd.f32 %v102, %v109
    %v112 = vadd.f32 %v103, %v109
    %v113 = vpack.c.bf16 %v112, %v111
    %v115 = vunpack.c.l.b16 %v113
    %v116 = vunpack.c.h.b16 %v113
    %v117 = vpack.c.b16 %v115, %v115
    %v118 = vpack.c.b16 %v116, %v116
    %121 = vst [vmem:[%s4] sm:$0xf] %v117
    %122 = vst [vmem:[%s4 + $0x4] sm:$0xf] %v118
  $region25: #{resnet_forward.23} parent=0 // pred_fallthru
    _
  // Predicated region
  $region26: #{resnet_forward.23} parent=0 // pred_check
    _
  $region27: #{resnet_forward.23} parent=0 // pred_check_branch
    %124 = sbr.rel (0) target = $region29
  $region28: #{resnet_forward.23} parent=0 // pred_region
    _
  $region29: #{resnet_forward.23} parent=0 // pred_fallthru
    _
  // Predicated region
  $region30: #{resnet_forward.23} parent=0 // pred_check
    _
  $region31: #{resnet_forward.23} parent=0 // pred_check_branch
    %126 = sbr.rel (0) target = $region33
  $region32: #{resnet_forward.23} parent=0 // pred_region
    _
  $region33: #{resnet_forward.23} parent=0 // pred_fallthru
    _

// kernel: resnet_forward.21
$region0: #{resnet_forward.21}
  #allocation0 [shape = 'u32[]', space=smem, size = 0x4, offset = 0x4, fixed_abs, tag = 'smem constant byte address 0x4 - core index']
  #allocation1 [shape = 'u32[144,128]{1,0:T(1,128)}', space=vmem, size = 0x12000, scoped, tag = 'internal scratch']
  #allocation2 [shape = 'f32[32,128]{1,0:T(8,128)}', space=vmem, size = 0x4000, scoped, tag = 'scratch operand']
  %s0 = inlined_call_operand.vmem [shape: bf16[32,144], index: 0, kind: input, shape index: {}]
  %s1 = inlined_call_operand.vmem [shape: bf16[144,128], index: 1, kind: input, shape index: {}]
  %s2 = inlined_call_operand.vmem [shape: f32[1,128], index: 2, kind: input, shape index: {}]
  %s3 = inlined_call_operand.vmem [shape: f32[1,128], index: 3, kind: input, shape index: {}]
  %s4 = inlined_call_operand.vmem [shape: bf16[32,128], index: 4, kind: input, shape index: {}]
  %s5 = inlined_call_operand.vmem [shape: bf16[32,128], index: 5, kind: output, shape index: {}]
  %s6 = sld [smem:[#allocation0]]
  $region38: #{resnet_forward.21} parent=0
    _
  %s8 = ssub.s32 1, %s6
  %s9 = scalar_select 0, %s8, %s6
  // Predicated region
  $region2: #{resnet_forward.21} parent=0 // pred_check
    _
  $region3: #{resnet_forward.21} parent=0 // pred_check_branch
    %11 = sbr.rel (0) target = $region5
  $region4: #{resnet_forward.21} parent=0 // pred_region
    _
  $region5: #{resnet_forward.21} parent=0 // pred_fallthru
    _
  // Predicated region
  $region6: #{resnet_forward.21} parent=0 // pred_check
    _
  $region7: #{resnet_forward.21} parent=0 // pred_check_branch
    %13 = sbr.rel (0) target = $region9
  $region8: #{resnet_forward.21} parent=0 // pred_region
    _
  $region9: #{resnet_forward.21} parent=0 // pred_fallthru
    _
  // Predicated region
  $region10: #{resnet_forward.21} parent=0 // pred_check
    _
  $region11: #{resnet_forward.21} parent=0 // pred_check_branch
    %15 = sbr.rel (0) target = $region13
  $region12: #{resnet_forward.21} parent=0 // pred_region
    _
  $region13: #{resnet_forward.21} parent=0 // pred_fallthru
    _
  // Predicated region
  $region14: #{resnet_forward.21} parent=0 // pred_check
    _
  $region15: #{resnet_forward.21} parent=0 // pred_check_branch
    %17 = sbr.rel (0) target = $region17
  $region16: #{resnet_forward.21} parent=0 // pred_region
    _
  $region17: #{resnet_forward.21} parent=0 // pred_fallthru
    _
  // Predicated region
  $region18: #{resnet_forward.21} parent=0 // pred_check
    _
  $region19: #{resnet_forward.21} parent=0 // pred_check_branch
    %19 = sbr.rel (0) target = $region21
  $region20: #{resnet_forward.21} parent=0 // pred_region
    _
  $region21: #{resnet_forward.21} parent=0 // pred_fallthru
    _
  %p21 = scmp.eq.s32.totalorder 0, 0
  // Predicated region
  $region22: #{resnet_forward.21} parent=0 // pred_check
    %p22 = pneg %p21
  $region23: #{resnet_forward.21} parent=0 // pred_check_branch
    %24 = sbr.rel (%p22) target = $region25
  $region24: #{resnet_forward.21} parent=0 // pred_region
    %25 = vst [vmem:[#allocation2] sm:$0xff] 0.0
    %26 = vst [vmem:[#allocation2 + $0x8] sm:$0xff] 0.0
    %27 = vst [vmem:[#allocation2 + $0x10] sm:$0xff] 0.0
    %28 = vst [vmem:[#allocation2 + $0x18] sm:$0xff] 0.0
  $region25: #{resnet_forward.21} parent=0 // pred_fallthru
    _
  %v29 = vld [vmem:[#allocation2] sm:$0xff]
  %v30 = vld [vmem:[#allocation2 + $0x8] sm:$0xff]
  %v31 = vld [vmem:[#allocation2 + $0x10] sm:$0xff]
  %v32 = vld [vmem:[#allocation2 + $0x18] sm:$0xff]
  %v33 = vld [vmem:[%s0] sm:$0xff]
  %v34 = vld [vmem:[%s0 + $0x8] sm:$0xff]
  %v35 = vld [vmem:[%s0 + $0x10] sm:$0xff]
  %v36 = vld [vmem:[%s0 + $0x18] sm:$0xff]
  %v37 = vld [vmem:[%s1] sm:$0xf]
  %v38 = vld [vmem:[%s1 + $0x4] sm:$0xf]
  %v39 = vld [vmem:[%s1 + $0x8] sm:$0xf]
  %v40 = vld [vmem:[%s1 + $0xc] sm:$0xf]
  %v41 = vld [vmem:[%s1 + $0x10] sm:$0xf]
  %v42 = vld [vmem:[%s1 + $0x14] sm:$0xf]
  %v43 = vld [vmem:[%s1 + $0x18] sm:$0xf]
  %v44 = vld [vmem:[%s1 + $0x1c] sm:$0xf]
  %v45 = vld [vmem:[%s1 + $0x20] sm:$0xf]
  %v46 = vld [vmem:[%s1 + $0x24] sm:$0xf]
  %v47 = vld [vmem:[%s1 + $0x28] sm:$0xf]
  %v48 = vld [vmem:[%s1 + $0x2c] sm:$0xf]
  %v49 = vld [vmem:[%s1 + $0x30] sm:$0xf]
  %v50 = vld [vmem:[%s1 + $0x34] sm:$0xf]
  %v51 = vld [vmem:[%s1 + $0x38] sm:$0xf]
  %v52 = vld [vmem:[%s1 + $0x3c] sm:$0xf]
  %v53 = vld [vmem:[%s1 + $0x40] sm:$0xf]
  %v54 = vld [vmem:[%s1 + $0x44] sm:$0xf]
  %v59 = vunpack.c.l.b16 %v33
  %v60 = vunpack.c.h.b16 %v33
  %v61 = vunpack.c.l.b16 %v34
  %v62 = vunpack.c.h.b16 %v34
  %v63 = vunpack.c.l.b16 %v35
  %v64 = vunpack.c.h.b16 %v35
  %v65 = vunpack.c.l.b16 %v36
  %v66 = vunpack.c.h.b16 %v36
  %v67 = vpack.c.b16 %v61, %v59
  %v68 = vpack.c.b16 %v62, %v60
  %v69 = vpack.c.b16 %v65, %v63
  %v70 = vpack.c.b16 %v66, %v64
  %v91 = vunpack.c.l.b16 %v37
  %v92 = vunpack.c.l.b16 %v38
  %v93 = vunpack.c.l.b16 %v39
  %v94 = vunpack.c.l.b16 %v40
  %v95 = vunpack.c.l.b16 %v41
  %v96 = vunpack.c.l.b16 %v42
  %v97 = vunpack.c.l.b16 %v43
  %v98 = vunpack.c.l.b16 %v44
  %v99 = vunpack.c.l.b16 %v45
  %v100 = vunpack.c.l.b16 %v46
  %v101 = vunpack.c.l.b16 %v47
  %v102 = vunpack.c.l.b16 %v48
  %v103 = vunpack.c.l.b16 %v49
  %v104 = vunpack.c.l.b16 %v50
  %v105 = vunpack.c.l.b16 %v51
  %v106 = vunpack.c.l.b16 %v52
  %v107 = vunpack.c.l.b16 %v53
  %v108 = vunpack.c.l.b16 %v54
  %v109 = vpack.c.b16 %v92, %v91
  %v110 = vpack.c.b16 %v94, %v93
  %v111 = vpack.c.b16 %v96, %v95
  %v112 = vpack.c.b16 %v98, %v97
  %v113 = vpack.c.b16 %v100, %v99
  %v114 = vpack.c.b16 %v102, %v101
  %v115 = vpack.c.b16 %v104, %v103
  %v116 = vpack.c.b16 %v106, %v105
  %v117 = vpack.c.b16 %v108, %v107
  %vm127 = vcmask 130048
  %v129 = vsel %vm127, %v68, 0
  %v132 = vsel %vm127, %v70, 0
  %134 = vmatprep.subr.bf16.mxu0 0
  %135 = vmatpush1.bf16.msra.mxu0 %v116
  %136 = vmatprep.subr.bf16.mxu0 0
  %137 = vmatpush1.bf16.msra.mxu0 %v115
  %138 = vmatprep.subr.bf16.mxu0 0
  %139 = vmatpush1.bf16.msra.mxu0 %v114
  %140 = vmatprep.subr.bf16.mxu0 0
  %141 = vmatpush1.bf16.msra.mxu0 %v113
  %142 = vmatprep.subr.bf16.mxu0 0
  %143 = vmatpush1.bf16.msra.mxu0 %v112
  %144 = vmatprep.subr.bf16.mxu0 0
  %145 = vmatpush1.bf16.msra.mxu0 %v111
  %146 = vmatprep.subr.bf16.mxu0 0
  %147 = vmatpush1.bf16.msra.mxu0 %v110
  %148 = vmatprep.subr.bf16.mxu0 0
  %149 = vmatpush1.bf16.msra.mxu0 %v109
  %150 = vmatprep.subr.bf16.mxu0 0
  %151 = vmatpush2.bf16.msra.mxu0 0
  %152 = vmatprep.subr.bf16.mxu0 0
  %153 = vmatpush2.bf16.msra.mxu0 0
  %154 = vmatprep.subr.bf16.mxu0 0
  %155 = vmatpush2.bf16.msra.mxu0 0
  %156 = vmatprep.subr.bf16.mxu0 0
  %157 = vmatpush2.bf16.msra.mxu0 0
  %158 = vmatprep.subr.bf16.mxu0 0
  %159 = vmatpush2.bf16.msra.mxu0 0
  %160 = vmatprep.subr.bf16.mxu0 0
  %161 = vmatpush2.bf16.msra.mxu0 0
  %162 = vmatprep.subr.bf16.mxu0 0
  %163 = vmatpush2.bf16.msra.mxu0 0
  %164 = vmatprep.subr.bf16.mxu0 0
  %165 = vmatpush2.bf16.msra.mxu0 %v117
  %166 = vmatprep.mubr.bf16.mxu0 %v129
  %167 = vmatmul.mubr.bf16.gmra.mxu0 %v67
  %v168 = vpop.f32.mrf.mxu0
  %v169 = vadd.f32 0.0, %v168
  %v170 = vpop.f32.mrf.mxu0
  %v171 = vpop.f32.mrf.mxu0
  %v172 = vadd.f32 0.0, %v171
  %v173 = vpop.f32.mrf.mxu0
  %174 = vmatprep.mubr.bf16.mxu0 %v132
  %175 = vmatmul.mubr.bf16.gmra.mxu0 %v69
  %v176 = vpop.f32.mrf.mxu0
  %v177 = vadd.f32 0.0, %v176
  %v178 = vpop.f32.mrf.mxu0
  %v179 = vpop.f32.mrf.mxu0
  %v180 = vadd.f32 0.0, %v179
  %v181 = vpop.f32.mrf.mxu0
  %182 = vdwg.mxu0
  %v183 = vadd.f32 %v29, %v169
  %v184 = vadd.f32 %v30, %v172
  %v185 = vadd.f32 %v31, %v177
  %v186 = vadd.f32 %v32, %v180
  %187 = vst [vmem:[#allocation2] sm:$0xff] %v183
  %188 = vst [vmem:[#allocation2 + $0x8] sm:$0xff] %v184
  %189 = vst [vmem:[#allocation2 + $0x10] sm:$0xff] %v185
  %190 = vst [vmem:[#allocation2 + $0x18] sm:$0xff] %v186
  // Predicated region
  $region26: #{resnet_forward.21} parent=0 // pred_check
    %p191 = pneg %p21
  $region27: #{resnet_forward.21} parent=0 // pred_check_branch
    %193 = sbr.rel (%p191) target = $region29
  $region28: #{resnet_forward.21} parent=0 // pred_region
    %v194 = vld [vmem:[#allocation2] sm:$0xff]
    %v195 = vld [vmem:[#allocation2 + $0x8] sm:$0xff]
    %v196 = vld [vmem:[#allocation2 + $0x10] sm:$0xff]
    %v197 = vld [vmem:[#allocation2 + $0x18] sm:$0xff]
    %v198 = vld [vmem:[%s2] sm:$0x1]
    %v200 = vlaneseq
    %v201 = vshrl.u32 %v200, 7
    %v202 = vsub.s32 0, %v201
    %v203 = vrot.slane %v198, %v202
    %v205 = vmul.f32 %v194, %v203
    %v206 = vmul.f32 %v195, %v203
    %v207 = vmul.f32 %v196, %v203
    %v208 = vmul.f32 %v197, %v203
    %v209 = vld [vmem:[%s3] sm:$0x1]
    %v211 = vlaneseq
    %v212 = vshrl.u32 %v211, 7
    %v213 = vsub.s32 0, %v212
    %v214 = vrot.slane %v209, %v213
    %v216 = vadd.f32 %v205, %v214
    %v217 = vadd.f32 %v206, %v214
    %v218 = vadd.f32 %v207, %v214
    %v219 = vadd.f32 %v208, %v214
    %v220 = vld [vmem:[%s4] sm:$0xf]
    %v221 = vld [vmem:[%s4 + $0x4] sm:$0xf]
    %v222 = vld [vmem:[%s4 + $0x8] sm:$0xf]
    %v223 = vld [vmem:[%s4 + $0xc] sm:$0xf]
    %v224 = vunpack.c.l.bf16 %v220
    %v225 = vunpack.c.l.bf16 %v221
    %v226 = vunpack.c.l.bf16 %v222
    %v227 = vunpack.c.l.bf16 %v223
    %v228 = vadd.f32 %v216, %v224
    %v229 = vadd.f32 %v217, %v225
    %v230 = vadd.f32 %v218, %v226
    %v231 = vadd.f32 %v219, %v227
    %v232 = vmax.f32 %v228, 0.0
    %v233 = vmax.f32 %v229, 0.0
    %v234 = vmax.f32 %v230, 0.0
    %v235 = vmax.f32 %v231, 0.0
    %v236 = vpack.c.bf16 %v233, %v232
    %v237 = vpack.c.bf16 %v235, %v234
    %v240 = vunpack.c.l.b16 %v236
    %v241 = vunpack.c.h.b16 %v236
    %v242 = vunpack.c.l.b16 %v237
    %v243 = vunpack.c.h.b16 %v237
    %v244 = vpack.c.b16 %v240, %v240
    %v245 = vpack.c.b16 %v241, %v241
    %v246 = vpack.c.b16 %v242, %v242
    %v247 = vpack.c.b16 %v243, %v243
    %252 = vst [vmem:[%s5] sm:$0xf] %v244
    %253 = vst [vmem:[%s5 + $0x4] sm:$0xf] %v245
    %254 = vst [vmem:[%s5 + $0x8] sm:$0xf] %v246
    %255 = vst [vmem:[%s5 + $0xc] sm:$0xf] %v247
  $region29: #{resnet_forward.21} parent=0 // pred_fallthru
    _
  // Predicated region
  $region30: #{resnet_forward.21} parent=0 // pred_check
    _
  $region31: #{resnet_forward.21} parent=0 // pred_check_branch
    %257 = sbr.rel (0) target = $region33
  $region32: #{resnet_forward.21} parent=0 // pred_region
    _
  $region33: #{resnet_forward.21} parent=0 // pred_fallthru
    _
  // Predicated region
  $region34: #{resnet_forward.21} parent=0 // pred_check
    _
  $region35: #{resnet_forward.21} parent=0 // pred_check_branch
    %259 = sbr.rel (0) target = $region37
  $region36: #{resnet_forward.21} parent=0 // pred_region
    _
  $region37: #{resnet_forward.21} parent=0 // pred_fallthru
    _

// kernel: resnet_forward.22
$region0: #{resnet_forward.22}
  #allocation0 [shape = 'u32[]', space=smem, size = 0x4, offset = 0x4, fixed_abs, tag = 'smem constant byte address 0x4 - core index']
  #allocation1 [shape = 'u32[144,128]{1,0:T(1,128)}', space=vmem, size = 0x12000, scoped, tag = 'internal scratch']
  #allocation2 [shape = 'f32[16,128]{1,0:T(8,128)}', space=vmem, size = 0x2000, scoped, tag = 'scratch operand']
  %s0 = inlined_call_operand.vmem [shape: bf16[16,144], index: 0, kind: input, shape index: {}]
  %s1 = inlined_call_operand.vmem [shape: bf16[144,128], index: 1, kind: input, shape index: {}]
  %s2 = inlined_call_operand.vmem [shape: f32[1,128], index: 2, kind: input, shape index: {}]
  %s3 = inlined_call_operand.vmem [shape: f32[1,128], index: 3, kind: input, shape index: {}]
  %s4 = inlined_call_operand.vmem [shape: bf16[16,128], index: 4, kind: output, shape index: {}]
  %s5 = sld [smem:[#allocation0]]
  $region34: #{resnet_forward.22} parent=0
    _
  %s7 = ssub.s32 1, %s5
  %s8 = scalar_select 0, %s7, %s5
  // Predicated region
  $region2: #{resnet_forward.22} parent=0 // pred_check
    _
  $region3: #{resnet_forward.22} parent=0 // pred_check_branch
    %10 = sbr.rel (0) target = $region5
  $region4: #{resnet_forward.22} parent=0 // pred_region
    _
  $region5: #{resnet_forward.22} parent=0 // pred_fallthru
    _
  // Predicated region
  $region6: #{resnet_forward.22} parent=0 // pred_check
    _
  $region7: #{resnet_forward.22} parent=0 // pred_check_branch
    %12 = sbr.rel (0) target = $region9
  $region8: #{resnet_forward.22} parent=0 // pred_region
    _
  $region9: #{resnet_forward.22} parent=0 // pred_fallthru
    _
  // Predicated region
  $region10: #{resnet_forward.22} parent=0 // pred_check
    _
  $region11: #{resnet_forward.22} parent=0 // pred_check_branch
    %14 = sbr.rel (0) target = $region13
  $region12: #{resnet_forward.22} parent=0 // pred_region
    _
  $region13: #{resnet_forward.22} parent=0 // pred_fallthru
    _
  // Predicated region
  $region14: #{resnet_forward.22} parent=0 // pred_check
    _
  $region15: #{resnet_forward.22} parent=0 // pred_check_branch
    %16 = sbr.rel (0) target = $region17
  $region16: #{resnet_forward.22} parent=0 // pred_region
    _
  $region17: #{resnet_forward.22} parent=0 // pred_fallthru
    _
  %p18 = scmp.eq.s32.totalorder 0, 0
  // Predicated region
  $region18: #{resnet_forward.22} parent=0 // pred_check
    %p19 = pneg %p18
  $region19: #{resnet_forward.22} parent=0 // pred_check_branch
    %21 = sbr.rel (%p19) target = $region21
  $region20: #{resnet_forward.22} parent=0 // pred_region
    %22 = vst [vmem:[#allocation2] sm:$0xff] 0.0
    %23 = vst [vmem:[#allocation2 + $0x8] sm:$0xff] 0.0
  $region21: #{resnet_forward.22} parent=0 // pred_fallthru
    _
  %v24 = vld [vmem:[#allocation2] sm:$0xff]
  %v25 = vld [vmem:[#allocation2 + $0x8] sm:$0xff]
  %v26 = vld [vmem:[%s0] sm:$0xff]
  %v27 = vld [vmem:[%s0 + $0x8] sm:$0xff]
  %v28 = vld [vmem:[%s1] sm:$0xf]
  %v29 = vld [vmem:[%s1 + $0x4] sm:$0xf]
  %v30 = vld [vmem:[%s1 + $0x8] sm:$0xf]
  %v31 = vld [vmem:[%s1 + $0xc] sm:$0xf]
  %v32 = vld [vmem:[%s1 + $0x10] sm:$0xf]
  %v33 = vld [vmem:[%s1 + $0x14] sm:$0xf]
  %v34 = vld [vmem:[%s1 + $0x18] sm:$0xf]
  %v35 = vld [vmem:[%s1 + $0x1c] sm:$0xf]
  %v36 = vld [vmem:[%s1 + $0x20] sm:$0xf]
  %v37 = vld [vmem:[%s1 + $0x24] sm:$0xf]
  %v38 = vld [vmem:[%s1 + $0x28] sm:$0xf]
  %v39 = vld [vmem:[%s1 + $0x2c] sm:$0xf]
  %v40 = vld [vmem:[%s1 + $0x30] sm:$0xf]
  %v41 = vld [vmem:[%s1 + $0x34] sm:$0xf]
  %v42 = vld [vmem:[%s1 + $0x38] sm:$0xf]
  %v43 = vld [vmem:[%s1 + $0x3c] sm:$0xf]
  %v44 = vld [vmem:[%s1 + $0x40] sm:$0xf]
  %v45 = vld [vmem:[%s1 + $0x44] sm:$0xf]
  %v48 = vunpack.c.l.b16 %v26
  %v49 = vunpack.c.h.b16 %v26
  %v50 = vunpack.c.l.b16 %v27
  %v51 = vunpack.c.h.b16 %v27
  %v52 = vpack.c.b16 %v50, %v48
  %v53 = vpack.c.b16 %v51, %v49
  %v73 = vunpack.c.l.b16 %v28
  %v74 = vunpack.c.l.b16 %v29
  %v75 = vunpack.c.l.b16 %v30
  %v76 = vunpack.c.l.b16 %v31
  %v77 = vunpack.c.l.b16 %v32
  %v78 = vunpack.c.l.b16 %v33
  %v79 = vunpack.c.l.b16 %v34
  %v80 = vunpack.c.l.b16 %v35
  %v81 = vunpack.c.l.b16 %v36
  %v82 = vunpack.c.l.b16 %v37
  %v83 = vunpack.c.l.b16 %v38
  %v84 = vunpack.c.l.b16 %v39
  %v85 = vunpack.c.l.b16 %v40
  %v86 = vunpack.c.l.b16 %v41
  %v87 = vunpack.c.l.b16 %v42
  %v88 = vunpack.c.l.b16 %v43
  %v89 = vunpack.c.l.b16 %v44
  %v90 = vunpack.c.l.b16 %v45
  %v91 = vpack.c.b16 %v74, %v73
  %v92 = vpack.c.b16 %v76, %v75
  %v93 = vpack.c.b16 %v78, %v77
  %v94 = vpack.c.b16 %v80, %v79
  %v95 = vpack.c.b16 %v82, %v81
  %v96 = vpack.c.b16 %v84, %v83
  %v97 = vpack.c.b16 %v86, %v85
  %v98 = vpack.c.b16 %v88, %v87
  %v99 = vpack.c.b16 %v90, %v89
  %vm109 = vcmask 130048
  %v111 = vsel %vm109, %v53, 0
  %113 = vmatprep.subr.bf16.mxu0 0
  %114 = vmatpush1.bf16.msra.mxu0 %v98
  %115 = vmatprep.subr.bf16.mxu0 0
  %116 = vmatpush1.bf16.msra.mxu0 %v97
  %117 = vmatprep.subr.bf16.mxu0 0
  %118 = vmatpush1.bf16.msra.mxu0 %v96
  %119 = vmatprep.subr.bf16.mxu0 0
  %120 = vmatpush1.bf16.msra.mxu0 %v95
  %121 = vmatprep.subr.bf16.mxu0 0
  %122 = vmatpush1.bf16.msra.mxu0 %v94
  %123 = vmatprep.subr.bf16.mxu0 0
  %124 = vmatpush1.bf16.msra.mxu0 %v93
  %125 = vmatprep.subr.bf16.mxu0 0
  %126 = vmatpush1.bf16.msra.mxu0 %v92
  %127 = vmatprep.subr.bf16.mxu0 0
  %128 = vmatpush1.bf16.msra.mxu0 %v91
  %129 = vmatprep.subr.bf16.mxu0 0
  %130 = vmatpush2.bf16.msra.mxu0 0
  %131 = vmatprep.subr.bf16.mxu0 0
  %132 = vmatpush2.bf16.msra.mxu0 0
  %133 = vmatprep.subr.bf16.mxu0 0
  %134 = vmatpush2.bf16.msra.mxu0 0
  %135 = vmatprep.subr.bf16.mxu0 0
  %136 = vmatpush2.bf16.msra.mxu0 0
  %137 = vmatprep.subr.bf16.mxu0 0
  %138 = vmatpush2.bf16.msra.mxu0 0
  %139 = vmatprep.subr.bf16.mxu0 0
  %140 = vmatpush2.bf16.msra.mxu0 0
  %141 = vmatprep.subr.bf16.mxu0 0
  %142 = vmatpush2.bf16.msra.mxu0 0
  %143 = vmatprep.subr.bf16.mxu0 0
  %144 = vmatpush2.bf16.msra.mxu0 %v99
  %145 = vmatprep.mubr.bf16.mxu0 %v111
  %146 = vmatmul.mubr.bf16.gmra.mxu0 %v52
  %v147 = vpop.f32.mrf.mxu0
  %v148 = vadd.f32 0.0, %v147
  %v149 = vpop.f32.mrf.mxu0
  %v150 = vpop.f32.mrf.mxu0
  %v151 = vadd.f32 0.0, %v150
  %v152 = vpop.f32.mrf.mxu0
  %153 = vdwg.mxu0
  %v154 = vadd.f32 %v24, %v148
  %v155 = vadd.f32 %v25, %v151
  %156 = vst [vmem:[#allocation2] sm:$0xff] %v154
  %157 = vst [vmem:[#allocation2 + $0x8] sm:$0xff] %v155
  // Predicated region
  $region22: #{resnet_forward.22} parent=0 // pred_check
    %p158 = pneg %p18
  $region23: #{resnet_forward.22} parent=0 // pred_check_branch
    %160 = sbr.rel (%p158) target = $region25
  $region24: #{resnet_forward.22} parent=0 // pred_region
    %v161 = vld [vmem:[#allocation2] sm:$0xff]
    %v162 = vld [vmem:[#allocation2 + $0x8] sm:$0xff]
    %v163 = vld [vmem:[%s2] sm:$0x1]
    %v165 = vlaneseq
    %v166 = vshrl.u32 %v165, 7
    %v167 = vsub.s32 0, %v166
    %v168 = vrot.slane %v163, %v167
    %v170 = vmul.f32 %v161, %v168
    %v171 = vmul.f32 %v162, %v168
    %v172 = vld [vmem:[%s3] sm:$0x1]
    %v174 = vlaneseq
    %v175 = vshrl.u32 %v174, 7
    %v176 = vsub.s32 0, %v175
    %v177 = vrot.slane %v172, %v176
    %v179 = vadd.f32 %v170, %v177
    %v180 = vadd.f32 %v171, %v177
    %v181 = vmax.f32 %v179, 0.0
    %v182 = vmax.f32 %v180, 0.0
    %v183 = vpack.c.bf16 %v182, %v181
    %v185 = vunpack.c.l.b16 %v183
    %v186 = vunpack.c.h.b16 %v183
    %v187 = vpack.c.b16 %v185, %v185
    %v188 = vpack.c.b16 %v186, %v186
    %191 = vst [vmem:[%s4] sm:$0xf] %v187
    %192 = vst [vmem:[%s4 + $0x4] sm:$0xf] %v188
  $region25: #{resnet_forward.22} parent=0 // pred_fallthru
    _
  // Predicated region
  $region26: #{resnet_forward.22} parent=0 // pred_check
    _
  $region27: #{resnet_forward.22} parent=0 // pred_check_branch
    %194 = sbr.rel (0) target = $region29
  $region28: #{resnet_forward.22} parent=0 // pred_region
    _
  $region29: #{resnet_forward.22} parent=0 // pred_fallthru
    _
  // Predicated region
  $region30: #{resnet_forward.22} parent=0 // pred_check
    _
  $region31: #{resnet_forward.22} parent=0 // pred_check_branch
    %196 = sbr.rel (0) target = $region33
  $region32: #{resnet_forward.22} parent=0 // pred_region
    _
  $region33: #{resnet_forward.22} parent=0 // pred_fallthru
    _

// kernel: resnet_forward.25
$region0: #{resnet_forward.25}
  #allocation0 [shape = 'u32[]', space=smem, size = 0x4, offset = 0x4, fixed_abs, tag = 'smem constant byte address 0x4 - core index']
  #allocation1 [shape = 'u32[144,128]{1,0:T(1,128)}', space=vmem, size = 0x12000, scoped, tag = 'internal scratch']
  %s0 = inlined_call_operand.vmem [shape: bf16[2,4,32], index: 0, kind: input, shape index: {}]
  %s1 = inlined_call_operand.vmem [shape: bf16[32,128], index: 1, kind: input, shape index: {}]
  %s2 = inlined_call_operand.vmem [shape: f32[1,128], index: 2, kind: input, shape index: {}]
  %s3 = inlined_call_operand.hbm [shape: f32[2,128], index: 3, kind: output, shape index: {}]
  %s4 = sld [smem:[#allocation0]]
  $region22: #{resnet_forward.25} parent=0
    _
  %s6 = ssub.s32 1, %s4
  %s7 = scalar_select 0, %s6, %s4
  $region1: #{resnet_forward.25} parent=0
    #allocation2 [shape = 'u8[1024]{0}', space=vmem, size = 0x400, scoped, tag = 'output window, operand 0, single buffered']
    #allocation3 [shape = 's32[1]{0}', space=sflag, size = 0x4, scoped, tag = 'scoped memory for resnet_forward.25']
    %8 = vsyncpa [#allocation3], 0
    // Predicated region
    $region2: #{resnet_forward.25} parent=1 // pred_check
      _
    $region3: #{resnet_forward.25} parent=1 // pred_check_branch
      %10 = sbr.rel (0) target = $region5
    $region4: #{resnet_forward.25} parent=1 // pred_region
      _
    $region5: #{resnet_forward.25} parent=1 // pred_fallthru
      _
    // Predicated region
    $region6: #{resnet_forward.25} parent=1 // pred_check
      _
    $region7: #{resnet_forward.25} parent=1 // pred_check_branch
      %12 = sbr.rel (0) target = $region9
    $region8: #{resnet_forward.25} parent=1 // pred_region
      _
    $region9: #{resnet_forward.25} parent=1 // pred_fallthru
      _
    // Predicated region
    $region10: #{resnet_forward.25} parent=1 // pred_check
      _
    $region11: #{resnet_forward.25} parent=1 // pred_check_branch
      %14 = sbr.rel (0) target = $region13
    $region12: #{resnet_forward.25} parent=1 // pred_region
      _
    $region13: #{resnet_forward.25} parent=1 // pred_fallthru
      _
    %v16 = vld [vmem:[%s0] sm:$0x3]
    %v17 = vld [vmem:[%s0 + $0x2] sm:$0x3]
    %v18 = vunpack.c.l.bf16 %v16
    %v19 = vunpack.c.l.bf16 %v17
    %vm20 = vcmask 257024
    %v21 = vsel %vm20, %v18, 0.0
    %v22 = vrot.slane %v21, 4
    %v23 = vadd.f32 %v21, %v22
    %v24 = vrot.slane %v23, 2
    %v25 = vadd.f32 %v23, %v24
    %v26 = vrot.slane %v25, 1
    %v27 = vadd.f32 %v25, %v26
    %v28 = vsel %vm20, %v19, 0.0
    %v29 = vrot.slane %v28, 4
    %v30 = vadd.f32 %v28, %v29
    %v31 = vrot.slane %v30, 2
    %v32 = vadd.f32 %v30, %v31
    %v33 = vrot.slane %v32, 1
    %v34 = vadd.f32 %v32, %v33
    %v35 = vrcp.pop 4.0
    %v36 = vmul.f32 %v27, %v35
    %v37 = vmul.f32 %v34, %v35
    %v38 = vpack.c.bf16 %v36, %v36
    %v39 = vpack.c.bf16 %v37, %v37
    %v40 = vld [vmem:[%s1] sm:$0xf]
    %v41 = vld [vmem:[%s1 + $0x4] sm:$0xf]
    %v42 = vld [vmem:[%s1 + $0x8] sm:$0xf]
    %v43 = vld [vmem:[%s1 + $0xc] sm:$0xf]
    %v44 = vld [vmem:[%s2] sm:$0x1]
    %v46 = vlaneseq
    %v47 = vshrl.u32 %v46, 7
    %v48 = vsub.s32 0, %v47
    %v49 = vrot.slane %v44, %v48
    %v53 = vunpack.c.l.b16 %v38
    %v54 = vunpack.c.l.b16 %v39
    %vm55 = vcmask 1041409
    %v56 = vsel %vm55, %v54, %v53
    %v57 = vpack.c.b16 %v56, %v56
    %v62 = vunpack.c.l.b16 %v40
    %v63 = vunpack.c.l.b16 %v41
    %v64 = vunpack.c.l.b16 %v42
    %v65 = vunpack.c.l.b16 %v43
    %v66 = vpack.c.b16 %v63, %v62
    %v67 = vpack.c.b16 %v65, %v64
    %vm70 = vcmask 261120
    %v72 = vsel %vm70, %v57, 0
    %74 = vmatprep.subr.bf16.mxu0 0
    %75 = vmatpush1.bf16.msra.mxu0 0
    %76 = vmatprep.subr.bf16.mxu0 0
    %77 = vmatpush1.bf16.msra.mxu0 0
    %78 = vmatprep.subr.bf16.mxu0 0
    %79 = vmatpush1.bf16.msra.mxu0 0
    %80 = vmatprep.subr.bf16.mxu0 0
    %81 = vmatpush1.bf16.msra.mxu0 0
    %82 = vmatprep.subr.bf16.mxu0 0
    %83 = vmatpush1.bf16.msra.mxu0 0
    %84 = vmatprep.subr.bf16.mxu0 0
    %85 = vmatpush1.bf16.msra.mxu0 0
    %86 = vmatprep.subr.bf16.mxu0 0
    %87 = vmatpush1.bf16.msra.mxu0 %v67
    %88 = vmatprep.subr.bf16.mxu0 0
    %89 = vmatpush1.bf16.msra.mxu0 %v66
    %90 = vmatprep.subr.bf16.mxu0 0
    %91 = vmatpush2.bf16.msra.mxu0 0
    %92 = vmatprep.subr.bf16.mxu0 0
    %93 = vmatpush2.bf16.msra.mxu0 0
    %94 = vmatprep.subr.bf16.mxu0 0
    %95 = vmatpush2.bf16.msra.mxu0 0
    %96 = vmatprep.subr.bf16.mxu0 0
    %97 = vmatpush2.bf16.msra.mxu0 0
    %98 = vmatprep.subr.bf16.mxu0 0
    %99 = vmatpush2.bf16.msra.mxu0 0
    %100 = vmatprep.subr.bf16.mxu0 0
    %101 = vmatpush2.bf16.msra.mxu0 0
    %102 = vmatprep.subr.bf16.mxu0 0
    %103 = vmatpush2.bf16.msra.mxu0 0
    %104 = vmatprep.subr.bf16.mxu0 0
    %105 = vmatpush2.bf16.msra.mxu0 0
    %106 = vmatprep.mubr.bf16.mxu0 0
    %107 = vmatmul.mubr.bf16.gmra.mxu0 %v72
    %v108 = vpop.f32.mrf.mxu0
    %v109 = vadd.f32 %v49, %v108
    %v110 = vpop.f32.mrf.mxu0
    %v111 = vpop.f32.mrf.mxu0
    %v112 = vpop.f32.mrf.mxu0
    %113 = vdwg.mxu0
    %114 = vst [vmem:[#allocation2] sm:$0x3] %v109
    // Predicated region
    $region14: #{resnet_forward.25} parent=1 // pred_check
      _
    $region15: #{resnet_forward.25} parent=1 // pred_check_branch
      %116 = sbr.rel (0) target = $region17
    $region16: #{resnet_forward.25} parent=1 // pred_region
      %s118 = ssub.s32 32, 32
      %119 = vsyncadd [#allocation3], %s118
      %s121 = sshll.u32 [#allocation2], 4
      %s122 = int_to_ptr.vmem [resolvable:$true] %s121
      %124 = dma.vmem_to_hbm [thread:$0]  %s122, 32, %s3, [#allocation3]
    $region17: #{resnet_forward.25} parent=1 // pred_fallthru
      _
    // Predicated region
    $region18: #{resnet_forward.25} parent=1 // pred_check
      _
    $region19: #{resnet_forward.25} parent=1 // pred_check_branch
      %126 = sbr.rel (0) target = $region21
    $region20: #{resnet_forward.25} parent=1 // pred_region
      %127 = dma.done [#allocation3], 32
    $region21: #{resnet_forward.25} parent=1 // pred_fallthru
      _
    %128 = vsyncpa [#allocation3], 1

// kernel: resnet_forward.24
$region0: #{resnet_forward.24}
  #allocation0 [shape = 'u32[]', space=smem, size = 0x4, offset = 0x4, fixed_abs, tag = 'smem constant byte address 0x4 - core index']
  #allocation1 [shape = 'u32[144,128]{1,0:T(1,128)}', space=vmem, size = 0x12000, scoped, tag = 'internal scratch']
  #allocation2 [shape = 'f32[16,128]{1,0:T(8,128)}', space=vmem, size = 0x2000, scoped, tag = 'scratch operand']
  %s0 = inlined_call_operand.vmem [shape: bf16[16,288], index: 0, kind: input, shape index: {}]
  %s1 = inlined_call_operand.vmem [shape: bf16[288,128], index: 1, kind: input, shape index: {}]
  %s2 = inlined_call_operand.vmem [shape: f32[1,128], index: 2, kind: input, shape index: {}]
  %s3 = inlined_call_operand.vmem [shape: f32[1,128], index: 3, kind: input, shape index: {}]
  %s4 = inlined_call_operand.vmem [shape: bf16[16,128], index: 4, kind: input, shape index: {}]
  %s5 = inlined_call_operand.vmem [shape: bf16[16,128], index: 5, kind: output, shape index: {}]
  %s6 = sld [smem:[#allocation0]]
  $region38: #{resnet_forward.24} parent=0
    _
  %s8 = ssub.s32 1, %s6
  %s9 = scalar_select 0, %s8, %s6
  // Predicated region
  $region2: #{resnet_forward.24} parent=0 // pred_check
    _
  $region3: #{resnet_forward.24} parent=0 // pred_check_branch
    %11 = sbr.rel (0) target = $region5
  $region4: #{resnet_forward.24} parent=0 // pred_region
    _
  $region5: #{resnet_forward.24} parent=0 // pred_fallthru
    _
  // Predicated region
  $region6: #{resnet_forward.24} parent=0 // pred_check
    _
  $region7: #{resnet_forward.24} parent=0 // pred_check_branch
    %13 = sbr.rel (0) target = $region9
  $region8: #{resnet_forward.24} parent=0 // pred_region
    _
  $region9: #{resnet_forward.24} parent=0 // pred_fallthru
    _
  // Predicated region
  $region10: #{resnet_forward.24} parent=0 // pred_check
    _
  $region11: #{resnet_forward.24} parent=0 // pred_check_branch
    %15 = sbr.rel (0) target = $region13
  $region12: #{resnet_forward.24} parent=0 // pred_region
    _
  $region13: #{resnet_forward.24} parent=0 // pred_fallthru
    _
  // Predicated region
  $region14: #{resnet_forward.24} parent=0 // pred_check
    _
  $region15: #{resnet_forward.24} parent=0 // pred_check_branch
    %17 = sbr.rel (0) target = $region17
  $region16: #{resnet_forward.24} parent=0 // pred_region
    _
  $region17: #{resnet_forward.24} parent=0 // pred_fallthru
    _
  // Predicated region
  $region18: #{resnet_forward.24} parent=0 // pred_check
    _
  $region19: #{resnet_forward.24} parent=0 // pred_check_branch
    %19 = sbr.rel (0) target = $region21
  $region20: #{resnet_forward.24} parent=0 // pred_region
    _
  $region21: #{resnet_forward.24} parent=0 // pred_fallthru
    _
  %p21 = scmp.eq.s32.totalorder 0, 0
  // Predicated region
  $region22: #{resnet_forward.24} parent=0 // pred_check
    %p22 = pneg %p21
  $region23: #{resnet_forward.24} parent=0 // pred_check_branch
    %24 = sbr.rel (%p22) target = $region25
  $region24: #{resnet_forward.24} parent=0 // pred_region
    %25 = vst [vmem:[#allocation2] sm:$0xff] 0.0
    %26 = vst [vmem:[#allocation2 + $0x8] sm:$0xff] 0.0
  $region25: #{resnet_forward.24} parent=0 // pred_fallthru
    _
  %v27 = vld [vmem:[#allocation2] sm:$0xff]
  %v28 = vld [vmem:[#allocation2 + $0x8] sm:$0xff]
  %v29 = vld [vmem:[%s0] sm:$0xff]
  %v30 = vld [vmem:[%s0 + $0x8] sm:$0xf]
  %v31 = vld [vmem:[%s0 + $0xc] sm:$0xff]
  %v32 = vld [vmem:[%s0 + $0x14] sm:$0xf]
  %v33 = vld [vmem:[%s1] sm:$0xf]
  %v34 = vld [vmem:[%s1 + $0x4] sm:$0xf]
  %v35 = vld [vmem:[%s1 + $0x8] sm:$0xf]
  %v36 = vld [vmem:[%s1 + $0xc] sm:$0xf]
  %v37 = vld [vmem:[%s1 + $0x10] sm:$0xf]
  %v38 = vld [vmem:[%s1 + $0x14] sm:$0xf]
  %v39 = vld [vmem:[%s1 + $0x18] sm:$0xf]
  %v40 = vld [vmem:[%s1 + $0x1c] sm:$0xf]
  %v41 = vld [vmem:[%s1 + $0x20] sm:$0xf]
  %v42 = vld [vmem:[%s1 + $0x24] sm:$0xf]
  %v43 = vld [vmem:[%s1 + $0x28] sm:$0xf]
  %v44 = vld [vmem:[%s1 + $0x2c] sm:$0xf]
  %v45 = vld [vmem:[%s1 + $0x30] sm:$0xf]
  %v46 = vld [vmem:[%s1 + $0x34] sm:$0xf]
  %v47 = vld [vmem:[%s1 + $0x38] sm:$0xf]
  %v48 = vld [vmem:[%s1 + $0x3c] sm:$0xf]
  %v49 = vld [vmem:[%s1 + $0x40] sm:$0xf]
  %v50 = vld [vmem:[%s1 + $0x44] sm:$0xf]
  %v51 = vld [vmem:[%s1 + $0x48] sm:$0xf]
  %v52 = vld [vmem:[%s1 + $0x4c] sm:$0xf]
  %v53 = vld [vmem:[%s1 + $0x50] sm:$0xf]
  %v54 = vld [vmem:[%s1 + $0x54] sm:$0xf]
  %v55 = vld [vmem:[%s1 + $0x58] sm:$0xf]
  %v56 = vld [vmem:[%s1 + $0x5c] sm:$0xf]
  %v57 = vld [vmem:[%s1 + $0x60] sm:$0xf]
  %v58 = vld [vmem:[%s1 + $0x64] sm:$0xf]
  %v59 = vld [vmem:[%s1 + $0x68] sm:$0xf]
  %v60 = vld [vmem:[%s1 + $0x6c] sm:$0xf]
  %v61 = vld [vmem:[%s1 + $0x70] sm:$0xf]
  %v62 = vld [vmem:[%s1 + $0x74] sm:$0xf]
  %v63 = vld [vmem:[%s1 + $0x78] sm:$0xf]
  %v64 = vld [vmem:[%s1 + $0x7c] sm:$0xf]
  %v65 = vld [vmem:[%s1 + $0x80] sm:$0xf]
  %v66 = vld [vmem:[%s1 + $0x84] sm:$0xf]
  %v67 = vld [vmem:[%s1 + $0x88] sm:$0xf]
  %v68 = vld [vmem:[%s1 + $0x8c] sm:$0xf]
  %v73 = vunpack.c.l.b16 %v29
  %v74 = vunpack.c.h.b16 %v29
  %v75 = vunpack.c.l.b16 %v30
  %v76 = vunpack.c.l.b16 %v31
  %v77 = vunpack.c.h.b16 %v31
  %v78 = vunpack.c.l.b16 %v32
  %v79 = vpack.c.b16 %v76, %v73
  %v80 = vpack.c.b16 %v77, %v74
  %v81 = vpack.c.b16 %v78, %v75
  %v120 = vunpack.c.l.b16 %v33
  %v121 = vunpack.c.l.b16 %v34
  %v122 = vunpack.c.l.b16 %v35
  %v123 = vunpack.c.l.b16 %v36
  %v124 = vunpack.c.l.b16 %v37
  %v125 = vunpack.c.l.b16 %v38
  %v126 = vunpack.c.l.b16 %v39
  %v127 = vunpack.c.l.b16 %v40
  %v128 = vunpack.c.l.b16 %v41
  %v129 = vunpack.c.l.b16 %v42
  %v130 = vunpack.c.l.b16 %v43
  %v131 = vunpack.c.l.b16 %v44
  %v132 = vunpack.c.l.b16 %v45
  %v133 = vunpack.c.l.b16 %v46
  %v134 = vunpack.c.l.b16 %v47
  %v135 = vunpack.c.l.b16 %v48
  %v136 = vunpack.c.l.b16 %v49
  %v137 = vunpack.c.l.b16 %v50
  %v138 = vunpack.c.l.b16 %v51
  %v139 = vunpack.c.l.b16 %v52
  %v140 = vunpack.c.l.b16 %v53
  %v141 = vunpack.c.l.b16 %v54
  %v142 = vunpack.c.l.b16 %v55
  %v143 = vunpack.c.l.b16 %v56
  %v144 = vunpack.c.l.b16 %v57
  %v145 = vunpack.c.l.b16 %v58
  %v146 = vunpack.c.l.b16 %v59
  %v147 = vunpack.c.l.b16 %v60
  %v148 = vunpack.c.l.b16 %v61
  %v149 = vunpack.c.l.b16 %v62
  %v150 = vunpack.c.l.b16 %v63
  %v151 = vunpack.c.l.b16 %v64
  %v152 = vunpack.c.l.b16 %v65
  %v153 = vunpack.c.l.b16 %v66
  %v154 = vunpack.c.l.b16 %v67
  %v155 = vunpack.c.l.b16 %v68
  %v156 = vpack.c.b16 %v121, %v120
  %v157 = vpack.c.b16 %v123, %v122
  %v158 = vpack.c.b16 %v125, %v124
  %v159 = vpack.c.b16 %v127, %v126
  %v160 = vpack.c.b16 %v129, %v128
  %v161 = vpack.c.b16 %v131, %v130
  %v162 = vpack.c.b16 %v133, %v132
  %v163 = vpack.c.b16 %v135, %v134
  %v164 = vpack.c.b16 %v137, %v136
  %v165 = vpack.c.b16 %v139, %v138
  %v166 = vpack.c.b16 %v141, %v140
  %v167 = vpack.c.b16 %v143, %v142
  %v168 = vpack.c.b16 %v145, %v144
  %v169 = vpack.c.b16 %v147, %v146
  %v170 = vpack.c.b16 %v149, %v148
  %v171 = vpack.c.b16 %v151, %v150
  %v172 = vpack.c.b16 %v153, %v152
  %v173 = vpack.c.b16 %v155, %v154
  %vm192 = vcmask 261120
  %v194 = vsel %vm192, %v81, 0
  %196 = vmatprep.subr.bf16.mxu0 0
  %197 = vmatpush1.bf16.msra.mxu0 %v163
  %198 = vmatprep.subr.bf16.mxu0 0
  %199 = vmatpush1.bf16.msra.mxu0 %v162
  %200 = vmatprep.subr.bf16.mxu0 0
  %201 = vmatpush1.bf16.msra.mxu0 %v161
  %202 = vmatprep.subr.bf16.mxu0 0
  %203 = vmatpush1.bf16.msra.mxu0 %v160
  %204 = vmatprep.subr.bf16.mxu0 0
  %205 = vmatpush1.bf16.msra.mxu0 %v159
  %206 = vmatprep.subr.bf16.mxu0 0
  %207 = vmatpush1.bf16.msra.mxu0 %v158
  %208 = vmatprep.subr.bf16.mxu0 0
  %209 = vmatpush1.bf16.msra.mxu0 %v157
  %210 = vmatprep.subr.bf16.mxu0 0
  %211 = vmatpush1.bf16.msra.mxu0 %v156
  %212 = vmatprep.subr.bf16.mxu0 0
  %213 = vmatpush2.bf16.msra.mxu0 %v171
  %214 = vmatprep.subr.bf16.mxu0 0
  %215 = vmatpush2.bf16.msra.mxu0 %v170
  %216 = vmatprep.subr.bf16.mxu0 0
  %217 = vmatpush2.bf16.msra.mxu0 %v169
  %218 = vmatprep.subr.bf16.mxu0 0
  %219 = vmatpush2.bf16.msra.mxu0 %v168
  %220 = vmatprep.subr.bf16.mxu0 0
  %221 = vmatpush2.bf16.msra.mxu0 %v167
  %222 = vmatprep.subr.bf16.mxu0 0
  %223 = vmatpush2.bf16.msra.mxu0 %v166
  %224 = vmatprep.subr.bf16.mxu0 0
  %225 = vmatpush2.bf16.msra.mxu0 %v165
  %226 = vmatprep.subr.bf16.mxu0 0
  %227 = vmatpush2.bf16.msra.mxu0 %v164
  %228 = vmatprep.mubr.bf16.mxu0 %v80
  %229 = vmatmul.mubr.bf16.gmra.mxu0 %v79
  %v230 = vpop.f32.mrf.mxu0
  %v231 = vadd.f32 0.0, %v230
  %v232 = vpop.f32.mrf.mxu0
  %v233 = vpop.f32.mrf.mxu0
  %v234 = vadd.f32 0.0, %v233
  %v235 = vpop.f32.mrf.mxu0
  %236 = vdwg.mxu0
  %237 = vmatprep.subr.bf16.mxu0 0
  %238 = vmatpush1.bf16.msra.mxu0 0
  %239 = vmatprep.subr.bf16.mxu0 0
  %240 = vmatpush1.bf16.msra.mxu0 0
  %241 = vmatprep.subr.bf16.mxu0 0
  %242 = vmatpush1.bf16.msra.mxu0 0
  %243 = vmatprep.subr.bf16.mxu0 0
  %244 = vmatpush1.bf16.msra.mxu0 0
  %245 = vmatprep.subr.bf16.mxu0 0
  %246 = vmatpush1.bf16.msra.mxu0 0
  %247 = vmatprep.subr.bf16.mxu0 0
  %248 = vmatpush1.bf16.msra.mxu0 0
  %249 = vmatprep.subr.bf16.mxu0 0
  %250 = vmatpush1.bf16.msra.mxu0 %v173
  %251 = vmatprep.subr.bf16.mxu0 0
  %252 = vmatpush1.bf16.msra.mxu0 %v172
  %253 = vmatprep.subr.bf16.mxu0 0
  %254 = vmatpush2.bf16.msra.mxu0 0
  %255 = vmatprep.subr.bf16.mxu0 0
  %256 = vmatpush2.bf16.msra.mxu0 0
  %257 = vmatprep.subr.bf16.mxu0 0
  %258 = vmatpush2.bf16.msra.mxu0 0
  %259 = vmatprep.subr.bf16.mxu0 0
  %260 = vmatpush2.bf16.msra.mxu0 0
  %261 = vmatprep.subr.bf16.mxu0 0
  %262 = vmatpush2.bf16.msra.mxu0 0
  %263 = vmatprep.subr.bf16.mxu0 0
  %264 = vmatpush2.bf16.msra.mxu0 0
  %265 = vmatprep.subr.bf16.mxu0 0
  %266 = vmatpush2.bf16.msra.mxu0 0
  %267 = vmatprep.subr.bf16.mxu0 0
  %268 = vmatpush2.bf16.msra.mxu0 0
  %269 = vmatprep.mubr.bf16.mxu0 0
  %270 = vmatmul.mubr.bf16.gmra.mxu0 %v194
  %v271 = vpop.f32.mrf.mxu0
  %v272 = vadd.f32 %v231, %v271
  %v273 = vpop.f32.mrf.mxu0
  %v274 = vpop.f32.mrf.mxu0
  %v275 = vadd.f32 %v234, %v274
  %v276 = vpop.f32.mrf.mxu0
  %277 = vdwg.mxu0
  %v278 = vadd.f32 %v27, %v272
  %v279 = vadd.f32 %v28, %v275
  %280 = vst [vmem:[#allocation2] sm:$0xff] %v278
  %281 = vst [vmem:[#allocation2 + $0x8] sm:$0xff] %v279
  // Predicated region
  $region26: #{resnet_forward.24} parent=0 // pred_check
    %p282 = pneg %p21
  $region27: #{resnet_forward.24} parent=0 // pred_check_branch
    %284 = sbr.rel (%p282) target = $region29
  $region28: #{resnet_forward.24} parent=0 // pred_region
    %v285 = vld [vmem:[#allocation2] sm:$0xff]
    %v286 = vld [vmem:[#allocation2 + $0x8] sm:$0xff]
    %v287 = vld [vmem:[%s2] sm:$0x1]
    %v289 = vlaneseq
    %v290 = vshrl.u32 %v289, 7
    %v291 = vsub.s32 0, %v290
    %v292 = vrot.slane %v287, %v291
    %v294 = vmul.f32 %v285, %v292
    %v295 = vmul.f32 %v286, %v292
    %v296 = vld [vmem:[%s3] sm:$0x1]
    %v298 = vlaneseq
    %v299 = vshrl.u32 %v298, 7
    %v300 = vsub.s32 0, %v299
    %v301 = vrot.slane %v296, %v300
    %v303 = vadd.f32 %v294, %v301
    %v304 = vadd.f32 %v295, %v301
    %v305 = vld [vmem:[%s4] sm:$0xf]
    %v306 = vld [vmem:[%s4 + $0x4] sm:$0xf]
    %v307 = vunpack.c.l.bf16 %v305
    %v308 = vunpack.c.l.bf16 %v306
    %v309 = vadd.f32 %v303, %v307
    %v310 = vadd.f32 %v304, %v308
    %v311 = vmax.f32 %v309, 0.0
    %v312 = vmax.f32 %v310, 0.0
    %v313 = vpack.c.bf16 %v312, %v311
    %v315 = vunpack.c.l.b16 %v313
    %v316 = vunpack.c.h.b16 %v313
    %v317 = vpack.c.b16 %v315, %v315
    %v318 = vpack.c.b16 %v316, %v316
    %321 = vst [vmem:[%s5] sm:$0xf] %v317
    %322 = vst [vmem:[%s5 + $0x4] sm:$0xf] %v318
  $region29: #{resnet_forward.24} parent=0 // pred_fallthru
    _
  // Predicated region
  $region30: #{resnet_forward.24} parent=0 // pred_check
    _
  $region31: #{resnet_forward.24} parent=0 // pred_check_branch
    %324 = sbr.rel (0) target = $region33
  $region32: #{resnet_forward.24} parent=0 // pred_region
    _
  $region33: #{resnet_forward.24} parent=0 // pred_fallthru
    _
  // Predicated region
  $region34: #{resnet_forward.24} parent=0 // pred_check
    _
  $region35: #{resnet_forward.24} parent=0 // pred_check_branch
    %326 = sbr.rel (0) target = $region37
  $region36: #{resnet_forward.24} parent=0 // pred_region
    _
  $region37: #{resnet_forward.24} parent=0 // pred_fallthru
    _

</llo_original>
